<compile_context>
chip_gen: v6e
topology: v6e:2x2x1
jax: 0.10.0
libtpu: 0.0.40
codegen_flags: <defaults>
</compile_context>

<pallas_src>
import functools

import jax
import jax.numpy as jnp
from jax.experimental import pallas as pl
from jax.experimental.pallas import tpu as pltpu

EPS = 1e-5


# ----------------------------------------------------------------------------
# Kernels
# ----------------------------------------------------------------------------
def conv3x3_bn_stats_kernel(xb_ref, xt_ref, xbot_ref, scale_ref, shift_ref,
                            w_ref, y_ref, stat_ref, pad_ref, acc_ref,
                            *, fuse_bn_relu):
    """One (batch, row-band) tile.

    [optional fused BN-affine + ReLU of the previous conv] -> zero-halo pad ->
    3x3 conv as 9 shifted MXU matmuls accumulated in f32 ->
    bf16 conv output tile + per-tile BN partial statistics (sum, sum-of-squares).

    xb_ref   : (1, TH, W, Cin) bf16   row band of the input
    xt_ref   : (1, 1,  W, Cin) bf16   row above the band (clamped for band 0)
    xbot_ref : (1, 1,  W, Cin) bf16   row below the band (clamped for last band)
    scale_ref: (1, Cin) f32           folded BN scale (used only if fuse_bn_relu)
    shift_ref: (1, Cin) f32           folded BN shift (used only if fuse_bn_relu)
    w_ref    : (9, Cin, Cout) bf16    one (Cin, Cout) tap per 3x3 position
    y_ref    : (1, TH, W, Cout) bf16  raw conv output (pre-BN)
    stat_ref : (1, 1, 2, Cout) f32    per-tile [sum; sum of squares]
    pad_ref  : VMEM (TH+2, W+2, Cin) bf16 scratch (only the halo is zeroed)
    acc_ref  : VMEM (TH*W, Cout) f32  accumulator
    """
    r = pl.program_id(1)
    last = pl.num_programs(1) - 1
    _, TH, W, Cin = xb_ref.shape
    Cout = y_ref.shape[-1]
    M = TH * W

    def prep(v):
        # Pass 2 fuses BN1 + ReLU of conv1's raw output into the conv2 prologue.
        if fuse_bn_relu:
            t = v.astype(jnp.float32) * scale_ref[...] + shift_ref[...]
            return jnp.maximum(t, 0.0).astype(jnp.bfloat16)
        return v

    band = prep(xb_ref[...].reshape(TH, W, Cin))
    top = prep(xt_ref[...].reshape(1, W, Cin))
    bot = prep(xbot_ref[...].reshape(1, W, Cin))
    zrow = jnp.zeros_like(top)
    top = jnp.where(r == 0, zrow, top)       # first band: zero halo above
    bot = jnp.where(r == last, zrow, bot)    # last band : zero halo below

    # Build the zero-padded (TH+2, W+2, Cin) tile: only the 2 halo columns are
    # explicitly zeroed; every interior element is written exactly once.
    pad_ref[:, 0:1, :] = jnp.zeros((TH + 2, 1, Cin), jnp.bfloat16)
    pad_ref[:, W + 1:W + 2, :] = jnp.zeros((TH + 2, 1, Cin), jnp.bfloat16)
    pad_ref[0:1, 1:W + 1, :] = top
    pad_ref[TH + 1:TH + 2, 1:W + 1, :] = bot
    pad_ref[1:TH + 1, 1:W + 1, :] = band

    # 3x3 conv = 9 shifted (M, Cin) x (Cin, Cout) matmuls, f32 accumulation.
    # No im2col buffer: the MXU operands are read straight from pad_ref.
    for kh in range(3):
        for kw in range(3):
            patch = pad_ref[kh:kh + TH, kw:kw + W, :].reshape(M, Cin)
            contrib = jnp.dot(patch, w_ref[kh * 3 + kw],
                              preferred_element_type=jnp.float32)
            if kh == 0 and kw == 0:
                acc_ref[...] = contrib
            else:
                acc_ref[...] += contrib

    acc = acc_ref[...]                                         # (M, Cout) f32
    y_ref[...] = acc.reshape(1, TH, W, Cout).astype(y_ref.dtype)   # bf16 store

    # BN partial statistics from the f32 accumulator (fused moments).  Note:
    # E[x^2]-E[x]^2 is fine here because post-conv activations are ~zero-mean.
    s = jnp.sum(acc, axis=0, keepdims=True)                    # (1, Cout)
    ss = jnp.sum(acc * acc, axis=0, keepdims=True)             # (1, Cout)
    stat_ref[...] = jnp.concatenate([s, ss], axis=0).reshape(1, 1, 2, Cout)


def bn_residual_relu_kernel(y_ref, x_ref, scale_ref, shift_ref, out_ref):
    """out = relu(y * scale + shift + residual) on a lane-dense 2-D view."""
    y = y_ref[...].astype(jnp.float32)
    res = x_ref[...].astype(jnp.float32)
    out_ref[...] = jnp.maximum(y * scale_ref[...] + shift_ref[...] + res, 0.0)


# ----------------------------------------------------------------------------
# Compiler params (per-generation VMEM limits)
# ----------------------------------------------------------------------------
@functools.lru_cache(maxsize=None)
def _vmem_limit_bytes():
    try:
        kind = jax.devices()[0].device_kind.lower()
    except Exception:
        kind = ""
    if "v5" in kind or "v6" in kind:
        return 96 * 1024 * 1024      # 128 MiB physical VMEM per core
    return 48 * 1024 * 1024          # v7x: 64 MiB / TensorCore; conservative default


def _compiler_params(semantics):
    return pltpu.CompilerParams(dimension_semantics=semantics,
                                vmem_limit_bytes=_vmem_limit_bytes())


# ----------------------------------------------------------------------------
# pallas_call wrappers
# ----------------------------------------------------------------------------
def _conv3x3_bn_stats(x, scale, shift, w, *, fuse_bn_relu, row_block):
    """x: (N,H,W,Cin) bf16 -> (y_bf16 (N,H,W,Cout), stats (N,KB,2,Cout) f32)."""
    N, H, W, Cin = x.shape
    Cout = w.shape[-1]
    TH = row_block
    KB = H // TH
    M = TH * W
    kern = functools.partial(conv3x3_bn_stats_kernel, fuse_bn_relu=fuse_bn_relu)

    band_spec = pl.BlockSpec((1, TH, W, Cin), lambda b, r: (b, r, 0, 0))
    # 1-row halo blocks (block size 1 along H => block index == row index).
    top_spec = pl.BlockSpec(
        (1, 1, W, Cin), lambda b, r: (b, jnp.maximum(r * TH - 1, 0), 0, 0))
    bot_spec = pl.BlockSpec(
        (1, 1, W, Cin), lambda b, r: (b, jnp.minimum((r + 1) * TH, H - 1), 0, 0))

    y, stat = pl.pallas_call(
        kern,
        grid=(N, KB),
        in_specs=[
            band_spec, top_spec, bot_spec,
            pl.BlockSpec((1, Cin), lambda b, r: (0, 0)),
            pl.BlockSpec((1, Cin), lambda b, r: (0, 0)),
            pl.BlockSpec((9, Cin, Cout), lambda b, r: (0, 0, 0)),
        ],
        out_specs=[
            pl.BlockSpec((1, TH, W, Cout), lambda b, r: (b, r, 0, 0)),
            pl.BlockSpec((1, 1, 2, Cout), lambda b, r: (b, r, 0, 0)),
        ],
        out_shape=[
            jax.ShapeDtypeStruct((N, H, W, Cout), jnp.bfloat16),   # bf16 inter-pass
            jax.ShapeDtypeStruct((N, KB, 2, Cout), jnp.float32),
        ],
        scratch_shapes=[
            pltpu.VMEM((TH + 2, W + 2, Cin), jnp.bfloat16),   # zero-halo padded tile
            pltpu.VMEM((M, Cout), jnp.float32),               # f32 conv accumulator
        ],
        compiler_params=_compiler_params(("parallel", "parallel")),
    )(x, x, x, scale, shift, w)
    return y, stat


def _bn_add_relu(y2, x, scale, shift):
    """Lane-dense elementwise pass: relu(y2*scale + shift + x), NHWC in/out."""
    N, H, W, C = y2.shape
    HW = H * W
    # Group `reps` consecutive spatial positions so the flattened last dim is a
    # lane-dense >=128 slab (unmasked vst).
    reps = 1
    while reps * C < 128 and HW % (reps * 2) == 0:
        reps *= 2
    L = reps * C
    R = (N * HW) // reps

    yf = y2.reshape(R, L)                       # free (row-major) reshapes
    xf = x.reshape(R, L)
    sc = jnp.tile(scale.reshape(-1), reps).reshape(1, L)
    sh = jnp.tile(shift.reshape(-1), reps).reshape(1, L)

    TR = R
    for t in (512, 256, 128, 64, 32, 16, 8):
        if R > t and R % t == 0:
            TR = t
            break

    out = pl.pallas_call(
        bn_residual_relu_kernel,
        grid=(R // TR,),
        in_specs=[
            pl.BlockSpec((TR, L), lambda i: (i, 0)),
            pl.BlockSpec((TR, L), lambda i: (i, 0)),
            pl.BlockSpec((1, L), lambda i: (0, 0)),
            pl.BlockSpec((1, L), lambda i: (0, 0)),
        ],
        out_specs=pl.BlockSpec((TR, L), lambda i: (i, 0)),
        out_shape=jax.ShapeDtypeStruct((R, L), jnp.float32),
        compiler_params=_compiler_params(("parallel",)),
    )(yf, xf, sc, sh)
    return out.reshape(N, H, W, C)


# ----------------------------------------------------------------------------
# BN helpers (shared with the reference so the comparison is apples-to-apples)
# ----------------------------------------------------------------------------
def _bn_scale_shift(mean, var, gamma, beta):
    inv = jax.lax.rsqrt(var + EPS)
    scale = gamma.reshape(1, -1) * inv.reshape(1, -1)
    shift = beta.reshape(1, -1) - mean.reshape(1, -1) * scale
    return scale, shift


def _moments(stat, m):
    s = jnp.sum(stat[:, :, 0, :], axis=(0, 1))
    ss = jnp.sum(stat[:, :, 1, :], axis=(0, 1))
    mean = s / m
    var = ss / m - mean * mean
    return mean, var


# ----------------------------------------------------------------------------
# Public forward
# ----------------------------------------------------------------------------
def _residual_block_nhwc(x, params, row_block):
    """x: (N,H,W,C) bf16. Returns (N,H,W,C) f32."""
    N, H, W, C = x.shape
    m = N * H * W

    if row_block is None:
        # Aim for M = TH*W of ~2K rows per MXU matmul, bounded by H.
        target = max(1, 2048 // W)
        row_block = 1
        for t in range(min(H, target), 0, -1):
            if H % t == 0:
                row_block = t
                break
    assert H % row_block == 0, "row_block must divide H"

    # (3,3,Cin,Cout) -> (9, Cin, Cout) bf16: one MXU tap per 3x3 position.
    w1 = params["w1"].reshape(9, C, -1).astype(jnp.bfloat16)
    w2 = params["w2"].reshape(9, C, -1).astype(jnp.bfloat16)
    # Conv biases (b1, b2) are exactly cancelled by training-mode BN mean
    # subtraction, so they are not passed to the kernels.

    one = jnp.ones((1, C), jnp.float32)
    zero = jnp.zeros((1, C), jnp.float32)

    # pass 1: conv1 + partial BN1 statistics
    y1, stat1 = _conv3x3_bn_stats(x, one, zero, w1,
                                  fuse_bn_relu=False, row_block=row_block)
    scale1, shift1 = _bn_scale_shift(*_moments(stat1, m),
                                     params["g1"], params["beta1"])

    # pass 2: (BN1 + ReLU fused into the conv prologue) -> conv2 + BN2 statistics
    y2, stat2 = _conv3x3_bn_stats(y1, scale1, shift1, w2,
                                  fuse_bn_relu=True, row_block=row_block)
    scale2, shift2 = _bn_scale_shift(*_moments(stat2, m),
                                     params["g2"], params["beta2"])

    # pass 3: BN2 + residual add + ReLU (lane-dense elementwise)
    return _bn_add_relu(y2, x, scale2, shift2)


@functools.partial(jax.jit, static_argnames=("row_block",))
def residual_block_nhwc(x_nhwc, params, row_block=None):
    """NHWC-native entry point (no layout transposes)."""
    return _residual_block_nhwc(x_nhwc.astype(jnp.bfloat16), params, row_block)


@functools.partial(jax.jit, static_argnames=("row_block",))
def residual_block(x_nchw, params, row_block=None):
    """NCHW adapter mirroring the PyTorch interface; the transposes are layout
    plumbing only — NHWC callers should use residual_block_nhwc directly."""
    x = jnp.transpose(x_nchw, (0, 2, 3, 1)).astype(jnp.bfloat16)
    out = _residual_block_nhwc(x, params, row_block)
    return jnp.transpose(out, (0, 3, 1, 2))


# ----------------------------------------------------------------------------
# Init + reference
# ----------------------------------------------------------------------------
def init_params(key, in_channels, out_channels):
    assert in_channels == out_channels, "residual add requires Cin == Cout"
    k = jax.random.split(key, 6)
    s = 1.0 / (in_channels * 9) ** 0.5          # ~ PyTorch conv init scale
    return {
        "w1": jax.random.uniform(k[0], (3, 3, in_channels, out_channels),
                                 jnp.float32, -s, s),
        "b1": jax.random.uniform(k[1], (1, out_channels), jnp.float32, -s, s),
        "g1": jnp.ones((1, out_channels), jnp.float32),
        "beta1": jnp.zeros((1, out_channels), jnp.float32),
        "w2": jax.random.uniform(k[2], (3, 3, out_channels, out_channels),
                                 jnp.float32, -s, s),
        "b2": jax.random.uniform(k[3], (1, out_channels), jnp.float32, -s, s),
        "g2": jnp.ones((1, out_channels), jnp.float32),
        "beta2": jnp.zeros((1, out_channels), jnp.float32),
    }


def residual_block_ref(x_nchw, p):
    """Pure-JAX reference mirroring the kernel math (bf16 conv operands, f32
    accumulation, training-mode BN).  It keeps the conv biases, demonstrating
    that dropping them in the kernel is a no-op under training-mode BN."""
    x = jnp.transpose(x_nchw, (0, 2, 3, 1)).astype(jnp.bfloat16)
    m = x.shape[0] * x.shape[1] * x.shape[2]

    def conv(h, w, b):
        y = jax.lax.conv_general_dilated(
            h, w.astype(jnp.bfloat16), (1, 1), "SAME",
            dimension_numbers=("NHWC", "HWIO", "NHWC"),
            preferred_element_type=jnp.float32)
        return y + b

    def stats(y):
        s = jnp.sum(y, axis=(0, 1, 2))
        ss = jnp.sum(y * y, axis=(0, 1, 2))
        mean = s / m
        return mean, ss / m - mean * mean

    y1 = conv(x, p["w1"], p["b1"])
    sc1, sh1 = _bn_scale_shift(*stats(y1), p["g1"], p["beta1"])
    h = jnp.maximum(y1 * sc1 + sh1, 0.0).astype(jnp.bfloat16)

    y2 = conv(h, p["w2"], p["b2"])
    sc2, sh2 = _bn_scale_shift(*stats(y2), p["g2"], p["beta2"])
    out = jnp.maximum(y2 * sc2 + sh2 + x.astype(jnp.float32), 0.0)
    return jnp.transpose(out, (0, 3, 1, 2))


if __name__ == "__main__":
    key = jax.random.PRNGKey(0)
    kx, kp = jax.random.split(key)

    N, C, H, W = 2, 4, 16, 16
    x = jax.random.normal(kx, (N, C, H, W), dtype=jnp.float32)
    params = init_params(kp, C, C)

    # row_block=8 exercises the multi-band (halo) path even at this toy H.
    out = jax.block_until_ready(residual_block(x, params, row_block=8))
    ref = residual_block_ref(x, params)

    assert out.shape == (N, C, H, W) and out.dtype == jnp.float32
    err = float(jnp.max(jnp.abs(out - ref)))
    assert err < 2e-2, f"max abs err vs reference: {err}"
    print("KERNEL_OK")
</pallas_src>

<mosaic_0001>
module attributes {stable_mosaic.version = 11 : i64} {
  func.func @conv3x3_bn_stats_kernel(%arg0: i32, %arg1: i32, %arg2: memref<1x8x16x4xbf16, #tpu.memory_space<vmem>>, %arg3: memref<1x1x16x4xbf16, #tpu.memory_space<vmem>>, %arg4: memref<1x1x16x4xbf16, #tpu.memory_space<vmem>>, %arg5: memref<1x4xf32, #tpu.memory_space<vmem>>, %arg6: memref<1x4xf32, #tpu.memory_space<vmem>>, %arg7: memref<9x4x4xbf16, #tpu.memory_space<vmem>>, %arg8: memref<1x8x16x4xbf16, #tpu.memory_space<vmem>>, %arg9: memref<1x1x2x4xf32, #tpu.memory_space<vmem>>, %arg10: memref<10x18x4xbf16, #tpu.memory_space<vmem>>, %arg11: memref<128x4xf32, #tpu.memory_space<vmem>>) attributes {dimension_semantics = [#tpu.dimension_semantics<parallel>, #tpu.dimension_semantics<parallel>], iteration_bounds = array<i64: 2, 2>, scalar_prefetch = 0 : i64, scratch_operands = 2 : i64, tpu.core_type = #tpu.core_type<tc>, window_params = [{transform_indices = @transform_0, window_bounds = array<i64: 1, 8, 16, 4>}, {transform_indices = @transform_1, window_bounds = array<i64: 1, 1, 16, 4>}, {transform_indices = @transform_2, window_bounds = array<i64: 1, 1, 16, 4>}, {pipeline_mode = #tpu.pipeline_mode<synchronous>, transform_indices = @transform_3, window_bounds = array<i64: 1, 4>}, {pipeline_mode = #tpu.pipeline_mode<synchronous>, transform_indices = @transform_4, window_bounds = array<i64: 1, 4>}, {pipeline_mode = #tpu.pipeline_mode<synchronous>, transform_indices = @transform_5, window_bounds = array<i64: 9, 4, 4>}, {transform_indices = @transform_6, window_bounds = array<i64: 1, 8, 16, 4>}, {transform_indices = @transform_7, window_bounds = array<i64: 1, 1, 2, 4>}]} {
    %c0 = arith.constant 0 : index
    %c0_0 = arith.constant 0 : index
    %c0_1 = arith.constant 0 : index
    %c0_2 = arith.constant 0 : index
    %0 = vector.load %arg2[%c0, %c0_0, %c0_1, %c0_2] : memref<1x8x16x4xbf16, #tpu.memory_space<vmem>>, vector<1x8x16x4xbf16>
    %1 = vector.shape_cast %0 : vector<1x8x16x4xbf16> to vector<8x16x4xbf16>
    %c0_3 = arith.constant 0 : index
    %c0_4 = arith.constant 0 : index
    %c0_5 = arith.constant 0 : index
    %c0_6 = arith.constant 0 : index
    %2 = vector.load %arg3[%c0_3, %c0_4, %c0_5, %c0_6] : memref<1x1x16x4xbf16, #tpu.memory_space<vmem>>, vector<1x1x16x4xbf16>
    %3 = vector.shape_cast %2 : vector<1x1x16x4xbf16> to vector<1x16x4xbf16>
    %c0_7 = arith.constant 0 : index
    %c0_8 = arith.constant 0 : index
    %c0_9 = arith.constant 0 : index
    %c0_10 = arith.constant 0 : index
    %4 = vector.load %arg4[%c0_7, %c0_8, %c0_9, %c0_10] : memref<1x1x16x4xbf16, #tpu.memory_space<vmem>>, vector<1x1x16x4xbf16>
    %5 = vector.shape_cast %4 : vector<1x1x16x4xbf16> to vector<1x16x4xbf16>
    %cst = arith.constant 0.000000e+00 : bf16
    %6 = vector.broadcast %cst : bf16 to vector<1x16x4xbf16>
    %c0_i32 = arith.constant 0 : i32
    %7 = arith.cmpi eq, %arg1, %c0_i32 : i32
    %8 = arith.select %7, %6, %3 : vector<1x16x4xbf16>
    %c1_i32 = arith.constant 1 : i32
    %9 = arith.cmpi eq, %arg1, %c1_i32 : i32
    %10 = arith.select %9, %6, %5 : vector<1x16x4xbf16>
    %cst_11 = arith.constant 0.000000e+00 : bf16
    %11 = vector.broadcast %cst_11 : bf16 to vector<10x1x4xbf16>
    %c0_12 = arith.constant 0 : index
    %c0_13 = arith.constant 0 : index
    %c0_14 = arith.constant 0 : index
    %12 = vector.load %arg10[%c0_12, %c0_13, %c0_14] : memref<10x18x4xbf16, #tpu.memory_space<vmem>>, vector<10x1x4xbf16>
    tpu.vector_store %arg10[%c0_12, %c0_13, %c0_14], %11 {strides = array<i32>} : memref<10x18x4xbf16, #tpu.memory_space<vmem>>, vector<10x1x4xbf16>,
    %cst_15 = arith.constant 0.000000e+00 : bf16
    %13 = vector.broadcast %cst_15 : bf16 to vector<10x1x4xbf16>
    %c0_16 = arith.constant 0 : index
    %c17 = arith.constant 17 : index
    %c0_17 = arith.constant 0 : index
    %14 = vector.load %arg10[%c0_16, %c17, %c0_17] : memref<10x18x4xbf16, #tpu.memory_space<vmem>>, vector<10x1x4xbf16>
    tpu.vector_store %arg10[%c0_16, %c17, %c0_17], %13 {strides = array<i32>} : memref<10x18x4xbf16, #tpu.memory_space<vmem>>, vector<10x1x4xbf16>,
    %c0_18 = arith.constant 0 : index
    %c1 = arith.constant 1 : index
    %c0_19 = arith.constant 0 : index
    %15 = vector.load %arg10[%c0_18, %c1, %c0_19] : memref<10x18x4xbf16, #tpu.memory_space<vmem>>, vector<1x16x4xbf16>
    tpu.vector_store %arg10[%c0_18, %c1, %c0_19], %8 {strides = array<i32>} : memref<10x18x4xbf16, #tpu.memory_space<vmem>>, vector<1x16x4xbf16>,
    %c9 = arith.constant 9 : index
    %c1_20 = arith.constant 1 : index
    %c0_21 = arith.constant 0 : index
    %16 = vector.load %arg10[%c9, %c1_20, %c0_21] : memref<10x18x4xbf16, #tpu.memory_space<vmem>>, vector<1x16x4xbf16>
    tpu.vector_store %arg10[%c9, %c1_20, %c0_21], %10 {strides = array<i32>} : memref<10x18x4xbf16, #tpu.memory_space<vmem>>, vector<1x16x4xbf16>,
    %c1_22 = arith.constant 1 : index
    %c1_23 = arith.constant 1 : index
    %c0_24 = arith.constant 0 : index
    %17 = vector.load %arg10[%c1_22, %c1_23, %c0_24] : memref<10x18x4xbf16, #tpu.memory_space<vmem>>, vector<8x16x4xbf16>
    tpu.vector_store %arg10[%c1_22, %c1_23, %c0_24], %1 {strides = array<i32>} : memref<10x18x4xbf16, #tpu.memory_space<vmem>>, vector<8x16x4xbf16>,
    %c0_25 = arith.constant 0 : index
    %c0_26 = arith.constant 0 : index
    %c0_27 = arith.constant 0 : index
    %18 = vector.load %arg10[%c0_25, %c0_26, %c0_27] : memref<10x18x4xbf16, #tpu.memory_space<vmem>>, vector<8x16x4xbf16>
    %19 = vector.shape_cast %18 : vector<8x16x4xbf16> to vector<128x4xbf16>
    %c0_28 = arith.constant 0 : index
    %c0_29 = arith.constant 0 : index
    %c0_30 = arith.constant 0 : index
    %20 = vector.load %arg7[%c0_28, %c0_29, %c0_30] : memref<9x4x4xbf16, #tpu.memory_space<vmem>>, vector<1x4x4xbf16>
    %21 = vector.shape_cast %20 : vector<1x4x4xbf16> to vector<4x4xbf16>
    %cst_31 = arith.constant dense<0.000000e+00> : vector<128x4xf32>
    %22 = tpu.matmul %19, %21, %cst_31 {dimension_numbers = #tpu.dot_dimension_numbers<[1], [0], [0], [1], [0, 0, 1, 1], [], []>} : vector<128x4xbf16>, vector<4x4xbf16>, vector<128x4xf32> -> vector<128x4xf32>
    %c0_32 = arith.constant 0 : index
    %c0_33 = arith.constant 0 : index
    %23 = vector.load %arg11[%c0_32, %c0_33] : memref<128x4xf32, #tpu.memory_space<vmem>>, vector<128x4xf32>
    tpu.vector_store %arg11[%c0_32, %c0_33], %22 {strides = array<i32>} : memref<128x4xf32, #tpu.memory_space<vmem>>, vector<128x4xf32>,
    %c0_34 = arith.constant 0 : index
    %c1_35 = arith.constant 1 : index
    %c0_36 = arith.constant 0 : index
    %24 = vector.load %arg10[%c0_34, %c1_35, %c0_36] : memref<10x18x4xbf16, #tpu.memory_space<vmem>>, vector<8x16x4xbf16>
    %25 = vector.shape_cast %24 : vector<8x16x4xbf16> to vector<128x4xbf16>
    %c1_37 = arith.constant 1 : index
    %c0_38 = arith.constant 0 : index
    %c0_39 = arith.constant 0 : index
    %26 = vector.load %arg7[%c1_37, %c0_38, %c0_39] : memref<9x4x4xbf16, #tpu.memory_space<vmem>>, vector<1x4x4xbf16>
    %27 = vector.shape_cast %26 : vector<1x4x4xbf16> to vector<4x4xbf16>
    %cst_40 = arith.constant dense<0.000000e+00> : vector<128x4xf32>
    %28 = tpu.matmul %25, %27, %cst_40 {dimension_numbers = #tpu.dot_dimension_numbers<[1], [0], [0], [1], [0, 0, 1, 1], [], []>} : vector<128x4xbf16>, vector<4x4xbf16>, vector<128x4xf32> -> vector<128x4xf32>
    %c0_41 = arith.constant 0 : index
    %c0_42 = arith.constant 0 : index
    %29 = vector.load %arg11[%c0_41, %c0_42] : memref<128x4xf32, #tpu.memory_space<vmem>>, vector<128x4xf32>
    %30 = arith.addf %29, %28 : vector<128x4xf32>
    %c0_43 = arith.constant 0 : index
    %c0_44 = arith.constant 0 : index
    %31 = vector.load %arg11[%c0_43, %c0_44] : memref<128x4xf32, #tpu.memory_space<vmem>>, vector<128x4xf32>
    tpu.vector_store %arg11[%c0_43, %c0_44], %30 {strides = array<i32>} : memref<128x4xf32, #tpu.memory_space<vmem>>, vector<128x4xf32>,
    %c0_45 = arith.constant 0 : index
    %c2 = arith.constant 2 : index
    %c0_46 = arith.constant 0 : index
    %32 = vector.load %arg10[%c0_45, %c2, %c0_46] : memref<10x18x4xbf16, #tpu.memory_space<vmem>>, vector<8x16x4xbf16>
    %33 = vector.shape_cast %32 : vector<8x16x4xbf16> to vector<128x4xbf16>
    %c2_47 = arith.constant 2 : index
    %c0_48 = arith.constant 0 : index
    %c0_49 = arith.constant 0 : index
    %34 = vector.load %arg7[%c2_47, %c0_48, %c0_49] : memref<9x4x4xbf16, #tpu.memory_space<vmem>>, vector<1x4x4xbf16>
    %35 = vector.shape_cast %34 : vector<1x4x4xbf16> to vector<4x4xbf16>
    %cst_50 = arith.constant dense<0.000000e+00> : vector<128x4xf32>
    %36 = tpu.matmul %33, %35, %cst_50 {dimension_numbers = #tpu.dot_dimension_numbers<[1], [0], [0], [1], [0, 0, 1, 1], [], []>} : vector<128x4xbf16>, vector<4x4xbf16>, vector<128x4xf32> -> vector<128x4xf32>
    %c0_51 = arith.constant 0 : index
    %c0_52 = arith.constant 0 : index
    %37 = vector.load %arg11[%c0_51, %c0_52] : memref<128x4xf32, #tpu.memory_space<vmem>>, vector<128x4xf32>
    %38 = arith.addf %37, %36 : vector<128x4xf32>
    %c0_53 = arith.constant 0 : index
    %c0_54 = arith.constant 0 : index
    %39 = vector.load %arg11[%c0_53, %c0_54] : memref<128x4xf32, #tpu.memory_space<vmem>>, vector<128x4xf32>
    tpu.vector_store %arg11[%c0_53, %c0_54], %38 {strides = array<i32>} : memref<128x4xf32, #tpu.memory_space<vmem>>, vector<128x4xf32>,
    %c1_55 = arith.constant 1 : index
    %c0_56 = arith.constant 0 : index
    %c0_57 = arith.constant 0 : index
    %40 = vector.load %arg10[%c1_55, %c0_56, %c0_57] : memref<10x18x4xbf16, #tpu.memory_space<vmem>>, vector<8x16x4xbf16>
    %41 = vector.shape_cast %40 : vector<8x16x4xbf16> to vector<128x4xbf16>
    %c3 = arith.constant 3 : index
    %c0_58 = arith.constant 0 : index
    %c0_59 = arith.constant 0 : index
    %42 = vector.load %arg7[%c3, %c0_58, %c0_59] : memref<9x4x4xbf16, #tpu.memory_space<vmem>>, vector<1x4x4xbf16>
    %43 = vector.shape_cast %42 : vector<1x4x4xbf16> to vector<4x4xbf16>
    %cst_60 = arith.constant dense<0.000000e+00> : vector<128x4xf32>
    %44 = tpu.matmul %41, %43, %cst_60 {dimension_numbers = #tpu.dot_dimension_numbers<[1], [0], [0], [1], [0, 0, 1, 1], [], []>} : vector<128x4xbf16>, vector<4x4xbf16>, vector<128x4xf32> -> vector<128x4xf32>
    %c0_61 = arith.constant 0 : index
    %c0_62 = arith.constant 0 : index
    %45 = vector.load %arg11[%c0_61, %c0_62] : memref<128x4xf32, #tpu.memory_space<vmem>>, vector<128x4xf32>
    %46 = arith.addf %45, %44 : vector<128x4xf32>
    %c0_63 = arith.constant 0 : index
    %c0_64 = arith.constant 0 : index
    %47 = vector.load %arg11[%c0_63, %c0_64] : memref<128x4xf32, #tpu.memory_space<vmem>>, vector<128x4xf32>
    tpu.vector_store %arg11[%c0_63, %c0_64], %46 {strides = array<i32>} : memref<128x4xf32, #tpu.memory_space<vmem>>, vector<128x4xf32>,
    %c1_65 = arith.constant 1 : index
    %c1_66 = arith.constant 1 : index
    %c0_67 = arith.constant 0 : index
    %48 = vector.load %arg10[%c1_65, %c1_66, %c0_67] : memref<10x18x4xbf16, #tpu.memory_space<vmem>>, vector<8x16x4xbf16>
    %49 = vector.shape_cast %48 : vector<8x16x4xbf16> to vector<128x4xbf16>
    %c4 = arith.constant 4 : index
    %c0_68 = arith.constant 0 : index
    %c0_69 = arith.constant 0 : index
    %50 = vector.load %arg7[%c4, %c0_68, %c0_69] : memref<9x4x4xbf16, #tpu.memory_space<vmem>>, vector<1x4x4xbf16>
    %51 = vector.shape_cast %50 : vector<1x4x4xbf16> to vector<4x4xbf16>
    %cst_70 = arith.constant dense<0.000000e+00> : vector<128x4xf32>
    %52 = tpu.matmul %49, %51, %cst_70 {dimension_numbers = #tpu.dot_dimension_numbers<[1], [0], [0], [1], [0, 0, 1, 1], [], []>} : vector<128x4xbf16>, vector<4x4xbf16>, vector<128x4xf32> -> vector<128x4xf32>
    %c0_71 = arith.constant 0 : index
    %c0_72 = arith.constant 0 : index
    %53 = vector.load %arg11[%c0_71, %c0_72] : memref<128x4xf32, #tpu.memory_space<vmem>>, vector<128x4xf32>
    %54 = arith.addf %53, %52 : vector<128x4xf32>
    %c0_73 = arith.constant 0 : index
    %c0_74 = arith.constant 0 : index
    %55 = vector.load %arg11[%c0_73, %c0_74] : memref<128x4xf32, #tpu.memory_space<vmem>>, vector<128x4xf32>
    tpu.vector_store %arg11[%c0_73, %c0_74], %54 {strides = array<i32>} : memref<128x4xf32, #tpu.memory_space<vmem>>, vector<128x4xf32>,
    %c1_75 = arith.constant 1 : index
    %c2_76 = arith.constant 2 : index
    %c0_77 = arith.constant 0 : index
    %56 = vector.load %arg10[%c1_75, %c2_76, %c0_77] : memref<10x18x4xbf16, #tpu.memory_space<vmem>>, vector<8x16x4xbf16>
    %57 = vector.shape_cast %56 : vector<8x16x4xbf16> to vector<128x4xbf16>
    %c5 = arith.constant 5 : index
    %c0_78 = arith.constant 0 : index
    %c0_79 = arith.constant 0 : index
    %58 = vector.load %arg7[%c5, %c0_78, %c0_79] : memref<9x4x4xbf16, #tpu.memory_space<vmem>>, vector<1x4x4xbf16>
    %59 = vector.shape_cast %58 : vector<1x4x4xbf16> to vector<4x4xbf16>
    %cst_80 = arith.constant dense<0.000000e+00> : vector<128x4xf32>
    %60 = tpu.matmul %57, %59, %cst_80 {dimension_numbers = #tpu.dot_dimension_numbers<[1], [0], [0], [1], [0, 0, 1, 1], [], []>} : vector<128x4xbf16>, vector<4x4xbf16>, vector<128x4xf32> -> vector<128x4xf32>
    %c0_81 = arith.constant 0 : index
    %c0_82 = arith.constant 0 : index
    %61 = vector.load %arg11[%c0_81, %c0_82] : memref<128x4xf32, #tpu.memory_space<vmem>>, vector<128x4xf32>
    %62 = arith.addf %61, %60 : vector<128x4xf32>
    %c0_83 = arith.constant 0 : index
    %c0_84 = arith.constant 0 : index
    %63 = vector.load %arg11[%c0_83, %c0_84] : memref<128x4xf32, #tpu.memory_space<vmem>>, vector<128x4xf32>
    tpu.vector_store %arg11[%c0_83, %c0_84], %62 {strides = array<i32>} : memref<128x4xf32, #tpu.memory_space<vmem>>, vector<128x4xf32>,
    %c2_85 = arith.constant 2 : index
    %c0_86 = arith.constant 0 : index
    %c0_87 = arith.constant 0 : index
    %64 = vector.load %arg10[%c2_85, %c0_86, %c0_87] : memref<10x18x4xbf16, #tpu.memory_space<vmem>>, vector<8x16x4xbf16>
    %65 = vector.shape_cast %64 : vector<8x16x4xbf16> to vector<128x4xbf16>
    %c6 = arith.constant 6 : index
    %c0_88 = arith.constant 0 : index
    %c0_89 = arith.constant 0 : index
    %66 = vector.load %arg7[%c6, %c0_88, %c0_89] : memref<9x4x4xbf16, #tpu.memory_space<vmem>>, vector<1x4x4xbf16>
    %67 = vector.shape_cast %66 : vector<1x4x4xbf16> to vector<4x4xbf16>
    %cst_90 = arith.constant dense<0.000000e+00> : vector<128x4xf32>
    %68 = tpu.matmul %65, %67, %cst_90 {dimension_numbers = #tpu.dot_dimension_numbers<[1], [0], [0], [1], [0, 0, 1, 1], [], []>} : vector<128x4xbf16>, vector<4x4xbf16>, vector<128x4xf32> -> vector<128x4xf32>
    %c0_91 = arith.constant 0 : index
    %c0_92 = arith.constant 0 : index
    %69 = vector.load %arg11[%c0_91, %c0_92] : memref<128x4xf32, #tpu.memory_space<vmem>>, vector<128x4xf32>
    %70 = arith.addf %69, %68 : vector<128x4xf32>
    %c0_93 = arith.constant 0 : index
    %c0_94 = arith.constant 0 : index
    %71 = vector.load %arg11[%c0_93, %c0_94] : memref<128x4xf32, #tpu.memory_space<vmem>>, vector<128x4xf32>
    tpu.vector_store %arg11[%c0_93, %c0_94], %70 {strides = array<i32>} : memref<128x4xf32, #tpu.memory_space<vmem>>, vector<128x4xf32>,
    %c2_95 = arith.constant 2 : index
    %c1_96 = arith.constant 1 : index
    %c0_97 = arith.constant 0 : index
    %72 = vector.load %arg10[%c2_95, %c1_96, %c0_97] : memref<10x18x4xbf16, #tpu.memory_space<vmem>>, vector<8x16x4xbf16>
    %73 = vector.shape_cast %72 : vector<8x16x4xbf16> to vector<128x4xbf16>
    %c7 = arith.constant 7 : index
    %c0_98 = arith.constant 0 : index
    %c0_99 = arith.constant 0 : index
    %74 = vector.load %arg7[%c7, %c0_98, %c0_99] : memref<9x4x4xbf16, #tpu.memory_space<vmem>>, vector<1x4x4xbf16>
    %75 = vector.shape_cast %74 : vector<1x4x4xbf16> to vector<4x4xbf16>
    %cst_100 = arith.constant dense<0.000000e+00> : vector<128x4xf32>
    %76 = tpu.matmul %73, %75, %cst_100 {dimension_numbers = #tpu.dot_dimension_numbers<[1], [0], [0], [1], [0, 0, 1, 1], [], []>} : vector<128x4xbf16>, vector<4x4xbf16>, vector<128x4xf32> -> vector<128x4xf32>
    %c0_101 = arith.constant 0 : index
    %c0_102 = arith.constant 0 : index
    %77 = vector.load %arg11[%c0_101, %c0_102] : memref<128x4xf32, #tpu.memory_space<vmem>>, vector<128x4xf32>
    %78 = arith.addf %77, %76 : vector<128x4xf32>
    %c0_103 = arith.constant 0 : index
    %c0_104 = arith.constant 0 : index
    %79 = vector.load %arg11[%c0_103, %c0_104] : memref<128x4xf32, #tpu.memory_space<vmem>>, vector<128x4xf32>
    tpu.vector_store %arg11[%c0_103, %c0_104], %78 {strides = array<i32>} : memref<128x4xf32, #tpu.memory_space<vmem>>, vector<128x4xf32>,
    %c2_105 = arith.constant 2 : index
    %c2_106 = arith.constant 2 : index
    %c0_107 = arith.constant 0 : index
    %80 = vector.load %arg10[%c2_105, %c2_106, %c0_107] : memref<10x18x4xbf16, #tpu.memory_space<vmem>>, vector<8x16x4xbf16>
    %81 = vector.shape_cast %80 : vector<8x16x4xbf16> to vector<128x4xbf16>
    %c8 = arith.constant 8 : index
    %c0_108 = arith.constant 0 : index
    %c0_109 = arith.constant 0 : index
    %82 = vector.load %arg7[%c8, %c0_108, %c0_109] : memref<9x4x4xbf16, #tpu.memory_space<vmem>>, vector<1x4x4xbf16>
    %83 = vector.shape_cast %82 : vector<1x4x4xbf16> to vector<4x4xbf16>
    %cst_110 = arith.constant dense<0.000000e+00> : vector<128x4xf32>
    %84 = tpu.matmul %81, %83, %cst_110 {dimension_numbers = #tpu.dot_dimension_numbers<[1], [0], [0], [1], [0, 0, 1, 1], [], []>} : vector<128x4xbf16>, vector<4x4xbf16>, vector<128x4xf32> -> vector<128x4xf32>
    %c0_111 = arith.constant 0 : index
    %c0_112 = arith.constant 0 : index
    %85 = vector.load %arg11[%c0_111, %c0_112] : memref<128x4xf32, #tpu.memory_space<vmem>>, vector<128x4xf32>
    %86 = arith.addf %85, %84 : vector<128x4xf32>
    %c0_113 = arith.constant 0 : index
    %c0_114 = arith.constant 0 : index
    %87 = vector.load %arg11[%c0_113, %c0_114] : memref<128x4xf32, #tpu.memory_space<vmem>>, vector<128x4xf32>
    tpu.vector_store %arg11[%c0_113, %c0_114], %86 {strides = array<i32>} : memref<128x4xf32, #tpu.memory_space<vmem>>, vector<128x4xf32>,
    %c0_115 = arith.constant 0 : index
    %c0_116 = arith.constant 0 : index
    %88 = vector.load %arg11[%c0_115, %c0_116] : memref<128x4xf32, #tpu.memory_space<vmem>>, vector<128x4xf32>
    %89 = vector.shape_cast %88 : vector<128x4xf32> to vector<1x8x16x4xf32>
    %90 = arith.truncf %89 : vector<1x8x16x4xf32> to vector<1x8x16x4xbf16>
    %c0_117 = arith.constant 0 : index
    %c0_118 = arith.constant 0 : index
    %c0_119 = arith.constant 0 : index
    %c0_120 = arith.constant 0 : index
    %91 = vector.load %arg8[%c0_117, %c0_118, %c0_119, %c0_120] : memref<1x8x16x4xbf16, #tpu.memory_space<vmem>>, vector<1x8x16x4xbf16>
    tpu.vector_store %arg8[%c0_117, %c0_118, %c0_119, %c0_120], %90 {strides = array<i32>} : memref<1x8x16x4xbf16, #tpu.memory_space<vmem>>, vector<1x8x16x4xbf16>,
    %cst_121 = arith.constant dense<0.000000e+00> : vector<4xf32>
    %92 = vector.multi_reduction <add>, %88, %cst_121 [0] : vector<128x4xf32> to vector<4xf32>
    %93 = vector.shape_cast %92 : vector<4xf32> to vector<1x4xf32>
    %94 = arith.mulf %88, %88 : vector<128x4xf32>
    %cst_122 = arith.constant dense<0.000000e+00> : vector<4xf32>
    %95 = vector.multi_reduction <add>, %94, %cst_122 [0] : vector<128x4xf32> to vector<4xf32>
    %96 = vector.shape_cast %95 : vector<4xf32> to vector<1x4xf32>
    %97 = tpu.concatenate %93, %96 in 0 : vector<1x4xf32>, vector<1x4xf32> -> vector<2x4xf32>
    %98 = vector.shape_cast %97 : vector<2x4xf32> to vector<1x1x2x4xf32>
    %c0_123 = arith.constant 0 : index
    %c0_124 = arith.constant 0 : index
    %c0_125 = arith.constant 0 : index
    %c0_126 = arith.constant 0 : index
    %99 = vector.load %arg9[%c0_123, %c0_124, %c0_125, %c0_126] : memref<1x1x2x4xf32, #tpu.memory_space<vmem>>, vector<1x1x2x4xf32>
    tpu.vector_store %arg9[%c0_123, %c0_124, %c0_125, %c0_126], %98 {strides = array<i32>} : memref<1x1x2x4xf32, #tpu.memory_space<vmem>>, vector<1x1x2x4xf32>,
    return
  }
  func.func @transform_0(%arg0: i32, %arg1: i32) -> (i32, i32, i32, i32) {
    %c0_i32 = arith.constant 0 : i32
    %c0_i32_0 = arith.constant 0 : i32
    %c0_i32_1 = arith.constant 0 : i32
    return %arg0, %arg1, %c0_i32, %c0_i32_0 : i32, i32, i32, i32
  }
  func.func @transform_1(%arg0: i32, %arg1: i32) -> (i32, i32, i32, i32) {
    %c8_i32 = arith.constant 8 : i32
    %0 = arith.muli %arg1, %c8_i32 : i32
    %c1_i32 = arith.constant 1 : i32
    %1 = arith.subi %0, %c1_i32 : i32
    %c0_i32 = arith.constant 0 : i32
    %2 = arith.maxsi %1, %c0_i32 : i32
    %c0_i32_0 = arith.constant 0 : i32
    %c0_i32_1 = arith.constant 0 : i32
    %c0_i32_2 = arith.constant 0 : i32
    return %arg0, %2, %c0_i32_0, %c0_i32_1 : i32, i32, i32, i32
  }
  func.func @transform_2(%arg0: i32, %arg1: i32) -> (i32, i32, i32, i32) {
    %c1_i32 = arith.constant 1 : i32
    %0 = arith.addi %arg1, %c1_i32 : i32
    %c8_i32 = arith.constant 8 : i32
    %1 = arith.muli %0, %c8_i32 : i32
    %c15_i32 = arith.constant 15 : i32
    %2 = arith.minsi %1, %c15_i32 : i32
    %c0_i32 = arith.constant 0 : i32
    %c0_i32_0 = arith.constant 0 : i32
    %c0_i32_1 = arith.constant 0 : i32
    return %arg0, %2, %c0_i32, %c0_i32_0 : i32, i32, i32, i32
  }
  func.func @transform_3(%arg0: i32, %arg1: i32) -> (i32, i32) {
    %c0_i32 = arith.constant 0 : i32
    %c0_i32_0 = arith.constant 0 : i32
    %c0_i32_1 = arith.constant 0 : i32
    return %c0_i32, %c0_i32_0 : i32, i32
  }
  func.func @transform_4(%arg0: i32, %arg1: i32) -> (i32, i32) {
    %c0_i32 = arith.constant 0 : i32
    %c0_i32_0 = arith.constant 0 : i32
    %c0_i32_1 = arith.constant 0 : i32
    return %c0_i32, %c0_i32_0 : i32, i32
  }
  func.func @transform_5(%arg0: i32, %arg1: i32) -> (i32, i32, i32) {
    %c0_i32 = arith.constant 0 : i32
    %c0_i32_0 = arith.constant 0 : i32
    %c0_i32_1 = arith.constant 0 : i32
    %c0_i32_2 = arith.constant 0 : i32
    return %c0_i32, %c0_i32_0, %c0_i32_1 : i32, i32, i32
  }
  func.func @transform_6(%arg0: i32, %arg1: i32) -> (i32, i32, i32, i32) {
    %c0_i32 = arith.constant 0 : i32
    %c0_i32_0 = arith.constant 0 : i32
    %c0_i32_1 = arith.constant 0 : i32
    return %arg0, %arg1, %c0_i32, %c0_i32_0 : i32, i32, i32, i32
  }
  func.func @transform_7(%arg0: i32, %arg1: i32) -> (i32, i32, i32, i32) {
    %c0_i32 = arith.constant 0 : i32
    %c0_i32_0 = arith.constant 0 : i32
    %c0_i32_1 = arith.constant 0 : i32
    return %arg0, %arg1, %c0_i32, %c0_i32_0 : i32, i32, i32, i32
  }
}

module attributes {stable_mosaic.version = 11 : i64} {
  func.func @conv3x3_bn_stats_kernel(%arg0: i32, %arg1: i32, %arg2: memref<1x8x16x4xbf16, #tpu.memory_space<vmem>>, %arg3: memref<1x1x16x4xbf16, #tpu.memory_space<vmem>>, %arg4: memref<1x1x16x4xbf16, #tpu.memory_space<vmem>>, %arg5: memref<1x4xf32, #tpu.memory_space<vmem>>, %arg6: memref<1x4xf32, #tpu.memory_space<vmem>>, %arg7: memref<9x4x4xbf16, #tpu.memory_space<vmem>>, %arg8: memref<1x8x16x4xbf16, #tpu.memory_space<vmem>>, %arg9: memref<1x1x2x4xf32, #tpu.memory_space<vmem>>, %arg10: memref<10x18x4xbf16, #tpu.memory_space<vmem>>, %arg11: memref<128x4xf32, #tpu.memory_space<vmem>>) attributes {dimension_semantics = [#tpu.dimension_semantics<parallel>, #tpu.dimension_semantics<parallel>], iteration_bounds = array<i64: 2, 2>, scalar_prefetch = 0 : i64, scratch_operands = 2 : i64, tpu.core_type = #tpu.core_type<tc>, window_params = [{transform_indices = @transform_0, window_bounds = array<i64: 1, 8, 16, 4>}, {transform_indices = @transform_1, window_bounds = array<i64: 1, 1, 16, 4>}, {transform_indices = @transform_2, window_bounds = array<i64: 1, 1, 16, 4>}, {pipeline_mode = #tpu.pipeline_mode<synchronous>, transform_indices = @transform_3, window_bounds = array<i64: 1, 4>}, {pipeline_mode = #tpu.pipeline_mode<synchronous>, transform_indices = @transform_4, window_bounds = array<i64: 1, 4>}, {pipeline_mode = #tpu.pipeline_mode<synchronous>, transform_indices = @transform_5, window_bounds = array<i64: 9, 4, 4>}, {transform_indices = @transform_6, window_bounds = array<i64: 1, 8, 16, 4>}, {transform_indices = @transform_7, window_bounds = array<i64: 1, 1, 2, 4>}]} {
    %c0 = arith.constant 0 : index
    %c0_0 = arith.constant 0 : index
    %c0_1 = arith.constant 0 : index
    %c0_2 = arith.constant 0 : index
    %0 = vector.load %arg2[%c0, %c0_0, %c0_1, %c0_2] : memref<1x8x16x4xbf16, #tpu.memory_space<vmem>>, vector<1x8x16x4xbf16>
    %1 = vector.shape_cast %0 : vector<1x8x16x4xbf16> to vector<8x16x4xbf16>
    %2 = arith.extf %1 : vector<8x16x4xbf16> to vector<8x16x4xf32>
    %c0_3 = arith.constant 0 : index
    %c0_4 = arith.constant 0 : index
    %3 = vector.load %arg5[%c0_3, %c0_4] : memref<1x4xf32, #tpu.memory_space<vmem>>, vector<1x4xf32>
    %4 = vector.shape_cast %3 : vector<1x4xf32> to vector<1x1x4xf32>
    %5 = vector.broadcast %4 : vector<1x1x4xf32> to vector<8x16x4xf32>
    %6 = arith.mulf %2, %5 : vector<8x16x4xf32>
    %c0_5 = arith.constant 0 : index
    %c0_6 = arith.constant 0 : index
    %7 = vector.load %arg6[%c0_5, %c0_6] : memref<1x4xf32, #tpu.memory_space<vmem>>, vector<1x4xf32>
    %8 = vector.shape_cast %7 : vector<1x4xf32> to vector<1x1x4xf32>
    %9 = vector.broadcast %8 : vector<1x1x4xf32> to vector<8x16x4xf32>
    %10 = arith.addf %6, %9 : vector<8x16x4xf32>
    %cst = arith.constant 0.000000e+00 : f32
    %11 = vector.broadcast %cst : f32 to vector<8x16x4xf32>
    %12 = arith.maximumf %10, %11 : vector<8x16x4xf32>
    %13 = arith.truncf %12 : vector<8x16x4xf32> to vector<8x16x4xbf16>
    %c0_7 = arith.constant 0 : index
    %c0_8 = arith.constant 0 : index
    %c0_9 = arith.constant 0 : index
    %c0_10 = arith.constant 0 : index
    %14 = vector.load %arg3[%c0_7, %c0_8, %c0_9, %c0_10] : memref<1x1x16x4xbf16, #tpu.memory_space<vmem>>, vector<1x1x16x4xbf16>
    %15 = vector.shape_cast %14 : vector<1x1x16x4xbf16> to vector<1x16x4xbf16>
    %16 = arith.extf %15 : vector<1x16x4xbf16> to vector<1x16x4xf32>
    %c0_11 = arith.constant 0 : index
    %c0_12 = arith.constant 0 : index
    %17 = vector.load %arg5[%c0_11, %c0_12] : memref<1x4xf32, #tpu.memory_space<vmem>>, vector<1x4xf32>
    %18 = vector.shape_cast %17 : vector<1x4xf32> to vector<1x1x4xf32>
    %19 = vector.broadcast %18 : vector<1x1x4xf32> to vector<1x16x4xf32>
    %20 = arith.mulf %16, %19 : vector<1x16x4xf32>
    %c0_13 = arith.constant 0 : index
    %c0_14 = arith.constant 0 : index
    %21 = vector.load %arg6[%c0_13, %c0_14] : memref<1x4xf32, #tpu.memory_space<vmem>>, vector<1x4xf32>
    %22 = vector.shape_cast %21 : vector<1x4xf32> to vector<1x1x4xf32>
    %23 = vector.broadcast %22 : vector<1x1x4xf32> to vector<1x16x4xf32>
    %24 = arith.addf %20, %23 : vector<1x16x4xf32>
    %cst_15 = arith.constant 0.000000e+00 : f32
    %25 = vector.broadcast %cst_15 : f32 to vector<1x16x4xf32>
    %26 = arith.maximumf %24, %25 : vector<1x16x4xf32>
    %27 = arith.truncf %26 : vector<1x16x4xf32> to vector<1x16x4xbf16>
    %c0_16 = arith.constant 0 : index
    %c0_17 = arith.constant 0 : index
    %c0_18 = arith.constant 0 : index
    %c0_19 = arith.constant 0 : index
    %28 = vector.load %arg4[%c0_16, %c0_17, %c0_18, %c0_19] : memref<1x1x16x4xbf16, #tpu.memory_space<vmem>>, vector<1x1x16x4xbf16>
    %29 = vector.shape_cast %28 : vector<1x1x16x4xbf16> to vector<1x16x4xbf16>
    %30 = arith.extf %29 : vector<1x16x4xbf16> to vector<1x16x4xf32>
    %c0_20 = arith.constant 0 : index
    %c0_21 = arith.constant 0 : index
    %31 = vector.load %arg5[%c0_20, %c0_21] : memref<1x4xf32, #tpu.memory_space<vmem>>, vector<1x4xf32>
    %32 = vector.shape_cast %31 : vector<1x4xf32> to vector<1x1x4xf32>
    %33 = vector.broadcast %32 : vector<1x1x4xf32> to vector<1x16x4xf32>
    %34 = arith.mulf %30, %33 : vector<1x16x4xf32>
    %c0_22 = arith.constant 0 : index
    %c0_23 = arith.constant 0 : index
    %35 = vector.load %arg6[%c0_22, %c0_23] : memref<1x4xf32, #tpu.memory_space<vmem>>, vector<1x4xf32>
    %36 = vector.shape_cast %35 : vector<1x4xf32> to vector<1x1x4xf32>
    %37 = vector.broadcast %36 : vector<1x1x4xf32> to vector<1x16x4xf32>
    %38 = arith.addf %34, %37 : vector<1x16x4xf32>
    %cst_24 = arith.constant 0.000000e+00 : f32
    %39 = vector.broadcast %cst_24 : f32 to vector<1x16x4xf32>
    %40 = arith.maximumf %38, %39 : vector<1x16x4xf32>
    %41 = arith.truncf %40 : vector<1x16x4xf32> to vector<1x16x4xbf16>
    %cst_25 = arith.constant 0.000000e+00 : bf16
    %42 = vector.broadcast %cst_25 : bf16 to vector<1x16x4xbf16>
    %c0_i32 = arith.constant 0 : i32
    %43 = arith.cmpi eq, %arg1, %c0_i32 : i32
    %44 = arith.select %43, %42, %27 : vector<1x16x4xbf16>
    %c1_i32 = arith.constant 1 : i32
    %45 = arith.cmpi eq, %arg1, %c1_i32 : i32
    %46 = arith.select %45, %42, %41 : vector<1x16x4xbf16>
    %cst_26 = arith.constant 0.000000e+00 : bf16
    %47 = vector.broadcast %cst_26 : bf16 to vector<10x1x4xbf16>
    %c0_27 = arith.constant 0 : index
    %c0_28 = arith.constant 0 : index
    %c0_29 = arith.constant 0 : index
    %48 = vector.load %arg10[%c0_27, %c0_28, %c0_29] : memref<10x18x4xbf16, #tpu.memory_space<vmem>>, vector<10x1x4xbf16>
    tpu.vector_store %arg10[%c0_27, %c0_28, %c0_29], %47 {strides = array<i32>} : memref<10x18x4xbf16, #tpu.memory_space<vmem>>, vector<10x1x4xbf16>,
    %cst_30 = arith.constant 0.000000e+00 : bf16
    %49 = vector.broadcast %cst_30 : bf16 to vector<10x1x4xbf16>
    %c0_31 = arith.constant 0 : index
    %c17 = arith.constant 17 : index
    %c0_32 = arith.constant 0 : index
    %50 = vector.load %arg10[%c0_31, %c17, %c0_32] : memref<10x18x4xbf16, #tpu.memory_space<vmem>>, vector<10x1x4xbf16>
    tpu.vector_store %arg10[%c0_31, %c17, %c0_32], %49 {strides = array<i32>} : memref<10x18x4xbf16, #tpu.memory_space<vmem>>, vector<10x1x4xbf16>,
    %c0_33 = arith.constant 0 : index
    %c1 = arith.constant 1 : index
    %c0_34 = arith.constant 0 : index
    %51 = vector.load %arg10[%c0_33, %c1, %c0_34] : memref<10x18x4xbf16, #tpu.memory_space<vmem>>, vector<1x16x4xbf16>
    tpu.vector_store %arg10[%c0_33, %c1, %c0_34], %44 {strides = array<i32>} : memref<10x18x4xbf16, #tpu.memory_space<vmem>>, vector<1x16x4xbf16>,
    %c9 = arith.constant 9 : index
    %c1_35 = arith.constant 1 : index
    %c0_36 = arith.constant 0 : index
    %52 = vector.load %arg10[%c9, %c1_35, %c0_36] : memref<10x18x4xbf16, #tpu.memory_space<vmem>>, vector<1x16x4xbf16>
    tpu.vector_store %arg10[%c9, %c1_35, %c0_36], %46 {strides = array<i32>} : memref<10x18x4xbf16, #tpu.memory_space<vmem>>, vector<1x16x4xbf16>,
    %c1_37 = arith.constant 1 : index
    %c1_38 = arith.constant 1 : index
    %c0_39 = arith.constant 0 : index
    %53 = vector.load %arg10[%c1_37, %c1_38, %c0_39] : memref<10x18x4xbf16, #tpu.memory_space<vmem>>, vector<8x16x4xbf16>
    tpu.vector_store %arg10[%c1_37, %c1_38, %c0_39], %13 {strides = array<i32>} : memref<10x18x4xbf16, #tpu.memory_space<vmem>>, vector<8x16x4xbf16>,
    %c0_40 = arith.constant 0 : index
    %c0_41 = arith.constant 0 : index
    %c0_42 = arith.constant 0 : index
    %54 = vector.load %arg10[%c0_40, %c0_41, %c0_42] : memref<10x18x4xbf16, #tpu.memory_space<vmem>>, vector<8x16x4xbf16>
    %55 = vector.shape_cast %54 : vector<8x16x4xbf16> to vector<128x4xbf16>
    %c0_43 = arith.constant 0 : index
    %c0_44 = arith.constant 0 : index
    %c0_45 = arith.constant 0 : index
    %56 = vector.load %arg7[%c0_43, %c0_44, %c0_45] : memref<9x4x4xbf16, #tpu.memory_space<vmem>>, vector<1x4x4xbf16>
    %57 = vector.shape_cast %56 : vector<1x4x4xbf16> to vector<4x4xbf16>
    %cst_46 = arith.constant dense<0.000000e+00> : vector<128x4xf32>
    %58 = tpu.matmul %55, %57, %cst_46 {dimension_numbers = #tpu.dot_dimension_numbers<[1], [0], [0], [1], [0, 0, 1, 1], [], []>} : vector<128x4xbf16>, vector<4x4xbf16>, vector<128x4xf32> -> vector<128x4xf32>
    %c0_47 = arith.constant 0 : index
    %c0_48 = arith.constant 0 : index
    %59 = vector.load %arg11[%c0_47, %c0_48] : memref<128x4xf32, #tpu.memory_space<vmem>>, vector<128x4xf32>
    tpu.vector_store %arg11[%c0_47, %c0_48], %58 {strides = array<i32>} : memref<128x4xf32, #tpu.memory_space<vmem>>, vector<128x4xf32>,
    %c0_49 = arith.constant 0 : index
    %c1_50 = arith.constant 1 : index
    %c0_51 = arith.constant 0 : index
    %60 = vector.load %arg10[%c0_49, %c1_50, %c0_51] : memref<10x18x4xbf16, #tpu.memory_space<vmem>>, vector<8x16x4xbf16>
    %61 = vector.shape_cast %60 : vector<8x16x4xbf16> to vector<128x4xbf16>
    %c1_52 = arith.constant 1 : index
    %c0_53 = arith.constant 0 : index
    %c0_54 = arith.constant 0 : index
    %62 = vector.load %arg7[%c1_52, %c0_53, %c0_54] : memref<9x4x4xbf16, #tpu.memory_space<vmem>>, vector<1x4x4xbf16>
    %63 = vector.shape_cast %62 : vector<1x4x4xbf16> to vector<4x4xbf16>
    %cst_55 = arith.constant dense<0.000000e+00> : vector<128x4xf32>
    %64 = tpu.matmul %61, %63, %cst_55 {dimension_numbers = #tpu.dot_dimension_numbers<[1], [0], [0], [1], [0, 0, 1, 1], [], []>} : vector<128x4xbf16>, vector<4x4xbf16>, vector<128x4xf32> -> vector<128x4xf32>
    %c0_56 = arith.constant 0 : index
    %c0_57 = arith.constant 0 : index
    %65 = vector.load %arg11[%c0_56, %c0_57] : memref<128x4xf32, #tpu.memory_space<vmem>>, vector<128x4xf32>
    %66 = arith.addf %65, %64 : vector<128x4xf32>
    %c0_58 = arith.constant 0 : index
    %c0_59 = arith.constant 0 : index
    %67 = vector.load %arg11[%c0_58, %c0_59] : memref<128x4xf32, #tpu.memory_space<vmem>>, vector<128x4xf32>
    tpu.vector_store %arg11[%c0_58, %c0_59], %66 {strides = array<i32>} : memref<128x4xf32, #tpu.memory_space<vmem>>, vector<128x4xf32>,
    %c0_60 = arith.constant 0 : index
    %c2 = arith.constant 2 : index
    %c0_61 = arith.constant 0 : index
    %68 = vector.load %arg10[%c0_60, %c2, %c0_61] : memref<10x18x4xbf16, #tpu.memory_space<vmem>>, vector<8x16x4xbf16>
    %69 = vector.shape_cast %68 : vector<8x16x4xbf16> to vector<128x4xbf16>
    %c2_62 = arith.constant 2 : index
    %c0_63 = arith.constant 0 : index
    %c0_64 = arith.constant 0 : index
    %70 = vector.load %arg7[%c2_62, %c0_63, %c0_64] : memref<9x4x4xbf16, #tpu.memory_space<vmem>>, vector<1x4x4xbf16>
    %71 = vector.shape_cast %70 : vector<1x4x4xbf16> to vector<4x4xbf16>
    %cst_65 = arith.constant dense<0.000000e+00> : vector<128x4xf32>
    %72 = tpu.matmul %69, %71, %cst_65 {dimension_numbers = #tpu.dot_dimension_numbers<[1], [0], [0], [1], [0, 0, 1, 1], [], []>} : vector<128x4xbf16>, vector<4x4xbf16>, vector<128x4xf32> -> vector<128x4xf32>
    %c0_66 = arith.constant 0 : index
    %c0_67 = arith.constant 0 : index
    %73 = vector.load %arg11[%c0_66, %c0_67] : memref<128x4xf32, #tpu.memory_space<vmem>>, vector<128x4xf32>
    %74 = arith.addf %73, %72 : vector<128x4xf32>
    %c0_68 = arith.constant 0 : index
    %c0_69 = arith.constant 0 : index
    %75 = vector.load %arg11[%c0_68, %c0_69] : memref<128x4xf32, #tpu.memory_space<vmem>>, vector<128x4xf32>
    tpu.vector_store %arg11[%c0_68, %c0_69], %74 {strides = array<i32>} : memref<128x4xf32, #tpu.memory_space<vmem>>, vector<128x4xf32>,
    %c1_70 = arith.constant 1 : index
    %c0_71 = arith.constant 0 : index
    %c0_72 = arith.constant 0 : index
    %76 = vector.load %arg10[%c1_70, %c0_71, %c0_72] : memref<10x18x4xbf16, #tpu.memory_space<vmem>>, vector<8x16x4xbf16>
    %77 = vector.shape_cast %76 : vector<8x16x4xbf16> to vector<128x4xbf16>
    %c3 = arith.constant 3 : index
    %c0_73 = arith.constant 0 : index
    %c0_74 = arith.constant 0 : index
    %78 = vector.load %arg7[%c3, %c0_73, %c0_74] : memref<9x4x4xbf16, #tpu.memory_space<vmem>>, vector<1x4x4xbf16>
    %79 = vector.shape_cast %78 : vector<1x4x4xbf16> to vector<4x4xbf16>
    %cst_75 = arith.constant dense<0.000000e+00> : vector<128x4xf32>
    %80 = tpu.matmul %77, %79, %cst_75 {dimension_numbers = #tpu.dot_dimension_numbers<[1], [0], [0], [1], [0, 0, 1, 1], [], []>} : vector<128x4xbf16>, vector<4x4xbf16>, vector<128x4xf32> -> vector<128x4xf32>
    %c0_76 = arith.constant 0 : index
    %c0_77 = arith.constant 0 : index
    %81 = vector.load %arg11[%c0_76, %c0_77] : memref<128x4xf32, #tpu.memory_space<vmem>>, vector<128x4xf32>
    %82 = arith.addf %81, %80 : vector<128x4xf32>
    %c0_78 = arith.constant 0 : index
    %c0_79 = arith.constant 0 : index
    %83 = vector.load %arg11[%c0_78, %c0_79] : memref<128x4xf32, #tpu.memory_space<vmem>>, vector<128x4xf32>
    tpu.vector_store %arg11[%c0_78, %c0_79], %82 {strides = array<i32>} : memref<128x4xf32, #tpu.memory_space<vmem>>, vector<128x4xf32>,
    %c1_80 = arith.constant 1 : index
    %c1_81 = arith.constant 1 : index
    %c0_82 = arith.constant 0 : index
    %84 = vector.load %arg10[%c1_80, %c1_81, %c0_82] : memref<10x18x4xbf16, #tpu.memory_space<vmem>>, vector<8x16x4xbf16>
    %85 = vector.shape_cast %84 : vector<8x16x4xbf16> to vector<128x4xbf16>
    %c4 = arith.constant 4 : index
    %c0_83 = arith.constant 0 : index
    %c0_84 = arith.constant 0 : index
    %86 = vector.load %arg7[%c4, %c0_83, %c0_84] : memref<9x4x4xbf16, #tpu.memory_space<vmem>>, vector<1x4x4xbf16>
    %87 = vector.shape_cast %86 : vector<1x4x4xbf16> to vector<4x4xbf16>
    %cst_85 = arith.constant dense<0.000000e+00> : vector<128x4xf32>
    %88 = tpu.matmul %85, %87, %cst_85 {dimension_numbers = #tpu.dot_dimension_numbers<[1], [0], [0], [1], [0, 0, 1, 1], [], []>} : vector<128x4xbf16>, vector<4x4xbf16>, vector<128x4xf32> -> vector<128x4xf32>
    %c0_86 = arith.constant 0 : index
    %c0_87 = arith.constant 0 : index
    %89 = vector.load %arg11[%c0_86, %c0_87] : memref<128x4xf32, #tpu.memory_space<vmem>>, vector<128x4xf32>
    %90 = arith.addf %89, %88 : vector<128x4xf32>
    %c0_88 = arith.constant 0 : index
    %c0_89 = arith.constant 0 : index
    %91 = vector.load %arg11[%c0_88, %c0_89] : memref<128x4xf32, #tpu.memory_space<vmem>>, vector<128x4xf32>
    tpu.vector_store %arg11[%c0_88, %c0_89], %90 {strides = array<i32>} : memref<128x4xf32, #tpu.memory_space<vmem>>, vector<128x4xf32>,
    %c1_90 = arith.constant 1 : index
    %c2_91 = arith.constant 2 : index
    %c0_92 = arith.constant 0 : index
    %92 = vector.load %arg10[%c1_90, %c2_91, %c0_92] : memref<10x18x4xbf16, #tpu.memory_space<vmem>>, vector<8x16x4xbf16>
    %93 = vector.shape_cast %92 : vector<8x16x4xbf16> to vector<128x4xbf16>
    %c5 = arith.constant 5 : index
    %c0_93 = arith.constant 0 : index
    %c0_94 = arith.constant 0 : index
    %94 = vector.load %arg7[%c5, %c0_93, %c0_94] : memref<9x4x4xbf16, #tpu.memory_space<vmem>>, vector<1x4x4xbf16>
    %95 = vector.shape_cast %94 : vector<1x4x4xbf16> to vector<4x4xbf16>
    %cst_95 = arith.constant dense<0.000000e+00> : vector<128x4xf32>
    %96 = tpu.matmul %93, %95, %cst_95 {dimension_numbers = #tpu.dot_dimension_numbers<[1], [0], [0], [1], [0, 0, 1, 1], [], []>} : vector<128x4xbf16>, vector<4x4xbf16>, vector<128x4xf32> -> vector<128x4xf32>
    %c0_96 = arith.constant 0 : index
    %c0_97 = arith.constant 0 : index
    %97 = vector.load %arg11[%c0_96, %c0_97] : memref<128x4xf32, #tpu.memory_space<vmem>>, vector<128x4xf32>
    %98 = arith.addf %97, %96 : vector<128x4xf32>
    %c0_98 = arith.constant 0 : index
    %c0_99 = arith.constant 0 : index
    %99 = vector.load %arg11[%c0_98, %c0_99] : memref<128x4xf32, #tpu.memory_space<vmem>>, vector<128x4xf32>
    tpu.vector_store %arg11[%c0_98, %c0_99], %98 {strides = array<i32>} : memref<128x4xf32, #tpu.memory_space<vmem>>, vector<128x4xf32>,
    %c2_100 = arith.constant 2 : index
    %c0_101 = arith.constant 0 : index
    %c0_102 = arith.constant 0 : index
    %100 = vector.load %arg10[%c2_100, %c0_101, %c0_102] : memref<10x18x4xbf16, #tpu.memory_space<vmem>>, vector<8x16x4xbf16>
    %101 = vector.shape_cast %100 : vector<8x16x4xbf16> to vector<128x4xbf16>
    %c6 = arith.constant 6 : index
    %c0_103 = arith.constant 0 : index
    %c0_104 = arith.constant 0 : index
    %102 = vector.load %arg7[%c6, %c0_103, %c0_104] : memref<9x4x4xbf16, #tpu.memory_space<vmem>>, vector<1x4x4xbf16>
    %103 = vector.shape_cast %102 : vector<1x4x4xbf16> to vector<4x4xbf16>
    %cst_105 = arith.constant dense<0.000000e+00> : vector<128x4xf32>
    %104 = tpu.matmul %101, %103, %cst_105 {dimension_numbers = #tpu.dot_dimension_numbers<[1], [0], [0], [1], [0, 0, 1, 1], [], []>} : vector<128x4xbf16>, vector<4x4xbf16>, vector<128x4xf32> -> vector<128x4xf32>
    %c0_106 = arith.constant 0 : index
    %c0_107 = arith.constant 0 : index
    %105 = vector.load %arg11[%c0_106, %c0_107] : memref<128x4xf32, #tpu.memory_space<vmem>>, vector<128x4xf32>
    %106 = arith.addf %105, %104 : vector<128x4xf32>
    %c0_108 = arith.constant 0 : index
    %c0_109 = arith.constant 0 : index
    %107 = vector.load %arg11[%c0_108, %c0_109] : memref<128x4xf32, #tpu.memory_space<vmem>>, vector<128x4xf32>
    tpu.vector_store %arg11[%c0_108, %c0_109], %106 {strides = array<i32>} : memref<128x4xf32, #tpu.memory_space<vmem>>, vector<128x4xf32>,
    %c2_110 = arith.constant 2 : index
    %c1_111 = arith.constant 1 : index
    %c0_112 = arith.constant 0 : index
    %108 = vector.load %arg10[%c2_110, %c1_111, %c0_112] : memref<10x18x4xbf16, #tpu.memory_space<vmem>>, vector<8x16x4xbf16>
    %109 = vector.shape_cast %108 : vector<8x16x4xbf16> to vector<128x4xbf16>
    %c7 = arith.constant 7 : index
    %c0_113 = arith.constant 0 : index
    %c0_114 = arith.constant 0 : index
    %110 = vector.load %arg7[%c7, %c0_113, %c0_114] : memref<9x4x4xbf16, #tpu.memory_space<vmem>>, vector<1x4x4xbf16>
    %111 = vector.shape_cast %110 : vector<1x4x4xbf16> to vector<4x4xbf16>
    %cst_115 = arith.constant dense<0.000000e+00> : vector<128x4xf32>
    %112 = tpu.matmul %109, %111, %cst_115 {dimension_numbers = #tpu.dot_dimension_numbers<[1], [0], [0], [1], [0, 0, 1, 1], [], []>} : vector<128x4xbf16>, vector<4x4xbf16>, vector<128x4xf32> -> vector<128x4xf32>
    %c0_116 = arith.constant 0 : index
    %c0_117 = arith.constant 0 : index
    %113 = vector.load %arg11[%c0_116, %c0_117] : memref<128x4xf32, #tpu.memory_space<vmem>>, vector<128x4xf32>
    %114 = arith.addf %113, %112 : vector<128x4xf32>
    %c0_118 = arith.constant 0 : index
    %c0_119 = arith.constant 0 : index
    %115 = vector.load %arg11[%c0_118, %c0_119] : memref<128x4xf32, #tpu.memory_space<vmem>>, vector<128x4xf32>
    tpu.vector_store %arg11[%c0_118, %c0_119], %114 {strides = array<i32>} : memref<128x4xf32, #tpu.memory_space<vmem>>, vector<128x4xf32>,
    %c2_120 = arith.constant 2 : index
    %c2_121 = arith.constant 2 : index
    %c0_122 = arith.constant 0 : index
    %116 = vector.load %arg10[%c2_120, %c2_121, %c0_122] : memref<10x18x4xbf16, #tpu.memory_space<vmem>>, vector<8x16x4xbf16>
    %117 = vector.shape_cast %116 : vector<8x16x4xbf16> to vector<128x4xbf16>
    %c8 = arith.constant 8 : index
    %c0_123 = arith.constant 0 : index
    %c0_124 = arith.constant 0 : index
    %118 = vector.load %arg7[%c8, %c0_123, %c0_124] : memref<9x4x4xbf16, #tpu.memory_space<vmem>>, vector<1x4x4xbf16>
    %119 = vector.shape_cast %118 : vector<1x4x4xbf16> to vector<4x4xbf16>
    %cst_125 = arith.constant dense<0.000000e+00> : vector<128x4xf32>
    %120 = tpu.matmul %117, %119, %cst_125 {dimension_numbers = #tpu.dot_dimension_numbers<[1], [0], [0], [1], [0, 0, 1, 1], [], []>} : vector<128x4xbf16>, vector<4x4xbf16>, vector<128x4xf32> -> vector<128x4xf32>
    %c0_126 = arith.constant 0 : index
    %c0_127 = arith.constant 0 : index
    %121 = vector.load %arg11[%c0_126, %c0_127] : memref<128x4xf32, #tpu.memory_space<vmem>>, vector<128x4xf32>
    %122 = arith.addf %121, %120 : vector<128x4xf32>
    %c0_128 = arith.constant 0 : index
    %c0_129 = arith.constant 0 : index
    %123 = vector.load %arg11[%c0_128, %c0_129] : memref<128x4xf32, #tpu.memory_space<vmem>>, vector<128x4xf32>
    tpu.vector_store %arg11[%c0_128, %c0_129], %122 {strides = array<i32>} : memref<128x4xf32, #tpu.memory_space<vmem>>, vector<128x4xf32>,
    %c0_130 = arith.constant 0 : index
    %c0_131 = arith.constant 0 : index
    %124 = vector.load %arg11[%c0_130, %c0_131] : memref<128x4xf32, #tpu.memory_space<vmem>>, vector<128x4xf32>
    %125 = vector.shape_cast %124 : vector<128x4xf32> to vector<1x8x16x4xf32>
    %126 = arith.truncf %125 : vector<1x8x16x4xf32> to vector<1x8x16x4xbf16>
    %c0_132 = arith.constant 0 : index
    %c0_133 = arith.constant 0 : index
    %c0_134 = arith.constant 0 : index
    %c0_135 = arith.constant 0 : index
    %127 = vector.load %arg8[%c0_132, %c0_133, %c0_134, %c0_135] : memref<1x8x16x4xbf16, #tpu.memory_space<vmem>>, vector<1x8x16x4xbf16>
    tpu.vector_store %arg8[%c0_132, %c0_133, %c0_134, %c0_135], %126 {strides = array<i32>} : memref<1x8x16x4xbf16, #tpu.memory_space<vmem>>, vector<1x8x16x4xbf16>,
    %cst_136 = arith.constant dense<0.000000e+00> : vector<4xf32>
    %128 = vector.multi_reduction <add>, %124, %cst_136 [0] : vector<128x4xf32> to vector<4xf32>
    %129 = vector.shape_cast %128 : vector<4xf32> to vector<1x4xf32>
    %130 = arith.mulf %124, %124 : vector<128x4xf32>
    %cst_137 = arith.constant dense<0.000000e+00> : vector<4xf32>
    %131 = vector.multi_reduction <add>, %130, %cst_137 [0] : vector<128x4xf32> to vector<4xf32>
    %132 = vector.shape_cast %131 : vector<4xf32> to vector<1x4xf32>
    %133 = tpu.concatenate %129, %132 in 0 : vector<1x4xf32>, vector<1x4xf32> -> vector<2x4xf32>
    %134 = vector.shape_cast %133 : vector<2x4xf32> to vector<1x1x2x4xf32>
    %c0_138 = arith.constant 0 : index
    %c0_139 = arith.constant 0 : index
    %c0_140 = arith.constant 0 : index
    %c0_141 = arith.constant 0 : index
    %135 = vector.load %arg9[%c0_138, %c0_139, %c0_140, %c0_141] : memref<1x1x2x4xf32, #tpu.memory_space<vmem>>, vector<1x1x2x4xf32>
    tpu.vector_store %arg9[%c0_138, %c0_139, %c0_140, %c0_141], %134 {strides = array<i32>} : memref<1x1x2x4xf32, #tpu.memory_space<vmem>>, vector<1x1x2x4xf32>,
    return
  }
  func.func @transform_0(%arg0: i32, %arg1: i32) -> (i32, i32, i32, i32) {
    %c0_i32 = arith.constant 0 : i32
    %c0_i32_0 = arith.constant 0 : i32
    %c0_i32_1 = arith.constant 0 : i32
    return %arg0, %arg1, %c0_i32, %c0_i32_0 : i32, i32, i32, i32
  }
  func.func @transform_1(%arg0: i32, %arg1: i32) -> (i32, i32, i32, i32) {
    %c8_i32 = arith.constant 8 : i32
    %0 = arith.muli %arg1, %c8_i32 : i32
    %c1_i32 = arith.constant 1 : i32
    %1 = arith.subi %0, %c1_i32 : i32
    %c0_i32 = arith.constant 0 : i32
    %2 = arith.maxsi %1, %c0_i32 : i32
    %c0_i32_0 = arith.constant 0 : i32
    %c0_i32_1 = arith.constant 0 : i32
    %c0_i32_2 = arith.constant 0 : i32
    return %arg0, %2, %c0_i32_0, %c0_i32_1 : i32, i32, i32, i32
  }
  func.func @transform_2(%arg0: i32, %arg1: i32) -> (i32, i32, i32, i32) {
    %c1_i32 = arith.constant 1 : i32
    %0 = arith.addi %arg1, %c1_i32 : i32
    %c8_i32 = arith.constant 8 : i32
    %1 = arith.muli %0, %c8_i32 : i32
    %c15_i32 = arith.constant 15 : i32
    %2 = arith.minsi %1, %c15_i32 : i32
    %c0_i32 = arith.constant 0 : i32
    %c0_i32_0 = arith.constant 0 : i32
    %c0_i32_1 = arith.constant 0 : i32
    return %arg0, %2, %c0_i32, %c0_i32_0 : i32, i32, i32, i32
  }
  func.func @transform_3(%arg0: i32, %arg1: i32) -> (i32, i32) {
    %c0_i32 = arith.constant 0 : i32
    %c0_i32_0 = arith.constant 0 : i32
    %c0_i32_1 = arith.constant 0 : i32
    return %c0_i32, %c0_i32_0 : i32, i32
  }
  func.func @transform_4(%arg0: i32, %arg1: i32) -> (i32, i32) {
    %c0_i32 = arith.constant 0 : i32
    %c0_i32_0 = arith.constant 0 : i32
    %c0_i32_1 = arith.constant 0 : i32
    return %c0_i32, %c0_i32_0 : i32, i32
  }
  func.func @transform_5(%arg0: i32, %arg1: i32) -> (i32, i32, i32) {
    %c0_i32 = arith.constant 0 : i32
    %c0_i32_0 = arith.constant 0 : i32
    %c0_i32_1 = arith.constant 0 : i32
    %c0_i32_2 = arith.constant 0 : i32
    return %c0_i32, %c0_i32_0, %c0_i32_1 : i32, i32, i32
  }
  func.func @transform_6(%arg0: i32, %arg1: i32) -> (i32, i32, i32, i32) {
    %c0_i32 = arith.constant 0 : i32
    %c0_i32_0 = arith.constant 0 : i32
    %c0_i32_1 = arith.constant 0 : i32
    return %arg0, %arg1, %c0_i32, %c0_i32_0 : i32, i32, i32, i32
  }
  func.func @transform_7(%arg0: i32, %arg1: i32) -> (i32, i32, i32, i32) {
    %c0_i32 = arith.constant 0 : i32
    %c0_i32_0 = arith.constant 0 : i32
    %c0_i32_1 = arith.constant 0 : i32
    return %arg0, %arg1, %c0_i32, %c0_i32_0 : i32, i32, i32, i32
  }
}

module attributes {stable_mosaic.version = 11 : i64} {
  func.func @bn_residual_relu_kernel(%arg0: i32, %arg1: memref<8x128xbf16, #tpu.memory_space<vmem>>, %arg2: memref<8x128xbf16, #tpu.memory_space<vmem>>, %arg3: memref<1x128xf32, #tpu.memory_space<vmem>>, %arg4: memref<1x128xf32, #tpu.memory_space<vmem>>, %arg5: memref<8x128xf32, #tpu.memory_space<vmem>>) attributes {dimension_semantics = [#tpu.dimension_semantics<parallel>], iteration_bounds = array<i64: 2>, scalar_prefetch = 0 : i64, scratch_operands = 0 : i64, tpu.core_type = #tpu.core_type<tc>, window_params = [{transform_indices = @transform_0, window_bounds = array<i64: 8, 128>}, {transform_indices = @transform_1, window_bounds = array<i64: 8, 128>}, {pipeline_mode = #tpu.pipeline_mode<synchronous>, transform_indices = @transform_2, window_bounds = array<i64: 1, 128>}, {pipeline_mode = #tpu.pipeline_mode<synchronous>, transform_indices = @transform_3, window_bounds = array<i64: 1, 128>}, {transform_indices = @transform_4, window_bounds = array<i64: 8, 128>}]} {
    %c0 = arith.constant 0 : index
    %c0_0 = arith.constant 0 : index
    %0 = vector.load %arg1[%c0, %c0_0] : memref<8x128xbf16, #tpu.memory_space<vmem>>, vector<8x128xbf16>
    %1 = arith.extf %0 : vector<8x128xbf16> to vector<8x128xf32>
    %c0_1 = arith.constant 0 : index
    %c0_2 = arith.constant 0 : index
    %2 = vector.load %arg2[%c0_1, %c0_2] : memref<8x128xbf16, #tpu.memory_space<vmem>>, vector<8x128xbf16>
    %3 = arith.extf %2 : vector<8x128xbf16> to vector<8x128xf32>
    %c0_3 = arith.constant 0 : index
    %c0_4 = arith.constant 0 : index
    %4 = vector.load %arg3[%c0_3, %c0_4] : memref<1x128xf32, #tpu.memory_space<vmem>>, vector<1x128xf32>
    %5 = vector.broadcast %4 : vector<1x128xf32> to vector<8x128xf32>
    %6 = arith.mulf %1, %5 : vector<8x128xf32>
    %c0_5 = arith.constant 0 : index
    %c0_6 = arith.constant 0 : index
    %7 = vector.load %arg4[%c0_5, %c0_6] : memref<1x128xf32, #tpu.memory_space<vmem>>, vector<1x128xf32>
    %8 = vector.broadcast %7 : vector<1x128xf32> to vector<8x128xf32>
    %9 = arith.addf %6, %8 : vector<8x128xf32>
    %10 = arith.addf %9, %3 : vector<8x128xf32>
    %cst = arith.constant 0.000000e+00 : f32
    %11 = vector.broadcast %cst : f32 to vector<8x128xf32>
    %12 = arith.maximumf %10, %11 : vector<8x128xf32>
    %c0_7 = arith.constant 0 : index
    %c0_8 = arith.constant 0 : index
    %13 = vector.load %arg5[%c0_7, %c0_8] : memref<8x128xf32, #tpu.memory_space<vmem>>, vector<8x128xf32>
    tpu.vector_store %arg5[%c0_7, %c0_8], %12 {strides = array<i32>} : memref<8x128xf32, #tpu.memory_space<vmem>>, vector<8x128xf32>,
    return
  }
  func.func @transform_0(%arg0: i32) -> (i32, i32) {
    %c0_i32 = arith.constant 0 : i32
    %c0_i32_0 = arith.constant 0 : i32
    return %arg0, %c0_i32 : i32, i32
  }
  func.func @transform_1(%arg0: i32) -> (i32, i32) {
    %c0_i32 = arith.constant 0 : i32
    %c0_i32_0 = arith.constant 0 : i32
    return %arg0, %c0_i32 : i32, i32
  }
  func.func @transform_2(%arg0: i32) -> (i32, i32) {
    %c0_i32 = arith.constant 0 : i32
    %c0_i32_0 = arith.constant 0 : i32
    %c0_i32_1 = arith.constant 0 : i32
    return %c0_i32, %c0_i32_0 : i32, i32
  }
  func.func @transform_3(%arg0: i32) -> (i32, i32) {
    %c0_i32 = arith.constant 0 : i32
    %c0_i32_0 = arith.constant 0 : i32
    %c0_i32_1 = arith.constant 0 : i32
    return %c0_i32, %c0_i32_0 : i32, i32
  }
  func.func @transform_4(%arg0: i32) -> (i32, i32) {
    %c0_i32 = arith.constant 0 : i32
    %c0_i32_0 = arith.constant 0 : i32
    return %arg0, %c0_i32 : i32, i32
  }
}

</mosaic_0001>

<llo_original>
// kernel: tile.10
$region0: #{tile.10}
  #allocation0 [shape = 's32[1]{0}', space=sflag, size = 0x4, scoped, tag = 'scoped memory for tile.10']
  %s0 = inlined_call_operand.vmem [shape: f32[4], index: 0, kind: input, shape index: {}]
  %s1 = inlined_call_operand.vmem [shape: f32[32,4], index: 1, kind: output, shape index: {}]
  // Predicated region
  $region2: #{tile.10} parent=0 // pred_check
    _
  $region3: #{tile.10} parent=0 // pred_check_branch
    %3 = sbr.rel (0) target = $region5
  $region4: #{tile.10} parent=0 // pred_region
    _
  $region5: #{tile.10} parent=0 // pred_fallthru
    _
  %v4 = vld [vmem:[%s0] ss:$0 sm:$0xff]
  %5 = vst [vmem:[%s1] sm:$0xff] %v4
  %s6 = scalar_lea.vmem %s1, 8
  %7 = vst [vmem:[%s6] sm:$0xff] %v4
  %s8 = scalar_lea.vmem %s1, 16
  %9 = vst [vmem:[%s8] sm:$0xff] %v4
  %s10 = scalar_lea.vmem %s1, 24
  %11 = vst [vmem:[%s10] sm:$0xff] %v4

// kernel: tile.11
$region0: #{tile.11}
  %s0 = inlined_call_operand.vmem [shape: f32[32,4], index: 0, kind: input, shape index: {}]
  %s1 = inlined_call_operand.vmem [shape: f32[1,128], index: 1, kind: output, shape index: {}]
  $region1: #{tile.11} parent=0
    #allocation0 [shape = 'u8[4096]{0}', space=vmem, size = 0x1000, scoped, tag = 'scoped mem for output reshape']
    %v2 = vld [vmem:[%s0] sm:$0x1]
    %vm3 = vcmask 31744
    %4 = vst.msk [vmem:[#allocation0] sm:$0x1] %vm3, %v2
    %s5 = scalar_lea.vmem %s0, 31
    %v6 = vld [vmem:[%s5] sm:$0x1]
    %7 = vrot.lane.b32.xlu0 %v6, 124
    %v8 = vpop.permute.xlu0 %7
    %vm9 = vcmask 1048544
    %10 = vst.msk [vmem:[#allocation0] sm:$0x1] %vm9, %v8
    %s11 = scalar_lea.vmem %s0, 30
    %v12 = vld [vmem:[%s11] sm:$0x1]
    %13 = vrot.lane.b32.xlu0 %v12, 120
    %v14 = vpop.permute.xlu0 %13
    %vm15 = vcmask 1015744
    %16 = vst.msk [vmem:[#allocation0] sm:$0x1] %vm15, %v14
    %s17 = scalar_lea.vmem %s0, 29
    %v18 = vld [vmem:[%s17] sm:$0x1]
    %19 = vrot.lane.b32.xlu0 %v18, 116
    %v20 = vpop.permute.xlu0 %19
    %vm21 = vcmask 982944
    %22 = vst.msk [vmem:[#allocation0] sm:$0x1] %vm21, %v20
    %s23 = scalar_lea.vmem %s0, 28
    %v24 = vld [vmem:[%s23] sm:$0x1]
    %25 = vrot.lane.b32.xlu0 %v24, 112
    %v26 = vpop.permute.xlu0 %25
    %vm27 = vcmask 950144
    %28 = vst.msk [vmem:[#allocation0] sm:$0x1] %vm27, %v26
    %s29 = scalar_lea.vmem %s0, 27
    %v30 = vld [vmem:[%s29] sm:$0x1]
    %31 = vrot.lane.b32.xlu0 %v30, 108
    %v32 = vpop.permute.xlu0 %31
    %vm33 = vcmask 917344
    %34 = vst.msk [vmem:[#allocation0] sm:$0x1] %vm33, %v32
    %s35 = scalar_lea.vmem %s0, 26
    %v36 = vld [vmem:[%s35] sm:$0x1]
    %37 = vrot.lane.b32.xlu0 %v36, 104
    %v38 = vpop.permute.xlu0 %37
    %vm39 = vcmask 884544
    %40 = vst.msk [vmem:[#allocation0] sm:$0x1] %vm39, %v38
    %s41 = scalar_lea.vmem %s0, 25
    %v42 = vld [vmem:[%s41] sm:$0x1]
    %43 = vrot.lane.b32.xlu0 %v42, 100
    %v44 = vpop.permute.xlu0 %43
    %vm45 = vcmask 851744
    %46 = vst.msk [vmem:[#allocation0] sm:$0x1] %vm45, %v44
    %s47 = scalar_lea.vmem %s0, 24
    %v48 = vld [vmem:[%s47] sm:$0x1]
    %49 = vrot.lane.b32.xlu0 %v48, 96
    %v50 = vpop.permute.xlu0 %49
    %vm51 = vcmask 818944
    %52 = vst.msk [vmem:[#allocation0] sm:$0x1] %vm51, %v50
    %s53 = scalar_lea.vmem %s0, 23
    %v54 = vld [vmem:[%s53] sm:$0x1]
    %55 = vrot.lane.b32.xlu0 %v54, 92
    %v56 = vpop.permute.xlu0 %55
    %vm57 = vcmask 786144
    %58 = vst.msk [vmem:[#allocation0] sm:$0x1] %vm57, %v56
    %s59 = scalar_lea.vmem %s0, 22
    %v60 = vld [vmem:[%s59] sm:$0x1]
    %61 = vrot.lane.b32.xlu0 %v60, 88
    %v62 = vpop.permute.xlu0 %61
    %vm63 = vcmask 753344
    %64 = vst.msk [vmem:[#allocation0] sm:$0x1] %vm63, %v62
    %s65 = scalar_lea.vmem %s0, 21
    %v66 = vld [vmem:[%s65] sm:$0x1]
    %67 = vrot.lane.b32.xlu0 %v66, 84
    %v68 = vpop.permute.xlu0 %67
    %vm69 = vcmask 720544
    %70 = vst.msk [vmem:[#allocation0] sm:$0x1] %vm69, %v68
    %s71 = scalar_lea.vmem %s0, 20
    %v72 = vld [vmem:[%s71] sm:$0x1]
    %73 = vrot.lane.b32.xlu0 %v72, 80
    %v74 = vpop.permute.xlu0 %73
    %vm75 = vcmask 687744
    %76 = vst.msk [vmem:[#allocation0] sm:$0x1] %vm75, %v74
    %s77 = scalar_lea.vmem %s0, 19
    %v78 = vld [vmem:[%s77] sm:$0x1]
    %79 = vrot.lane.b32.xlu0 %v78, 76
    %v80 = vpop.permute.xlu0 %79
    %vm81 = vcmask 654944
    %82 = vst.msk [vmem:[#allocation0] sm:$0x1] %vm81, %v80
    %s83 = scalar_lea.vmem %s0, 18
    %v84 = vld [vmem:[%s83] sm:$0x1]
    %85 = vrot.lane.b32.xlu0 %v84, 72
    %v86 = vpop.permute.xlu0 %85
    %vm87 = vcmask 622144
    %88 = vst.msk [vmem:[#allocation0] sm:$0x1] %vm87, %v86
    %s89 = scalar_lea.vmem %s0, 17
    %v90 = vld [vmem:[%s89] sm:$0x1]
    %91 = vrot.lane.b32.xlu0 %v90, 68
    %v92 = vpop.permute.xlu0 %91
    %vm93 = vcmask 589344
    %94 = vst.msk [vmem:[#allocation0] sm:$0x1] %vm93, %v92
    %s95 = scalar_lea.vmem %s0, 16
    %v96 = vld [vmem:[%s95] sm:$0x1]
    %97 = vrot.lane.b32.xlu0 %v96, 64
    %v98 = vpop.permute.xlu0 %97
    %vm99 = vcmask 556544
    %100 = vst.msk [vmem:[#allocation0] sm:$0x1] %vm99, %v98
    %s101 = scalar_lea.vmem %s0, 15
    %v102 = vld [vmem:[%s101] sm:$0x1]
    %103 = vrot.lane.b32.xlu0 %v102, 60
    %v104 = vpop.permute.xlu0 %103
    %vm105 = vcmask 523744
    %106 = vst.msk [vmem:[#allocation0] sm:$0x1] %vm105, %v104
    %s107 = scalar_lea.vmem %s0, 14
    %v108 = vld [vmem:[%s107] sm:$0x1]
    %109 = vrot.lane.b32.xlu0 %v108, 56
    %v110 = vpop.permute.xlu0 %109
    %vm111 = vcmask 490944
    %112 = vst.msk [vmem:[#allocation0] sm:$0x1] %vm111, %v110
    %s113 = scalar_lea.vmem %s0, 13
    %v114 = vld [vmem:[%s113] sm:$0x1]
    %115 = vrot.lane.b32.xlu0 %v114, 52
    %v116 = vpop.permute.xlu0 %115
    %vm117 = vcmask 458144
    %118 = vst.msk [vmem:[#allocation0] sm:$0x1] %vm117, %v116
    %s119 = scalar_lea.vmem %s0, 12
    %v120 = vld [vmem:[%s119] sm:$0x1]
    %121 = vrot.lane.b32.xlu0 %v120, 48
    %v122 = vpop.permute.xlu0 %121
    %vm123 = vcmask 425344
    %124 = vst.msk [vmem:[#allocation0] sm:$0x1] %vm123, %v122
    %s125 = scalar_lea.vmem %s0, 11
    %v126 = vld [vmem:[%s125] sm:$0x1]
    %127 = vrot.lane.b32.xlu0 %v126, 44
    %v128 = vpop.permute.xlu0 %127
    %vm129 = vcmask 392544
    %130 = vst.msk [vmem:[#allocation0] sm:$0x1] %vm129, %v128
    %s131 = scalar_lea.vmem %s0, 10
    %v132 = vld [vmem:[%s131] sm:$0x1]
    %133 = vrot.lane.b32.xlu0 %v132, 40
    %v134 = vpop.permute.xlu0 %133
    %vm135 = vcmask 359744
    %136 = vst.msk [vmem:[#allocation0] sm:$0x1] %vm135, %v134
    %s137 = scalar_lea.vmem %s0, 9
    %v138 = vld [vmem:[%s137] sm:$0x1]
    %139 = vrot.lane.b32.xlu0 %v138, 36
    %v140 = vpop.permute.xlu0 %139
    %vm141 = vcmask 326944
    %142 = vst.msk [vmem:[#allocation0] sm:$0x1] %vm141, %v140
    %s143 = scalar_lea.vmem %s0, 8
    %v144 = vld [vmem:[%s143] sm:$0x1]
    %145 = vrot.lane.b32.xlu0 %v144, 32
    %v146 = vpop.permute.xlu0 %145
    %vm147 = vcmask 294144
    %148 = vst.msk [vmem:[#allocation0] sm:$0x1] %vm147, %v146
    %s149 = scalar_lea.vmem %s0, 7
    %v150 = vld [vmem:[%s149] sm:$0x1]
    %151 = vrot.lane.b32.xlu0 %v150, 28
    %v152 = vpop.permute.xlu0 %151
    %vm153 = vcmask 261344
    %154 = vst.msk [vmem:[#allocation0] sm:$0x1] %vm153, %v152
    %s155 = scalar_lea.vmem %s0, 6
    %v156 = vld [vmem:[%s155] sm:$0x1]
    %157 = vrot.lane.b32.xlu0 %v156, 24
    %v158 = vpop.permute.xlu0 %157
    %vm159 = vcmask 228544
    %160 = vst.msk [vmem:[#allocation0] sm:$0x1] %vm159, %v158
    %s161 = scalar_lea.vmem %s0, 5
    %v162 = vld [vmem:[%s161] sm:$0x1]
    %163 = vrot.lane.b32.xlu0 %v162, 20
    %v164 = vpop.permute.xlu0 %163
    %vm165 = vcmask 195744
    %166 = vst.msk [vmem:[#allocation0] sm:$0x1] %vm165, %v164
    %s167 = scalar_lea.vmem %s0, 4
    %v168 = vld [vmem:[%s167] sm:$0x1]
    %169 = vrot.lane.b32.xlu0 %v168, 16
    %v170 = vpop.permute.xlu0 %169
    %vm171 = vcmask 162944
    %172 = vst.msk [vmem:[#allocation0] sm:$0x1] %vm171, %v170
    %s173 = scalar_lea.vmem %s0, 3
    %v174 = vld [vmem:[%s173] sm:$0x1]
    %175 = vrot.lane.b32.xlu0 %v174, 12
    %v176 = vpop.permute.xlu0 %175
    %vm177 = vcmask 130144
    %178 = vst.msk [vmem:[#allocation0] sm:$0x1] %vm177, %v176
    %s179 = scalar_lea.vmem %s0, 2
    %v180 = vld [vmem:[%s179] sm:$0x1]
    %181 = vrot.lane.b32.xlu0 %v180, 8
    %v182 = vpop.permute.xlu0 %181
    %vm183 = vcmask 97344
    %184 = vst.msk [vmem:[#allocation0] sm:$0x1] %vm183, %v182
    %s185 = scalar_lea.vmem %s0, 1
    %v186 = vld [vmem:[%s185] sm:$0x1]
    %187 = vrot.lane.b32.xlu0 %v186, 4
    %v188 = vpop.permute.xlu0 %187
    %vm189 = vcmask 64544
    %190 = vst.msk [vmem:[#allocation0] sm:$0x1] %vm189, %v188
    %s192 = sshll.u32 1, 1
    %s193 = ssub.s32 %s192, 1
    %v195 = vld [vmem:[#allocation0] sm:%s193]
    %s196 = sshll.u32 1, 1
    %s197 = ssub.s32 %s196, 1
    %198 = vst [vmem:[%s1] sm:%s197] %v195

// kernel: residual_block.5
$region0: #{residual_block.5}
  #allocation0 [shape = 'u32[]', space=smem, size = 0x4, offset = 0x4, fixed_abs, tag = 'smem constant byte address 0x4 - core index']
  #allocation1 [shape = 'u32[144,128]{1,0:T(1,128)}', space=vmem, size = 0x12000, scoped, tag = 'internal scratch']
  %s0 = inlined_call_operand.vmem [shape: bf16[16,128], index: 0, kind: input, shape index: {}]
  %s1 = inlined_call_operand.vmem [shape: bf16[16,128], index: 1, kind: input, shape index: {}]
  %s2 = inlined_call_operand.vmem [shape: f32[1,128], index: 2, kind: input, shape index: {}]
  %s3 = inlined_call_operand.vmem [shape: f32[1,128], index: 3, kind: input, shape index: {}]
  %s4 = inlined_call_operand.vmem [shape: f32[16,128], index: 4, kind: output, shape index: {}]
  %s5 = sld [smem:[#allocation0]]
  $region49: #{residual_block.5} parent=0
    _
  %s7 = ssub.s32 1, %s5
  %s8 = scalar_select 0, %s7, %s5
  loop: start=0, step=1, limit=4
  $region2: #{residual_block.5} parent=0 // loop_pre_header
    _
  $region3: #{residual_block.5} parent=0 // loop_header
    %s10 = sphi 0, %s14
    %p11 = scmp.ge.s32.totalorder %s10, 4
    %s20 = sphi 0, %s22
    %s23 = sphi 0, %s20
    %s24 = sphi 0, %s23
    %s40 = sphi 0, %s24
    %s46 = sphi 0, %s48
    %s49 = sphi 0, %s46
    %s50 = sphi 0, %s49
    %s66 = sphi 0, %s50
    %s70 = sphi 0, %s70
    %s72 = sphi 0, %s70
    %s73 = sphi 0, %s72
    %s87 = sphi 0, %s73
    %s91 = sphi 0, %s91
    %s93 = sphi 0, %s91
    %s94 = sphi 0, %s93
    %s108 = sphi 0, %s94
    %s114 = sphi 0, %s116
    %s117 = sphi 0, %s114
    %s118 = sphi 0, %s117
    %s134 = sphi 0, %s118
  $region4: #{residual_block.5} parent=0 // loop_header_branch
    %13 = sbr.rel (%p11) target = $region8
  $region5: #{residual_block.5} parent=0 // loop_body
    %s15 = ssub.s32 %s10, 1
    %s16 = ssub.s32 %s10, 2
    %s17 = sadd.s32 %s10, 1
    %s18 = ssub.s32 %s10, %s17
    %p19 = scmp.eq.s32.totalorder %s18, 0
    %s21 = sadd.s32 %s20, 1
    %s22 = scalar_select %p19, %s20, %s21
    %p25 = pneg %p19
    %p26 = scmp.eq.s32.totalorder %s10, 1
    %p27 = por %p25, %p26
    %p28 = scmp.ne.s32.totalorder %s20, %s23
    %p29 = scmp.eq.s32.totalorder %s10, 0
    %p30 = por %p28, %p29
    %p31 = scmp.ne.s32.totalorder %s20, %s23
    %p32 = scmp.eq.s32.totalorder %s15, 1
    %p33 = por %p31, %p32
    %p34 = scmp.ne.s32.totalorder %s23, %s24
    %p35 = scmp.eq.s32.totalorder %s15, 0
    %p36 = por %p34, %p35
    %p37 = scmp.ne.s32.totalorder %s23, %s24
    %p38 = scmp.eq.s32.totalorder %s16, 1
    %p39 = por %p37, %p38
    %p41 = scmp.ne.s32.totalorder %s24, %s40
    %p42 = scmp.eq.s32.totalorder %s16, 0
    %p43 = por %p41, %p42
    %s44 = ssub.s32 %s10, %s17
    %p45 = scmp.eq.s32.totalorder %s44, 0
    %s47 = sadd.s32 %s46, 1
    %s48 = scalar_select %p45, %s46, %s47
    %p51 = pneg %p45
    %p52 = scmp.eq.s32.totalorder %s10, 1
    %p53 = por %p51, %p52
    %p54 = scmp.ne.s32.totalorder %s46, %s49
    %p55 = scmp.eq.s32.totalorder %s10, 0
    %p56 = por %p54, %p55
    %p57 = scmp.ne.s32.totalorder %s46, %s49
    %p58 = scmp.eq.s32.totalorder %s15, 1
    %p59 = por %p57, %p58
    %p60 = scmp.ne.s32.totalorder %s49, %s50
    %p61 = scmp.eq.s32.totalorder %s15, 0
    %p62 = por %p60, %p61
    %p63 = scmp.ne.s32.totalorder %s49, %s50
    %p64 = scmp.eq.s32.totalorder %s16, 1
    %p65 = por %p63, %p64
    %p67 = scmp.ne.s32.totalorder %s50, %s66
    %p68 = scmp.eq.s32.totalorder %s16, 0
    %p69 = por %p67, %p68
    %s71 = sadd.s32 %s70, 1
    %p74 = scmp.eq.s32.totalorder %s10, 1
    %p75 = scmp.ne.s32.totalorder %s70, %s72
    %p76 = scmp.eq.s32.totalorder %s10, 0
    %p77 = por %p75, %p76
    %p78 = scmp.ne.s32.totalorder %s70, %s72
    %p79 = scmp.eq.s32.totalorder %s15, 1
    %p80 = por %p78, %p79
    %p81 = scmp.ne.s32.totalorder %s72, %s73
    %p82 = scmp.eq.s32.totalorder %s15, 0
    %p83 = por %p81, %p82
    %p84 = scmp.ne.s32.totalorder %s72, %s73
    %p85 = scmp.eq.s32.totalorder %s16, 1
    %p86 = por %p84, %p85
    %p88 = scmp.ne.s32.totalorder %s73, %s87
    %p89 = scmp.eq.s32.totalorder %s16, 0
    %p90 = por %p88, %p89
    %s92 = sadd.s32 %s91, 1
    %p95 = scmp.eq.s32.totalorder %s10, 1
    %p96 = scmp.ne.s32.totalorder %s91, %s93
    %p97 = scmp.eq.s32.totalorder %s10, 0
    %p98 = por %p96, %p97
    %p99 = scmp.ne.s32.totalorder %s91, %s93
    %p100 = scmp.eq.s32.totalorder %s15, 1
    %p101 = por %p99, %p100
    %p102 = scmp.ne.s32.totalorder %s93, %s94
    %p103 = scmp.eq.s32.totalorder %s15, 0
    %p104 = por %p102, %p103
    %p105 = scmp.ne.s32.totalorder %s93, %s94
    %p106 = scmp.eq.s32.totalorder %s16, 1
    %p107 = por %p105, %p106
    %p109 = scmp.ne.s32.totalorder %s94, %s108
    %p110 = scmp.eq.s32.totalorder %s16, 0
    %p111 = por %p109, %p110
    %s112 = ssub.s32 %s10, %s17
    %p113 = scmp.eq.s32.totalorder %s112, 0
    %s115 = sadd.s32 %s114, 1
    %s116 = scalar_select %p113, %s114, %s115
    %p119 = pneg %p113
    %p120 = scmp.eq.s32.totalorder %s10, 1
    %p121 = por %p119, %p120
    %p122 = scmp.ne.s32.totalorder %s114, %s117
    %p123 = scmp.eq.s32.totalorder %s10, 0
    %p124 = por %p122, %p123
    %p125 = scmp.ne.s32.totalorder %s114, %s117
    %p126 = scmp.eq.s32.totalorder %s15, 1
    %p127 = por %p125, %p126
    %p128 = scmp.ne.s32.totalorder %s117, %s118
    %p129 = scmp.eq.s32.totalorder %s15, 0
    %p130 = por %p128, %p129
    %p131 = scmp.ne.s32.totalorder %s117, %s118
    %p132 = scmp.eq.s32.totalorder %s16, 1
    %p133 = por %p131, %p132
    %p135 = scmp.ne.s32.totalorder %s118, %s134
    %p136 = scmp.eq.s32.totalorder %s16, 0
    %p137 = por %p135, %p136
    %p138 = scmp.le.s32.totalorder 1, %s10
    %p139 = scmp.lt.s32.totalorder %s10, 3
    %p140 = pnand %p138, %p139
    %p141 = pneg %p140
    // Predicated region
    $region9: #{residual_block.5} parent=5 // pred_check
      _
    $region10: #{residual_block.5} parent=5 // pred_check_branch
      %143 = sbr.rel (%p140) target = $region12
    $region11: #{residual_block.5} parent=5 // pred_region
      %s144 = ssub.s32 %s10, 1
      // Predicated region
      $region13: #{residual_block.5} parent=11 // pred_check
        %p145 = pneg %p83
      $region14: #{residual_block.5} parent=11 // pred_check_branch
        %147 = sbr.rel (%p145) target = $region16
      $region15: #{residual_block.5} parent=11 // pred_region
        _
      $region16: #{residual_block.5} parent=11 // pred_fallthru
        _
      // Predicated region
      $region17: #{residual_block.5} parent=11 // pred_check
        %p148 = pneg %p104
      $region18: #{residual_block.5} parent=11 // pred_check_branch
        %150 = sbr.rel (%p148) target = $region20
      $region19: #{residual_block.5} parent=11 // pred_region
        _
      $region20: #{residual_block.5} parent=11 // pred_fallthru
        _
    $region12: #{residual_block.5} parent=5 // pred_fallthru
      _
    %p151 = scmp.lt.s32.totalorder %s10, 2
    // Predicated region
    $region21: #{residual_block.5} parent=5 // pred_check
      %p152 = pneg %p151
    $region22: #{residual_block.5} parent=5 // pred_check_branch
      %154 = sbr.rel (%p152) target = $region24
    $region23: #{residual_block.5} parent=5 // pred_region
      // Predicated region
      $region25: #{residual_block.5} parent=23 // pred_check
        %p155 = pneg %p30
      $region26: #{residual_block.5} parent=23 // pred_check_branch
        %157 = sbr.rel (%p155) target = $region28
      $region27: #{residual_block.5} parent=23 // pred_region
        %p158 = scmp.lt.s32.totalorder %s10, 1
        %s159 = scalar_select %p158, %s10, 1
        %s160 = smul.addr %s159, 4
        %s161 = scalar_lea.vmem %s0, %s160
      $region28: #{residual_block.5} parent=23 // pred_fallthru
        _
      // Predicated region
      $region29: #{residual_block.5} parent=23 // pred_check
        %p162 = pneg %p56
      $region30: #{residual_block.5} parent=23 // pred_check_branch
        %164 = sbr.rel (%p162) target = $region32
      $region31: #{residual_block.5} parent=23 // pred_region
        %p165 = scmp.lt.s32.totalorder %s10, 1
        %s166 = scalar_select %p165, %s10, 1
        %s167 = smul.addr %s166, 4
        %s168 = scalar_lea.vmem %s1, %s167
      $region32: #{residual_block.5} parent=23 // pred_fallthru
        _
    $region24: #{residual_block.5} parent=5 // pred_fallthru
      _
    %p169 = scmp.le.s32.totalorder 1, %s10
    %p170 = scmp.lt.s32.totalorder %s10, 3
    %p171 = pnand %p169, %p170
    %p172 = pneg %p171
    // Predicated region
    $region33: #{residual_block.5} parent=5 // pred_check
      _
    $region34: #{residual_block.5} parent=5 // pred_check_branch
      %174 = sbr.rel (%p171) target = $region36
    $region35: #{residual_block.5} parent=5 // pred_region
      %s175 = ssub.s32 %s10, 1
      %p176 = scmp.lt.s32.totalorder %s15, 1
      %s177 = scalar_select %p176, %s15, 1
      %s178 = smul.addr %s177, 4
      %s179 = scalar_lea.vmem %s0, %s178
      %p180 = pneg %p36
      %p181 = pneg %p33
      %p182 = scmp.lt.s32.totalorder %s15, 1
      %s183 = scalar_select %p182, %s15, 1
      %s184 = smul.addr %s183, 4
      %s185 = scalar_lea.vmem %s1, %s184
      %p186 = pneg %p62
      %p187 = pneg %p59
      %p188 = pneg %p83
      %p189 = pneg %p80
      %p190 = pneg %p104
      %p191 = pneg %p101
      %p192 = pneg %p130
      %p193 = pneg %p127
      %p194 = scmp.lt.s32.totalorder %s15, 1
      %s195 = scalar_select %p194, %s15, 1
      %s196 = smul.addr %s195, 8
      %s197 = scalar_lea.vmem %s4, %s196
      %p198 = scmp.lt.s32.totalorder %s15, 1
      %s199 = scalar_select %p198, %s15, 1
      %s200 = smul.addr %s199, 4
      %s201 = scalar_lea.vmem %s0, %s200
      %p202 = scmp.lt.s32.totalorder %s15, 1
      %s203 = scalar_select %p202, %s15, 1
      %s204 = smul.addr %s203, 4
      %s205 = scalar_lea.vmem %s1, %s204
      %p206 = scmp.lt.s32.totalorder %s15, 1
      %s207 = scalar_select %p206, %s15, 1
      %s208 = smul.addr %s207, 8
      %s209 = scalar_lea.vmem %s4, %s208
      %v210 = vld [vmem:[%s201] sm:$0xf]
      %v211 = vunpack.c.l.bf16 %v210
      %v212 = vld [vmem:[%s205] sm:$0xf]
      %v213 = vunpack.c.l.bf16 %v212
      %v214 = vld [vmem:[%s2] sm:$0x1]
      %v216 = vlaneseq
      %v217 = vshrl.u32 %v216, 7
      %v218 = vsub.s32 0, %v217
      %v219 = vrot.slane %v214, %v218
      %v221 = vmul.f32 %v211, %v219
      %v222 = vld [vmem:[%s3] sm:$0x1]
      %v224 = vlaneseq
      %v225 = vshrl.u32 %v224, 7
      %v226 = vsub.s32 0, %v225
      %v227 = vrot.slane %v222, %v226
      %v229 = vadd.f32 %v221, %v227
      %v230 = vadd.f32 %v229, %v213
      %v231 = vmax.f32 %v230, 0.0
      %232 = vst [vmem:[%s209] sm:$0xff] %v231
      %p233 = scmp.lt.s32.totalorder %s15, 1
      %s234 = scalar_select %p233, %s15, 1
      %s235 = smul.addr %s234, 8
      %s236 = scalar_lea.vmem %s4, %s235
      // Predicated region
      $region37: #{residual_block.5} parent=35 // pred_check
        %p237 = pneg %p127
      $region38: #{residual_block.5} parent=35 // pred_check_branch
        %239 = sbr.rel (%p237) target = $region40
      $region39: #{residual_block.5} parent=35 // pred_region
        _
      $region40: #{residual_block.5} parent=35 // pred_fallthru
        _
    $region36: #{residual_block.5} parent=5 // pred_fallthru
      _
    %p240 = scmp.le.s32.totalorder 2, %s10
    // Predicated region
    $region41: #{residual_block.5} parent=5 // pred_check
      %p241 = pneg %p240
    $region42: #{residual_block.5} parent=5 // pred_check_branch
      %243 = sbr.rel (%p241) target = $region44
    $region43: #{residual_block.5} parent=5 // pred_region
      %s244 = ssub.s32 %s10, 2
      // Predicated region
      $region45: #{residual_block.5} parent=43 // pred_check
        %p245 = pneg %p133
      $region46: #{residual_block.5} parent=43 // pred_check_branch
        %247 = sbr.rel (%p245) target = $region48
      $region47: #{residual_block.5} parent=43 // pred_region
        %p248 = scmp.lt.s32.totalorder %s16, 1
        %s249 = scalar_select %p248, %s16, 1
        %s250 = smul.addr %s249, 8
        %s251 = scalar_lea.vmem %s4, %s250
      $region48: #{residual_block.5} parent=43 // pred_fallthru
        _
    $region44: #{residual_block.5} parent=5 // pred_fallthru
      _
  $region6: #{residual_block.5} parent=0 // loop_footer
    %s14 = sadd.s32 1, %s10
  $region7: #{residual_block.5} parent=0 // loop_footer_branch
    %9 = sbr.rel target = $region3
  $region8: #{residual_block.5} parent=0 // loop_exit
    _

// kernel: residual_block.4
$region0: #{residual_block.4}
  #allocation0 [shape = 'u32[]', space=smem, size = 0x4, offset = 0x4, fixed_abs, tag = 'smem constant byte address 0x4 - core index']
  #allocation1 [shape = 'u32[144,128]{1,0:T(1,128)}', space=vmem, size = 0x12000, scoped, tag = 'internal scratch']
  #allocation2 [shape = 'bf16[10,18,4]{2,1,0:T(8,128)(2,1)}', space=vmem, size = 0xf000, scoped, tag = 'scratch operand']
  #allocation3 [shape = 'f32[128,4]{1,0:T(8,128)}', space=vmem, size = 0x10000, scoped, tag = 'scratch operand']
  %s0 = inlined_call_operand.vmem [shape: bf16[2,16,16,4], index: 0, kind: input, shape index: {}, may-alias: {0,1,2}]
  %s1 = inlined_call_operand.vmem [shape: bf16[2,16,16,4], index: 1, kind: input, shape index: {}, may-alias: {0,1,2}]
  %s2 = inlined_call_operand.vmem [shape: bf16[2,16,16,4], index: 2, kind: input, shape index: {}, may-alias: {0,1,2}]
  %s3 = inlined_call_operand.vmem [shape: f32[1,4], index: 3, kind: input, shape index: {}]
  %s4 = inlined_call_operand.vmem [shape: f32[1,4], index: 4, kind: input, shape index: {}]
  %s5 = inlined_call_operand.vmem [shape: bf16[9,4,4], index: 5, kind: input, shape index: {}]
  %s6 = inlined_call_operand.vmem [shape: bf16[2,16,16,4], index: 6, kind: output, shape index: {0}]
  %s7 = inlined_call_operand.vmem [shape: f32[2,2,2,4], index: 7, kind: output, shape index: {1}]
  %8 = xla_tuple %s6, %s7
  %s9 = sld [smem:[#allocation0]]
  $region65: #{residual_block.4} parent=0
    _
  %s11 = ssub.s32 1, %s9
  %s12 = scalar_select 0, %s11, %s9
  loop: start=0, step=1, limit=6
  $region2: #{residual_block.4} parent=0 // loop_pre_header
    _
  $region3: #{residual_block.4} parent=0 // loop_header
    %s14 = sphi 0, %s18
    %p15 = scmp.ge.s32.totalorder %s14, 6
    %s21 = sphi 0, %s33
    %s22 = sphi 0, %s29
    %s23 = sphi 0, %s21
    %s24 = sphi 0, %s22
    %s25 = sphi 0, %s23
    %s26 = sphi 0, %s24
    %s38 = sphi 0, %s40
    %s41 = sphi 0, %s38
    %s42 = sphi 0, %s41
    %s58 = sphi 0, %s42
    %s74 = sphi 0, %s76
    %s77 = sphi 0, %s74
    %s78 = sphi 0, %s77
    %s94 = sphi 0, %s78
    %s110 = sphi 0, %s112
    %s113 = sphi 0, %s110
    %s114 = sphi 0, %s113
    %s130 = sphi 0, %s114
    %s134 = sphi 0, %s134
    %s136 = sphi 0, %s134
    %s137 = sphi 0, %s136
    %s151 = sphi 0, %s137
    %s155 = sphi 0, %s155
    %s157 = sphi 0, %s155
    %s158 = sphi 0, %s157
    %s172 = sphi 0, %s158
    %s176 = sphi 0, %s176
    %s178 = sphi 0, %s176
    %s179 = sphi 0, %s178
    %s193 = sphi 0, %s179
    %s201 = sphi 0, %s203
    %s204 = sphi 0, %s201
    %s205 = sphi 0, %s204
    %s221 = sphi 0, %s205
    %s229 = sphi 0, %s231
    %s232 = sphi 0, %s229
    %s233 = sphi 0, %s232
    %s249 = sphi 0, %s233
  $region4: #{residual_block.4} parent=0 // loop_header_branch
    %17 = sbr.rel (%p15) target = $region8
  $region5: #{residual_block.4} parent=0 // loop_body
    %s19 = ssub.s32 %s14, 1
    %s20 = ssub.s32 %s14, 2
    %s27 = sadd.s32 1, %s22
    %p28 = scmp.ge.s32.totalorder %s27, 2
    %s29 = scalar_select %p28, 0, %s27
    %s30 = sadd.s32 1, %s21
    %s31 = scalar_select %p28, %s30, %s21
    %p32 = scmp.ge.s32.totalorder %s31, 2
    %s33 = scalar_select %p32, 0, %s31
    %s34 = ssub.s32 %s21, %s33
    %s35 = ssub.s32 %s22, %s29
    %s36 = sor.u32 %s34, %s35
    %p37 = scmp.eq.s32.totalorder %s36, 0
    %s39 = sadd.s32 %s38, 1
    %s40 = scalar_select %p37, %s38, %s39
    %p43 = pneg %p37
    %p44 = scmp.eq.s32.totalorder %s14, 3
    %p45 = por %p43, %p44
    %p46 = scmp.ne.s32.totalorder %s38, %s41
    %p47 = scmp.eq.s32.totalorder %s14, 0
    %p48 = por %p46, %p47
    %p49 = scmp.ne.s32.totalorder %s38, %s41
    %p50 = scmp.eq.s32.totalorder %s19, 3
    %p51 = por %p49, %p50
    %p52 = scmp.ne.s32.totalorder %s41, %s42
    %p53 = scmp.eq.s32.totalorder %s19, 0
    %p54 = por %p52, %p53
    %p55 = scmp.ne.s32.totalorder %s41, %s42
    %p56 = scmp.eq.s32.totalorder %s20, 3
    %p57 = por %p55, %p56
    %p59 = scmp.ne.s32.totalorder %s42, %s58
    %p60 = scmp.eq.s32.totalorder %s20, 0
    %p61 = por %p59, %p60
    %s62 = smul.u32 %s22, 8
    %s63 = ssub.s32 %s62, 1
    %p64 = scmp.gt.s32.totalorder %s63, 0
    %s65 = scalar_select %p64, %s63, 0
    %s66 = smul.u32 %s29, 8
    %s67 = ssub.s32 %s66, 1
    %p68 = scmp.gt.s32.totalorder %s67, 0
    %s69 = scalar_select %p68, %s67, 0
    %s70 = ssub.s32 %s21, %s33
    %s71 = ssub.s32 %s65, %s69
    %s72 = sor.u32 %s70, %s71
    %p73 = scmp.eq.s32.totalorder %s72, 0
    %s75 = sadd.s32 %s74, 1
    %s76 = scalar_select %p73, %s74, %s75
    %p79 = pneg %p73
    %p80 = scmp.eq.s32.totalorder %s14, 3
    %p81 = por %p79, %p80
    %p82 = scmp.ne.s32.totalorder %s74, %s77
    %p83 = scmp.eq.s32.totalorder %s14, 0
    %p84 = por %p82, %p83
    %p85 = scmp.ne.s32.totalorder %s74, %s77
    %p86 = scmp.eq.s32.totalorder %s19, 3
    %p87 = por %p85, %p86
    %p88 = scmp.ne.s32.totalorder %s77, %s78
    %p89 = scmp.eq.s32.totalorder %s19, 0
    %p90 = por %p88, %p89
    %p91 = scmp.ne.s32.totalorder %s77, %s78
    %p92 = scmp.eq.s32.totalorder %s20, 3
    %p93 = por %p91, %p92
    %p95 = scmp.ne.s32.totalorder %s78, %s94
    %p96 = scmp.eq.s32.totalorder %s20, 0
    %p97 = por %p95, %p96
    %s98 = sadd.s32 %s22, 1
    %s99 = smul.u32 %s98, 8
    %p100 = scmp.lt.s32.totalorder %s99, 15
    %s101 = scalar_select %p100, %s99, 15
    %s102 = sadd.s32 %s29, 1
    %s103 = smul.u32 %s102, 8
    %p104 = scmp.lt.s32.totalorder %s103, 15
    %s105 = scalar_select %p104, %s103, 15
    %s106 = ssub.s32 %s21, %s33
    %s107 = ssub.s32 %s101, %s105
    %s108 = sor.u32 %s106, %s107
    %p109 = scmp.eq.s32.totalorder %s108, 0
    %s111 = sadd.s32 %s110, 1
    %s112 = scalar_select %p109, %s110, %s111
    %p115 = pneg %p109
    %p116 = scmp.eq.s32.totalorder %s14, 3
    %p117 = por %p115, %p116
    %p118 = scmp.ne.s32.totalorder %s110, %s113
    %p119 = scmp.eq.s32.totalorder %s14, 0
    %p120 = por %p118, %p119
    %p121 = scmp.ne.s32.totalorder %s110, %s113
    %p122 = scmp.eq.s32.totalorder %s19, 3
    %p123 = por %p121, %p122
    %p124 = scmp.ne.s32.totalorder %s113, %s114
    %p125 = scmp.eq.s32.totalorder %s19, 0
    %p126 = por %p124, %p125
    %p127 = scmp.ne.s32.totalorder %s113, %s114
    %p128 = scmp.eq.s32.totalorder %s20, 3
    %p129 = por %p127, %p128
    %p131 = scmp.ne.s32.totalorder %s114, %s130
    %p132 = scmp.eq.s32.totalorder %s20, 0
    %p133 = por %p131, %p132
    %s135 = sadd.s32 %s134, 1
    %p138 = scmp.eq.s32.totalorder %s14, 3
    %p139 = scmp.ne.s32.totalorder %s134, %s136
    %p140 = scmp.eq.s32.totalorder %s14, 0
    %p141 = por %p139, %p140
    %p142 = scmp.ne.s32.totalorder %s134, %s136
    %p143 = scmp.eq.s32.totalorder %s19, 3
    %p144 = por %p142, %p143
    %p145 = scmp.ne.s32.totalorder %s136, %s137
    %p146 = scmp.eq.s32.totalorder %s19, 0
    %p147 = por %p145, %p146
    %p148 = scmp.ne.s32.totalorder %s136, %s137
    %p149 = scmp.eq.s32.totalorder %s20, 3
    %p150 = por %p148, %p149
    %p152 = scmp.ne.s32.totalorder %s137, %s151
    %p153 = scmp.eq.s32.totalorder %s20, 0
    %p154 = por %p152, %p153
    %s156 = sadd.s32 %s155, 1
    %p159 = scmp.eq.s32.totalorder %s14, 3
    %p160 = scmp.ne.s32.totalorder %s155, %s157
    %p161 = scmp.eq.s32.totalorder %s14, 0
    %p162 = por %p160, %p161
    %p163 = scmp.ne.s32.totalorder %s155, %s157
    %p164 = scmp.eq.s32.totalorder %s19, 3
    %p165 = por %p163, %p164
    %p166 = scmp.ne.s32.totalorder %s157, %s158
    %p167 = scmp.eq.s32.totalorder %s19, 0
    %p168 = por %p166, %p167
    %p169 = scmp.ne.s32.totalorder %s157, %s158
    %p170 = scmp.eq.s32.totalorder %s20, 3
    %p171 = por %p169, %p170
    %p173 = scmp.ne.s32.totalorder %s158, %s172
    %p174 = scmp.eq.s32.totalorder %s20, 0
    %p175 = por %p173, %p174
    %s177 = sadd.s32 %s176, 1
    %p180 = scmp.eq.s32.totalorder %s14, 3
    %p181 = scmp.ne.s32.totalorder %s176, %s178
    %p182 = scmp.eq.s32.totalorder %s14, 0
    %p183 = por %p181, %p182
    %p184 = scmp.ne.s32.totalorder %s176, %s178
    %p185 = scmp.eq.s32.totalorder %s19, 3
    %p186 = por %p184, %p185
    %p187 = scmp.ne.s32.totalorder %s178, %s179
    %p188 = scmp.eq.s32.totalorder %s19, 0
    %p189 = por %p187, %p188
    %p190 = scmp.ne.s32.totalorder %s178, %s179
    %p191 = scmp.eq.s32.totalorder %s20, 3
    %p192 = por %p190, %p191
    %p194 = scmp.ne.s32.totalorder %s179, %s193
    %p195 = scmp.eq.s32.totalorder %s20, 0
    %p196 = por %p194, %p195
    %s197 = ssub.s32 %s21, %s33
    %s198 = ssub.s32 %s22, %s29
    %s199 = sor.u32 %s197, %s198
    %p200 = scmp.eq.s32.totalorder %s199, 0
    %s202 = sadd.s32 %s201, 1
    %s203 = scalar_select %p200, %s201, %s202
    %p206 = pneg %p200
    %p207 = scmp.eq.s32.totalorder %s14, 3
    %p208 = por %p206, %p207
    %p209 = scmp.ne.s32.totalorder %s201, %s204
    %p210 = scmp.eq.s32.totalorder %s14, 0
    %p211 = por %p209, %p210
    %p212 = scmp.ne.s32.totalorder %s201, %s204
    %p213 = scmp.eq.s32.totalorder %s19, 3
    %p214 = por %p212, %p213
    %p215 = scmp.ne.s32.totalorder %s204, %s205
    %p216 = scmp.eq.s32.totalorder %s19, 0
    %p217 = por %p215, %p216
    %p218 = scmp.ne.s32.totalorder %s204, %s205
    %p219 = scmp.eq.s32.totalorder %s20, 3
    %p220 = por %p218, %p219
    %p222 = scmp.ne.s32.totalorder %s205, %s221
    %p223 = scmp.eq.s32.totalorder %s20, 0
    %p224 = por %p222, %p223
    %s225 = ssub.s32 %s21, %s33
    %s226 = ssub.s32 %s22, %s29
    %s227 = sor.u32 %s225, %s226
    %p228 = scmp.eq.s32.totalorder %s227, 0
    %s230 = sadd.s32 %s229, 1
    %s231 = scalar_select %p228, %s229, %s230
    %p234 = pneg %p228
    %p235 = scmp.eq.s32.totalorder %s14, 3
    %p236 = por %p234, %p235
    %p237 = scmp.ne.s32.totalorder %s229, %s232
    %p238 = scmp.eq.s32.totalorder %s14, 0
    %p239 = por %p237, %p238
    %p240 = scmp.ne.s32.totalorder %s229, %s232
    %p241 = scmp.eq.s32.totalorder %s19, 3
    %p242 = por %p240, %p241
    %p243 = scmp.ne.s32.totalorder %s232, %s233
    %p244 = scmp.eq.s32.totalorder %s19, 0
    %p245 = por %p243, %p244
    %p246 = scmp.ne.s32.totalorder %s232, %s233
    %p247 = scmp.eq.s32.totalorder %s20, 3
    %p248 = por %p246, %p247
    %p250 = scmp.ne.s32.totalorder %s233, %s249
    %p251 = scmp.eq.s32.totalorder %s20, 0
    %p252 = por %p250, %p251
    %p253 = scmp.le.s32.totalorder 1, %s14
    %p254 = scmp.lt.s32.totalorder %s14, 5
    %p255 = pnand %p253, %p254
    %p256 = pneg %p255
    // Predicated region
    $region9: #{residual_block.4} parent=5 // pred_check
      _
    $region10: #{residual_block.4} parent=5 // pred_check_branch
      %258 = sbr.rel (%p255) target = $region12
    $region11: #{residual_block.4} parent=5 // pred_region
      %s259 = ssub.s32 %s14, 1
      // Predicated region
      $region13: #{residual_block.4} parent=11 // pred_check
        %p260 = pneg %p147
      $region14: #{residual_block.4} parent=11 // pred_check_branch
        %262 = sbr.rel (%p260) target = $region16
      $region15: #{residual_block.4} parent=11 // pred_region
        _
      $region16: #{residual_block.4} parent=11 // pred_fallthru
        _
      // Predicated region
      $region17: #{residual_block.4} parent=11 // pred_check
        %p263 = pneg %p168
      $region18: #{residual_block.4} parent=11 // pred_check_branch
        %265 = sbr.rel (%p263) target = $region20
      $region19: #{residual_block.4} parent=11 // pred_region
        _
      $region20: #{residual_block.4} parent=11 // pred_fallthru
        _
      // Predicated region
      $region21: #{residual_block.4} parent=11 // pred_check
        %p266 = pneg %p189
      $region22: #{residual_block.4} parent=11 // pred_check_branch
        %268 = sbr.rel (%p266) target = $region24
      $region23: #{residual_block.4} parent=11 // pred_region
        _
      $region24: #{residual_block.4} parent=11 // pred_fallthru
        _
    $region12: #{residual_block.4} parent=5 // pred_fallthru
      _
    %p269 = scmp.lt.s32.totalorder %s14, 4
    // Predicated region
    $region25: #{residual_block.4} parent=5 // pred_check
      %p270 = pneg %p269
    $region26: #{residual_block.4} parent=5 // pred_check_branch
      %272 = sbr.rel (%p270) target = $region28
    $region27: #{residual_block.4} parent=5 // pred_region
      // Predicated region
      $region29: #{residual_block.4} parent=27 // pred_check
        %p273 = pneg %p48
      $region30: #{residual_block.4} parent=27 // pred_check_branch
        %275 = sbr.rel (%p273) target = $region32
      $region31: #{residual_block.4} parent=27 // pred_region
        %s276 = smul.u32 8, %s22
        %p277 = scmp.lt.s32.totalorder %s21, 1
        %s278 = scalar_select %p277, %s21, 1
        %p279 = scmp.lt.s32.totalorder %s276, 15
        %s280 = scalar_select %p279, %s276, 15
        %s281 = smul.addr %s280, 2
        %s282 = smul.addr %s278, 32
        %s283 = sadd.s32 %s281, %s282
        %s284 = smul.addr %s283, 4
        %s285 = scalar_lea.vmem %s0, %s284
        %s286 = smul.u32 8, %s22
      $region32: #{residual_block.4} parent=27 // pred_fallthru
        _
      // Predicated region
      $region33: #{residual_block.4} parent=27 // pred_check
        %p287 = pneg %p84
      $region34: #{residual_block.4} parent=27 // pred_check_branch
        %289 = sbr.rel (%p287) target = $region36
      $region35: #{residual_block.4} parent=27 // pred_region
        %s290 = smul.u32 %s22, 8
        %s291 = ssub.s32 %s290, 1
        %p292 = scmp.gt.s32.totalorder %s291, 0
        %s293 = scalar_select %p292, %s291, 0
        %p294 = scmp.lt.s32.totalorder %s21, 1
        %s295 = scalar_select %p294, %s21, 1
        %p296 = scmp.lt.s32.totalorder %s293, 15
        %s297 = scalar_select %p296, %s293, 15
        %s298 = smul.addr %s297, 2
        %s299 = smul.addr %s295, 32
        %s300 = sadd.s32 %s298, %s299
        %s301 = smul.addr %s300, 4
        %s302 = scalar_lea.vmem %s1, %s301
        %s303 = smul.u32 %s22, 8
        %s304 = ssub.s32 %s303, 1
        %p305 = scmp.gt.s32.totalorder %s304, 0
        %s306 = scalar_select %p305, %s304, 0
      $region36: #{residual_block.4} parent=27 // pred_fallthru
        _
      // Predicated region
      $region37: #{residual_block.4} parent=27 // pred_check
        %p307 = pneg %p120
      $region38: #{residual_block.4} parent=27 // pred_check_branch
        %309 = sbr.rel (%p307) target = $region40
      $region39: #{residual_block.4} parent=27 // pred_region
        %s310 = sadd.s32 %s22, 1
        %s311 = smul.u32 %s310, 8
        %p312 = scmp.lt.s32.totalorder %s311, 15
        %s313 = scalar_select %p312, %s311, 15
        %p314 = scmp.lt.s32.totalorder %s21, 1
        %s315 = scalar_select %p314, %s21, 1
        %p316 = scmp.lt.s32.totalorder %s313, 15
        %s317 = scalar_select %p316, %s313, 15
        %s318 = smul.addr %s317, 2
        %s319 = smul.addr %s315, 32
        %s320 = sadd.s32 %s318, %s319
        %s321 = smul.addr %s320, 4
        %s322 = scalar_lea.vmem %s2, %s321
        %s323 = sadd.s32 %s22, 1
        %s324 = smul.u32 %s323, 8
        %p325 = scmp.lt.s32.totalorder %s324, 15
        %s326 = scalar_select %p325, %s324, 15
      $region40: #{residual_block.4} parent=27 // pred_fallthru
        _
    $region28: #{residual_block.4} parent=5 // pred_fallthru
      _
    %p327 = scmp.le.s32.totalorder 1, %s14
    %p328 = scmp.lt.s32.totalorder %s14, 5
    %p329 = pnand %p327, %p328
    %p330 = pneg %p329
    // Predicated region
    $region41: #{residual_block.4} parent=5 // pred_check
      _
    $region42: #{residual_block.4} parent=5 // pred_check_branch
      %332 = sbr.rel (%p329) target = $region44
    $region43: #{residual_block.4} parent=5 // pred_region
      %s333 = ssub.s32 %s14, 1
      %s334 = smul.u32 8, %s24
      %p335 = scmp.lt.s32.totalorder %s23, 1
      %s336 = scalar_select %p335, %s23, 1
      %p337 = scmp.lt.s32.totalorder %s334, 15
      %s338 = scalar_select %p337, %s334, 15
      %s339 = smul.addr %s338, 2
      %s340 = smul.addr %s336, 32
      %s341 = sadd.s32 %s339, %s340
      %s342 = smul.addr %s341, 4
      %s343 = scalar_lea.vmem %s0, %s342
      %p344 = pneg %p54
      %p345 = pneg %p51
      %s346 = smul.u32 %s24, 8
      %s347 = ssub.s32 %s346, 1
      %p348 = scmp.gt.s32.totalorder %s347, 0
      %s349 = scalar_select %p348, %s347, 0
      %p350 = scmp.lt.s32.totalorder %s23, 1
      %s351 = scalar_select %p350, %s23, 1
      %p352 = scmp.lt.s32.totalorder %s349, 15
      %s353 = scalar_select %p352, %s349, 15
      %s354 = smul.addr %s353, 2
      %s355 = smul.addr %s351, 32
      %s356 = sadd.s32 %s354, %s355
      %s357 = smul.addr %s356, 4
      %s358 = scalar_lea.vmem %s1, %s357
      %p359 = pneg %p90
      %p360 = pneg %p87
      %s361 = sadd.s32 %s24, 1
      %s362 = smul.u32 %s361, 8
      %p363 = scmp.lt.s32.totalorder %s362, 15
      %s364 = scalar_select %p363, %s362, 15
      %p365 = scmp.lt.s32.totalorder %s23, 1
      %s366 = scalar_select %p365, %s23, 1
      %p367 = scmp.lt.s32.totalorder %s364, 15
      %s368 = scalar_select %p367, %s364, 15
      %s369 = smul.addr %s368, 2
      %s370 = smul.addr %s366, 32
      %s371 = sadd.s32 %s369, %s370
      %s372 = smul.addr %s371, 4
      %s373 = scalar_lea.vmem %s2, %s372
      %p374 = pneg %p126
      %p375 = pneg %p123
      %p376 = pneg %p147
      %p377 = pneg %p144
      %p378 = pneg %p168
      %p379 = pneg %p165
      %p380 = pneg %p189
      %p381 = pneg %p186
      %p382 = pneg %p217
      %p383 = pneg %p214
      %s384 = smul.u32 8, %s24
      %p385 = scmp.lt.s32.totalorder %s23, 1
      %s386 = scalar_select %p385, %s23, 1
      %p387 = scmp.lt.s32.totalorder %s384, 15
      %s388 = scalar_select %p387, %s384, 15
      %s389 = smul.addr %s388, 2
      %s390 = smul.addr %s386, 32
      %s391 = sadd.s32 %s389, %s390
      %s392 = smul.addr %s391, 4
      %s393 = scalar_lea.vmem %s6, %s392
      %p394 = pneg %p245
      %p395 = pneg %p242
      %p396 = scmp.lt.s32.totalorder %s23, 1
      %s397 = scalar_select %p396, %s23, 1
      %p398 = scmp.lt.s32.totalorder %s24, 1
      %s399 = scalar_select %p398, %s24, 1
      %s400 = smul.addr %s397, 2
      %s401 = sadd.s32 %s399, %s400
      %s402 = smul.addr %s401, 2
      %s403 = scalar_lea.vmem %s7, %s402
      %s404 = smul.u32 8, %s24
      %p405 = scmp.lt.s32.totalorder %s23, 1
      %s406 = scalar_select %p405, %s23, 1
      %p407 = scmp.lt.s32.totalorder %s404, 15
      %s408 = scalar_select %p407, %s404, 15
      %s409 = smul.addr %s408, 2
      %s410 = smul.addr %s406, 32
      %s411 = sadd.s32 %s409, %s410
      %s412 = smul.addr %s411, 4
      %s413 = scalar_lea.vmem %s0, %s412
      %s414 = smul.u32 8, %s24
      %s415 = smul.u32 %s24, 8
      %s416 = ssub.s32 %s415, 1
      %p417 = scmp.gt.s32.totalorder %s416, 0
      %s418 = scalar_select %p417, %s416, 0
      %p419 = scmp.lt.s32.totalorder %s23, 1
      %s420 = scalar_select %p419, %s23, 1
      %p421 = scmp.lt.s32.totalorder %s418, 15
      %s422 = scalar_select %p421, %s418, 15
      %s423 = smul.addr %s422, 2
      %s424 = smul.addr %s420, 32
      %s425 = sadd.s32 %s423, %s424
      %s426 = smul.addr %s425, 4
      %s427 = scalar_lea.vmem %s1, %s426
      %s428 = smul.u32 %s24, 8
      %s429 = ssub.s32 %s428, 1
      %p430 = scmp.gt.s32.totalorder %s429, 0
      %s431 = scalar_select %p430, %s429, 0
      %s432 = sadd.s32 %s24, 1
      %s433 = smul.u32 %s432, 8
      %p434 = scmp.lt.s32.totalorder %s433, 15
      %s435 = scalar_select %p434, %s433, 15
      %p436 = scmp.lt.s32.totalorder %s23, 1
      %s437 = scalar_select %p436, %s23, 1
      %p438 = scmp.lt.s32.totalorder %s435, 15
      %s439 = scalar_select %p438, %s435, 15
      %s440 = smul.addr %s439, 2
      %s441 = smul.addr %s437, 32
      %s442 = sadd.s32 %s440, %s441
      %s443 = smul.addr %s442, 4
      %s444 = scalar_lea.vmem %s2, %s443
      %s445 = sadd.s32 %s24, 1
      %s446 = smul.u32 %s445, 8
      %p447 = scmp.lt.s32.totalorder %s446, 15
      %s448 = scalar_select %p447, %s446, 15
      %s449 = smul.u32 8, %s24
      %p450 = scmp.lt.s32.totalorder %s23, 1
      %s451 = scalar_select %p450, %s23, 1
      %p452 = scmp.lt.s32.totalorder %s449, 15
      %s453 = scalar_select %p452, %s449, 15
      %s454 = smul.addr %s453, 2
      %s455 = smul.addr %s451, 32
      %s456 = sadd.s32 %s454, %s455
      %s457 = smul.addr %s456, 4
      %s458 = scalar_lea.vmem %s6, %s457
      %s459 = smul.u32 8, %s24
      %p460 = scmp.lt.s32.totalorder %s23, 1
      %s461 = scalar_select %p460, %s23, 1
      %p462 = scmp.lt.s32.totalorder %s24, 1
      %s463 = scalar_select %p462, %s24, 1
      %s464 = smul.addr %s461, 2
      %s465 = sadd.s32 %s463, %s464
      %s466 = smul.addr %s465, 2
      %s467 = scalar_lea.vmem %s7, %s466
      %v469 = vld [vmem:[%s413] sm:$0xf]
      %v470 = vld [vmem:[%s413 + $0x4] sm:$0xf]
      %v471 = vld [vmem:[%s413 + $0x8] sm:$0xf]
      %v472 = vld [vmem:[%s413 + $0xc] sm:$0xf]
      %v473 = vld [vmem:[%s413 + $0x10] sm:$0xf]
      %v474 = vld [vmem:[%s413 + $0x14] sm:$0xf]
      %v475 = vld [vmem:[%s413 + $0x18] sm:$0xf]
      %v476 = vld [vmem:[%s413 + $0x1c] sm:$0xf]
      %v477 = vld [vmem:[%s413 + $0x20] sm:$0xf]
      %v478 = vld [vmem:[%s413 + $0x24] sm:$0xf]
      %v479 = vld [vmem:[%s413 + $0x28] sm:$0xf]
      %v480 = vld [vmem:[%s413 + $0x2c] sm:$0xf]
      %v481 = vld [vmem:[%s413 + $0x30] sm:$0xf]
      %v482 = vld [vmem:[%s413 + $0x34] sm:$0xf]
      %v483 = vld [vmem:[%s413 + $0x38] sm:$0xf]
      %v484 = vld [vmem:[%s413 + $0x3c] sm:$0xf]
      %v485 = vunpack.c.l.bf16 %v469
      %v486 = vunpack.c.l.bf16 %v470
      %v487 = vunpack.c.l.bf16 %v471
      %v488 = vunpack.c.l.bf16 %v472
      %v489 = vunpack.c.l.bf16 %v473
      %v490 = vunpack.c.l.bf16 %v474
      %v491 = vunpack.c.l.bf16 %v475
      %v492 = vunpack.c.l.bf16 %v476
      %v493 = vunpack.c.l.bf16 %v477
      %v494 = vunpack.c.l.bf16 %v478
      %v495 = vunpack.c.l.bf16 %v479
      %v496 = vunpack.c.l.bf16 %v480
      %v497 = vunpack.c.l.bf16 %v481
      %v498 = vunpack.c.l.bf16 %v482
      %v499 = vunpack.c.l.bf16 %v483
      %v500 = vunpack.c.l.bf16 %v484
      %v501 = vld [vmem:[%s3] sm:$0x1]
      %v503 = vlaneseq
      %v504 = vshrl.u32 %v503, 7
      %v505 = vsub.s32 0, %v504
      %v506 = vrot.slane %v501, %v505
      %v508 = vmul.f32 %v485, %v506
      %v509 = vmul.f32 %v486, %v506
      %v510 = vmul.f32 %v487, %v506
      %v511 = vmul.f32 %v488, %v506
      %v512 = vmul.f32 %v489, %v506
      %v513 = vmul.f32 %v490, %v506
      %v514 = vmul.f32 %v491, %v506
      %v515 = vmul.f32 %v492, %v506
      %v516 = vmul.f32 %v493, %v506
      %v517 = vmul.f32 %v494, %v506
      %v518 = vmul.f32 %v495, %v506
      %v519 = vmul.f32 %v496, %v506
      %v520 = vmul.f32 %v497, %v506
      %v521 = vmul.f32 %v498, %v506
      %v522 = vmul.f32 %v499, %v506
      %v523 = vmul.f32 %v500, %v506
      %v524 = vld [vmem:[%s4] sm:$0x1]
      %v526 = vlaneseq
      %v527 = vshrl.u32 %v526, 7
      %v528 = vsub.s32 0, %v527
      %v529 = vrot.slane %v524, %v528
      %v531 = vadd.f32 %v508, %v529
      %v532 = vadd.f32 %v509, %v529
      %v533 = vadd.f32 %v510, %v529
      %v534 = vadd.f32 %v511, %v529
      %v535 = vadd.f32 %v512, %v529
      %v536 = vadd.f32 %v513, %v529
      %v537 = vadd.f32 %v514, %v529
      %v538 = vadd.f32 %v515, %v529
      %v539 = vadd.f32 %v516, %v529
      %v540 = vadd.f32 %v517, %v529
      %v541 = vadd.f32 %v518, %v529
      %v542 = vadd.f32 %v519, %v529
      %v543 = vadd.f32 %v520, %v529
      %v544 = vadd.f32 %v521, %v529
      %v545 = vadd.f32 %v522, %v529
      %v546 = vadd.f32 %v523, %v529
      %v547 = vmax.f32 %v531, 0.0
      %v548 = vmax.f32 %v532, 0.0
      %v549 = vmax.f32 %v533, 0.0
      %v550 = vmax.f32 %v534, 0.0
      %v551 = vmax.f32 %v535, 0.0
      %v552 = vmax.f32 %v536, 0.0
      %v553 = vmax.f32 %v537, 0.0
      %v554 = vmax.f32 %v538, 0.0
      %v555 = vmax.f32 %v539, 0.0
      %v556 = vmax.f32 %v540, 0.0
      %v557 = vmax.f32 %v541, 0.0
      %v558 = vmax.f32 %v542, 0.0
      %v559 = vmax.f32 %v543, 0.0
      %v560 = vmax.f32 %v544, 0.0
      %v561 = vmax.f32 %v545, 0.0
      %v562 = vmax.f32 %v546, 0.0
      %v563 = vpack.c.bf16 %v548, %v547
      %v564 = vpack.c.bf16 %v550, %v549
      %v565 = vpack.c.bf16 %v552, %v551
      %v566 = vpack.c.bf16 %v554, %v553
      %v567 = vpack.c.bf16 %v556, %v555
      %v568 = vpack.c.bf16 %v558, %v557
      %v569 = vpack.c.bf16 %v560, %v559
      %v570 = vpack.c.bf16 %v562, %v561
      %v571 = vld [vmem:[%s427] sm:$0xf]
      %v572 = vld [vmem:[%s427 + $0x4] sm:$0xf]
      %v573 = vunpack.c.l.bf16 %v571
      %v574 = vunpack.c.l.bf16 %v572
      %v575 = vmul.f32 %v573, %v506
      %v576 = vmul.f32 %v574, %v506
      %v577 = vadd.f32 %v575, %v529
      %v578 = vadd.f32 %v576, %v529
      %v579 = vmax.f32 %v577, 0.0
      %v580 = vmax.f32 %v578, 0.0
      %v581 = vpack.c.bf16 %v580, %v579
      %v582 = vld [vmem:[%s444] sm:$0xf]
      %v583 = vld [vmem:[%s444 + $0x4] sm:$0xf]
      %v584 = vunpack.c.l.bf16 %v582
      %v585 = vunpack.c.l.bf16 %v583
      %v586 = vmul.f32 %v584, %v506
      %v587 = vmul.f32 %v585, %v506
      %v588 = vadd.f32 %v586, %v529
      %v589 = vadd.f32 %v587, %v529
      %v590 = vmax.f32 %v588, 0.0
      %v591 = vmax.f32 %v589, 0.0
      %v592 = vpack.c.bf16 %v591, %v590
      %p593 = scmp.eq.s32.totalorder %s24, 0
      %s594 = scalar_select %p593, 1, 0
      %v595 = vstv %s594
      %vm596 = vcmp.eq.s32.totalorder %v595, 1
      %v597 = vsel %vm596, 0, %v581
      %p598 = scmp.eq.s32.totalorder %s24, 1
      %s599 = scalar_select %p598, 1, 0
      %v600 = vstv %s599
      %vm601 = vcmp.eq.s32.totalorder %v600, 1
      %v602 = vsel %vm601, 0, %v592
      %vm603 = vcmask 24576
      %vm604 = vsmask.f32 256
      %vm605 = vmand %vm603, %vm604
      %v606 = vld [vmem:[#allocation2] sm:$0x1]
      %v607 = vsel %vm605, 0, %v606
      %608 = vst [vmem:[#allocation2] sm:$0x1] %v607
      %v609 = vld [vmem:[#allocation2 + $0xc] sm:$0x1]
      %v610 = vsel %vm605, 0, %v609
      %611 = vst [vmem:[#allocation2 + $0xc] sm:$0x1] %v610
      %v612 = vld [vmem:[#allocation2 + $0x18] sm:$0x1]
      %v613 = vsel %vm605, 0, %v612
      %614 = vst [vmem:[#allocation2 + $0x18] sm:$0x1] %v613
      %v615 = vld [vmem:[#allocation2 + $0x24] sm:$0x1]
      %v616 = vsel %vm605, 0, %v615
      %617 = vst [vmem:[#allocation2 + $0x24] sm:$0x1] %v616
      %v618 = vld [vmem:[#allocation2 + $0x30] sm:$0x1]
      %v619 = vsel %vm605, 0, %v618
      %620 = vst [vmem:[#allocation2 + $0x30] sm:$0x1] %v619
      %v621 = vld [vmem:[#allocation2 + $0x3c] sm:$0x1]
      %v622 = vsel %vm605, 0, %v621
      %623 = vst [vmem:[#allocation2 + $0x3c] sm:$0x1] %v622
      %v624 = vld [vmem:[#allocation2 + $0x48] sm:$0x1]
      %v625 = vsel %vm605, 0, %v624
      %626 = vst [vmem:[#allocation2 + $0x48] sm:$0x1] %v625
      %v627 = vld [vmem:[#allocation2 + $0x54] sm:$0x1]
      %v628 = vsel %vm605, 0, %v627
      %629 = vst [vmem:[#allocation2 + $0x54] sm:$0x1] %v628
      %v630 = vld [vmem:[#allocation2 + $0x60] sm:$0x1]
      %v631 = vsel %vm605, 0, %v630
      %632 = vst [vmem:[#allocation2 + $0x60] sm:$0x1] %v631
      %v633 = vld [vmem:[#allocation2 + $0x6c] sm:$0x1]
      %v634 = vsel %vm605, 0, %v633
      %635 = vst [vmem:[#allocation2 + $0x6c] sm:$0x1] %v634
      %vm636 = vsmask.f32 7938
      %vm637 = vmand %vm603, %vm636
      %v638 = vld [vmem:[#allocation2 + $0x8] sm:$0x1]
      %v639 = vsel %vm637, 0, %v638
      %640 = vst [vmem:[#allocation2 + $0x8] sm:$0x1] %v639
      %v641 = vld [vmem:[#allocation2 + $0x14] sm:$0x1]
      %v642 = vsel %vm637, 0, %v641
      %643 = vst [vmem:[#allocation2 + $0x14] sm:$0x1] %v642
      %v644 = vld [vmem:[#allocation2 + $0x20] sm:$0x1]
      %v645 = vsel %vm637, 0, %v644
      %646 = vst [vmem:[#allocation2 + $0x20] sm:$0x1] %v645
      %v647 = vld [vmem:[#allocation2 + $0x2c] sm:$0x1]
      %v648 = vsel %vm637, 0, %v647
      %649 = vst [vmem:[#allocation2 + $0x2c] sm:$0x1] %v648
      %v650 = vld [vmem:[#allocation2 + $0x38] sm:$0x1]
      %v651 = vsel %vm637, 0, %v650
      %652 = vst [vmem:[#allocation2 + $0x38] sm:$0x1] %v651
      %v653 = vld [vmem:[#allocation2 + $0x44] sm:$0x1]
      %v654 = vsel %vm637, 0, %v653
      %655 = vst [vmem:[#allocation2 + $0x44] sm:$0x1] %v654
      %v656 = vld [vmem:[#allocation2 + $0x50] sm:$0x1]
      %v657 = vsel %vm637, 0, %v656
      %658 = vst [vmem:[#allocation2 + $0x50] sm:$0x1] %v657
      %v659 = vld [vmem:[#allocation2 + $0x5c] sm:$0x1]
      %v660 = vsel %vm637, 0, %v659
      %661 = vst [vmem:[#allocation2 + $0x5c] sm:$0x1] %v660
      %v662 = vld [vmem:[#allocation2 + $0x68] sm:$0x1]
      %v663 = vsel %vm637, 0, %v662
      %664 = vst [vmem:[#allocation2 + $0x68] sm:$0x1] %v663
      %v665 = vld [vmem:[#allocation2 + $0x74] sm:$0x1]
      %v666 = vsel %vm637, 0, %v665
      %667 = vst [vmem:[#allocation2 + $0x74] sm:$0x1] %v666
      %v669 = vunpack.c.l.b16 %v597
      %v670 = vunpack.c.h.b16 %v597
      %v671 = vpack.c.b16 %v669, %v669
      %v672 = vpack.c.b16 %v670, %v670
      %vm673 = vsmask.f32 4368
      %vm674 = vmor %vm604, %vm673
      %v676 = vshrl.u32 %v671, 16
      %v678 = vrot.slane %v676, 7
      %v679 = vshll.u32 %v671, 16
      %v681 = vor.u32 %v678, %v679
      %v682 = vrot.slane %v678, 4
      %v684 = vshrl.u32 %v672, 16
      %v686 = vrot.slane %v684, 7
      %v687 = vshll.u32 %v672, 16
      %v689 = vor.u32 %v686, %v687
      %v690 = vsel %vm674, %v682, %v689
      %v691 = vrot.slane %v686, 4
      %vm695 = vcmask 27648
      %vm696 = vmand %vm695, %vm636
      %v697 = vld [vmem:[#allocation2] sm:$0xf]
      %v698 = vsel %vm696, %v681, %v697
      %699 = vst [vmem:[#allocation2] sm:$0xf] %v698
      %vm700 = vcmask 27648
      %701 = vst.msk [vmem:[#allocation2 + $0x4] sm:$0xf] %vm700, %v690
      %v702 = vld [vmem:[#allocation2 + $0x8] sm:$0x1]
      %v703 = vsel %vm605, %v691, %v702
      %704 = vst [vmem:[#allocation2 + $0x8] sm:$0x1] %v703
      %v706 = vunpack.c.l.b16 %v602
      %v707 = vunpack.c.h.b16 %v602
      %v708 = vpack.c.b16 %v706, %v706
      %v709 = vpack.c.b16 %v707, %v707
      %v711 = vshrl.u32 %v708, 16
      %v713 = vrot.slane %v711, 7
      %v714 = vshll.u32 %v708, 16
      %v716 = vor.u32 %v713, %v714
      %v717 = vrot.slane %v713, 4
      %v719 = vshrl.u32 %v709, 16
      %v721 = vrot.slane %v719, 7
      %v722 = vshll.u32 %v709, 16
      %v724 = vor.u32 %v721, %v722
      %v725 = vsel %vm674, %v717, %v724
      %v726 = vrot.slane %v721, 4
      %s730 = scalar_lea.vmem [#allocation2], 108
      %v731 = vld [vmem:[%s730] sm:$0xf]
      %v732 = vsel %vm696, %v716, %v731
      %733 = vst [vmem:[%s730] sm:$0xf] %v732
      %734 = vst.msk [vmem:[%s730 + $0x4] sm:$0xf] %vm700, %v725
      %v735 = vld [vmem:[%s730 + $0x8] sm:$0x1]
      %v736 = vsel %vm605, %v726, %v735
      %737 = vst [vmem:[%s730 + $0x8] sm:$0x1] %v736
      %v746 = vunpack.c.l.b16 %v563
      %v747 = vunpack.c.h.b16 %v563
      %v748 = vunpack.c.l.b16 %v564
      %v749 = vunpack.c.h.b16 %v564
      %v750 = vunpack.c.l.b16 %v565
      %v751 = vunpack.c.h.b16 %v565
      %v752 = vunpack.c.l.b16 %v566
      %v753 = vunpack.c.h.b16 %v566
      %v754 = vunpack.c.l.b16 %v567
      %v755 = vunpack.c.h.b16 %v567
      %v756 = vunpack.c.l.b16 %v568
      %v757 = vunpack.c.h.b16 %v568
      %v758 = vunpack.c.l.b16 %v569
      %v759 = vunpack.c.h.b16 %v569
      %v760 = vunpack.c.l.b16 %v570
      %v761 = vunpack.c.h.b16 %v570
      %v762 = vpack.c.b16 %v746, %v746
      %v763 = vpack.c.b16 %v747, %v747
      %v764 = vpack.c.b16 %v748, %v748
      %v765 = vpack.c.b16 %v749, %v749
      %v766 = vpack.c.b16 %v750, %v750
      %v767 = vpack.c.b16 %v751, %v751
      %v768 = vpack.c.b16 %v752, %v752
      %v769 = vpack.c.b16 %v753, %v753
      %v770 = vpack.c.b16 %v754, %v754
      %v771 = vpack.c.b16 %v755, %v755
      %v772 = vpack.c.b16 %v756, %v756
      %v773 = vpack.c.b16 %v757, %v757
      %v774 = vpack.c.b16 %v758, %v758
      %v775 = vpack.c.b16 %v759, %v759
      %v776 = vpack.c.b16 %v760, %v760
      %v777 = vpack.c.b16 %v761, %v761
      %v779 = vshrl.u32 %v762, 16
      %v781 = vrot.slane %v779, 7
      %v782 = vshll.u32 %v762, 16
      %v784 = vor.u32 %v781, %v782
      %v785 = vrot.slane %v781, 4
      %v787 = vshrl.u32 %v763, 16
      %v789 = vrot.slane %v787, 7
      %v790 = vshll.u32 %v763, 16
      %v792 = vor.u32 %v789, %v790
      %v793 = vsel %vm674, %v785, %v792
      %v794 = vrot.slane %v789, 4
      %v796 = vshrl.u32 %v764, 16
      %v798 = vrot.slane %v796, 7
      %v799 = vshll.u32 %v764, 16
      %v801 = vor.u32 %v798, %v799
      %v802 = vrot.slane %v798, 4
      %v804 = vshrl.u32 %v765, 16
      %v806 = vrot.slane %v804, 7
      %v807 = vshll.u32 %v765, 16
      %v809 = vor.u32 %v806, %v807
      %v810 = vsel %vm674, %v802, %v809
      %v811 = vrot.slane %v806, 4
      %v813 = vshrl.u32 %v766, 16
      %v815 = vrot.slane %v813, 7
      %v816 = vshll.u32 %v766, 16
      %v818 = vor.u32 %v815, %v816
      %v819 = vrot.slane %v815, 4
      %v821 = vshrl.u32 %v767, 16
      %v823 = vrot.slane %v821, 7
      %v824 = vshll.u32 %v767, 16
      %v826 = vor.u32 %v823, %v824
      %v827 = vsel %vm674, %v819, %v826
      %v828 = vrot.slane %v823, 4
      %v830 = vshrl.u32 %v768, 16
      %v832 = vrot.slane %v830, 7
      %v833 = vshll.u32 %v768, 16
      %v835 = vor.u32 %v832, %v833
      %v836 = vrot.slane %v832, 4
      %v838 = vshrl.u32 %v769, 16
      %v840 = vrot.slane %v838, 7
      %v841 = vshll.u32 %v769, 16
      %v843 = vor.u32 %v840, %v841
      %v844 = vsel %vm674, %v836, %v843
      %v845 = vrot.slane %v840, 4
      %v847 = vshrl.u32 %v770, 16
      %v849 = vrot.slane %v847, 7
      %v850 = vshll.u32 %v770, 16
      %v852 = vor.u32 %v849, %v850
      %v853 = vrot.slane %v849, 4
      %v855 = vshrl.u32 %v771, 16
      %v857 = vrot.slane %v855, 7
      %v858 = vshll.u32 %v771, 16
      %v860 = vor.u32 %v857, %v858
      %v861 = vsel %vm674, %v853, %v860
      %v862 = vrot.slane %v857, 4
      %v864 = vshrl.u32 %v772, 16
      %v866 = vrot.slane %v864, 7
      %v867 = vshll.u32 %v772, 16
      %v869 = vor.u32 %v866, %v867
      %v870 = vrot.slane %v866, 4
      %v872 = vshrl.u32 %v773, 16
      %v874 = vrot.slane %v872, 7
      %v875 = vshll.u32 %v773, 16
      %v877 = vor.u32 %v874, %v875
      %v878 = vsel %vm674, %v870, %v877
      %v879 = vrot.slane %v874, 4
      %v881 = vshrl.u32 %v774, 16
      %v883 = vrot.slane %v881, 7
      %v884 = vshll.u32 %v774, 16
      %v886 = vor.u32 %v883, %v884
      %v887 = vrot.slane %v883, 4
      %v889 = vshrl.u32 %v775, 16
      %v891 = vrot.slane %v889, 7
      %v892 = vshll.u32 %v775, 16
      %v894 = vor.u32 %v891, %v892
      %v895 = vsel %vm674, %v887, %v894
      %v896 = vrot.slane %v891, 4
      %v898 = vshrl.u32 %v776, 16
      %v900 = vrot.slane %v898, 7
      %v901 = vshll.u32 %v776, 16
      %v903 = vor.u32 %v900, %v901
      %v904 = vrot.slane %v900, 4
      %v906 = vshrl.u32 %v777, 16
      %v908 = vrot.slane %v906, 7
      %v909 = vshll.u32 %v777, 16
      %v911 = vor.u32 %v908, %v909
      %v912 = vsel %vm674, %v904, %v911
      %v913 = vrot.slane %v908, 4
      %s938 = scalar_lea.vmem [#allocation2], 12
      %v939 = vld [vmem:[%s938] sm:$0xf]
      %v940 = vsel %vm696, %v784, %v939
      %941 = vst [vmem:[%s938] sm:$0xf] %v940
      %942 = vst.msk [vmem:[%s938 + $0x4] sm:$0xf] %vm700, %v793
      %v943 = vld [vmem:[%s938 + $0x8] sm:$0x1]
      %v944 = vsel %vm605, %v794, %v943
      %945 = vst [vmem:[%s938 + $0x8] sm:$0x1] %v944
      %v946 = vld [vmem:[%s938 + $0xc] sm:$0xf]
      %v947 = vsel %vm696, %v801, %v946
      %948 = vst [vmem:[%s938 + $0xc] sm:$0xf] %v947
      %949 = vst.msk [vmem:[%s938 + $0x10] sm:$0xf] %vm700, %v810
      %v950 = vld [vmem:[%s938 + $0x14] sm:$0x1]
      %v951 = vsel %vm605, %v811, %v950
      %952 = vst [vmem:[%s938 + $0x14] sm:$0x1] %v951
      %v953 = vld [vmem:[%s938 + $0x18] sm:$0xf]
      %v954 = vsel %vm696, %v818, %v953
      %955 = vst [vmem:[%s938 + $0x18] sm:$0xf] %v954
      %956 = vst.msk [vmem:[%s938 + $0x1c] sm:$0xf] %vm700, %v827
      %v957 = vld [vmem:[%s938 + $0x20] sm:$0x1]
      %v958 = vsel %vm605, %v828, %v957
      %959 = vst [vmem:[%s938 + $0x20] sm:$0x1] %v958
      %v960 = vld [vmem:[%s938 + $0x24] sm:$0xf]
      %v961 = vsel %vm696, %v835, %v960
      %962 = vst [vmem:[%s938 + $0x24] sm:$0xf] %v961
      %963 = vst.msk [vmem:[%s938 + $0x28] sm:$0xf] %vm700, %v844
      %v964 = vld [vmem:[%s938 + $0x2c] sm:$0x1]
      %v965 = vsel %vm605, %v845, %v964
      %966 = vst [vmem:[%s938 + $0x2c] sm:$0x1] %v965
      %v967 = vld [vmem:[%s938 + $0x30] sm:$0xf]
      %v968 = vsel %vm696, %v852, %v967
      %969 = vst [vmem:[%s938 + $0x30] sm:$0xf] %v968
      %970 = vst.msk [vmem:[%s938 + $0x34] sm:$0xf] %vm700, %v861
      %v971 = vld [vmem:[%s938 + $0x38] sm:$0x1]
      %v972 = vsel %vm605, %v862, %v971
      %973 = vst [vmem:[%s938 + $0x38] sm:$0x1] %v972
      %v974 = vld [vmem:[%s938 + $0x3c] sm:$0xf]
      %v975 = vsel %vm696, %v869, %v974
      %976 = vst [vmem:[%s938 + $0x3c] sm:$0xf] %v975
      %977 = vst.msk [vmem:[%s938 + $0x40] sm:$0xf] %vm700, %v878
      %v978 = vld [vmem:[%s938 + $0x44] sm:$0x1]
      %v979 = vsel %vm605, %v879, %v978
      %980 = vst [vmem:[%s938 + $0x44] sm:$0x1] %v979
      %v981 = vld [vmem:[%s938 + $0x48] sm:$0xf]
      %v982 = vsel %vm696, %v886, %v981
      %983 = vst [vmem:[%s938 + $0x48] sm:$0xf] %v982
      %984 = vst.msk [vmem:[%s938 + $0x4c] sm:$0xf] %vm700, %v895
      %v985 = vld [vmem:[%s938 + $0x50] sm:$0x1]
      %v986 = vsel %vm605, %v896, %v985
      %987 = vst [vmem:[%s938 + $0x50] sm:$0x1] %v986
      %v988 = vld [vmem:[%s938 + $0x54] sm:$0xf]
      %v989 = vsel %vm696, %v903, %v988
      %990 = vst [vmem:[%s938 + $0x54] sm:$0xf] %v989
      %991 = vst.msk [vmem:[%s938 + $0x58] sm:$0xf] %vm700, %v912
      %v992 = vld [vmem:[%s938 + $0x5c] sm:$0x1]
      %v993 = vsel %vm605, %v913, %v992
      %994 = vst [vmem:[%s938 + $0x5c] sm:$0x1] %v993
      %v995 = vld [vmem:[#allocation2] sm:$0xf]
      %v996 = vld [vmem:[#allocation2 + $0x4] sm:$0xf]
      %v997 = vld [vmem:[#allocation2 + $0xc] sm:$0xf]
      %v998 = vld [vmem:[#allocation2 + $0x10] sm:$0xf]
      %v999 = vld [vmem:[#allocation2 + $0x18] sm:$0xf]
      %v1000 = vld [vmem:[#allocation2 + $0x1c] sm:$0xf]
      %v1001 = vld [vmem:[#allocation2 + $0x24] sm:$0xf]
      %v1002 = vld [vmem:[#allocation2 + $0x28] sm:$0xf]
      %v1003 = vld [vmem:[#allocation2 + $0x30] sm:$0xf]
      %v1004 = vld [vmem:[#allocation2 + $0x34] sm:$0xf]
      %v1005 = vld [vmem:[#allocation2 + $0x3c] sm:$0xf]
      %v1006 = vld [vmem:[#allocation2 + $0x40] sm:$0xf]
      %v1007 = vld [vmem:[#allocation2 + $0x48] sm:$0xf]
      %v1008 = vld [vmem:[#allocation2 + $0x4c] sm:$0xf]
      %v1009 = vld [vmem:[#allocation2 + $0x54] sm:$0xf]
      %v1010 = vld [vmem:[#allocation2 + $0x58] sm:$0xf]
      %v1011 = vld [vmem:[%s5] sm:$0x3]
      %v1028 = vunpack.c.l.b16 %v995
      %v1029 = vunpack.c.l.b16 %v996
      %v1030 = vunpack.c.l.b16 %v997
      %v1031 = vunpack.c.l.b16 %v998
      %v1032 = vunpack.c.l.b16 %v999
      %v1033 = vunpack.c.l.b16 %v1000
      %v1034 = vunpack.c.l.b16 %v1001
      %v1035 = vunpack.c.l.b16 %v1002
      %v1036 = vunpack.c.l.b16 %v1003
      %v1037 = vunpack.c.l.b16 %v1004
      %v1038 = vunpack.c.l.b16 %v1005
      %v1039 = vunpack.c.l.b16 %v1006
      %v1040 = vunpack.c.l.b16 %v1007
      %v1041 = vunpack.c.l.b16 %v1008
      %v1042 = vunpack.c.l.b16 %v1009
      %v1043 = vunpack.c.l.b16 %v1010
      %v1044 = vpack.c.b16 %v1029, %v1028
      %v1045 = vpack.c.b16 %v1031, %v1030
      %v1046 = vpack.c.b16 %v1033, %v1032
      %v1047 = vpack.c.b16 %v1035, %v1034
      %v1048 = vpack.c.b16 %v1037, %v1036
      %v1049 = vpack.c.b16 %v1039, %v1038
      %v1050 = vpack.c.b16 %v1041, %v1040
      %v1051 = vpack.c.b16 %v1043, %v1042
      %vm1052 = vcmask 31744
      %v1054 = vsel %vm1052, %v1044, 0
      %v1057 = vsel %vm1052, %v1045, 0
      %v1060 = vsel %vm1052, %v1046, 0
      %v1063 = vsel %vm1052, %v1047, 0
      %v1066 = vsel %vm1052, %v1048, 0
      %v1069 = vsel %vm1052, %v1049, 0
      %v1072 = vsel %vm1052, %v1050, 0
      %v1075 = vsel %vm1052, %v1051, 0
      %vm1077 = vcmask 1041408
      %v1079 = vsel %vm1077, %v1011, 0
      %1081 = vmatprep.subr.bf16.mxu0 0
      %1082 = vmatpush1.bf16.msra.mxu0 0
      %1083 = vmatprep.subr.bf16.mxu0 0
      %1084 = vmatpush1.bf16.msra.mxu0 0
      %1085 = vmatprep.subr.bf16.mxu0 0
      %1086 = vmatpush1.bf16.msra.mxu0 0
      %1087 = vmatprep.subr.bf16.mxu0 0
      %1088 = vmatpush1.bf16.msra.mxu0 0
      %1089 = vmatprep.subr.bf16.mxu0 0
      %1090 = vmatpush1.bf16.msra.mxu0 0
      %1091 = vmatprep.subr.bf16.mxu0 0
      %1092 = vmatpush1.bf16.msra.mxu0 0
      %1093 = vmatprep.subr.bf16.mxu0 0
      %1094 = vmatpush1.bf16.msra.mxu0 0
      %1095 = vmatprep.subr.bf16.mxu0 0
      %1096 = vmatpush1.bf16.msra.mxu0 %v1079
      %1097 = vmatprep.subr.bf16.mxu0 0
      %1098 = vmatpush2.bf16.msra.mxu0 0
      %1099 = vmatprep.subr.bf16.mxu0 0
      %1100 = vmatpush2.bf16.msra.mxu0 0
      %1101 = vmatprep.subr.bf16.mxu0 0
      %1102 = vmatpush2.bf16.msra.mxu0 0
      %1103 = vmatprep.subr.bf16.mxu0 0
      %1104 = vmatpush2.bf16.msra.mxu0 0
      %1105 = vmatprep.subr.bf16.mxu0 0
      %1106 = vmatpush2.bf16.msra.mxu0 0
      %1107 = vmatprep.subr.bf16.mxu0 0
      %1108 = vmatpush2.bf16.msra.mxu0 0
      %1109 = vmatprep.subr.bf16.mxu0 0
      %1110 = vmatpush2.bf16.msra.mxu0 0
      %1111 = vmatprep.subr.bf16.mxu0 0
      %1112 = vmatpush2.bf16.msra.mxu0 0
      %1113 = vmatprep.mubr.bf16.mxu0 0
      %1114 = vmatmul.mubr.bf16.gmra.mxu0 %v1054
      %v1115 = vpop.f32.mrf.mxu0
      %v1116 = vadd.f32 0.0, %v1115
      %v1117 = vpop.f32.mrf.mxu0
      %v1118 = vpop.f32.mrf.mxu0
      %v1119 = vadd.f32 0.0, %v1118
      %v1120 = vpop.f32.mrf.mxu0
      %1121 = vmatprep.mubr.bf16.mxu0 0
      %1122 = vmatmul.mubr.bf16.gmra.mxu0 %v1057
      %v1123 = vpop.f32.mrf.mxu0
      %v1124 = vadd.f32 0.0, %v1123
      %v1125 = vpop.f32.mrf.mxu0
      %v1126 = vpop.f32.mrf.mxu0
      %v1127 = vadd.f32 0.0, %v1126
      %v1128 = vpop.f32.mrf.mxu0
      %1129 = vmatprep.mubr.bf16.mxu0 0
      %1130 = vmatmul.mubr.bf16.gmra.mxu0 %v1060
      %v1131 = vpop.f32.mrf.mxu0
      %v1132 = vadd.f32 0.0, %v1131
      %v1133 = vpop.f32.mrf.mxu0
      %v1134 = vpop.f32.mrf.mxu0
      %v1135 = vadd.f32 0.0, %v1134
      %v1136 = vpop.f32.mrf.mxu0
      %1137 = vmatprep.mubr.bf16.mxu0 0
      %1138 = vmatmul.mubr.bf16.gmra.mxu0 %v1063
      %v1139 = vpop.f32.mrf.mxu0
      %v1140 = vadd.f32 0.0, %v1139
      %v1141 = vpop.f32.mrf.mxu0
      %v1142 = vpop.f32.mrf.mxu0
      %v1143 = vadd.f32 0.0, %v1142
      %v1144 = vpop.f32.mrf.mxu0
      %1145 = vmatprep.mubr.bf16.mxu0 0
      %1146 = vmatmul.mubr.bf16.gmra.mxu0 %v1066
      %v1147 = vpop.f32.mrf.mxu0
      %v1148 = vadd.f32 0.0, %v1147
      %v1149 = vpop.f32.mrf.mxu0
      %v1150 = vpop.f32.mrf.mxu0
      %v1151 = vadd.f32 0.0, %v1150
      %v1152 = vpop.f32.mrf.mxu0
      %1153 = vmatprep.mubr.bf16.mxu0 0
      %1154 = vmatmul.mubr.bf16.gmra.mxu0 %v1069
      %v1155 = vpop.f32.mrf.mxu0
      %v1156 = vadd.f32 0.0, %v1155
      %v1157 = vpop.f32.mrf.mxu0
      %v1158 = vpop.f32.mrf.mxu0
      %v1159 = vadd.f32 0.0, %v1158
      %v1160 = vpop.f32.mrf.mxu0
      %1161 = vmatprep.mubr.bf16.mxu0 0
      %1162 = vmatmul.mubr.bf16.gmra.mxu0 %v1072
      %v1163 = vpop.f32.mrf.mxu0
      %v1164 = vadd.f32 0.0, %v1163
      %v1165 = vpop.f32.mrf.mxu0
      %v1166 = vpop.f32.mrf.mxu0
      %v1167 = vadd.f32 0.0, %v1166
      %v1168 = vpop.f32.mrf.mxu0
      %1169 = vmatprep.mubr.bf16.mxu0 0
      %1170 = vmatmul.mubr.bf16.gmra.mxu0 %v1075
      %v1171 = vpop.f32.mrf.mxu0
      %v1172 = vadd.f32 0.0, %v1171
      %v1173 = vpop.f32.mrf.mxu0
      %v1174 = vpop.f32.mrf.mxu0
      %v1175 = vadd.f32 0.0, %v1174
      %v1176 = vpop.f32.mrf.mxu0
      %1177 = vdwg.mxu0
      %1178 = vst.msk [vmem:[#allocation3] sm:$0xff] %vm1052, %v1116
      %1179 = vst.msk [vmem:[#allocation3 + $0x8] sm:$0xff] %vm1052, %v1119
      %1180 = vst.msk [vmem:[#allocation3 + $0x10] sm:$0xff] %vm1052, %v1124
      %1181 = vst.msk [vmem:[#allocation3 + $0x18] sm:$0xff] %vm1052, %v1127
      %1182 = vst.msk [vmem:[#allocation3 + $0x20] sm:$0xff] %vm1052, %v1132
      %1183 = vst.msk [vmem:[#allocation3 + $0x28] sm:$0xff] %vm1052, %v1135
      %1184 = vst.msk [vmem:[#allocation3 + $0x30] sm:$0xff] %vm1052, %v1140
      %1185 = vst.msk [vmem:[#allocation3 + $0x38] sm:$0xff] %vm1052, %v1143
      %1186 = vst.msk [vmem:[#allocation3 + $0x40] sm:$0xff] %vm1052, %v1148
      %1187 = vst.msk [vmem:[#allocation3 + $0x48] sm:$0xff] %vm1052, %v1151
      %1188 = vst.msk [vmem:[#allocation3 + $0x50] sm:$0xff] %vm1052, %v1156
      %1189 = vst.msk [vmem:[#allocation3 + $0x58] sm:$0xff] %vm1052, %v1159
      %1190 = vst.msk [vmem:[#allocation3 + $0x60] sm:$0xff] %vm1052, %v1164
      %1191 = vst.msk [vmem:[#allocation3 + $0x68] sm:$0xff] %vm1052, %v1167
      %1192 = vst.msk [vmem:[#allocation3 + $0x70] sm:$0xff] %vm1052, %v1172
      %1193 = vst.msk [vmem:[#allocation3 + $0x78] sm:$0xff] %vm1052, %v1175
      %v1194 = vld [vmem:[#allocation2] sm:$0xf]
      %v1195 = vld [vmem:[#allocation2 + $0x4] sm:$0xf]
      %v1196 = vld [vmem:[#allocation2 + $0x8] sm:$0x1]
      %v1197 = vld [vmem:[#allocation2 + $0xc] sm:$0xf]
      %v1198 = vld [vmem:[#allocation2 + $0x10] sm:$0xf]
      %v1199 = vld [vmem:[#allocation2 + $0x14] sm:$0x1]
      %v1200 = vld [vmem:[#allocation2 + $0x18] sm:$0xf]
      %v1201 = vld [vmem:[#allocation2 + $0x1c] sm:$0xf]
      %v1202 = vld [vmem:[#allocation2 + $0x20] sm:$0x1]
      %v1203 = vld [vmem:[#allocation2 + $0x24] sm:$0xf]
      %v1204 = vld [vmem:[#allocation2 + $0x28] sm:$0xf]
      %v1205 = vld [vmem:[#allocation2 + $0x2c] sm:$0x1]
      %v1206 = vld [vmem:[#allocation2 + $0x30] sm:$0xf]
      %v1207 = vld [vmem:[#allocation2 + $0x34] sm:$0xf]
      %v1208 = vld [vmem:[#allocation2 + $0x38] sm:$0x1]
      %v1209 = vld [vmem:[#allocation2 + $0x3c] sm:$0xf]
      %v1210 = vld [vmem:[#allocation2 + $0x40] sm:$0xf]
      %v1211 = vld [vmem:[#allocation2 + $0x44] sm:$0x1]
      %v1212 = vld [vmem:[#allocation2 + $0x48] sm:$0xf]
      %v1213 = vld [vmem:[#allocation2 + $0x4c] sm:$0xf]
      %v1214 = vld [vmem:[#allocation2 + $0x50] sm:$0x1]
      %v1215 = vld [vmem:[#allocation2 + $0x54] sm:$0xf]
      %v1216 = vld [vmem:[#allocation2 + $0x58] sm:$0xf]
      %v1217 = vld [vmem:[#allocation2 + $0x5c] sm:$0x1]
      %vm1218 = vsmask.f32 3328
      %vm1219 = vsmask.f32 7440
      %vm1220 = vmor %vm1218, %vm1219
      %v1222 = vshrl.u32 %v1194, 16
      %v1224 = vrot.slane %v1222, 4
      %v1225 = vshll.u32 %v1194, 16
      %v1227 = vrot.slane %v1225, 5
      %v1228 = vor.u32 %v1224, %v1227
      %v1229 = vrot.slane %v1228, 4
      %v1231 = vshll.u32 %v1195, 16
      %v1233 = vrot.slane %v1231, 5
      %v1234 = vsel %vm1220, %v1229, %v1233
      %v1235 = vshrl.u32 %v1195, 16
      %v1237 = vrot.slane %v1235, 4
      %v1238 = vor.u32 %v1237, %v1233
      %v1239 = vrot.slane %v1238, 4
      %v1241 = vshll.u32 %v1196, 16
      %v1243 = vrot.slane %v1241, 5
      %v1244 = vsel %vm1220, %v1239, %v1243
      %v1246 = vshrl.u32 %v1197, 16
      %v1248 = vrot.slane %v1246, 4
      %v1249 = vshll.u32 %v1197, 16
      %v1251 = vrot.slane %v1249, 5
      %v1252 = vor.u32 %v1248, %v1251
      %v1253 = vrot.slane %v1252, 4
      %v1255 = vshll.u32 %v1198, 16
      %v1257 = vrot.slane %v1255, 5
      %v1258 = vsel %vm1220, %v1253, %v1257
      %v1259 = vshrl.u32 %v1198, 16
      %v1261 = vrot.slane %v1259, 4
      %v1262 = vor.u32 %v1261, %v1257
      %v1263 = vrot.slane %v1262, 4
      %v1265 = vshll.u32 %v1199, 16
      %v1267 = vrot.slane %v1265, 5
      %v1268 = vsel %vm1220, %v1263, %v1267
      %v1270 = vshrl.u32 %v1200, 16
      %v1272 = vrot.slane %v1270, 4
      %v1273 = vshll.u32 %v1200, 16
      %v1275 = vrot.slane %v1273, 5
      %v1276 = vor.u32 %v1272, %v1275
      %v1277 = vrot.slane %v1276, 4
      %v1279 = vshll.u32 %v1201, 16
      %v1281 = vrot.slane %v1279, 5
      %v1282 = vsel %vm1220, %v1277, %v1281
      %v1283 = vshrl.u32 %v1201, 16
      %v1285 = vrot.slane %v1283, 4
      %v1286 = vor.u32 %v1285, %v1281
      %v1287 = vrot.slane %v1286, 4
      %v1289 = vshll.u32 %v1202, 16
      %v1291 = vrot.slane %v1289, 5
      %v1292 = vsel %vm1220, %v1287, %v1291
      %v1294 = vshrl.u32 %v1203, 16
      %v1296 = vrot.slane %v1294, 4
      %v1297 = vshll.u32 %v1203, 16
      %v1299 = vrot.slane %v1297, 5
      %v1300 = vor.u32 %v1296, %v1299
      %v1301 = vrot.slane %v1300, 4
      %v1303 = vshll.u32 %v1204, 16
      %v1305 = vrot.slane %v1303, 5
      %v1306 = vsel %vm1220, %v1301, %v1305
      %v1307 = vshrl.u32 %v1204, 16
      %v1309 = vrot.slane %v1307, 4
      %v1310 = vor.u32 %v1309, %v1305
      %v1311 = vrot.slane %v1310, 4
      %v1313 = vshll.u32 %v1205, 16
      %v1315 = vrot.slane %v1313, 5
      %v1316 = vsel %vm1220, %v1311, %v1315
      %v1318 = vshrl.u32 %v1206, 16
      %v1320 = vrot.slane %v1318, 4
      %v1321 = vshll.u32 %v1206, 16
      %v1323 = vrot.slane %v1321, 5
      %v1324 = vor.u32 %v1320, %v1323
      %v1325 = vrot.slane %v1324, 4
      %v1327 = vshll.u32 %v1207, 16
      %v1329 = vrot.slane %v1327, 5
      %v1330 = vsel %vm1220, %v1325, %v1329
      %v1331 = vshrl.u32 %v1207, 16
      %v1333 = vrot.slane %v1331, 4
      %v1334 = vor.u32 %v1333, %v1329
      %v1335 = vrot.slane %v1334, 4
      %v1337 = vshll.u32 %v1208, 16
      %v1339 = vrot.slane %v1337, 5
      %v1340 = vsel %vm1220, %v1335, %v1339
      %v1342 = vshrl.u32 %v1209, 16
      %v1344 = vrot.slane %v1342, 4
      %v1345 = vshll.u32 %v1209, 16
      %v1347 = vrot.slane %v1345, 5
      %v1348 = vor.u32 %v1344, %v1347
      %v1349 = vrot.slane %v1348, 4
      %v1351 = vshll.u32 %v1210, 16
      %v1353 = vrot.slane %v1351, 5
      %v1354 = vsel %vm1220, %v1349, %v1353
      %v1355 = vshrl.u32 %v1210, 16
      %v1357 = vrot.slane %v1355, 4
      %v1358 = vor.u32 %v1357, %v1353
      %v1359 = vrot.slane %v1358, 4
      %v1361 = vshll.u32 %v1211, 16
      %v1363 = vrot.slane %v1361, 5
      %v1364 = vsel %vm1220, %v1359, %v1363
      %v1366 = vshrl.u32 %v1212, 16
      %v1368 = vrot.slane %v1366, 4
      %v1369 = vshll.u32 %v1212, 16
      %v1371 = vrot.slane %v1369, 5
      %v1372 = vor.u32 %v1368, %v1371
      %v1373 = vrot.slane %v1372, 4
      %v1375 = vshll.u32 %v1213, 16
      %v1377 = vrot.slane %v1375, 5
      %v1378 = vsel %vm1220, %v1373, %v1377
      %v1379 = vshrl.u32 %v1213, 16
      %v1381 = vrot.slane %v1379, 4
      %v1382 = vor.u32 %v1381, %v1377
      %v1383 = vrot.slane %v1382, 4
      %v1385 = vshll.u32 %v1214, 16
      %v1387 = vrot.slane %v1385, 5
      %v1388 = vsel %vm1220, %v1383, %v1387
      %v1390 = vshrl.u32 %v1215, 16
      %v1392 = vrot.slane %v1390, 4
      %v1393 = vshll.u32 %v1215, 16
      %v1395 = vrot.slane %v1393, 5
      %v1396 = vor.u32 %v1392, %v1395
      %v1397 = vrot.slane %v1396, 4
      %v1399 = vshll.u32 %v1216, 16
      %v1401 = vrot.slane %v1399, 5
      %v1402 = vsel %vm1220, %v1397, %v1401
      %v1403 = vshrl.u32 %v1216, 16
      %v1405 = vrot.slane %v1403, 4
      %v1406 = vor.u32 %v1405, %v1401
      %v1407 = vrot.slane %v1406, 4
      %v1409 = vshll.u32 %v1217, 16
      %v1411 = vrot.slane %v1409, 5
      %v1412 = vsel %vm1220, %v1407, %v1411
      %s1413 = scalar_lea.vmem %s5, 2
      %v1414 = vld [vmem:[%s1413] sm:$0x3]
      %v1415 = vunpack.c.l.b16 %v1234
      %v1416 = vunpack.c.l.b16 %v1244
      %v1417 = vunpack.c.l.b16 %v1258
      %v1418 = vunpack.c.l.b16 %v1268
      %v1419 = vunpack.c.l.b16 %v1282
      %v1420 = vunpack.c.l.b16 %v1292
      %v1421 = vunpack.c.l.b16 %v1306
      %v1422 = vunpack.c.l.b16 %v1316
      %v1423 = vunpack.c.l.b16 %v1330
      %v1424 = vunpack.c.l.b16 %v1340
      %v1425 = vunpack.c.l.b16 %v1354
      %v1426 = vunpack.c.l.b16 %v1364
      %v1427 = vunpack.c.l.b16 %v1378
      %v1428 = vunpack.c.l.b16 %v1388
      %v1429 = vunpack.c.l.b16 %v1402
      %v1430 = vunpack.c.l.b16 %v1412
      %v1431 = vpack.c.b16 %v1416, %v1415
      %v1432 = vpack.c.b16 %v1418, %v1417
      %v1433 = vpack.c.b16 %v1420, %v1419
      %v1434 = vpack.c.b16 %v1422, %v1421
      %v1435 = vpack.c.b16 %v1424, %v1423
      %v1436 = vpack.c.b16 %v1426, %v1425
      %v1437 = vpack.c.b16 %v1428, %v1427
      %v1438 = vpack.c.b16 %v1430, %v1429
      %v1440 = vsel %vm1052, %v1431, 0
      %v1443 = vsel %vm1052, %v1432, 0
      %v1446 = vsel %vm1052, %v1433, 0
      %v1449 = vsel %vm1052, %v1434, 0
      %v1452 = vsel %vm1052, %v1435, 0
      %v1455 = vsel %vm1052, %v1436, 0
      %v1458 = vsel %vm1052, %v1437, 0
      %v1461 = vsel %vm1052, %v1438, 0
      %v1464 = vsel %vm1077, %v1414, 0
      %1466 = vmatprep.subr.bf16.mxu0 0
      %1467 = vmatpush1.bf16.msra.mxu0 0
      %1468 = vmatprep.subr.bf16.mxu0 0
      %1469 = vmatpush1.bf16.msra.mxu0 0
      %1470 = vmatprep.subr.bf16.mxu0 0
      %1471 = vmatpush1.bf16.msra.mxu0 0
      %1472 = vmatprep.subr.bf16.mxu0 0
      %1473 = vmatpush1.bf16.msra.mxu0 0
      %1474 = vmatprep.subr.bf16.mxu0 0
      %1475 = vmatpush1.bf16.msra.mxu0 0
      %1476 = vmatprep.subr.bf16.mxu0 0
      %1477 = vmatpush1.bf16.msra.mxu0 0
      %1478 = vmatprep.subr.bf16.mxu0 0
      %1479 = vmatpush1.bf16.msra.mxu0 0
      %1480 = vmatprep.subr.bf16.mxu0 0
      %1481 = vmatpush1.bf16.msra.mxu0 %v1464
      %1482 = vmatprep.subr.bf16.mxu0 0
      %1483 = vmatpush2.bf16.msra.mxu0 0
      %1484 = vmatprep.subr.bf16.mxu0 0
      %1485 = vmatpush2.bf16.msra.mxu0 0
      %1486 = vmatprep.subr.bf16.mxu0 0
      %1487 = vmatpush2.bf16.msra.mxu0 0
      %1488 = vmatprep.subr.bf16.mxu0 0
      %1489 = vmatpush2.bf16.msra.mxu0 0
      %1490 = vmatprep.subr.bf16.mxu0 0
      %1491 = vmatpush2.bf16.msra.mxu0 0
      %1492 = vmatprep.subr.bf16.mxu0 0
      %1493 = vmatpush2.bf16.msra.mxu0 0
      %1494 = vmatprep.subr.bf16.mxu0 0
      %1495 = vmatpush2.bf16.msra.mxu0 0
      %1496 = vmatprep.subr.bf16.mxu0 0
      %1497 = vmatpush2.bf16.msra.mxu0 0
      %1498 = vmatprep.mubr.bf16.mxu0 0
      %1499 = vmatmul.mubr.bf16.gmra.mxu0 %v1440
      %v1500 = vpop.f32.mrf.mxu0
      %v1501 = vadd.f32 0.0, %v1500
      %v1502 = vpop.f32.mrf.mxu0
      %v1503 = vpop.f32.mrf.mxu0
      %v1504 = vadd.f32 0.0, %v1503
      %v1505 = vpop.f32.mrf.mxu0
      %1506 = vmatprep.mubr.bf16.mxu0 0
      %1507 = vmatmul.mubr.bf16.gmra.mxu0 %v1443
      %v1508 = vpop.f32.mrf.mxu0
      %v1509 = vadd.f32 0.0, %v1508
      %v1510 = vpop.f32.mrf.mxu0
      %v1511 = vpop.f32.mrf.mxu0
      %v1512 = vadd.f32 0.0, %v1511
      %v1513 = vpop.f32.mrf.mxu0
      %1514 = vmatprep.mubr.bf16.mxu0 0
      %1515 = vmatmul.mubr.bf16.gmra.mxu0 %v1446
      %v1516 = vpop.f32.mrf.mxu0
      %v1517 = vadd.f32 0.0, %v1516
      %v1518 = vpop.f32.mrf.mxu0
      %v1519 = vpop.f32.mrf.mxu0
      %v1520 = vadd.f32 0.0, %v1519
      %v1521 = vpop.f32.mrf.mxu0
      %1522 = vmatprep.mubr.bf16.mxu0 0
      %1523 = vmatmul.mubr.bf16.gmra.mxu0 %v1449
      %v1524 = vpop.f32.mrf.mxu0
      %v1525 = vadd.f32 0.0, %v1524
      %v1526 = vpop.f32.mrf.mxu0
      %v1527 = vpop.f32.mrf.mxu0
      %v1528 = vadd.f32 0.0, %v1527
      %v1529 = vpop.f32.mrf.mxu0
      %1530 = vmatprep.mubr.bf16.mxu0 0
      %1531 = vmatmul.mubr.bf16.gmra.mxu0 %v1452
      %v1532 = vpop.f32.mrf.mxu0
      %v1533 = vadd.f32 0.0, %v1532
      %v1534 = vpop.f32.mrf.mxu0
      %v1535 = vpop.f32.mrf.mxu0
      %v1536 = vadd.f32 0.0, %v1535
      %v1537 = vpop.f32.mrf.mxu0
      %1538 = vmatprep.mubr.bf16.mxu0 0
      %1539 = vmatmul.mubr.bf16.gmra.mxu0 %v1455
      %v1540 = vpop.f32.mrf.mxu0
      %v1541 = vadd.f32 0.0, %v1540
      %v1542 = vpop.f32.mrf.mxu0
      %v1543 = vpop.f32.mrf.mxu0
      %v1544 = vadd.f32 0.0, %v1543
      %v1545 = vpop.f32.mrf.mxu0
      %1546 = vmatprep.mubr.bf16.mxu0 0
      %1547 = vmatmul.mubr.bf16.gmra.mxu0 %v1458
      %v1548 = vpop.f32.mrf.mxu0
      %v1549 = vadd.f32 0.0, %v1548
      %v1550 = vpop.f32.mrf.mxu0
      %v1551 = vpop.f32.mrf.mxu0
      %v1552 = vadd.f32 0.0, %v1551
      %v1553 = vpop.f32.mrf.mxu0
      %1554 = vmatprep.mubr.bf16.mxu0 0
      %1555 = vmatmul.mubr.bf16.gmra.mxu0 %v1461
      %v1556 = vpop.f32.mrf.mxu0
      %v1557 = vadd.f32 0.0, %v1556
      %v1558 = vpop.f32.mrf.mxu0
      %v1559 = vpop.f32.mrf.mxu0
      %v1560 = vadd.f32 0.0, %v1559
      %v1561 = vpop.f32.mrf.mxu0
      %1562 = vdwg.mxu0
      %v1563 = vld [vmem:[#allocation3] sm:$0xff]
      %v1564 = vld [vmem:[#allocation3 + $0x8] sm:$0xff]
      %v1565 = vld [vmem:[#allocation3 + $0x10] sm:$0xff]
      %v1566 = vld [vmem:[#allocation3 + $0x18] sm:$0xff]
      %v1567 = vld [vmem:[#allocation3 + $0x20] sm:$0xff]
      %v1568 = vld [vmem:[#allocation3 + $0x28] sm:$0xff]
      %v1569 = vld [vmem:[#allocation3 + $0x30] sm:$0xff]
      %v1570 = vld [vmem:[#allocation3 + $0x38] sm:$0xff]
      %v1571 = vld [vmem:[#allocation3 + $0x40] sm:$0xff]
      %v1572 = vld [vmem:[#allocation3 + $0x48] sm:$0xff]
      %v1573 = vld [vmem:[#allocation3 + $0x50] sm:$0xff]
      %v1574 = vld [vmem:[#allocation3 + $0x58] sm:$0xff]
      %v1575 = vld [vmem:[#allocation3 + $0x60] sm:$0xff]
      %v1576 = vld [vmem:[#allocation3 + $0x68] sm:$0xff]
      %v1577 = vld [vmem:[#allocation3 + $0x70] sm:$0xff]
      %v1578 = vld [vmem:[#allocation3 + $0x78] sm:$0xff]
      %v1579 = vadd.f32 %v1563, %v1501
      %v1580 = vadd.f32 %v1564, %v1504
      %v1581 = vadd.f32 %v1565, %v1509
      %v1582 = vadd.f32 %v1566, %v1512
      %v1583 = vadd.f32 %v1567, %v1517
      %v1584 = vadd.f32 %v1568, %v1520
      %v1585 = vadd.f32 %v1569, %v1525
      %v1586 = vadd.f32 %v1570, %v1528
      %v1587 = vadd.f32 %v1571, %v1533
      %v1588 = vadd.f32 %v1572, %v1536
      %v1589 = vadd.f32 %v1573, %v1541
      %v1590 = vadd.f32 %v1574, %v1544
      %v1591 = vadd.f32 %v1575, %v1549
      %v1592 = vadd.f32 %v1576, %v1552
      %v1593 = vadd.f32 %v1577, %v1557
      %v1594 = vadd.f32 %v1578, %v1560
      %1595 = vst.msk [vmem:[#allocation3] sm:$0xff] %vm1052, %v1579
      %1596 = vst.msk [vmem:[#allocation3 + $0x8] sm:$0xff] %vm1052, %v1580
      %1597 = vst.msk [vmem:[#allocation3 + $0x10] sm:$0xff] %vm1052, %v1581
      %1598 = vst.msk [vmem:[#allocation3 + $0x18] sm:$0xff] %vm1052, %v1582
      %1599 = vst.msk [vmem:[#allocation3 + $0x20] sm:$0xff] %vm1052, %v1583
      %1600 = vst.msk [vmem:[#allocation3 + $0x28] sm:$0xff] %vm1052, %v1584
      %1601 = vst.msk [vmem:[#allocation3 + $0x30] sm:$0xff] %vm1052, %v1585
      %1602 = vst.msk [vmem:[#allocation3 + $0x38] sm:$0xff] %vm1052, %v1586
      %1603 = vst.msk [vmem:[#allocation3 + $0x40] sm:$0xff] %vm1052, %v1587
      %1604 = vst.msk [vmem:[#allocation3 + $0x48] sm:$0xff] %vm1052, %v1588
      %1605 = vst.msk [vmem:[#allocation3 + $0x50] sm:$0xff] %vm1052, %v1589
      %1606 = vst.msk [vmem:[#allocation3 + $0x58] sm:$0xff] %vm1052, %v1590
      %1607 = vst.msk [vmem:[#allocation3 + $0x60] sm:$0xff] %vm1052, %v1591
      %1608 = vst.msk [vmem:[#allocation3 + $0x68] sm:$0xff] %vm1052, %v1592
      %1609 = vst.msk [vmem:[#allocation3 + $0x70] sm:$0xff] %vm1052, %v1593
      %1610 = vst.msk [vmem:[#allocation3 + $0x78] sm:$0xff] %vm1052, %v1594
      %v1611 = vld [vmem:[#allocation2] sm:$0xe]
      %v1612 = vld [vmem:[#allocation2 + $0x4] sm:$0xf]
      %v1613 = vld [vmem:[#allocation2 + $0x8] sm:$0x1]
      %v1614 = vld [vmem:[#allocation2 + $0xc] sm:$0xe]
      %v1615 = vld [vmem:[#allocation2 + $0x10] sm:$0xf]
      %v1616 = vld [vmem:[#allocation2 + $0x14] sm:$0x1]
      %v1617 = vld [vmem:[#allocation2 + $0x18] sm:$0xe]
      %v1618 = vld [vmem:[#allocation2 + $0x1c] sm:$0xf]
      %v1619 = vld [vmem:[#allocation2 + $0x20] sm:$0x1]
      %v1620 = vld [vmem:[#allocation2 + $0x24] sm:$0xe]
      %v1621 = vld [vmem:[#allocation2 + $0x28] sm:$0xf]
      %v1622 = vld [vmem:[#allocation2 + $0x2c] sm:$0x1]
      %v1623 = vld [vmem:[#allocation2 + $0x30] sm:$0xe]
      %v1624 = vld [vmem:[#allocation2 + $0x34] sm:$0xf]
      %v1625 = vld [vmem:[#allocation2 + $0x38] sm:$0x1]
      %v1626 = vld [vmem:[#allocation2 + $0x3c] sm:$0xe]
      %v1627 = vld [vmem:[#allocation2 + $0x40] sm:$0xf]
      %v1628 = vld [vmem:[#allocation2 + $0x44] sm:$0x1]
      %v1629 = vld [vmem:[#allocation2 + $0x48] sm:$0xe]
      %v1630 = vld [vmem:[#allocation2 + $0x4c] sm:$0xf]
      %v1631 = vld [vmem:[#allocation2 + $0x50] sm:$0x1]
      %v1632 = vld [vmem:[#allocation2 + $0x54] sm:$0xe]
      %v1633 = vld [vmem:[#allocation2 + $0x58] sm:$0xf]
      %v1634 = vld [vmem:[#allocation2 + $0x5c] sm:$0x1]
      %vm1659 = vcmask 1042432
      %vm1660 = vcmask 1046532
      %vm1661 = vmor %vm1659, %vm1660
      %v1662 = vrot.slane %v1611, 5
      %v1663 = vrot.slane %v1662, 4
      %v1664 = vrot.slane %v1612, 5
      %v1665 = vsel %vm1661, %v1663, %v1664
      %v1666 = vrot.slane %v1664, 4
      %v1667 = vrot.slane %v1613, 5
      %v1668 = vsel %vm1661, %v1666, %v1667
      %v1669 = vrot.slane %v1614, 5
      %v1670 = vrot.slane %v1669, 4
      %v1671 = vrot.slane %v1615, 5
      %v1672 = vsel %vm1661, %v1670, %v1671
      %v1673 = vrot.slane %v1671, 4
      %v1674 = vrot.slane %v1616, 5
      %v1675 = vsel %vm1661, %v1673, %v1674
      %v1676 = vrot.slane %v1617, 5
      %v1677 = vrot.slane %v1676, 4
      %v1678 = vrot.slane %v1618, 5
      %v1679 = vsel %vm1661, %v1677, %v1678
      %v1680 = vrot.slane %v1678, 4
      %v1681 = vrot.slane %v1619, 5
      %v1682 = vsel %vm1661, %v1680, %v1681
      %v1683 = vrot.slane %v1620, 5
      %v1684 = vrot.slane %v1683, 4
      %v1685 = vrot.slane %v1621, 5
      %v1686 = vsel %vm1661, %v1684, %v1685
      %v1687 = vrot.slane %v1685, 4
      %v1688 = vrot.slane %v1622, 5
      %v1689 = vsel %vm1661, %v1687, %v1688
      %v1690 = vrot.slane %v1623, 5
      %v1691 = vrot.slane %v1690, 4
      %v1692 = vrot.slane %v1624, 5
      %v1693 = vsel %vm1661, %v1691, %v1692
      %v1694 = vrot.slane %v1692, 4
      %v1695 = vrot.slane %v1625, 5
      %v1696 = vsel %vm1661, %v1694, %v1695
      %v1697 = vrot.slane %v1626, 5
      %v1698 = vrot.slane %v1697, 4
      %v1699 = vrot.slane %v1627, 5
      %v1700 = vsel %vm1661, %v1698, %v1699
      %v1701 = vrot.slane %v1699, 4
      %v1702 = vrot.slane %v1628, 5
      %v1703 = vsel %vm1661, %v1701, %v1702
      %v1704 = vrot.slane %v1629, 5
      %v1705 = vrot.slane %v1704, 4
      %v1706 = vrot.slane %v1630, 5
      %v1707 = vsel %vm1661, %v1705, %v1706
      %v1708 = vrot.slane %v1706, 4
      %v1709 = vrot.slane %v1631, 5
      %v1710 = vsel %vm1661, %v1708, %v1709
      %v1711 = vrot.slane %v1632, 5
      %v1712 = vrot.slane %v1711, 4
      %v1713 = vrot.slane %v1633, 5
      %v1714 = vsel %vm1661, %v1712, %v1713
      %v1715 = vrot.slane %v1713, 4
      %v1716 = vrot.slane %v1634, 5
      %v1717 = vsel %vm1661, %v1715, %v1716
      %s1718 = scalar_lea.vmem %s5, 4
      %v1719 = vld [vmem:[%s1718] sm:$0x3]
      %v1720 = vunpack.c.l.b16 %v1665
      %v1721 = vunpack.c.l.b16 %v1668
      %v1722 = vunpack.c.l.b16 %v1672
      %v1723 = vunpack.c.l.b16 %v1675
      %v1724 = vunpack.c.l.b16 %v1679
      %v1725 = vunpack.c.l.b16 %v1682
      %v1726 = vunpack.c.l.b16 %v1686
      %v1727 = vunpack.c.l.b16 %v1689
      %v1728 = vunpack.c.l.b16 %v1693
      %v1729 = vunpack.c.l.b16 %v1696
      %v1730 = vunpack.c.l.b16 %v1700
      %v1731 = vunpack.c.l.b16 %v1703
      %v1732 = vunpack.c.l.b16 %v1707
      %v1733 = vunpack.c.l.b16 %v1710
      %v1734 = vunpack.c.l.b16 %v1714
      %v1735 = vunpack.c.l.b16 %v1717
      %v1736 = vpack.c.b16 %v1721, %v1720
      %v1737 = vpack.c.b16 %v1723, %v1722
      %v1738 = vpack.c.b16 %v1725, %v1724
      %v1739 = vpack.c.b16 %v1727, %v1726
      %v1740 = vpack.c.b16 %v1729, %v1728
      %v1741 = vpack.c.b16 %v1731, %v1730
      %v1742 = vpack.c.b16 %v1733, %v1732
      %v1743 = vpack.c.b16 %v1735, %v1734
      %v1745 = vsel %vm1052, %v1736, 0
      %v1748 = vsel %vm1052, %v1737, 0
      %v1751 = vsel %vm1052, %v1738, 0
      %v1754 = vsel %vm1052, %v1739, 0
      %v1757 = vsel %vm1052, %v1740, 0
      %v1760 = vsel %vm1052, %v1741, 0
      %v1763 = vsel %vm1052, %v1742, 0
      %v1766 = vsel %vm1052, %v1743, 0
      %v1769 = vsel %vm1077, %v1719, 0
      %1771 = vmatprep.subr.bf16.mxu0 0
      %1772 = vmatpush1.bf16.msra.mxu0 0
      %1773 = vmatprep.subr.bf16.mxu0 0
      %1774 = vmatpush1.bf16.msra.mxu0 0
      %1775 = vmatprep.subr.bf16.mxu0 0
      %1776 = vmatpush1.bf16.msra.mxu0 0
      %1777 = vmatprep.subr.bf16.mxu0 0
      %1778 = vmatpush1.bf16.msra.mxu0 0
      %1779 = vmatprep.subr.bf16.mxu0 0
      %1780 = vmatpush1.bf16.msra.mxu0 0
      %1781 = vmatprep.subr.bf16.mxu0 0
      %1782 = vmatpush1.bf16.msra.mxu0 0
      %1783 = vmatprep.subr.bf16.mxu0 0
      %1784 = vmatpush1.bf16.msra.mxu0 0
      %1785 = vmatprep.subr.bf16.mxu0 0
      %1786 = vmatpush1.bf16.msra.mxu0 %v1769
      %1787 = vmatprep.subr.bf16.mxu0 0
      %1788 = vmatpush2.bf16.msra.mxu0 0
      %1789 = vmatprep.subr.bf16.mxu0 0
      %1790 = vmatpush2.bf16.msra.mxu0 0
      %1791 = vmatprep.subr.bf16.mxu0 0
      %1792 = vmatpush2.bf16.msra.mxu0 0
      %1793 = vmatprep.subr.bf16.mxu0 0
      %1794 = vmatpush2.bf16.msra.mxu0 0
      %1795 = vmatprep.subr.bf16.mxu0 0
      %1796 = vmatpush2.bf16.msra.mxu0 0
      %1797 = vmatprep.subr.bf16.mxu0 0
      %1798 = vmatpush2.bf16.msra.mxu0 0
      %1799 = vmatprep.subr.bf16.mxu0 0
      %1800 = vmatpush2.bf16.msra.mxu0 0
      %1801 = vmatprep.subr.bf16.mxu0 0
      %1802 = vmatpush2.bf16.msra.mxu0 0
      %1803 = vmatprep.mubr.bf16.mxu0 0
      %1804 = vmatmul.mubr.bf16.gmra.mxu0 %v1745
      %v1805 = vpop.f32.mrf.mxu0
      %v1806 = vadd.f32 0.0, %v1805
      %v1807 = vpop.f32.mrf.mxu0
      %v1808 = vpop.f32.mrf.mxu0
      %v1809 = vadd.f32 0.0, %v1808
      %v1810 = vpop.f32.mrf.mxu0
      %1811 = vmatprep.mubr.bf16.mxu0 0
      %1812 = vmatmul.mubr.bf16.gmra.mxu0 %v1748
      %v1813 = vpop.f32.mrf.mxu0
      %v1814 = vadd.f32 0.0, %v1813
      %v1815 = vpop.f32.mrf.mxu0
      %v1816 = vpop.f32.mrf.mxu0
      %v1817 = vadd.f32 0.0, %v1816
      %v1818 = vpop.f32.mrf.mxu0
      %1819 = vmatprep.mubr.bf16.mxu0 0
      %1820 = vmatmul.mubr.bf16.gmra.mxu0 %v1751
      %v1821 = vpop.f32.mrf.mxu0
      %v1822 = vadd.f32 0.0, %v1821
      %v1823 = vpop.f32.mrf.mxu0
      %v1824 = vpop.f32.mrf.mxu0
      %v1825 = vadd.f32 0.0, %v1824
      %v1826 = vpop.f32.mrf.mxu0
      %1827 = vmatprep.mubr.bf16.mxu0 0
      %1828 = vmatmul.mubr.bf16.gmra.mxu0 %v1754
      %v1829 = vpop.f32.mrf.mxu0
      %v1830 = vadd.f32 0.0, %v1829
      %v1831 = vpop.f32.mrf.mxu0
      %v1832 = vpop.f32.mrf.mxu0
      %v1833 = vadd.f32 0.0, %v1832
      %v1834 = vpop.f32.mrf.mxu0
      %1835 = vmatprep.mubr.bf16.mxu0 0
      %1836 = vmatmul.mubr.bf16.gmra.mxu0 %v1757
      %v1837 = vpop.f32.mrf.mxu0
      %v1838 = vadd.f32 0.0, %v1837
      %v1839 = vpop.f32.mrf.mxu0
      %v1840 = vpop.f32.mrf.mxu0
      %v1841 = vadd.f32 0.0, %v1840
      %v1842 = vpop.f32.mrf.mxu0
      %1843 = vmatprep.mubr.bf16.mxu0 0
      %1844 = vmatmul.mubr.bf16.gmra.mxu0 %v1760
      %v1845 = vpop.f32.mrf.mxu0
      %v1846 = vadd.f32 0.0, %v1845
      %v1847 = vpop.f32.mrf.mxu0
      %v1848 = vpop.f32.mrf.mxu0
      %v1849 = vadd.f32 0.0, %v1848
      %v1850 = vpop.f32.mrf.mxu0
      %1851 = vmatprep.mubr.bf16.mxu0 0
      %1852 = vmatmul.mubr.bf16.gmra.mxu0 %v1763
      %v1853 = vpop.f32.mrf.mxu0
      %v1854 = vadd.f32 0.0, %v1853
      %v1855 = vpop.f32.mrf.mxu0
      %v1856 = vpop.f32.mrf.mxu0
      %v1857 = vadd.f32 0.0, %v1856
      %v1858 = vpop.f32.mrf.mxu0
      %1859 = vmatprep.mubr.bf16.mxu0 0
      %1860 = vmatmul.mubr.bf16.gmra.mxu0 %v1766
      %v1861 = vpop.f32.mrf.mxu0
      %v1862 = vadd.f32 0.0, %v1861
      %v1863 = vpop.f32.mrf.mxu0
      %v1864 = vpop.f32.mrf.mxu0
      %v1865 = vadd.f32 0.0, %v1864
      %v1866 = vpop.f32.mrf.mxu0
      %1867 = vdwg.mxu0
      %v1868 = vld [vmem:[#allocation3] sm:$0xff]
      %v1869 = vld [vmem:[#allocation3 + $0x8] sm:$0xff]
      %v1870 = vld [vmem:[#allocation3 + $0x10] sm:$0xff]
      %v1871 = vld [vmem:[#allocation3 + $0x18] sm:$0xff]
      %v1872 = vld [vmem:[#allocation3 + $0x20] sm:$0xff]
      %v1873 = vld [vmem:[#allocation3 + $0x28] sm:$0xff]
      %v1874 = vld [vmem:[#allocation3 + $0x30] sm:$0xff]
      %v1875 = vld [vmem:[#allocation3 + $0x38] sm:$0xff]
      %v1876 = vld [vmem:[#allocation3 + $0x40] sm:$0xff]
      %v1877 = vld [vmem:[#allocation3 + $0x48] sm:$0xff]
      %v1878 = vld [vmem:[#allocation3 + $0x50] sm:$0xff]
      %v1879 = vld [vmem:[#allocation3 + $0x58] sm:$0xff]
      %v1880 = vld [vmem:[#allocation3 + $0x60] sm:$0xff]
      %v1881 = vld [vmem:[#allocation3 + $0x68] sm:$0xff]
      %v1882 = vld [vmem:[#allocation3 + $0x70] sm:$0xff]
      %v1883 = vld [vmem:[#allocation3 + $0x78] sm:$0xff]
      %v1884 = vadd.f32 %v1868, %v1806
      %v1885 = vadd.f32 %v1869, %v1809
      %v1886 = vadd.f32 %v1870, %v1814
      %v1887 = vadd.f32 %v1871, %v1817
      %v1888 = vadd.f32 %v1872, %v1822
      %v1889 = vadd.f32 %v1873, %v1825
      %v1890 = vadd.f32 %v1874, %v1830
      %v1891 = vadd.f32 %v1875, %v1833
      %v1892 = vadd.f32 %v1876, %v1838
      %v1893 = vadd.f32 %v1877, %v1841
      %v1894 = vadd.f32 %v1878, %v1846
      %v1895 = vadd.f32 %v1879, %v1849
      %v1896 = vadd.f32 %v1880, %v1854
      %v1897 = vadd.f32 %v1881, %v1857
      %v1898 = vadd.f32 %v1882, %v1862
      %v1899 = vadd.f32 %v1883, %v1865
      %1900 = vst.msk [vmem:[#allocation3] sm:$0xff] %vm1052, %v1884
      %1901 = vst.msk [vmem:[#allocation3 + $0x8] sm:$0xff] %vm1052, %v1885
      %1902 = vst.msk [vmem:[#allocation3 + $0x10] sm:$0xff] %vm1052, %v1886
      %1903 = vst.msk [vmem:[#allocation3 + $0x18] sm:$0xff] %vm1052, %v1887
      %1904 = vst.msk [vmem:[#allocation3 + $0x20] sm:$0xff] %vm1052, %v1888
      %1905 = vst.msk [vmem:[#allocation3 + $0x28] sm:$0xff] %vm1052, %v1889
      %1906 = vst.msk [vmem:[#allocation3 + $0x30] sm:$0xff] %vm1052, %v1890
      %1907 = vst.msk [vmem:[#allocation3 + $0x38] sm:$0xff] %vm1052, %v1891
      %1908 = vst.msk [vmem:[#allocation3 + $0x40] sm:$0xff] %vm1052, %v1892
      %1909 = vst.msk [vmem:[#allocation3 + $0x48] sm:$0xff] %vm1052, %v1893
      %1910 = vst.msk [vmem:[#allocation3 + $0x50] sm:$0xff] %vm1052, %v1894
      %1911 = vst.msk [vmem:[#allocation3 + $0x58] sm:$0xff] %vm1052, %v1895
      %1912 = vst.msk [vmem:[#allocation3 + $0x60] sm:$0xff] %vm1052, %v1896
      %1913 = vst.msk [vmem:[#allocation3 + $0x68] sm:$0xff] %vm1052, %v1897
      %1914 = vst.msk [vmem:[#allocation3 + $0x70] sm:$0xff] %vm1052, %v1898
      %1915 = vst.msk [vmem:[#allocation3 + $0x78] sm:$0xff] %vm1052, %v1899
      %v1916 = vld [vmem:[%s938] sm:$0xf]
      %v1917 = vld [vmem:[%s938 + $0x4] sm:$0xf]
      %v1918 = vld [vmem:[%s938 + $0xc] sm:$0xf]
      %v1919 = vld [vmem:[%s938 + $0x10] sm:$0xf]
      %v1920 = vld [vmem:[%s938 + $0x18] sm:$0xf]
      %v1921 = vld [vmem:[%s938 + $0x1c] sm:$0xf]
      %v1922 = vld [vmem:[%s938 + $0x24] sm:$0xf]
      %v1923 = vld [vmem:[%s938 + $0x28] sm:$0xf]
      %v1924 = vld [vmem:[%s938 + $0x30] sm:$0xf]
      %v1925 = vld [vmem:[%s938 + $0x34] sm:$0xf]
      %v1926 = vld [vmem:[%s938 + $0x3c] sm:$0xf]
      %v1927 = vld [vmem:[%s938 + $0x40] sm:$0xf]
      %v1928 = vld [vmem:[%s938 + $0x48] sm:$0xf]
      %v1929 = vld [vmem:[%s938 + $0x4c] sm:$0xf]
      %v1930 = vld [vmem:[%s938 + $0x54] sm:$0xf]
      %v1931 = vld [vmem:[%s938 + $0x58] sm:$0xf]
      %s1932 = scalar_lea.vmem %s5, 6
      %v1933 = vld [vmem:[%s1932] sm:$0x3]
      %v1950 = vunpack.c.l.b16 %v1916
      %v1951 = vunpack.c.l.b16 %v1917
      %v1952 = vunpack.c.l.b16 %v1918
      %v1953 = vunpack.c.l.b16 %v1919
      %v1954 = vunpack.c.l.b16 %v1920
      %v1955 = vunpack.c.l.b16 %v1921
      %v1956 = vunpack.c.l.b16 %v1922
      %v1957 = vunpack.c.l.b16 %v1923
      %v1958 = vunpack.c.l.b16 %v1924
      %v1959 = vunpack.c.l.b16 %v1925
      %v1960 = vunpack.c.l.b16 %v1926
      %v1961 = vunpack.c.l.b16 %v1927
      %v1962 = vunpack.c.l.b16 %v1928
      %v1963 = vunpack.c.l.b16 %v1929
      %v1964 = vunpack.c.l.b16 %v1930
      %v1965 = vunpack.c.l.b16 %v1931
      %v1966 = vpack.c.b16 %v1951, %v1950
      %v1967 = vpack.c.b16 %v1953, %v1952
      %v1968 = vpack.c.b16 %v1955, %v1954
      %v1969 = vpack.c.b16 %v1957, %v1956
      %v1970 = vpack.c.b16 %v1959, %v1958
      %v1971 = vpack.c.b16 %v1961, %v1960
      %v1972 = vpack.c.b16 %v1963, %v1962
      %v1973 = vpack.c.b16 %v1965, %v1964
      %v1975 = vsel %vm1052, %v1966, 0
      %v1978 = vsel %vm1052, %v1967, 0
      %v1981 = vsel %vm1052, %v1968, 0
      %v1984 = vsel %vm1052, %v1969, 0
      %v1987 = vsel %vm1052, %v1970, 0
      %v1990 = vsel %vm1052, %v1971, 0
      %v1993 = vsel %vm1052, %v1972, 0
      %v1996 = vsel %vm1052, %v1973, 0
      %v1999 = vsel %vm1077, %v1933, 0
      %2001 = vmatprep.subr.bf16.mxu0 0
      %2002 = vmatpush1.bf16.msra.mxu0 0
      %2003 = vmatprep.subr.bf16.mxu0 0
      %2004 = vmatpush1.bf16.msra.mxu0 0
      %2005 = vmatprep.subr.bf16.mxu0 0
      %2006 = vmatpush1.bf16.msra.mxu0 0
      %2007 = vmatprep.subr.bf16.mxu0 0
      %2008 = vmatpush1.bf16.msra.mxu0 0
      %2009 = vmatprep.subr.bf16.mxu0 0
      %2010 = vmatpush1.bf16.msra.mxu0 0
      %2011 = vmatprep.subr.bf16.mxu0 0
      %2012 = vmatpush1.bf16.msra.mxu0 0
      %2013 = vmatprep.subr.bf16.mxu0 0
      %2014 = vmatpush1.bf16.msra.mxu0 0
      %2015 = vmatprep.subr.bf16.mxu0 0
      %2016 = vmatpush1.bf16.msra.mxu0 %v1999
      %2017 = vmatprep.subr.bf16.mxu0 0
      %2018 = vmatpush2.bf16.msra.mxu0 0
      %2019 = vmatprep.subr.bf16.mxu0 0
      %2020 = vmatpush2.bf16.msra.mxu0 0
      %2021 = vmatprep.subr.bf16.mxu0 0
      %2022 = vmatpush2.bf16.msra.mxu0 0
      %2023 = vmatprep.subr.bf16.mxu0 0
      %2024 = vmatpush2.bf16.msra.mxu0 0
      %2025 = vmatprep.subr.bf16.mxu0 0
      %2026 = vmatpush2.bf16.msra.mxu0 0
      %2027 = vmatprep.subr.bf16.mxu0 0
      %2028 = vmatpush2.bf16.msra.mxu0 0
      %2029 = vmatprep.subr.bf16.mxu0 0
      %2030 = vmatpush2.bf16.msra.mxu0 0
      %2031 = vmatprep.subr.bf16.mxu0 0
      %2032 = vmatpush2.bf16.msra.mxu0 0
      %2033 = vmatprep.mubr.bf16.mxu0 0
      %2034 = vmatmul.mubr.bf16.gmra.mxu0 %v1975
      %v2035 = vpop.f32.mrf.mxu0
      %v2036 = vadd.f32 0.0, %v2035
      %v2037 = vpop.f32.mrf.mxu0
      %v2038 = vpop.f32.mrf.mxu0
      %v2039 = vadd.f32 0.0, %v2038
      %v2040 = vpop.f32.mrf.mxu0
      %2041 = vmatprep.mubr.bf16.mxu0 0
      %2042 = vmatmul.mubr.bf16.gmra.mxu0 %v1978
      %v2043 = vpop.f32.mrf.mxu0
      %v2044 = vadd.f32 0.0, %v2043
      %v2045 = vpop.f32.mrf.mxu0
      %v2046 = vpop.f32.mrf.mxu0
      %v2047 = vadd.f32 0.0, %v2046
      %v2048 = vpop.f32.mrf.mxu0
      %2049 = vmatprep.mubr.bf16.mxu0 0
      %2050 = vmatmul.mubr.bf16.gmra.mxu0 %v1981
      %v2051 = vpop.f32.mrf.mxu0
      %v2052 = vadd.f32 0.0, %v2051
      %v2053 = vpop.f32.mrf.mxu0
      %v2054 = vpop.f32.mrf.mxu0
      %v2055 = vadd.f32 0.0, %v2054
      %v2056 = vpop.f32.mrf.mxu0
      %2057 = vmatprep.mubr.bf16.mxu0 0
      %2058 = vmatmul.mubr.bf16.gmra.mxu0 %v1984
      %v2059 = vpop.f32.mrf.mxu0
      %v2060 = vadd.f32 0.0, %v2059
      %v2061 = vpop.f32.mrf.mxu0
      %v2062 = vpop.f32.mrf.mxu0
      %v2063 = vadd.f32 0.0, %v2062
      %v2064 = vpop.f32.mrf.mxu0
      %2065 = vmatprep.mubr.bf16.mxu0 0
      %2066 = vmatmul.mubr.bf16.gmra.mxu0 %v1987
      %v2067 = vpop.f32.mrf.mxu0
      %v2068 = vadd.f32 0.0, %v2067
      %v2069 = vpop.f32.mrf.mxu0
      %v2070 = vpop.f32.mrf.mxu0
      %v2071 = vadd.f32 0.0, %v2070
      %v2072 = vpop.f32.mrf.mxu0
      %2073 = vmatprep.mubr.bf16.mxu0 0
      %2074 = vmatmul.mubr.bf16.gmra.mxu0 %v1990
      %v2075 = vpop.f32.mrf.mxu0
      %v2076 = vadd.f32 0.0, %v2075
      %v2077 = vpop.f32.mrf.mxu0
      %v2078 = vpop.f32.mrf.mxu0
      %v2079 = vadd.f32 0.0, %v2078
      %v2080 = vpop.f32.mrf.mxu0
      %2081 = vmatprep.mubr.bf16.mxu0 0
      %2082 = vmatmul.mubr.bf16.gmra.mxu0 %v1993
      %v2083 = vpop.f32.mrf.mxu0
      %v2084 = vadd.f32 0.0, %v2083
      %v2085 = vpop.f32.mrf.mxu0
      %v2086 = vpop.f32.mrf.mxu0
      %v2087 = vadd.f32 0.0, %v2086
      %v2088 = vpop.f32.mrf.mxu0
      %2089 = vmatprep.mubr.bf16.mxu0 0
      %2090 = vmatmul.mubr.bf16.gmra.mxu0 %v1996
      %v2091 = vpop.f32.mrf.mxu0
      %v2092 = vadd.f32 0.0, %v2091
      %v2093 = vpop.f32.mrf.mxu0
      %v2094 = vpop.f32.mrf.mxu0
      %v2095 = vadd.f32 0.0, %v2094
      %v2096 = vpop.f32.mrf.mxu0
      %2097 = vdwg.mxu0
      %v2098 = vld [vmem:[#allocation3] sm:$0xff]
      %v2099 = vld [vmem:[#allocation3 + $0x8] sm:$0xff]
      %v2100 = vld [vmem:[#allocation3 + $0x10] sm:$0xff]
      %v2101 = vld [vmem:[#allocation3 + $0x18] sm:$0xff]
      %v2102 = vld [vmem:[#allocation3 + $0x20] sm:$0xff]
      %v2103 = vld [vmem:[#allocation3 + $0x28] sm:$0xff]
      %v2104 = vld [vmem:[#allocation3 + $0x30] sm:$0xff]
      %v2105 = vld [vmem:[#allocation3 + $0x38] sm:$0xff]
      %v2106 = vld [vmem:[#allocation3 + $0x40] sm:$0xff]
      %v2107 = vld [vmem:[#allocation3 + $0x48] sm:$0xff]
      %v2108 = vld [vmem:[#allocation3 + $0x50] sm:$0xff]
      %v2109 = vld [vmem:[#allocation3 + $0x58] sm:$0xff]
      %v2110 = vld [vmem:[#allocation3 + $0x60] sm:$0xff]
      %v2111 = vld [vmem:[#allocation3 + $0x68] sm:$0xff]
      %v2112 = vld [vmem:[#allocation3 + $0x70] sm:$0xff]
      %v2113 = vld [vmem:[#allocation3 + $0x78] sm:$0xff]
      %v2114 = vadd.f32 %v2098, %v2036
      %v2115 = vadd.f32 %v2099, %v2039
      %v2116 = vadd.f32 %v2100, %v2044
      %v2117 = vadd.f32 %v2101, %v2047
      %v2118 = vadd.f32 %v2102, %v2052
      %v2119 = vadd.f32 %v2103, %v2055
      %v2120 = vadd.f32 %v2104, %v2060
      %v2121 = vadd.f32 %v2105, %v2063
      %v2122 = vadd.f32 %v2106, %v2068
      %v2123 = vadd.f32 %v2107, %v2071
      %v2124 = vadd.f32 %v2108, %v2076
      %v2125 = vadd.f32 %v2109, %v2079
      %v2126 = vadd.f32 %v2110, %v2084
      %v2127 = vadd.f32 %v2111, %v2087
      %v2128 = vadd.f32 %v2112, %v2092
      %v2129 = vadd.f32 %v2113, %v2095
      %2130 = vst.msk [vmem:[#allocation3] sm:$0xff] %vm1052, %v2114
      %2131 = vst.msk [vmem:[#allocation3 + $0x8] sm:$0xff] %vm1052, %v2115
      %2132 = vst.msk [vmem:[#allocation3 + $0x10] sm:$0xff] %vm1052, %v2116
      %2133 = vst.msk [vmem:[#allocation3 + $0x18] sm:$0xff] %vm1052, %v2117
      %2134 = vst.msk [vmem:[#allocation3 + $0x20] sm:$0xff] %vm1052, %v2118
      %2135 = vst.msk [vmem:[#allocation3 + $0x28] sm:$0xff] %vm1052, %v2119
      %2136 = vst.msk [vmem:[#allocation3 + $0x30] sm:$0xff] %vm1052, %v2120
      %2137 = vst.msk [vmem:[#allocation3 + $0x38] sm:$0xff] %vm1052, %v2121
      %2138 = vst.msk [vmem:[#allocation3 + $0x40] sm:$0xff] %vm1052, %v2122
      %2139 = vst.msk [vmem:[#allocation3 + $0x48] sm:$0xff] %vm1052, %v2123
      %2140 = vst.msk [vmem:[#allocation3 + $0x50] sm:$0xff] %vm1052, %v2124
      %2141 = vst.msk [vmem:[#allocation3 + $0x58] sm:$0xff] %vm1052, %v2125
      %2142 = vst.msk [vmem:[#allocation3 + $0x60] sm:$0xff] %vm1052, %v2126
      %2143 = vst.msk [vmem:[#allocation3 + $0x68] sm:$0xff] %vm1052, %v2127
      %2144 = vst.msk [vmem:[#allocation3 + $0x70] sm:$0xff] %vm1052, %v2128
      %2145 = vst.msk [vmem:[#allocation3 + $0x78] sm:$0xff] %vm1052, %v2129
      %v2146 = vld [vmem:[%s938] sm:$0xf]
      %v2147 = vld [vmem:[%s938 + $0x4] sm:$0xf]
      %v2148 = vld [vmem:[%s938 + $0x8] sm:$0x1]
      %v2149 = vld [vmem:[%s938 + $0xc] sm:$0xf]
      %v2150 = vld [vmem:[%s938 + $0x10] sm:$0xf]
      %v2151 = vld [vmem:[%s938 + $0x14] sm:$0x1]
      %v2152 = vld [vmem:[%s938 + $0x18] sm:$0xf]
      %v2153 = vld [vmem:[%s938 + $0x1c] sm:$0xf]
      %v2154 = vld [vmem:[%s938 + $0x20] sm:$0x1]
      %v2155 = vld [vmem:[%s938 + $0x24] sm:$0xf]
      %v2156 = vld [vmem:[%s938 + $0x28] sm:$0xf]
      %v2157 = vld [vmem:[%s938 + $0x2c] sm:$0x1]
      %v2158 = vld [vmem:[%s938 + $0x30] sm:$0xf]
      %v2159 = vld [vmem:[%s938 + $0x34] sm:$0xf]
      %v2160 = vld [vmem:[%s938 + $0x38] sm:$0x1]
      %v2161 = vld [vmem:[%s938 + $0x3c] sm:$0xf]
      %v2162 = vld [vmem:[%s938 + $0x40] sm:$0xf]
      %v2163 = vld [vmem:[%s938 + $0x44] sm:$0x1]
      %v2164 = vld [vmem:[%s938 + $0x48] sm:$0xf]
      %v2165 = vld [vmem:[%s938 + $0x4c] sm:$0xf]
      %v2166 = vld [vmem:[%s938 + $0x50] sm:$0x1]
      %v2167 = vld [vmem:[%s938 + $0x54] sm:$0xf]
      %v2168 = vld [vmem:[%s938 + $0x58] sm:$0xf]
      %v2169 = vld [vmem:[%s938 + $0x5c] sm:$0x1]
      %v2171 = vshrl.u32 %v2146, 16
      %v2173 = vrot.slane %v2171, 4
      %v2174 = vshll.u32 %v2146, 16
      %v2176 = vrot.slane %v2174, 5
      %v2177 = vor.u32 %v2173, %v2176
      %v2178 = vrot.slane %v2177, 4
      %v2180 = vshll.u32 %v2147, 16
      %v2182 = vrot.slane %v2180, 5
      %v2183 = vsel %vm1220, %v2178, %v2182
      %v2184 = vshrl.u32 %v2147, 16
      %v2186 = vrot.slane %v2184, 4
      %v2187 = vor.u32 %v2186, %v2182
      %v2188 = vrot.slane %v2187, 4
      %v2190 = vshll.u32 %v2148, 16
      %v2192 = vrot.slane %v2190, 5
      %v2193 = vsel %vm1220, %v2188, %v2192
      %v2195 = vshrl.u32 %v2149, 16
      %v2197 = vrot.slane %v2195, 4
      %v2198 = vshll.u32 %v2149, 16
      %v2200 = vrot.slane %v2198, 5
      %v2201 = vor.u32 %v2197, %v2200
      %v2202 = vrot.slane %v2201, 4
      %v2204 = vshll.u32 %v2150, 16
      %v2206 = vrot.slane %v2204, 5
      %v2207 = vsel %vm1220, %v2202, %v2206
      %v2208 = vshrl.u32 %v2150, 16
      %v2210 = vrot.slane %v2208, 4
      %v2211 = vor.u32 %v2210, %v2206
      %v2212 = vrot.slane %v2211, 4
      %v2214 = vshll.u32 %v2151, 16
      %v2216 = vrot.slane %v2214, 5
      %v2217 = vsel %vm1220, %v2212, %v2216
      %v2219 = vshrl.u32 %v2152, 16
      %v2221 = vrot.slane %v2219, 4
      %v2222 = vshll.u32 %v2152, 16
      %v2224 = vrot.slane %v2222, 5
      %v2225 = vor.u32 %v2221, %v2224
      %v2226 = vrot.slane %v2225, 4
      %v2228 = vshll.u32 %v2153, 16
      %v2230 = vrot.slane %v2228, 5
      %v2231 = vsel %vm1220, %v2226, %v2230
      %v2232 = vshrl.u32 %v2153, 16
      %v2234 = vrot.slane %v2232, 4
      %v2235 = vor.u32 %v2234, %v2230
      %v2236 = vrot.slane %v2235, 4
      %v2238 = vshll.u32 %v2154, 16
      %v2240 = vrot.slane %v2238, 5
      %v2241 = vsel %vm1220, %v2236, %v2240
      %v2243 = vshrl.u32 %v2155, 16
      %v2245 = vrot.slane %v2243, 4
      %v2246 = vshll.u32 %v2155, 16
      %v2248 = vrot.slane %v2246, 5
      %v2249 = vor.u32 %v2245, %v2248
      %v2250 = vrot.slane %v2249, 4
      %v2252 = vshll.u32 %v2156, 16
      %v2254 = vrot.slane %v2252, 5
      %v2255 = vsel %vm1220, %v2250, %v2254
      %v2256 = vshrl.u32 %v2156, 16
      %v2258 = vrot.slane %v2256, 4
      %v2259 = vor.u32 %v2258, %v2254
      %v2260 = vrot.slane %v2259, 4
      %v2262 = vshll.u32 %v2157, 16
      %v2264 = vrot.slane %v2262, 5
      %v2265 = vsel %vm1220, %v2260, %v2264
      %v2267 = vshrl.u32 %v2158, 16
      %v2269 = vrot.slane %v2267, 4
      %v2270 = vshll.u32 %v2158, 16
      %v2272 = vrot.slane %v2270, 5
      %v2273 = vor.u32 %v2269, %v2272
      %v2274 = vrot.slane %v2273, 4
      %v2276 = vshll.u32 %v2159, 16
      %v2278 = vrot.slane %v2276, 5
      %v2279 = vsel %vm1220, %v2274, %v2278
      %v2280 = vshrl.u32 %v2159, 16
      %v2282 = vrot.slane %v2280, 4
      %v2283 = vor.u32 %v2282, %v2278
      %v2284 = vrot.slane %v2283, 4
      %v2286 = vshll.u32 %v2160, 16
      %v2288 = vrot.slane %v2286, 5
      %v2289 = vsel %vm1220, %v2284, %v2288
      %v2291 = vshrl.u32 %v2161, 16
      %v2293 = vrot.slane %v2291, 4
      %v2294 = vshll.u32 %v2161, 16
      %v2296 = vrot.slane %v2294, 5
      %v2297 = vor.u32 %v2293, %v2296
      %v2298 = vrot.slane %v2297, 4
      %v2300 = vshll.u32 %v2162, 16
      %v2302 = vrot.slane %v2300, 5
      %v2303 = vsel %vm1220, %v2298, %v2302
      %v2304 = vshrl.u32 %v2162, 16
      %v2306 = vrot.slane %v2304, 4
      %v2307 = vor.u32 %v2306, %v2302
      %v2308 = vrot.slane %v2307, 4
      %v2310 = vshll.u32 %v2163, 16
      %v2312 = vrot.slane %v2310, 5
      %v2313 = vsel %vm1220, %v2308, %v2312
      %v2315 = vshrl.u32 %v2164, 16
      %v2317 = vrot.slane %v2315, 4
      %v2318 = vshll.u32 %v2164, 16
      %v2320 = vrot.slane %v2318, 5
      %v2321 = vor.u32 %v2317, %v2320
      %v2322 = vrot.slane %v2321, 4
      %v2324 = vshll.u32 %v2165, 16
      %v2326 = vrot.slane %v2324, 5
      %v2327 = vsel %vm1220, %v2322, %v2326
      %v2328 = vshrl.u32 %v2165, 16
      %v2330 = vrot.slane %v2328, 4
      %v2331 = vor.u32 %v2330, %v2326
      %v2332 = vrot.slane %v2331, 4
      %v2334 = vshll.u32 %v2166, 16
      %v2336 = vrot.slane %v2334, 5
      %v2337 = vsel %vm1220, %v2332, %v2336
      %v2339 = vshrl.u32 %v2167, 16
      %v2341 = vrot.slane %v2339, 4
      %v2342 = vshll.u32 %v2167, 16
      %v2344 = vrot.slane %v2342, 5
      %v2345 = vor.u32 %v2341, %v2344
      %v2346 = vrot.slane %v2345, 4
      %v2348 = vshll.u32 %v2168, 16
      %v2350 = vrot.slane %v2348, 5
      %v2351 = vsel %vm1220, %v2346, %v2350
      %v2352 = vshrl.u32 %v2168, 16
      %v2354 = vrot.slane %v2352, 4
      %v2355 = vor.u32 %v2354, %v2350
      %v2356 = vrot.slane %v2355, 4
      %v2358 = vshll.u32 %v2169, 16
      %v2360 = vrot.slane %v2358, 5
      %v2361 = vsel %vm1220, %v2356, %v2360
      %s2362 = scalar_lea.vmem %s5, 8
      %v2363 = vld [vmem:[%s2362] sm:$0x3]
      %v2364 = vunpack.c.l.b16 %v2183
      %v2365 = vunpack.c.l.b16 %v2193
      %v2366 = vunpack.c.l.b16 %v2207
      %v2367 = vunpack.c.l.b16 %v2217
      %v2368 = vunpack.c.l.b16 %v2231
      %v2369 = vunpack.c.l.b16 %v2241
      %v2370 = vunpack.c.l.b16 %v2255
      %v2371 = vunpack.c.l.b16 %v2265
      %v2372 = vunpack.c.l.b16 %v2279
      %v2373 = vunpack.c.l.b16 %v2289
      %v2374 = vunpack.c.l.b16 %v2303
      %v2375 = vunpack.c.l.b16 %v2313
      %v2376 = vunpack.c.l.b16 %v2327
      %v2377 = vunpack.c.l.b16 %v2337
      %v2378 = vunpack.c.l.b16 %v2351
      %v2379 = vunpack.c.l.b16 %v2361
      %v2380 = vpack.c.b16 %v2365, %v2364
      %v2381 = vpack.c.b16 %v2367, %v2366
      %v2382 = vpack.c.b16 %v2369, %v2368
      %v2383 = vpack.c.b16 %v2371, %v2370
      %v2384 = vpack.c.b16 %v2373, %v2372
      %v2385 = vpack.c.b16 %v2375, %v2374
      %v2386 = vpack.c.b16 %v2377, %v2376
      %v2387 = vpack.c.b16 %v2379, %v2378
      %v2389 = vsel %vm1052, %v2380, 0
      %v2392 = vsel %vm1052, %v2381, 0
      %v2395 = vsel %vm1052, %v2382, 0
      %v2398 = vsel %vm1052, %v2383, 0
      %v2401 = vsel %vm1052, %v2384, 0
      %v2404 = vsel %vm1052, %v2385, 0
      %v2407 = vsel %vm1052, %v2386, 0
      %v2410 = vsel %vm1052, %v2387, 0
      %v2413 = vsel %vm1077, %v2363, 0
      %2415 = vmatprep.subr.bf16.mxu0 0
      %2416 = vmatpush1.bf16.msra.mxu0 0
      %2417 = vmatprep.subr.bf16.mxu0 0
      %2418 = vmatpush1.bf16.msra.mxu0 0
      %2419 = vmatprep.subr.bf16.mxu0 0
      %2420 = vmatpush1.bf16.msra.mxu0 0
      %2421 = vmatprep.subr.bf16.mxu0 0
      %2422 = vmatpush1.bf16.msra.mxu0 0
      %2423 = vmatprep.subr.bf16.mxu0 0
      %2424 = vmatpush1.bf16.msra.mxu0 0
      %2425 = vmatprep.subr.bf16.mxu0 0
      %2426 = vmatpush1.bf16.msra.mxu0 0
      %2427 = vmatprep.subr.bf16.mxu0 0
      %2428 = vmatpush1.bf16.msra.mxu0 0
      %2429 = vmatprep.subr.bf16.mxu0 0
      %2430 = vmatpush1.bf16.msra.mxu0 %v2413
      %2431 = vmatprep.subr.bf16.mxu0 0
      %2432 = vmatpush2.bf16.msra.mxu0 0
      %2433 = vmatprep.subr.bf16.mxu0 0
      %2434 = vmatpush2.bf16.msra.mxu0 0
      %2435 = vmatprep.subr.bf16.mxu0 0
      %2436 = vmatpush2.bf16.msra.mxu0 0
      %2437 = vmatprep.subr.bf16.mxu0 0
      %2438 = vmatpush2.bf16.msra.mxu0 0
      %2439 = vmatprep.subr.bf16.mxu0 0
      %2440 = vmatpush2.bf16.msra.mxu0 0
      %2441 = vmatprep.subr.bf16.mxu0 0
      %2442 = vmatpush2.bf16.msra.mxu0 0
      %2443 = vmatprep.subr.bf16.mxu0 0
      %2444 = vmatpush2.bf16.msra.mxu0 0
      %2445 = vmatprep.subr.bf16.mxu0 0
      %2446 = vmatpush2.bf16.msra.mxu0 0
      %2447 = vmatprep.mubr.bf16.mxu0 0
      %2448 = vmatmul.mubr.bf16.gmra.mxu0 %v2389
      %v2449 = vpop.f32.mrf.mxu0
      %v2450 = vadd.f32 0.0, %v2449
      %v2451 = vpop.f32.mrf.mxu0
      %v2452 = vpop.f32.mrf.mxu0
      %v2453 = vadd.f32 0.0, %v2452
      %v2454 = vpop.f32.mrf.mxu0
      %2455 = vmatprep.mubr.bf16.mxu0 0
      %2456 = vmatmul.mubr.bf16.gmra.mxu0 %v2392
      %v2457 = vpop.f32.mrf.mxu0
      %v2458 = vadd.f32 0.0, %v2457
      %v2459 = vpop.f32.mrf.mxu0
      %v2460 = vpop.f32.mrf.mxu0
      %v2461 = vadd.f32 0.0, %v2460
      %v2462 = vpop.f32.mrf.mxu0
      %2463 = vmatprep.mubr.bf16.mxu0 0
      %2464 = vmatmul.mubr.bf16.gmra.mxu0 %v2395
      %v2465 = vpop.f32.mrf.mxu0
      %v2466 = vadd.f32 0.0, %v2465
      %v2467 = vpop.f32.mrf.mxu0
      %v2468 = vpop.f32.mrf.mxu0
      %v2469 = vadd.f32 0.0, %v2468
      %v2470 = vpop.f32.mrf.mxu0
      %2471 = vmatprep.mubr.bf16.mxu0 0
      %2472 = vmatmul.mubr.bf16.gmra.mxu0 %v2398
      %v2473 = vpop.f32.mrf.mxu0
      %v2474 = vadd.f32 0.0, %v2473
      %v2475 = vpop.f32.mrf.mxu0
      %v2476 = vpop.f32.mrf.mxu0
      %v2477 = vadd.f32 0.0, %v2476
      %v2478 = vpop.f32.mrf.mxu0
      %2479 = vmatprep.mubr.bf16.mxu0 0
      %2480 = vmatmul.mubr.bf16.gmra.mxu0 %v2401
      %v2481 = vpop.f32.mrf.mxu0
      %v2482 = vadd.f32 0.0, %v2481
      %v2483 = vpop.f32.mrf.mxu0
      %v2484 = vpop.f32.mrf.mxu0
      %v2485 = vadd.f32 0.0, %v2484
      %v2486 = vpop.f32.mrf.mxu0
      %2487 = vmatprep.mubr.bf16.mxu0 0
      %2488 = vmatmul.mubr.bf16.gmra.mxu0 %v2404
      %v2489 = vpop.f32.mrf.mxu0
      %v2490 = vadd.f32 0.0, %v2489
      %v2491 = vpop.f32.mrf.mxu0
      %v2492 = vpop.f32.mrf.mxu0
      %v2493 = vadd.f32 0.0, %v2492
      %v2494 = vpop.f32.mrf.mxu0
      %2495 = vmatprep.mubr.bf16.mxu0 0
      %2496 = vmatmul.mubr.bf16.gmra.mxu0 %v2407
      %v2497 = vpop.f32.mrf.mxu0
      %v2498 = vadd.f32 0.0, %v2497
      %v2499 = vpop.f32.mrf.mxu0
      %v2500 = vpop.f32.mrf.mxu0
      %v2501 = vadd.f32 0.0, %v2500
      %v2502 = vpop.f32.mrf.mxu0
      %2503 = vmatprep.mubr.bf16.mxu0 0
      %2504 = vmatmul.mubr.bf16.gmra.mxu0 %v2410
      %v2505 = vpop.f32.mrf.mxu0
      %v2506 = vadd.f32 0.0, %v2505
      %v2507 = vpop.f32.mrf.mxu0
      %v2508 = vpop.f32.mrf.mxu0
      %v2509 = vadd.f32 0.0, %v2508
      %v2510 = vpop.f32.mrf.mxu0
      %2511 = vdwg.mxu0
      %v2512 = vld [vmem:[#allocation3] sm:$0xff]
      %v2513 = vld [vmem:[#allocation3 + $0x8] sm:$0xff]
      %v2514 = vld [vmem:[#allocation3 + $0x10] sm:$0xff]
      %v2515 = vld [vmem:[#allocation3 + $0x18] sm:$0xff]
      %v2516 = vld [vmem:[#allocation3 + $0x20] sm:$0xff]
      %v2517 = vld [vmem:[#allocation3 + $0x28] sm:$0xff]
      %v2518 = vld [vmem:[#allocation3 + $0x30] sm:$0xff]
      %v2519 = vld [vmem:[#allocation3 + $0x38] sm:$0xff]
      %v2520 = vld [vmem:[#allocation3 + $0x40] sm:$0xff]
      %v2521 = vld [vmem:[#allocation3 + $0x48] sm:$0xff]
      %v2522 = vld [vmem:[#allocation3 + $0x50] sm:$0xff]
      %v2523 = vld [vmem:[#allocation3 + $0x58] sm:$0xff]
      %v2524 = vld [vmem:[#allocation3 + $0x60] sm:$0xff]
      %v2525 = vld [vmem:[#allocation3 + $0x68] sm:$0xff]
      %v2526 = vld [vmem:[#allocation3 + $0x70] sm:$0xff]
      %v2527 = vld [vmem:[#allocation3 + $0x78] sm:$0xff]
      %v2528 = vadd.f32 %v2512, %v2450
      %v2529 = vadd.f32 %v2513, %v2453
      %v2530 = vadd.f32 %v2514, %v2458
      %v2531 = vadd.f32 %v2515, %v2461
      %v2532 = vadd.f32 %v2516, %v2466
      %v2533 = vadd.f32 %v2517, %v2469
      %v2534 = vadd.f32 %v2518, %v2474
      %v2535 = vadd.f32 %v2519, %v2477
      %v2536 = vadd.f32 %v2520, %v2482
      %v2537 = vadd.f32 %v2521, %v2485
      %v2538 = vadd.f32 %v2522, %v2490
      %v2539 = vadd.f32 %v2523, %v2493
      %v2540 = vadd.f32 %v2524, %v2498
      %v2541 = vadd.f32 %v2525, %v2501
      %v2542 = vadd.f32 %v2526, %v2506
      %v2543 = vadd.f32 %v2527, %v2509
      %2544 = vst.msk [vmem:[#allocation3] sm:$0xff] %vm1052, %v2528
      %2545 = vst.msk [vmem:[#allocation3 + $0x8] sm:$0xff] %vm1052, %v2529
      %2546 = vst.msk [vmem:[#allocation3 + $0x10] sm:$0xff] %vm1052, %v2530
      %2547 = vst.msk [vmem:[#allocation3 + $0x18] sm:$0xff] %vm1052, %v2531
      %2548 = vst.msk [vmem:[#allocation3 + $0x20] sm:$0xff] %vm1052, %v2532
      %2549 = vst.msk [vmem:[#allocation3 + $0x28] sm:$0xff] %vm1052, %v2533
      %2550 = vst.msk [vmem:[#allocation3 + $0x30] sm:$0xff] %vm1052, %v2534
      %2551 = vst.msk [vmem:[#allocation3 + $0x38] sm:$0xff] %vm1052, %v2535
      %2552 = vst.msk [vmem:[#allocation3 + $0x40] sm:$0xff] %vm1052, %v2536
      %2553 = vst.msk [vmem:[#allocation3 + $0x48] sm:$0xff] %vm1052, %v2537
      %2554 = vst.msk [vmem:[#allocation3 + $0x50] sm:$0xff] %vm1052, %v2538
      %2555 = vst.msk [vmem:[#allocation3 + $0x58] sm:$0xff] %vm1052, %v2539
      %2556 = vst.msk [vmem:[#allocation3 + $0x60] sm:$0xff] %vm1052, %v2540
      %2557 = vst.msk [vmem:[#allocation3 + $0x68] sm:$0xff] %vm1052, %v2541
      %2558 = vst.msk [vmem:[#allocation3 + $0x70] sm:$0xff] %vm1052, %v2542
      %2559 = vst.msk [vmem:[#allocation3 + $0x78] sm:$0xff] %vm1052, %v2543
      %v2560 = vld [vmem:[%s938] sm:$0xe]
      %v2561 = vld [vmem:[%s938 + $0x4] sm:$0xf]
      %v2562 = vld [vmem:[%s938 + $0x8] sm:$0x1]
      %v2563 = vld [vmem:[%s938 + $0xc] sm:$0xe]
      %v2564 = vld [vmem:[%s938 + $0x10] sm:$0xf]
      %v2565 = vld [vmem:[%s938 + $0x14] sm:$0x1]
      %v2566 = vld [vmem:[%s938 + $0x18] sm:$0xe]
      %v2567 = vld [vmem:[%s938 + $0x1c] sm:$0xf]
      %v2568 = vld [vmem:[%s938 + $0x20] sm:$0x1]
      %v2569 = vld [vmem:[%s938 + $0x24] sm:$0xe]
      %v2570 = vld [vmem:[%s938 + $0x28] sm:$0xf]
      %v2571 = vld [vmem:[%s938 + $0x2c] sm:$0x1]
      %v2572 = vld [vmem:[%s938 + $0x30] sm:$0xe]
      %v2573 = vld [vmem:[%s938 + $0x34] sm:$0xf]
      %v2574 = vld [vmem:[%s938 + $0x38] sm:$0x1]
      %v2575 = vld [vmem:[%s938 + $0x3c] sm:$0xe]
      %v2576 = vld [vmem:[%s938 + $0x40] sm:$0xf]
      %v2577 = vld [vmem:[%s938 + $0x44] sm:$0x1]
      %v2578 = vld [vmem:[%s938 + $0x48] sm:$0xe]
      %v2579 = vld [vmem:[%s938 + $0x4c] sm:$0xf]
      %v2580 = vld [vmem:[%s938 + $0x50] sm:$0x1]
      %v2581 = vld [vmem:[%s938 + $0x54] sm:$0xe]
      %v2582 = vld [vmem:[%s938 + $0x58] sm:$0xf]
      %v2583 = vld [vmem:[%s938 + $0x5c] sm:$0x1]
      %v2608 = vrot.slane %v2560, 5
      %v2609 = vrot.slane %v2608, 4
      %v2610 = vrot.slane %v2561, 5
      %v2611 = vsel %vm1661, %v2609, %v2610
      %v2612 = vrot.slane %v2610, 4
      %v2613 = vrot.slane %v2562, 5
      %v2614 = vsel %vm1661, %v2612, %v2613
      %v2615 = vrot.slane %v2563, 5
      %v2616 = vrot.slane %v2615, 4
      %v2617 = vrot.slane %v2564, 5
      %v2618 = vsel %vm1661, %v2616, %v2617
      %v2619 = vrot.slane %v2617, 4
      %v2620 = vrot.slane %v2565, 5
      %v2621 = vsel %vm1661, %v2619, %v2620
      %v2622 = vrot.slane %v2566, 5
      %v2623 = vrot.slane %v2622, 4
      %v2624 = vrot.slane %v2567, 5
      %v2625 = vsel %vm1661, %v2623, %v2624
      %v2626 = vrot.slane %v2624, 4
      %v2627 = vrot.slane %v2568, 5
      %v2628 = vsel %vm1661, %v2626, %v2627
      %v2629 = vrot.slane %v2569, 5
      %v2630 = vrot.slane %v2629, 4
      %v2631 = vrot.slane %v2570, 5
      %v2632 = vsel %vm1661, %v2630, %v2631
      %v2633 = vrot.slane %v2631, 4
      %v2634 = vrot.slane %v2571, 5
      %v2635 = vsel %vm1661, %v2633, %v2634
      %v2636 = vrot.slane %v2572, 5
      %v2637 = vrot.slane %v2636, 4
      %v2638 = vrot.slane %v2573, 5
      %v2639 = vsel %vm1661, %v2637, %v2638
      %v2640 = vrot.slane %v2638, 4
      %v2641 = vrot.slane %v2574, 5
      %v2642 = vsel %vm1661, %v2640, %v2641
      %v2643 = vrot.slane %v2575, 5
      %v2644 = vrot.slane %v2643, 4
      %v2645 = vrot.slane %v2576, 5
      %v2646 = vsel %vm1661, %v2644, %v2645
      %v2647 = vrot.slane %v2645, 4
      %v2648 = vrot.slane %v2577, 5
      %v2649 = vsel %vm1661, %v2647, %v2648
      %v2650 = vrot.slane %v2578, 5
      %v2651 = vrot.slane %v2650, 4
      %v2652 = vrot.slane %v2579, 5
      %v2653 = vsel %vm1661, %v2651, %v2652
      %v2654 = vrot.slane %v2652, 4
      %v2655 = vrot.slane %v2580, 5
      %v2656 = vsel %vm1661, %v2654, %v2655
      %v2657 = vrot.slane %v2581, 5
      %v2658 = vrot.slane %v2657, 4
      %v2659 = vrot.slane %v2582, 5
      %v2660 = vsel %vm1661, %v2658, %v2659
      %v2661 = vrot.slane %v2659, 4
      %v2662 = vrot.slane %v2583, 5
      %v2663 = vsel %vm1661, %v2661, %v2662
      %s2664 = scalar_lea.vmem %s5, 10
      %v2665 = vld [vmem:[%s2664] sm:$0x3]
      %v2666 = vunpack.c.l.b16 %v2611
      %v2667 = vunpack.c.l.b16 %v2614
      %v2668 = vunpack.c.l.b16 %v2618
      %v2669 = vunpack.c.l.b16 %v2621
      %v2670 = vunpack.c.l.b16 %v2625
      %v2671 = vunpack.c.l.b16 %v2628
      %v2672 = vunpack.c.l.b16 %v2632
      %v2673 = vunpack.c.l.b16 %v2635
      %v2674 = vunpack.c.l.b16 %v2639
      %v2675 = vunpack.c.l.b16 %v2642
      %v2676 = vunpack.c.l.b16 %v2646
      %v2677 = vunpack.c.l.b16 %v2649
      %v2678 = vunpack.c.l.b16 %v2653
      %v2679 = vunpack.c.l.b16 %v2656
      %v2680 = vunpack.c.l.b16 %v2660
      %v2681 = vunpack.c.l.b16 %v2663
      %v2682 = vpack.c.b16 %v2667, %v2666
      %v2683 = vpack.c.b16 %v2669, %v2668
      %v2684 = vpack.c.b16 %v2671, %v2670
      %v2685 = vpack.c.b16 %v2673, %v2672
      %v2686 = vpack.c.b16 %v2675, %v2674
      %v2687 = vpack.c.b16 %v2677, %v2676
      %v2688 = vpack.c.b16 %v2679, %v2678
      %v2689 = vpack.c.b16 %v2681, %v2680
      %v2691 = vsel %vm1052, %v2682, 0
      %v2694 = vsel %vm1052, %v2683, 0
      %v2697 = vsel %vm1052, %v2684, 0
      %v2700 = vsel %vm1052, %v2685, 0
      %v2703 = vsel %vm1052, %v2686, 0
      %v2706 = vsel %vm1052, %v2687, 0
      %v2709 = vsel %vm1052, %v2688, 0
      %v2712 = vsel %vm1052, %v2689, 0
      %v2715 = vsel %vm1077, %v2665, 0
      %2717 = vmatprep.subr.bf16.mxu0 0
      %2718 = vmatpush1.bf16.msra.mxu0 0
      %2719 = vmatprep.subr.bf16.mxu0 0
      %2720 = vmatpush1.bf16.msra.mxu0 0
      %2721 = vmatprep.subr.bf16.mxu0 0
      %2722 = vmatpush1.bf16.msra.mxu0 0
      %2723 = vmatprep.subr.bf16.mxu0 0
      %2724 = vmatpush1.bf16.msra.mxu0 0
      %2725 = vmatprep.subr.bf16.mxu0 0
      %2726 = vmatpush1.bf16.msra.mxu0 0
      %2727 = vmatprep.subr.bf16.mxu0 0
      %2728 = vmatpush1.bf16.msra.mxu0 0
      %2729 = vmatprep.subr.bf16.mxu0 0
      %2730 = vmatpush1.bf16.msra.mxu0 0
      %2731 = vmatprep.subr.bf16.mxu0 0
      %2732 = vmatpush1.bf16.msra.mxu0 %v2715
      %2733 = vmatprep.subr.bf16.mxu0 0
      %2734 = vmatpush2.bf16.msra.mxu0 0
      %2735 = vmatprep.subr.bf16.mxu0 0
      %2736 = vmatpush2.bf16.msra.mxu0 0
      %2737 = vmatprep.subr.bf16.mxu0 0
      %2738 = vmatpush2.bf16.msra.mxu0 0
      %2739 = vmatprep.subr.bf16.mxu0 0
      %2740 = vmatpush2.bf16.msra.mxu0 0
      %2741 = vmatprep.subr.bf16.mxu0 0
      %2742 = vmatpush2.bf16.msra.mxu0 0
      %2743 = vmatprep.subr.bf16.mxu0 0
      %2744 = vmatpush2.bf16.msra.mxu0 0
      %2745 = vmatprep.subr.bf16.mxu0 0
      %2746 = vmatpush2.bf16.msra.mxu0 0
      %2747 = vmatprep.subr.bf16.mxu0 0
      %2748 = vmatpush2.bf16.msra.mxu0 0
      %2749 = vmatprep.mubr.bf16.mxu0 0
      %2750 = vmatmul.mubr.bf16.gmra.mxu0 %v2691
      %v2751 = vpop.f32.mrf.mxu0
      %v2752 = vadd.f32 0.0, %v2751
      %v2753 = vpop.f32.mrf.mxu0
      %v2754 = vpop.f32.mrf.mxu0
      %v2755 = vadd.f32 0.0, %v2754
      %v2756 = vpop.f32.mrf.mxu0
      %2757 = vmatprep.mubr.bf16.mxu0 0
      %2758 = vmatmul.mubr.bf16.gmra.mxu0 %v2694
      %v2759 = vpop.f32.mrf.mxu0
      %v2760 = vadd.f32 0.0, %v2759
      %v2761 = vpop.f32.mrf.mxu0
      %v2762 = vpop.f32.mrf.mxu0
      %v2763 = vadd.f32 0.0, %v2762
      %v2764 = vpop.f32.mrf.mxu0
      %2765 = vmatprep.mubr.bf16.mxu0 0
      %2766 = vmatmul.mubr.bf16.gmra.mxu0 %v2697
      %v2767 = vpop.f32.mrf.mxu0
      %v2768 = vadd.f32 0.0, %v2767
      %v2769 = vpop.f32.mrf.mxu0
      %v2770 = vpop.f32.mrf.mxu0
      %v2771 = vadd.f32 0.0, %v2770
      %v2772 = vpop.f32.mrf.mxu0
      %2773 = vmatprep.mubr.bf16.mxu0 0
      %2774 = vmatmul.mubr.bf16.gmra.mxu0 %v2700
      %v2775 = vpop.f32.mrf.mxu0
      %v2776 = vadd.f32 0.0, %v2775
      %v2777 = vpop.f32.mrf.mxu0
      %v2778 = vpop.f32.mrf.mxu0
      %v2779 = vadd.f32 0.0, %v2778
      %v2780 = vpop.f32.mrf.mxu0
      %2781 = vmatprep.mubr.bf16.mxu0 0
      %2782 = vmatmul.mubr.bf16.gmra.mxu0 %v2703
      %v2783 = vpop.f32.mrf.mxu0
      %v2784 = vadd.f32 0.0, %v2783
      %v2785 = vpop.f32.mrf.mxu0
      %v2786 = vpop.f32.mrf.mxu0
      %v2787 = vadd.f32 0.0, %v2786
      %v2788 = vpop.f32.mrf.mxu0
      %2789 = vmatprep.mubr.bf16.mxu0 0
      %2790 = vmatmul.mubr.bf16.gmra.mxu0 %v2706
      %v2791 = vpop.f32.mrf.mxu0
      %v2792 = vadd.f32 0.0, %v2791
      %v2793 = vpop.f32.mrf.mxu0
      %v2794 = vpop.f32.mrf.mxu0
      %v2795 = vadd.f32 0.0, %v2794
      %v2796 = vpop.f32.mrf.mxu0
      %2797 = vmatprep.mubr.bf16.mxu0 0
      %2798 = vmatmul.mubr.bf16.gmra.mxu0 %v2709
      %v2799 = vpop.f32.mrf.mxu0
      %v2800 = vadd.f32 0.0, %v2799
      %v2801 = vpop.f32.mrf.mxu0
      %v2802 = vpop.f32.mrf.mxu0
      %v2803 = vadd.f32 0.0, %v2802
      %v2804 = vpop.f32.mrf.mxu0
      %2805 = vmatprep.mubr.bf16.mxu0 0
      %2806 = vmatmul.mubr.bf16.gmra.mxu0 %v2712
      %v2807 = vpop.f32.mrf.mxu0
      %v2808 = vadd.f32 0.0, %v2807
      %v2809 = vpop.f32.mrf.mxu0
      %v2810 = vpop.f32.mrf.mxu0
      %v2811 = vadd.f32 0.0, %v2810
      %v2812 = vpop.f32.mrf.mxu0
      %2813 = vdwg.mxu0
      %v2814 = vld [vmem:[#allocation3] sm:$0xff]
      %v2815 = vld [vmem:[#allocation3 + $0x8] sm:$0xff]
      %v2816 = vld [vmem:[#allocation3 + $0x10] sm:$0xff]
      %v2817 = vld [vmem:[#allocation3 + $0x18] sm:$0xff]
      %v2818 = vld [vmem:[#allocation3 + $0x20] sm:$0xff]
      %v2819 = vld [vmem:[#allocation3 + $0x28] sm:$0xff]
      %v2820 = vld [vmem:[#allocation3 + $0x30] sm:$0xff]
      %v2821 = vld [vmem:[#allocation3 + $0x38] sm:$0xff]
      %v2822 = vld [vmem:[#allocation3 + $0x40] sm:$0xff]
      %v2823 = vld [vmem:[#allocation3 + $0x48] sm:$0xff]
      %v2824 = vld [vmem:[#allocation3 + $0x50] sm:$0xff]
      %v2825 = vld [vmem:[#allocation3 + $0x58] sm:$0xff]
      %v2826 = vld [vmem:[#allocation3 + $0x60] sm:$0xff]
      %v2827 = vld [vmem:[#allocation3 + $0x68] sm:$0xff]
      %v2828 = vld [vmem:[#allocation3 + $0x70] sm:$0xff]
      %v2829 = vld [vmem:[#allocation3 + $0x78] sm:$0xff]
      %v2830 = vadd.f32 %v2814, %v2752
      %v2831 = vadd.f32 %v2815, %v2755
      %v2832 = vadd.f32 %v2816, %v2760
      %v2833 = vadd.f32 %v2817, %v2763
      %v2834 = vadd.f32 %v2818, %v2768
      %v2835 = vadd.f32 %v2819, %v2771
      %v2836 = vadd.f32 %v2820, %v2776
      %v2837 = vadd.f32 %v2821, %v2779
      %v2838 = vadd.f32 %v2822, %v2784
      %v2839 = vadd.f32 %v2823, %v2787
      %v2840 = vadd.f32 %v2824, %v2792
      %v2841 = vadd.f32 %v2825, %v2795
      %v2842 = vadd.f32 %v2826, %v2800
      %v2843 = vadd.f32 %v2827, %v2803
      %v2844 = vadd.f32 %v2828, %v2808
      %v2845 = vadd.f32 %v2829, %v2811
      %2846 = vst.msk [vmem:[#allocation3] sm:$0xff] %vm1052, %v2830
      %2847 = vst.msk [vmem:[#allocation3 + $0x8] sm:$0xff] %vm1052, %v2831
      %2848 = vst.msk [vmem:[#allocation3 + $0x10] sm:$0xff] %vm1052, %v2832
      %2849 = vst.msk [vmem:[#allocation3 + $0x18] sm:$0xff] %vm1052, %v2833
      %2850 = vst.msk [vmem:[#allocation3 + $0x20] sm:$0xff] %vm1052, %v2834
      %2851 = vst.msk [vmem:[#allocation3 + $0x28] sm:$0xff] %vm1052, %v2835
      %2852 = vst.msk [vmem:[#allocation3 + $0x30] sm:$0xff] %vm1052, %v2836
      %2853 = vst.msk [vmem:[#allocation3 + $0x38] sm:$0xff] %vm1052, %v2837
      %2854 = vst.msk [vmem:[#allocation3 + $0x40] sm:$0xff] %vm1052, %v2838
      %2855 = vst.msk [vmem:[#allocation3 + $0x48] sm:$0xff] %vm1052, %v2839
      %2856 = vst.msk [vmem:[#allocation3 + $0x50] sm:$0xff] %vm1052, %v2840
      %2857 = vst.msk [vmem:[#allocation3 + $0x58] sm:$0xff] %vm1052, %v2841
      %2858 = vst.msk [vmem:[#allocation3 + $0x60] sm:$0xff] %vm1052, %v2842
      %2859 = vst.msk [vmem:[#allocation3 + $0x68] sm:$0xff] %vm1052, %v2843
      %2860 = vst.msk [vmem:[#allocation3 + $0x70] sm:$0xff] %vm1052, %v2844
      %2861 = vst.msk [vmem:[#allocation3 + $0x78] sm:$0xff] %vm1052, %v2845
      %s2862 = scalar_lea.vmem [#allocation2], 24
      %v2863 = vld [vmem:[%s2862] sm:$0xf]
      %v2864 = vld [vmem:[%s2862 + $0x4] sm:$0xf]
      %v2865 = vld [vmem:[%s2862 + $0xc] sm:$0xf]
      %v2866 = vld [vmem:[%s2862 + $0x10] sm:$0xf]
      %v2867 = vld [vmem:[%s2862 + $0x18] sm:$0xf]
      %v2868 = vld [vmem:[%s2862 + $0x1c] sm:$0xf]
      %v2869 = vld [vmem:[%s2862 + $0x24] sm:$0xf]
      %v2870 = vld [vmem:[%s2862 + $0x28] sm:$0xf]
      %v2871 = vld [vmem:[%s2862 + $0x30] sm:$0xf]
      %v2872 = vld [vmem:[%s2862 + $0x34] sm:$0xf]
      %v2873 = vld [vmem:[%s2862 + $0x3c] sm:$0xf]
      %v2874 = vld [vmem:[%s2862 + $0x40] sm:$0xf]
      %v2875 = vld [vmem:[%s2862 + $0x48] sm:$0xf]
      %v2876 = vld [vmem:[%s2862 + $0x4c] sm:$0xf]
      %v2877 = vld [vmem:[%s2862 + $0x54] sm:$0xf]
      %v2878 = vld [vmem:[%s2862 + $0x58] sm:$0xf]
      %s2879 = scalar_lea.vmem %s5, 12
      %v2880 = vld [vmem:[%s2879] sm:$0x3]
      %v2897 = vunpack.c.l.b16 %v2863
      %v2898 = vunpack.c.l.b16 %v2864
      %v2899 = vunpack.c.l.b16 %v2865
      %v2900 = vunpack.c.l.b16 %v2866
      %v2901 = vunpack.c.l.b16 %v2867
      %v2902 = vunpack.c.l.b16 %v2868
      %v2903 = vunpack.c.l.b16 %v2869
      %v2904 = vunpack.c.l.b16 %v2870
      %v2905 = vunpack.c.l.b16 %v2871
      %v2906 = vunpack.c.l.b16 %v2872
      %v2907 = vunpack.c.l.b16 %v2873
      %v2908 = vunpack.c.l.b16 %v2874
      %v2909 = vunpack.c.l.b16 %v2875
      %v2910 = vunpack.c.l.b16 %v2876
      %v2911 = vunpack.c.l.b16 %v2877
      %v2912 = vunpack.c.l.b16 %v2878
      %v2913 = vpack.c.b16 %v2898, %v2897
      %v2914 = vpack.c.b16 %v2900, %v2899
      %v2915 = vpack.c.b16 %v2902, %v2901
      %v2916 = vpack.c.b16 %v2904, %v2903
      %v2917 = vpack.c.b16 %v2906, %v2905
      %v2918 = vpack.c.b16 %v2908, %v2907
      %v2919 = vpack.c.b16 %v2910, %v2909
      %v2920 = vpack.c.b16 %v2912, %v2911
      %v2922 = vsel %vm1052, %v2913, 0
      %v2925 = vsel %vm1052, %v2914, 0
      %v2928 = vsel %vm1052, %v2915, 0
      %v2931 = vsel %vm1052, %v2916, 0
      %v2934 = vsel %vm1052, %v2917, 0
      %v2937 = vsel %vm1052, %v2918, 0
      %v2940 = vsel %vm1052, %v2919, 0
      %v2943 = vsel %vm1052, %v2920, 0
      %v2946 = vsel %vm1077, %v2880, 0
      %2948 = vmatprep.subr.bf16.mxu0 0
      %2949 = vmatpush1.bf16.msra.mxu0 0
      %2950 = vmatprep.subr.bf16.mxu0 0
      %2951 = vmatpush1.bf16.msra.mxu0 0
      %2952 = vmatprep.subr.bf16.mxu0 0
      %2953 = vmatpush1.bf16.msra.mxu0 0
      %2954 = vmatprep.subr.bf16.mxu0 0
      %2955 = vmatpush1.bf16.msra.mxu0 0
      %2956 = vmatprep.subr.bf16.mxu0 0
      %2957 = vmatpush1.bf16.msra.mxu0 0
      %2958 = vmatprep.subr.bf16.mxu0 0
      %2959 = vmatpush1.bf16.msra.mxu0 0
      %2960 = vmatprep.subr.bf16.mxu0 0
      %2961 = vmatpush1.bf16.msra.mxu0 0
      %2962 = vmatprep.subr.bf16.mxu0 0
      %2963 = vmatpush1.bf16.msra.mxu0 %v2946
      %2964 = vmatprep.subr.bf16.mxu0 0
      %2965 = vmatpush2.bf16.msra.mxu0 0
      %2966 = vmatprep.subr.bf16.mxu0 0
      %2967 = vmatpush2.bf16.msra.mxu0 0
      %2968 = vmatprep.subr.bf16.mxu0 0
      %2969 = vmatpush2.bf16.msra.mxu0 0
      %2970 = vmatprep.subr.bf16.mxu0 0
      %2971 = vmatpush2.bf16.msra.mxu0 0
      %2972 = vmatprep.subr.bf16.mxu0 0
      %2973 = vmatpush2.bf16.msra.mxu0 0
      %2974 = vmatprep.subr.bf16.mxu0 0
      %2975 = vmatpush2.bf16.msra.mxu0 0
      %2976 = vmatprep.subr.bf16.mxu0 0
      %2977 = vmatpush2.bf16.msra.mxu0 0
      %2978 = vmatprep.subr.bf16.mxu0 0
      %2979 = vmatpush2.bf16.msra.mxu0 0
      %2980 = vmatprep.mubr.bf16.mxu0 0
      %2981 = vmatmul.mubr.bf16.gmra.mxu0 %v2922
      %v2982 = vpop.f32.mrf.mxu0
      %v2983 = vadd.f32 0.0, %v2982
      %v2984 = vpop.f32.mrf.mxu0
      %v2985 = vpop.f32.mrf.mxu0
      %v2986 = vadd.f32 0.0, %v2985
      %v2987 = vpop.f32.mrf.mxu0
      %2988 = vmatprep.mubr.bf16.mxu0 0
      %2989 = vmatmul.mubr.bf16.gmra.mxu0 %v2925
      %v2990 = vpop.f32.mrf.mxu0
      %v2991 = vadd.f32 0.0, %v2990
      %v2992 = vpop.f32.mrf.mxu0
      %v2993 = vpop.f32.mrf.mxu0
      %v2994 = vadd.f32 0.0, %v2993
      %v2995 = vpop.f32.mrf.mxu0
      %2996 = vmatprep.mubr.bf16.mxu0 0
      %2997 = vmatmul.mubr.bf16.gmra.mxu0 %v2928
      %v2998 = vpop.f32.mrf.mxu0
      %v2999 = vadd.f32 0.0, %v2998
      %v3000 = vpop.f32.mrf.mxu0
      %v3001 = vpop.f32.mrf.mxu0
      %v3002 = vadd.f32 0.0, %v3001
      %v3003 = vpop.f32.mrf.mxu0
      %3004 = vmatprep.mubr.bf16.mxu0 0
      %3005 = vmatmul.mubr.bf16.gmra.mxu0 %v2931
      %v3006 = vpop.f32.mrf.mxu0
      %v3007 = vadd.f32 0.0, %v3006
      %v3008 = vpop.f32.mrf.mxu0
      %v3009 = vpop.f32.mrf.mxu0
      %v3010 = vadd.f32 0.0, %v3009
      %v3011 = vpop.f32.mrf.mxu0
      %3012 = vmatprep.mubr.bf16.mxu0 0
      %3013 = vmatmul.mubr.bf16.gmra.mxu0 %v2934
      %v3014 = vpop.f32.mrf.mxu0
      %v3015 = vadd.f32 0.0, %v3014
      %v3016 = vpop.f32.mrf.mxu0
      %v3017 = vpop.f32.mrf.mxu0
      %v3018 = vadd.f32 0.0, %v3017
      %v3019 = vpop.f32.mrf.mxu0
      %3020 = vmatprep.mubr.bf16.mxu0 0
      %3021 = vmatmul.mubr.bf16.gmra.mxu0 %v2937
      %v3022 = vpop.f32.mrf.mxu0
      %v3023 = vadd.f32 0.0, %v3022
      %v3024 = vpop.f32.mrf.mxu0
      %v3025 = vpop.f32.mrf.mxu0
      %v3026 = vadd.f32 0.0, %v3025
      %v3027 = vpop.f32.mrf.mxu0
      %3028 = vmatprep.mubr.bf16.mxu0 0
      %3029 = vmatmul.mubr.bf16.gmra.mxu0 %v2940
      %v3030 = vpop.f32.mrf.mxu0
      %v3031 = vadd.f32 0.0, %v3030
      %v3032 = vpop.f32.mrf.mxu0
      %v3033 = vpop.f32.mrf.mxu0
      %v3034 = vadd.f32 0.0, %v3033
      %v3035 = vpop.f32.mrf.mxu0
      %3036 = vmatprep.mubr.bf16.mxu0 0
      %3037 = vmatmul.mubr.bf16.gmra.mxu0 %v2943
      %v3038 = vpop.f32.mrf.mxu0
      %v3039 = vadd.f32 0.0, %v3038
      %v3040 = vpop.f32.mrf.mxu0
      %v3041 = vpop.f32.mrf.mxu0
      %v3042 = vadd.f32 0.0, %v3041
      %v3043 = vpop.f32.mrf.mxu0
      %3044 = vdwg.mxu0
      %v3045 = vld [vmem:[#allocation3] sm:$0xff]
      %v3046 = vld [vmem:[#allocation3 + $0x8] sm:$0xff]
      %v3047 = vld [vmem:[#allocation3 + $0x10] sm:$0xff]
      %v3048 = vld [vmem:[#allocation3 + $0x18] sm:$0xff]
      %v3049 = vld [vmem:[#allocation3 + $0x20] sm:$0xff]
      %v3050 = vld [vmem:[#allocation3 + $0x28] sm:$0xff]
      %v3051 = vld [vmem:[#allocation3 + $0x30] sm:$0xff]
      %v3052 = vld [vmem:[#allocation3 + $0x38] sm:$0xff]
      %v3053 = vld [vmem:[#allocation3 + $0x40] sm:$0xff]
      %v3054 = vld [vmem:[#allocation3 + $0x48] sm:$0xff]
      %v3055 = vld [vmem:[#allocation3 + $0x50] sm:$0xff]
      %v3056 = vld [vmem:[#allocation3 + $0x58] sm:$0xff]
      %v3057 = vld [vmem:[#allocation3 + $0x60] sm:$0xff]
      %v3058 = vld [vmem:[#allocation3 + $0x68] sm:$0xff]
      %v3059 = vld [vmem:[#allocation3 + $0x70] sm:$0xff]
      %v3060 = vld [vmem:[#allocation3 + $0x78] sm:$0xff]
      %v3061 = vadd.f32 %v3045, %v2983
      %v3062 = vadd.f32 %v3046, %v2986
      %v3063 = vadd.f32 %v3047, %v2991
      %v3064 = vadd.f32 %v3048, %v2994
      %v3065 = vadd.f32 %v3049, %v2999
      %v3066 = vadd.f32 %v3050, %v3002
      %v3067 = vadd.f32 %v3051, %v3007
      %v3068 = vadd.f32 %v3052, %v3010
      %v3069 = vadd.f32 %v3053, %v3015
      %v3070 = vadd.f32 %v3054, %v3018
      %v3071 = vadd.f32 %v3055, %v3023
      %v3072 = vadd.f32 %v3056, %v3026
      %v3073 = vadd.f32 %v3057, %v3031
      %v3074 = vadd.f32 %v3058, %v3034
      %v3075 = vadd.f32 %v3059, %v3039
      %v3076 = vadd.f32 %v3060, %v3042
      %3077 = vst.msk [vmem:[#allocation3] sm:$0xff] %vm1052, %v3061
      %3078 = vst.msk [vmem:[#allocation3 + $0x8] sm:$0xff] %vm1052, %v3062
      %3079 = vst.msk [vmem:[#allocation3 + $0x10] sm:$0xff] %vm1052, %v3063
      %3080 = vst.msk [vmem:[#allocation3 + $0x18] sm:$0xff] %vm1052, %v3064
      %3081 = vst.msk [vmem:[#allocation3 + $0x20] sm:$0xff] %vm1052, %v3065
      %3082 = vst.msk [vmem:[#allocation3 + $0x28] sm:$0xff] %vm1052, %v3066
      %3083 = vst.msk [vmem:[#allocation3 + $0x30] sm:$0xff] %vm1052, %v3067
      %3084 = vst.msk [vmem:[#allocation3 + $0x38] sm:$0xff] %vm1052, %v3068
      %3085 = vst.msk [vmem:[#allocation3 + $0x40] sm:$0xff] %vm1052, %v3069
      %3086 = vst.msk [vmem:[#allocation3 + $0x48] sm:$0xff] %vm1052, %v3070
      %3087 = vst.msk [vmem:[#allocation3 + $0x50] sm:$0xff] %vm1052, %v3071
      %3088 = vst.msk [vmem:[#allocation3 + $0x58] sm:$0xff] %vm1052, %v3072
      %3089 = vst.msk [vmem:[#allocation3 + $0x60] sm:$0xff] %vm1052, %v3073
      %3090 = vst.msk [vmem:[#allocation3 + $0x68] sm:$0xff] %vm1052, %v3074
      %3091 = vst.msk [vmem:[#allocation3 + $0x70] sm:$0xff] %vm1052, %v3075
      %3092 = vst.msk [vmem:[#allocation3 + $0x78] sm:$0xff] %vm1052, %v3076
      %v3093 = vld [vmem:[%s2862] sm:$0xf]
      %v3094 = vld [vmem:[%s2862 + $0x4] sm:$0xf]
      %v3095 = vld [vmem:[%s2862 + $0x8] sm:$0x1]
      %v3096 = vld [vmem:[%s2862 + $0xc] sm:$0xf]
      %v3097 = vld [vmem:[%s2862 + $0x10] sm:$0xf]
      %v3098 = vld [vmem:[%s2862 + $0x14] sm:$0x1]
      %v3099 = vld [vmem:[%s2862 + $0x18] sm:$0xf]
      %v3100 = vld [vmem:[%s2862 + $0x1c] sm:$0xf]
      %v3101 = vld [vmem:[%s2862 + $0x20] sm:$0x1]
      %v3102 = vld [vmem:[%s2862 + $0x24] sm:$0xf]
      %v3103 = vld [vmem:[%s2862 + $0x28] sm:$0xf]
      %v3104 = vld [vmem:[%s2862 + $0x2c] sm:$0x1]
      %v3105 = vld [vmem:[%s2862 + $0x30] sm:$0xf]
      %v3106 = vld [vmem:[%s2862 + $0x34] sm:$0xf]
      %v3107 = vld [vmem:[%s2862 + $0x38] sm:$0x1]
      %v3108 = vld [vmem:[%s2862 + $0x3c] sm:$0xf]
      %v3109 = vld [vmem:[%s2862 + $0x40] sm:$0xf]
      %v3110 = vld [vmem:[%s2862 + $0x44] sm:$0x1]
      %v3111 = vld [vmem:[%s2862 + $0x48] sm:$0xf]
      %v3112 = vld [vmem:[%s2862 + $0x4c] sm:$0xf]
      %v3113 = vld [vmem:[%s2862 + $0x50] sm:$0x1]
      %v3114 = vld [vmem:[%s2862 + $0x54] sm:$0xf]
      %v3115 = vld [vmem:[%s2862 + $0x58] sm:$0xf]
      %v3116 = vld [vmem:[%s2862 + $0x5c] sm:$0x1]
      %v3118 = vshrl.u32 %v3093, 16
      %v3120 = vrot.slane %v3118, 4
      %v3121 = vshll.u32 %v3093, 16
      %v3123 = vrot.slane %v3121, 5
      %v3124 = vor.u32 %v3120, %v3123
      %v3125 = vrot.slane %v3124, 4
      %v3127 = vshll.u32 %v3094, 16
      %v3129 = vrot.slane %v3127, 5
      %v3130 = vsel %vm1220, %v3125, %v3129
      %v3131 = vshrl.u32 %v3094, 16
      %v3133 = vrot.slane %v3131, 4
      %v3134 = vor.u32 %v3133, %v3129
      %v3135 = vrot.slane %v3134, 4
      %v3137 = vshll.u32 %v3095, 16
      %v3139 = vrot.slane %v3137, 5
      %v3140 = vsel %vm1220, %v3135, %v3139
      %v3142 = vshrl.u32 %v3096, 16
      %v3144 = vrot.slane %v3142, 4
      %v3145 = vshll.u32 %v3096, 16
      %v3147 = vrot.slane %v3145, 5
      %v3148 = vor.u32 %v3144, %v3147
      %v3149 = vrot.slane %v3148, 4
      %v3151 = vshll.u32 %v3097, 16
      %v3153 = vrot.slane %v3151, 5
      %v3154 = vsel %vm1220, %v3149, %v3153
      %v3155 = vshrl.u32 %v3097, 16
      %v3157 = vrot.slane %v3155, 4
      %v3158 = vor.u32 %v3157, %v3153
      %v3159 = vrot.slane %v3158, 4
      %v3161 = vshll.u32 %v3098, 16
      %v3163 = vrot.slane %v3161, 5
      %v3164 = vsel %vm1220, %v3159, %v3163
      %v3166 = vshrl.u32 %v3099, 16
      %v3168 = vrot.slane %v3166, 4
      %v3169 = vshll.u32 %v3099, 16
      %v3171 = vrot.slane %v3169, 5
      %v3172 = vor.u32 %v3168, %v3171
      %v3173 = vrot.slane %v3172, 4
      %v3175 = vshll.u32 %v3100, 16
      %v3177 = vrot.slane %v3175, 5
      %v3178 = vsel %vm1220, %v3173, %v3177
      %v3179 = vshrl.u32 %v3100, 16
      %v3181 = vrot.slane %v3179, 4
      %v3182 = vor.u32 %v3181, %v3177
      %v3183 = vrot.slane %v3182, 4
      %v3185 = vshll.u32 %v3101, 16
      %v3187 = vrot.slane %v3185, 5
      %v3188 = vsel %vm1220, %v3183, %v3187
      %v3190 = vshrl.u32 %v3102, 16
      %v3192 = vrot.slane %v3190, 4
      %v3193 = vshll.u32 %v3102, 16
      %v3195 = vrot.slane %v3193, 5
      %v3196 = vor.u32 %v3192, %v3195
      %v3197 = vrot.slane %v3196, 4
      %v3199 = vshll.u32 %v3103, 16
      %v3201 = vrot.slane %v3199, 5
      %v3202 = vsel %vm1220, %v3197, %v3201
      %v3203 = vshrl.u32 %v3103, 16
      %v3205 = vrot.slane %v3203, 4
      %v3206 = vor.u32 %v3205, %v3201
      %v3207 = vrot.slane %v3206, 4
      %v3209 = vshll.u32 %v3104, 16
      %v3211 = vrot.slane %v3209, 5
      %v3212 = vsel %vm1220, %v3207, %v3211
      %v3214 = vshrl.u32 %v3105, 16
      %v3216 = vrot.slane %v3214, 4
      %v3217 = vshll.u32 %v3105, 16
      %v3219 = vrot.slane %v3217, 5
      %v3220 = vor.u32 %v3216, %v3219
      %v3221 = vrot.slane %v3220, 4
      %v3223 = vshll.u32 %v3106, 16
      %v3225 = vrot.slane %v3223, 5
      %v3226 = vsel %vm1220, %v3221, %v3225
      %v3227 = vshrl.u32 %v3106, 16
      %v3229 = vrot.slane %v3227, 4
      %v3230 = vor.u32 %v3229, %v3225
      %v3231 = vrot.slane %v3230, 4
      %v3233 = vshll.u32 %v3107, 16
      %v3235 = vrot.slane %v3233, 5
      %v3236 = vsel %vm1220, %v3231, %v3235
      %v3238 = vshrl.u32 %v3108, 16
      %v3240 = vrot.slane %v3238, 4
      %v3241 = vshll.u32 %v3108, 16
      %v3243 = vrot.slane %v3241, 5
      %v3244 = vor.u32 %v3240, %v3243
      %v3245 = vrot.slane %v3244, 4
      %v3247 = vshll.u32 %v3109, 16
      %v3249 = vrot.slane %v3247, 5
      %v3250 = vsel %vm1220, %v3245, %v3249
      %v3251 = vshrl.u32 %v3109, 16
      %v3253 = vrot.slane %v3251, 4
      %v3254 = vor.u32 %v3253, %v3249
      %v3255 = vrot.slane %v3254, 4
      %v3257 = vshll.u32 %v3110, 16
      %v3259 = vrot.slane %v3257, 5
      %v3260 = vsel %vm1220, %v3255, %v3259
      %v3262 = vshrl.u32 %v3111, 16
      %v3264 = vrot.slane %v3262, 4
      %v3265 = vshll.u32 %v3111, 16
      %v3267 = vrot.slane %v3265, 5
      %v3268 = vor.u32 %v3264, %v3267
      %v3269 = vrot.slane %v3268, 4
      %v3271 = vshll.u32 %v3112, 16
      %v3273 = vrot.slane %v3271, 5
      %v3274 = vsel %vm1220, %v3269, %v3273
      %v3275 = vshrl.u32 %v3112, 16
      %v3277 = vrot.slane %v3275, 4
      %v3278 = vor.u32 %v3277, %v3273
      %v3279 = vrot.slane %v3278, 4
      %v3281 = vshll.u32 %v3113, 16
      %v3283 = vrot.slane %v3281, 5
      %v3284 = vsel %vm1220, %v3279, %v3283
      %v3286 = vshrl.u32 %v3114, 16
      %v3288 = vrot.slane %v3286, 4
      %v3289 = vshll.u32 %v3114, 16
      %v3291 = vrot.slane %v3289, 5
      %v3292 = vor.u32 %v3288, %v3291
      %v3293 = vrot.slane %v3292, 4
      %v3295 = vshll.u32 %v3115, 16
      %v3297 = vrot.slane %v3295, 5
      %v3298 = vsel %vm1220, %v3293, %v3297
      %v3299 = vshrl.u32 %v3115, 16
      %v3301 = vrot.slane %v3299, 4
      %v3302 = vor.u32 %v3301, %v3297
      %v3303 = vrot.slane %v3302, 4
      %v3305 = vshll.u32 %v3116, 16
      %v3307 = vrot.slane %v3305, 5
      %v3308 = vsel %vm1220, %v3303, %v3307
      %s3309 = scalar_lea.vmem %s5, 14
      %v3310 = vld [vmem:[%s3309] sm:$0x3]
      %v3311 = vunpack.c.l.b16 %v3130
      %v3312 = vunpack.c.l.b16 %v3140
      %v3313 = vunpack.c.l.b16 %v3154
      %v3314 = vunpack.c.l.b16 %v3164
      %v3315 = vunpack.c.l.b16 %v3178
      %v3316 = vunpack.c.l.b16 %v3188
      %v3317 = vunpack.c.l.b16 %v3202
      %v3318 = vunpack.c.l.b16 %v3212
      %v3319 = vunpack.c.l.b16 %v3226
      %v3320 = vunpack.c.l.b16 %v3236
      %v3321 = vunpack.c.l.b16 %v3250
      %v3322 = vunpack.c.l.b16 %v3260
      %v3323 = vunpack.c.l.b16 %v3274
      %v3324 = vunpack.c.l.b16 %v3284
      %v3325 = vunpack.c.l.b16 %v3298
      %v3326 = vunpack.c.l.b16 %v3308
      %v3327 = vpack.c.b16 %v3312, %v3311
      %v3328 = vpack.c.b16 %v3314, %v3313
      %v3329 = vpack.c.b16 %v3316, %v3315
      %v3330 = vpack.c.b16 %v3318, %v3317
      %v3331 = vpack.c.b16 %v3320, %v3319
      %v3332 = vpack.c.b16 %v3322, %v3321
      %v3333 = vpack.c.b16 %v3324, %v3323
      %v3334 = vpack.c.b16 %v3326, %v3325
      %v3336 = vsel %vm1052, %v3327, 0
      %v3339 = vsel %vm1052, %v3328, 0
      %v3342 = vsel %vm1052, %v3329, 0
      %v3345 = vsel %vm1052, %v3330, 0
      %v3348 = vsel %vm1052, %v3331, 0
      %v3351 = vsel %vm1052, %v3332, 0
      %v3354 = vsel %vm1052, %v3333, 0
      %v3357 = vsel %vm1052, %v3334, 0
      %v3360 = vsel %vm1077, %v3310, 0
      %3362 = vmatprep.subr.bf16.mxu0 0
      %3363 = vmatpush1.bf16.msra.mxu0 0
      %3364 = vmatprep.subr.bf16.mxu0 0
      %3365 = vmatpush1.bf16.msra.mxu0 0
      %3366 = vmatprep.subr.bf16.mxu0 0
      %3367 = vmatpush1.bf16.msra.mxu0 0
      %3368 = vmatprep.subr.bf16.mxu0 0
      %3369 = vmatpush1.bf16.msra.mxu0 0
      %3370 = vmatprep.subr.bf16.mxu0 0
      %3371 = vmatpush1.bf16.msra.mxu0 0
      %3372 = vmatprep.subr.bf16.mxu0 0
      %3373 = vmatpush1.bf16.msra.mxu0 0
      %3374 = vmatprep.subr.bf16.mxu0 0
      %3375 = vmatpush1.bf16.msra.mxu0 0
      %3376 = vmatprep.subr.bf16.mxu0 0
      %3377 = vmatpush1.bf16.msra.mxu0 %v3360
      %3378 = vmatprep.subr.bf16.mxu0 0
      %3379 = vmatpush2.bf16.msra.mxu0 0
      %3380 = vmatprep.subr.bf16.mxu0 0
      %3381 = vmatpush2.bf16.msra.mxu0 0
      %3382 = vmatprep.subr.bf16.mxu0 0
      %3383 = vmatpush2.bf16.msra.mxu0 0
      %3384 = vmatprep.subr.bf16.mxu0 0
      %3385 = vmatpush2.bf16.msra.mxu0 0
      %3386 = vmatprep.subr.bf16.mxu0 0
      %3387 = vmatpush2.bf16.msra.mxu0 0
      %3388 = vmatprep.subr.bf16.mxu0 0
      %3389 = vmatpush2.bf16.msra.mxu0 0
      %3390 = vmatprep.subr.bf16.mxu0 0
      %3391 = vmatpush2.bf16.msra.mxu0 0
      %3392 = vmatprep.subr.bf16.mxu0 0
      %3393 = vmatpush2.bf16.msra.mxu0 0
      %3394 = vmatprep.mubr.bf16.mxu0 0
      %3395 = vmatmul.mubr.bf16.gmra.mxu0 %v3336
      %v3396 = vpop.f32.mrf.mxu0
      %v3397 = vadd.f32 0.0, %v3396
      %v3398 = vpop.f32.mrf.mxu0
      %v3399 = vpop.f32.mrf.mxu0
      %v3400 = vadd.f32 0.0, %v3399
      %v3401 = vpop.f32.mrf.mxu0
      %3402 = vmatprep.mubr.bf16.mxu0 0
      %3403 = vmatmul.mubr.bf16.gmra.mxu0 %v3339
      %v3404 = vpop.f32.mrf.mxu0
      %v3405 = vadd.f32 0.0, %v3404
      %v3406 = vpop.f32.mrf.mxu0
      %v3407 = vpop.f32.mrf.mxu0
      %v3408 = vadd.f32 0.0, %v3407
      %v3409 = vpop.f32.mrf.mxu0
      %3410 = vmatprep.mubr.bf16.mxu0 0
      %3411 = vmatmul.mubr.bf16.gmra.mxu0 %v3342
      %v3412 = vpop.f32.mrf.mxu0
      %v3413 = vadd.f32 0.0, %v3412
      %v3414 = vpop.f32.mrf.mxu0
      %v3415 = vpop.f32.mrf.mxu0
      %v3416 = vadd.f32 0.0, %v3415
      %v3417 = vpop.f32.mrf.mxu0
      %3418 = vmatprep.mubr.bf16.mxu0 0
      %3419 = vmatmul.mubr.bf16.gmra.mxu0 %v3345
      %v3420 = vpop.f32.mrf.mxu0
      %v3421 = vadd.f32 0.0, %v3420
      %v3422 = vpop.f32.mrf.mxu0
      %v3423 = vpop.f32.mrf.mxu0
      %v3424 = vadd.f32 0.0, %v3423
      %v3425 = vpop.f32.mrf.mxu0
      %3426 = vmatprep.mubr.bf16.mxu0 0
      %3427 = vmatmul.mubr.bf16.gmra.mxu0 %v3348
      %v3428 = vpop.f32.mrf.mxu0
      %v3429 = vadd.f32 0.0, %v3428
      %v3430 = vpop.f32.mrf.mxu0
      %v3431 = vpop.f32.mrf.mxu0
      %v3432 = vadd.f32 0.0, %v3431
      %v3433 = vpop.f32.mrf.mxu0
      %3434 = vmatprep.mubr.bf16.mxu0 0
      %3435 = vmatmul.mubr.bf16.gmra.mxu0 %v3351
      %v3436 = vpop.f32.mrf.mxu0
      %v3437 = vadd.f32 0.0, %v3436
      %v3438 = vpop.f32.mrf.mxu0
      %v3439 = vpop.f32.mrf.mxu0
      %v3440 = vadd.f32 0.0, %v3439
      %v3441 = vpop.f32.mrf.mxu0
      %3442 = vmatprep.mubr.bf16.mxu0 0
      %3443 = vmatmul.mubr.bf16.gmra.mxu0 %v3354
      %v3444 = vpop.f32.mrf.mxu0
      %v3445 = vadd.f32 0.0, %v3444
      %v3446 = vpop.f32.mrf.mxu0
      %v3447 = vpop.f32.mrf.mxu0
      %v3448 = vadd.f32 0.0, %v3447
      %v3449 = vpop.f32.mrf.mxu0
      %3450 = vmatprep.mubr.bf16.mxu0 0
      %3451 = vmatmul.mubr.bf16.gmra.mxu0 %v3357
      %v3452 = vpop.f32.mrf.mxu0
      %v3453 = vadd.f32 0.0, %v3452
      %v3454 = vpop.f32.mrf.mxu0
      %v3455 = vpop.f32.mrf.mxu0
      %v3456 = vadd.f32 0.0, %v3455
      %v3457 = vpop.f32.mrf.mxu0
      %3458 = vdwg.mxu0
      %v3459 = vld [vmem:[#allocation3] sm:$0xff]
      %v3460 = vld [vmem:[#allocation3 + $0x8] sm:$0xff]
      %v3461 = vld [vmem:[#allocation3 + $0x10] sm:$0xff]
      %v3462 = vld [vmem:[#allocation3 + $0x18] sm:$0xff]
      %v3463 = vld [vmem:[#allocation3 + $0x20] sm:$0xff]
      %v3464 = vld [vmem:[#allocation3 + $0x28] sm:$0xff]
      %v3465 = vld [vmem:[#allocation3 + $0x30] sm:$0xff]
      %v3466 = vld [vmem:[#allocation3 + $0x38] sm:$0xff]
      %v3467 = vld [vmem:[#allocation3 + $0x40] sm:$0xff]
      %v3468 = vld [vmem:[#allocation3 + $0x48] sm:$0xff]
      %v3469 = vld [vmem:[#allocation3 + $0x50] sm:$0xff]
      %v3470 = vld [vmem:[#allocation3 + $0x58] sm:$0xff]
      %v3471 = vld [vmem:[#allocation3 + $0x60] sm:$0xff]
      %v3472 = vld [vmem:[#allocation3 + $0x68] sm:$0xff]
      %v3473 = vld [vmem:[#allocation3 + $0x70] sm:$0xff]
      %v3474 = vld [vmem:[#allocation3 + $0x78] sm:$0xff]
      %v3475 = vadd.f32 %v3459, %v3397
      %v3476 = vadd.f32 %v3460, %v3400
      %v3477 = vadd.f32 %v3461, %v3405
      %v3478 = vadd.f32 %v3462, %v3408
      %v3479 = vadd.f32 %v3463, %v3413
      %v3480 = vadd.f32 %v3464, %v3416
      %v3481 = vadd.f32 %v3465, %v3421
      %v3482 = vadd.f32 %v3466, %v3424
      %v3483 = vadd.f32 %v3467, %v3429
      %v3484 = vadd.f32 %v3468, %v3432
      %v3485 = vadd.f32 %v3469, %v3437
      %v3486 = vadd.f32 %v3470, %v3440
      %v3487 = vadd.f32 %v3471, %v3445
      %v3488 = vadd.f32 %v3472, %v3448
      %v3489 = vadd.f32 %v3473, %v3453
      %v3490 = vadd.f32 %v3474, %v3456
      %3491 = vst.msk [vmem:[#allocation3] sm:$0xff] %vm1052, %v3475
      %3492 = vst.msk [vmem:[#allocation3 + $0x8] sm:$0xff] %vm1052, %v3476
      %3493 = vst.msk [vmem:[#allocation3 + $0x10] sm:$0xff] %vm1052, %v3477
      %3494 = vst.msk [vmem:[#allocation3 + $0x18] sm:$0xff] %vm1052, %v3478
      %3495 = vst.msk [vmem:[#allocation3 + $0x20] sm:$0xff] %vm1052, %v3479
      %3496 = vst.msk [vmem:[#allocation3 + $0x28] sm:$0xff] %vm1052, %v3480
      %3497 = vst.msk [vmem:[#allocation3 + $0x30] sm:$0xff] %vm1052, %v3481
      %3498 = vst.msk [vmem:[#allocation3 + $0x38] sm:$0xff] %vm1052, %v3482
      %3499 = vst.msk [vmem:[#allocation3 + $0x40] sm:$0xff] %vm1052, %v3483
      %3500 = vst.msk [vmem:[#allocation3 + $0x48] sm:$0xff] %vm1052, %v3484
      %3501 = vst.msk [vmem:[#allocation3 + $0x50] sm:$0xff] %vm1052, %v3485
      %3502 = vst.msk [vmem:[#allocation3 + $0x58] sm:$0xff] %vm1052, %v3486
      %3503 = vst.msk [vmem:[#allocation3 + $0x60] sm:$0xff] %vm1052, %v3487
      %3504 = vst.msk [vmem:[#allocation3 + $0x68] sm:$0xff] %vm1052, %v3488
      %3505 = vst.msk [vmem:[#allocation3 + $0x70] sm:$0xff] %vm1052, %v3489
      %3506 = vst.msk [vmem:[#allocation3 + $0x78] sm:$0xff] %vm1052, %v3490
      %v3507 = vld [vmem:[%s2862] sm:$0xe]
      %v3508 = vld [vmem:[%s2862 + $0x4] sm:$0xf]
      %v3509 = vld [vmem:[%s2862 + $0x8] sm:$0x1]
      %v3510 = vld [vmem:[%s2862 + $0xc] sm:$0xe]
      %v3511 = vld [vmem:[%s2862 + $0x10] sm:$0xf]
      %v3512 = vld [vmem:[%s2862 + $0x14] sm:$0x1]
      %v3513 = vld [vmem:[%s2862 + $0x18] sm:$0xe]
      %v3514 = vld [vmem:[%s2862 + $0x1c] sm:$0xf]
      %v3515 = vld [vmem:[%s2862 + $0x20] sm:$0x1]
      %v3516 = vld [vmem:[%s2862 + $0x24] sm:$0xe]
      %v3517 = vld [vmem:[%s2862 + $0x28] sm:$0xf]
      %v3518 = vld [vmem:[%s2862 + $0x2c] sm:$0x1]
      %v3519 = vld [vmem:[%s2862 + $0x30] sm:$0xe]
      %v3520 = vld [vmem:[%s2862 + $0x34] sm:$0xf]
      %v3521 = vld [vmem:[%s2862 + $0x38] sm:$0x1]
      %v3522 = vld [vmem:[%s2862 + $0x3c] sm:$0xe]
      %v3523 = vld [vmem:[%s2862 + $0x40] sm:$0xf]
      %v3524 = vld [vmem:[%s2862 + $0x44] sm:$0x1]
      %v3525 = vld [vmem:[%s2862 + $0x48] sm:$0xe]
      %v3526 = vld [vmem:[%s2862 + $0x4c] sm:$0xf]
      %v3527 = vld [vmem:[%s2862 + $0x50] sm:$0x1]
      %v3528 = vld [vmem:[%s2862 + $0x54] sm:$0xe]
      %v3529 = vld [vmem:[%s2862 + $0x58] sm:$0xf]
      %v3530 = vld [vmem:[%s2862 + $0x5c] sm:$0x1]
      %v3555 = vrot.slane %v3507, 5
      %v3556 = vrot.slane %v3555, 4
      %v3557 = vrot.slane %v3508, 5
      %v3558 = vsel %vm1661, %v3556, %v3557
      %v3559 = vrot.slane %v3557, 4
      %v3560 = vrot.slane %v3509, 5
      %v3561 = vsel %vm1661, %v3559, %v3560
      %v3562 = vrot.slane %v3510, 5
      %v3563 = vrot.slane %v3562, 4
      %v3564 = vrot.slane %v3511, 5
      %v3565 = vsel %vm1661, %v3563, %v3564
      %v3566 = vrot.slane %v3564, 4
      %v3567 = vrot.slane %v3512, 5
      %v3568 = vsel %vm1661, %v3566, %v3567
      %v3569 = vrot.slane %v3513, 5
      %v3570 = vrot.slane %v3569, 4
      %v3571 = vrot.slane %v3514, 5
      %v3572 = vsel %vm1661, %v3570, %v3571
      %v3573 = vrot.slane %v3571, 4
      %v3574 = vrot.slane %v3515, 5
      %v3575 = vsel %vm1661, %v3573, %v3574
      %v3576 = vrot.slane %v3516, 5
      %v3577 = vrot.slane %v3576, 4
      %v3578 = vrot.slane %v3517, 5
      %v3579 = vsel %vm1661, %v3577, %v3578
      %v3580 = vrot.slane %v3578, 4
      %v3581 = vrot.slane %v3518, 5
      %v3582 = vsel %vm1661, %v3580, %v3581
      %v3583 = vrot.slane %v3519, 5
      %v3584 = vrot.slane %v3583, 4
      %v3585 = vrot.slane %v3520, 5
      %v3586 = vsel %vm1661, %v3584, %v3585
      %v3587 = vrot.slane %v3585, 4
      %v3588 = vrot.slane %v3521, 5
      %v3589 = vsel %vm1661, %v3587, %v3588
      %v3590 = vrot.slane %v3522, 5
      %v3591 = vrot.slane %v3590, 4
      %v3592 = vrot.slane %v3523, 5
      %v3593 = vsel %vm1661, %v3591, %v3592
      %v3594 = vrot.slane %v3592, 4
      %v3595 = vrot.slane %v3524, 5
      %v3596 = vsel %vm1661, %v3594, %v3595
      %v3597 = vrot.slane %v3525, 5
      %v3598 = vrot.slane %v3597, 4
      %v3599 = vrot.slane %v3526, 5
      %v3600 = vsel %vm1661, %v3598, %v3599
      %v3601 = vrot.slane %v3599, 4
      %v3602 = vrot.slane %v3527, 5
      %v3603 = vsel %vm1661, %v3601, %v3602
      %v3604 = vrot.slane %v3528, 5
      %v3605 = vrot.slane %v3604, 4
      %v3606 = vrot.slane %v3529, 5
      %v3607 = vsel %vm1661, %v3605, %v3606
      %v3608 = vrot.slane %v3606, 4
      %v3609 = vrot.slane %v3530, 5
      %v3610 = vsel %vm1661, %v3608, %v3609
      %s3611 = scalar_lea.vmem %s5, 16
      %v3612 = vld [vmem:[%s3611] sm:$0x3]
      %v3613 = vunpack.c.l.b16 %v3558
      %v3614 = vunpack.c.l.b16 %v3561
      %v3615 = vunpack.c.l.b16 %v3565
      %v3616 = vunpack.c.l.b16 %v3568
      %v3617 = vunpack.c.l.b16 %v3572
      %v3618 = vunpack.c.l.b16 %v3575
      %v3619 = vunpack.c.l.b16 %v3579
      %v3620 = vunpack.c.l.b16 %v3582
      %v3621 = vunpack.c.l.b16 %v3586
      %v3622 = vunpack.c.l.b16 %v3589
      %v3623 = vunpack.c.l.b16 %v3593
      %v3624 = vunpack.c.l.b16 %v3596
      %v3625 = vunpack.c.l.b16 %v3600
      %v3626 = vunpack.c.l.b16 %v3603
      %v3627 = vunpack.c.l.b16 %v3607
      %v3628 = vunpack.c.l.b16 %v3610
      %v3629 = vpack.c.b16 %v3614, %v3613
      %v3630 = vpack.c.b16 %v3616, %v3615
      %v3631 = vpack.c.b16 %v3618, %v3617
      %v3632 = vpack.c.b16 %v3620, %v3619
      %v3633 = vpack.c.b16 %v3622, %v3621
      %v3634 = vpack.c.b16 %v3624, %v3623
      %v3635 = vpack.c.b16 %v3626, %v3625
      %v3636 = vpack.c.b16 %v3628, %v3627
      %v3638 = vsel %vm1052, %v3629, 0
      %v3641 = vsel %vm1052, %v3630, 0
      %v3644 = vsel %vm1052, %v3631, 0
      %v3647 = vsel %vm1052, %v3632, 0
      %v3650 = vsel %vm1052, %v3633, 0
      %v3653 = vsel %vm1052, %v3634, 0
      %v3656 = vsel %vm1052, %v3635, 0
      %v3659 = vsel %vm1052, %v3636, 0
      %v3662 = vsel %vm1077, %v3612, 0
      %3664 = vmatprep.subr.bf16.mxu0 0
      %3665 = vmatpush1.bf16.msra.mxu0 0
      %3666 = vmatprep.subr.bf16.mxu0 0
      %3667 = vmatpush1.bf16.msra.mxu0 0
      %3668 = vmatprep.subr.bf16.mxu0 0
      %3669 = vmatpush1.bf16.msra.mxu0 0
      %3670 = vmatprep.subr.bf16.mxu0 0
      %3671 = vmatpush1.bf16.msra.mxu0 0
      %3672 = vmatprep.subr.bf16.mxu0 0
      %3673 = vmatpush1.bf16.msra.mxu0 0
      %3674 = vmatprep.subr.bf16.mxu0 0
      %3675 = vmatpush1.bf16.msra.mxu0 0
      %3676 = vmatprep.subr.bf16.mxu0 0
      %3677 = vmatpush1.bf16.msra.mxu0 0
      %3678 = vmatprep.subr.bf16.mxu0 0
      %3679 = vmatpush1.bf16.msra.mxu0 %v3662
      %3680 = vmatprep.subr.bf16.mxu0 0
      %3681 = vmatpush2.bf16.msra.mxu0 0
      %3682 = vmatprep.subr.bf16.mxu0 0
      %3683 = vmatpush2.bf16.msra.mxu0 0
      %3684 = vmatprep.subr.bf16.mxu0 0
      %3685 = vmatpush2.bf16.msra.mxu0 0
      %3686 = vmatprep.subr.bf16.mxu0 0
      %3687 = vmatpush2.bf16.msra.mxu0 0
      %3688 = vmatprep.subr.bf16.mxu0 0
      %3689 = vmatpush2.bf16.msra.mxu0 0
      %3690 = vmatprep.subr.bf16.mxu0 0
      %3691 = vmatpush2.bf16.msra.mxu0 0
      %3692 = vmatprep.subr.bf16.mxu0 0
      %3693 = vmatpush2.bf16.msra.mxu0 0
      %3694 = vmatprep.subr.bf16.mxu0 0
      %3695 = vmatpush2.bf16.msra.mxu0 0
      %3696 = vmatprep.mubr.bf16.mxu0 0
      %3697 = vmatmul.mubr.bf16.gmra.mxu0 %v3638
      %v3698 = vpop.f32.mrf.mxu0
      %v3699 = vadd.f32 0.0, %v3698
      %v3700 = vpop.f32.mrf.mxu0
      %v3701 = vpop.f32.mrf.mxu0
      %v3702 = vadd.f32 0.0, %v3701
      %v3703 = vpop.f32.mrf.mxu0
      %3704 = vmatprep.mubr.bf16.mxu0 0
      %3705 = vmatmul.mubr.bf16.gmra.mxu0 %v3641
      %v3706 = vpop.f32.mrf.mxu0
      %v3707 = vadd.f32 0.0, %v3706
      %v3708 = vpop.f32.mrf.mxu0
      %v3709 = vpop.f32.mrf.mxu0
      %v3710 = vadd.f32 0.0, %v3709
      %v3711 = vpop.f32.mrf.mxu0
      %3712 = vmatprep.mubr.bf16.mxu0 0
      %3713 = vmatmul.mubr.bf16.gmra.mxu0 %v3644
      %v3714 = vpop.f32.mrf.mxu0
      %v3715 = vadd.f32 0.0, %v3714
      %v3716 = vpop.f32.mrf.mxu0
      %v3717 = vpop.f32.mrf.mxu0
      %v3718 = vadd.f32 0.0, %v3717
      %v3719 = vpop.f32.mrf.mxu0
      %3720 = vmatprep.mubr.bf16.mxu0 0
      %3721 = vmatmul.mubr.bf16.gmra.mxu0 %v3647
      %v3722 = vpop.f32.mrf.mxu0
      %v3723 = vadd.f32 0.0, %v3722
      %v3724 = vpop.f32.mrf.mxu0
      %v3725 = vpop.f32.mrf.mxu0
      %v3726 = vadd.f32 0.0, %v3725
      %v3727 = vpop.f32.mrf.mxu0
      %3728 = vmatprep.mubr.bf16.mxu0 0
      %3729 = vmatmul.mubr.bf16.gmra.mxu0 %v3650
      %v3730 = vpop.f32.mrf.mxu0
      %v3731 = vadd.f32 0.0, %v3730
      %v3732 = vpop.f32.mrf.mxu0
      %v3733 = vpop.f32.mrf.mxu0
      %v3734 = vadd.f32 0.0, %v3733
      %v3735 = vpop.f32.mrf.mxu0
      %3736 = vmatprep.mubr.bf16.mxu0 0
      %3737 = vmatmul.mubr.bf16.gmra.mxu0 %v3653
      %v3738 = vpop.f32.mrf.mxu0
      %v3739 = vadd.f32 0.0, %v3738
      %v3740 = vpop.f32.mrf.mxu0
      %v3741 = vpop.f32.mrf.mxu0
      %v3742 = vadd.f32 0.0, %v3741
      %v3743 = vpop.f32.mrf.mxu0
      %3744 = vmatprep.mubr.bf16.mxu0 0
      %3745 = vmatmul.mubr.bf16.gmra.mxu0 %v3656
      %v3746 = vpop.f32.mrf.mxu0
      %v3747 = vadd.f32 0.0, %v3746
      %v3748 = vpop.f32.mrf.mxu0
      %v3749 = vpop.f32.mrf.mxu0
      %v3750 = vadd.f32 0.0, %v3749
      %v3751 = vpop.f32.mrf.mxu0
      %3752 = vmatprep.mubr.bf16.mxu0 0
      %3753 = vmatmul.mubr.bf16.gmra.mxu0 %v3659
      %v3754 = vpop.f32.mrf.mxu0
      %v3755 = vadd.f32 0.0, %v3754
      %v3756 = vpop.f32.mrf.mxu0
      %v3757 = vpop.f32.mrf.mxu0
      %v3758 = vadd.f32 0.0, %v3757
      %v3759 = vpop.f32.mrf.mxu0
      %3760 = vdwg.mxu0
      %v3761 = vld [vmem:[#allocation3] sm:$0xff]
      %v3762 = vld [vmem:[#allocation3 + $0x8] sm:$0xff]
      %v3763 = vld [vmem:[#allocation3 + $0x10] sm:$0xff]
      %v3764 = vld [vmem:[#allocation3 + $0x18] sm:$0xff]
      %v3765 = vld [vmem:[#allocation3 + $0x20] sm:$0xff]
      %v3766 = vld [vmem:[#allocation3 + $0x28] sm:$0xff]
      %v3767 = vld [vmem:[#allocation3 + $0x30] sm:$0xff]
      %v3768 = vld [vmem:[#allocation3 + $0x38] sm:$0xff]
      %v3769 = vld [vmem:[#allocation3 + $0x40] sm:$0xff]
      %v3770 = vld [vmem:[#allocation3 + $0x48] sm:$0xff]
      %v3771 = vld [vmem:[#allocation3 + $0x50] sm:$0xff]
      %v3772 = vld [vmem:[#allocation3 + $0x58] sm:$0xff]
      %v3773 = vld [vmem:[#allocation3 + $0x60] sm:$0xff]
      %v3774 = vld [vmem:[#allocation3 + $0x68] sm:$0xff]
      %v3775 = vld [vmem:[#allocation3 + $0x70] sm:$0xff]
      %v3776 = vld [vmem:[#allocation3 + $0x78] sm:$0xff]
      %v3777 = vadd.f32 %v3761, %v3699
      %v3778 = vadd.f32 %v3762, %v3702
      %v3779 = vadd.f32 %v3763, %v3707
      %v3780 = vadd.f32 %v3764, %v3710
      %v3781 = vadd.f32 %v3765, %v3715
      %v3782 = vadd.f32 %v3766, %v3718
      %v3783 = vadd.f32 %v3767, %v3723
      %v3784 = vadd.f32 %v3768, %v3726
      %v3785 = vadd.f32 %v3769, %v3731
      %v3786 = vadd.f32 %v3770, %v3734
      %v3787 = vadd.f32 %v3771, %v3739
      %v3788 = vadd.f32 %v3772, %v3742
      %v3789 = vadd.f32 %v3773, %v3747
      %v3790 = vadd.f32 %v3774, %v3750
      %v3791 = vadd.f32 %v3775, %v3755
      %v3792 = vadd.f32 %v3776, %v3758
      %3793 = vst.msk [vmem:[#allocation3] sm:$0xff] %vm1052, %v3777
      %3794 = vst.msk [vmem:[#allocation3 + $0x8] sm:$0xff] %vm1052, %v3778
      %3795 = vst.msk [vmem:[#allocation3 + $0x10] sm:$0xff] %vm1052, %v3779
      %3796 = vst.msk [vmem:[#allocation3 + $0x18] sm:$0xff] %vm1052, %v3780
      %3797 = vst.msk [vmem:[#allocation3 + $0x20] sm:$0xff] %vm1052, %v3781
      %3798 = vst.msk [vmem:[#allocation3 + $0x28] sm:$0xff] %vm1052, %v3782
      %3799 = vst.msk [vmem:[#allocation3 + $0x30] sm:$0xff] %vm1052, %v3783
      %3800 = vst.msk [vmem:[#allocation3 + $0x38] sm:$0xff] %vm1052, %v3784
      %3801 = vst.msk [vmem:[#allocation3 + $0x40] sm:$0xff] %vm1052, %v3785
      %3802 = vst.msk [vmem:[#allocation3 + $0x48] sm:$0xff] %vm1052, %v3786
      %3803 = vst.msk [vmem:[#allocation3 + $0x50] sm:$0xff] %vm1052, %v3787
      %3804 = vst.msk [vmem:[#allocation3 + $0x58] sm:$0xff] %vm1052, %v3788
      %3805 = vst.msk [vmem:[#allocation3 + $0x60] sm:$0xff] %vm1052, %v3789
      %3806 = vst.msk [vmem:[#allocation3 + $0x68] sm:$0xff] %vm1052, %v3790
      %3807 = vst.msk [vmem:[#allocation3 + $0x70] sm:$0xff] %vm1052, %v3791
      %3808 = vst.msk [vmem:[#allocation3 + $0x78] sm:$0xff] %vm1052, %v3792
      %v3809 = vld [vmem:[#allocation3] sm:$0xff]
      %v3810 = vld [vmem:[#allocation3 + $0x8] sm:$0xff]
      %v3811 = vld [vmem:[#allocation3 + $0x10] sm:$0xff]
      %v3812 = vld [vmem:[#allocation3 + $0x18] sm:$0xff]
      %v3813 = vld [vmem:[#allocation3 + $0x20] sm:$0xff]
      %v3814 = vld [vmem:[#allocation3 + $0x28] sm:$0xff]
      %v3815 = vld [vmem:[#allocation3 + $0x30] sm:$0xff]
      %v3816 = vld [vmem:[#allocation3 + $0x38] sm:$0xff]
      %v3817 = vld [vmem:[#allocation3 + $0x40] sm:$0xff]
      %v3818 = vld [vmem:[#allocation3 + $0x48] sm:$0xff]
      %v3819 = vld [vmem:[#allocation3 + $0x50] sm:$0xff]
      %v3820 = vld [vmem:[#allocation3 + $0x58] sm:$0xff]
      %v3821 = vld [vmem:[#allocation3 + $0x60] sm:$0xff]
      %v3822 = vld [vmem:[#allocation3 + $0x68] sm:$0xff]
      %v3823 = vld [vmem:[#allocation3 + $0x70] sm:$0xff]
      %v3824 = vld [vmem:[#allocation3 + $0x78] sm:$0xff]
      %v3825 = vpack.c.bf16 %v3810, %v3809
      %v3826 = vpack.c.bf16 %v3812, %v3811
      %v3827 = vpack.c.bf16 %v3814, %v3813
      %v3828 = vpack.c.bf16 %v3816, %v3815
      %v3829 = vpack.c.bf16 %v3818, %v3817
      %v3830 = vpack.c.bf16 %v3820, %v3819
      %v3831 = vpack.c.bf16 %v3822, %v3821
      %v3832 = vpack.c.bf16 %v3824, %v3823
      %v3841 = vunpack.c.l.b16 %v3825
      %v3842 = vunpack.c.h.b16 %v3825
      %v3843 = vunpack.c.l.b16 %v3826
      %v3844 = vunpack.c.h.b16 %v3826
      %v3845 = vunpack.c.l.b16 %v3827
      %v3846 = vunpack.c.h.b16 %v3827
      %v3847 = vunpack.c.l.b16 %v3828
      %v3848 = vunpack.c.h.b16 %v3828
      %v3849 = vunpack.c.l.b16 %v3829
      %v3850 = vunpack.c.h.b16 %v3829
      %v3851 = vunpack.c.l.b16 %v3830
      %v3852 = vunpack.c.h.b16 %v3830
      %v3853 = vunpack.c.l.b16 %v3831
      %v3854 = vunpack.c.h.b16 %v3831
      %v3855 = vunpack.c.l.b16 %v3832
      %v3856 = vunpack.c.h.b16 %v3832
      %v3857 = vpack.c.b16 %v3841, %v3841
      %v3858 = vpack.c.b16 %v3842, %v3842
      %v3859 = vpack.c.b16 %v3843, %v3843
      %v3860 = vpack.c.b16 %v3844, %v3844
      %v3861 = vpack.c.b16 %v3845, %v3845
      %v3862 = vpack.c.b16 %v3846, %v3846
      %v3863 = vpack.c.b16 %v3847, %v3847
      %v3864 = vpack.c.b16 %v3848, %v3848
      %v3865 = vpack.c.b16 %v3849, %v3849
      %v3866 = vpack.c.b16 %v3850, %v3850
      %v3867 = vpack.c.b16 %v3851, %v3851
      %v3868 = vpack.c.b16 %v3852, %v3852
      %v3869 = vpack.c.b16 %v3853, %v3853
      %v3870 = vpack.c.b16 %v3854, %v3854
      %v3871 = vpack.c.b16 %v3855, %v3855
      %v3872 = vpack.c.b16 %v3856, %v3856
      %3889 = vst.msk [vmem:[%s458] sm:$0xf] %vm700, %v3857
      %3890 = vst.msk [vmem:[%s458 + $0x4] sm:$0xf] %vm700, %v3858
      %3891 = vst.msk [vmem:[%s458 + $0x8] sm:$0xf] %vm700, %v3859
      %3892 = vst.msk [vmem:[%s458 + $0xc] sm:$0xf] %vm700, %v3860
      %3893 = vst.msk [vmem:[%s458 + $0x10] sm:$0xf] %vm700, %v3861
      %3894 = vst.msk [vmem:[%s458 + $0x14] sm:$0xf] %vm700, %v3862
      %3895 = vst.msk [vmem:[%s458 + $0x18] sm:$0xf] %vm700, %v3863
      %3896 = vst.msk [vmem:[%s458 + $0x1c] sm:$0xf] %vm700, %v3864
      %3897 = vst.msk [vmem:[%s458 + $0x20] sm:$0xf] %vm700, %v3865
      %3898 = vst.msk [vmem:[%s458 + $0x24] sm:$0xf] %vm700, %v3866
      %3899 = vst.msk [vmem:[%s458 + $0x28] sm:$0xf] %vm700, %v3867
      %3900 = vst.msk [vmem:[%s458 + $0x2c] sm:$0xf] %vm700, %v3868
      %3901 = vst.msk [vmem:[%s458 + $0x30] sm:$0xf] %vm700, %v3869
      %3902 = vst.msk [vmem:[%s458 + $0x34] sm:$0xf] %vm700, %v3870
      %3903 = vst.msk [vmem:[%s458 + $0x38] sm:$0xf] %vm700, %v3871
      %3904 = vst.msk [vmem:[%s458 + $0x3c] sm:$0xf] %vm700, %v3872
      %v3905 = vsel %vm1052, %v3809, 0.0
      %v3906 = vsel %vm1052, %v3810, 0.0
      %v3907 = vadd.f32 %v3905, %v3906
      %v3908 = vsel %vm1052, %v3811, 0.0
      %v3909 = vadd.f32 %v3907, %v3908
      %v3910 = vsel %vm1052, %v3812, 0.0
      %v3911 = vadd.f32 %v3909, %v3910
      %v3912 = vsel %vm1052, %v3813, 0.0
      %v3913 = vadd.f32 %v3911, %v3912
      %v3914 = vsel %vm1052, %v3814, 0.0
      %v3915 = vadd.f32 %v3913, %v3914
      %v3916 = vsel %vm1052, %v3815, 0.0
      %v3917 = vadd.f32 %v3915, %v3916
      %v3918 = vsel %vm1052, %v3816, 0.0
      %v3919 = vadd.f32 %v3917, %v3918
      %v3920 = vsel %vm1052, %v3817, 0.0
      %v3921 = vadd.f32 %v3919, %v3920
      %v3922 = vsel %vm1052, %v3818, 0.0
      %v3923 = vadd.f32 %v3921, %v3922
      %v3924 = vsel %vm1052, %v3819, 0.0
      %v3925 = vadd.f32 %v3923, %v3924
      %v3926 = vsel %vm1052, %v3820, 0.0
      %v3927 = vadd.f32 %v3925, %v3926
      %v3928 = vsel %vm1052, %v3821, 0.0
      %v3929 = vadd.f32 %v3927, %v3928
      %v3930 = vsel %vm1052, %v3822, 0.0
      %v3931 = vadd.f32 %v3929, %v3930
      %v3932 = vsel %vm1052, %v3823, 0.0
      %v3933 = vadd.f32 %v3931, %v3932
      %v3934 = vsel %vm1052, %v3824, 0.0
      %v3935 = vadd.f32 %v3933, %v3934
      %v3936 = vrot.slane %v3935, 4
      %v3937 = vadd.f32 %v3935, %v3936
      %v3938 = vrot.slane %v3937, 2
      %v3939 = vadd.f32 %v3937, %v3938
      %v3940 = vrot.slane %v3939, 1
      %v3941 = vadd.f32 %v3939, %v3940
      %v3942 = vmul.f32 %v3809, %v3809
      %v3943 = vmul.f32 %v3810, %v3810
      %v3944 = vmul.f32 %v3811, %v3811
      %v3945 = vmul.f32 %v3812, %v3812
      %v3946 = vmul.f32 %v3813, %v3813
      %v3947 = vmul.f32 %v3814, %v3814
      %v3948 = vmul.f32 %v3815, %v3815
      %v3949 = vmul.f32 %v3816, %v3816
      %v3950 = vmul.f32 %v3817, %v3817
      %v3951 = vmul.f32 %v3818, %v3818
      %v3952 = vmul.f32 %v3819, %v3819
      %v3953 = vmul.f32 %v3820, %v3820
      %v3954 = vmul.f32 %v3821, %v3821
      %v3955 = vmul.f32 %v3822, %v3822
      %v3956 = vmul.f32 %v3823, %v3823
      %v3957 = vmul.f32 %v3824, %v3824
      %v3958 = vsel %vm1052, %v3942, 0.0
      %v3959 = vsel %vm1052, %v3943, 0.0
      %v3960 = vadd.f32 %v3958, %v3959
      %v3961 = vsel %vm1052, %v3944, 0.0
      %v3962 = vadd.f32 %v3960, %v3961
      %v3963 = vsel %vm1052, %v3945, 0.0
      %v3964 = vadd.f32 %v3962, %v3963
      %v3965 = vsel %vm1052, %v3946, 0.0
      %v3966 = vadd.f32 %v3964, %v3965
      %v3967 = vsel %vm1052, %v3947, 0.0
      %v3968 = vadd.f32 %v3966, %v3967
      %v3969 = vsel %vm1052, %v3948, 0.0
      %v3970 = vadd.f32 %v3968, %v3969
      %v3971 = vsel %vm1052, %v3949, 0.0
      %v3972 = vadd.f32 %v3970, %v3971
      %v3973 = vsel %vm1052, %v3950, 0.0
      %v3974 = vadd.f32 %v3972, %v3973
      %v3975 = vsel %vm1052, %v3951, 0.0
      %v3976 = vadd.f32 %v3974, %v3975
      %v3977 = vsel %vm1052, %v3952, 0.0
      %v3978 = vadd.f32 %v3976, %v3977
      %v3979 = vsel %vm1052, %v3953, 0.0
      %v3980 = vadd.f32 %v3978, %v3979
      %v3981 = vsel %vm1052, %v3954, 0.0
      %v3982 = vadd.f32 %v3980, %v3981
      %v3983 = vsel %vm1052, %v3955, 0.0
      %v3984 = vadd.f32 %v3982, %v3983
      %v3985 = vsel %vm1052, %v3956, 0.0
      %v3986 = vadd.f32 %v3984, %v3985
      %v3987 = vsel %vm1052, %v3957, 0.0
      %v3988 = vadd.f32 %v3986, %v3987
      %v3989 = vrot.slane %v3988, 4
      %v3990 = vadd.f32 %v3988, %v3989
      %v3991 = vrot.slane %v3990, 2
      %v3992 = vadd.f32 %v3990, %v3991
      %v3993 = vrot.slane %v3992, 1
      %v3994 = vadd.f32 %v3992, %v3993
      %vm3995 = vcmask 1040384
      %v3996 = vsel %vm3995, %v3941, %v3994
      %vm3997 = vcmask 25600
      %3998 = vst.msk [vmem:[%s467] sm:$0x3] %vm3997, %v3996
      %s3999 = smul.u32 8, %s24
      %p4000 = scmp.lt.s32.totalorder %s23, 1
      %s4001 = scalar_select %p4000, %s23, 1
      %p4002 = scmp.lt.s32.totalorder %s3999, 15
      %s4003 = scalar_select %p4002, %s3999, 15
      %s4004 = smul.addr %s4003, 2
      %s4005 = smul.addr %s4001, 32
      %s4006 = sadd.s32 %s4004, %s4005
      %s4007 = smul.addr %s4006, 4
      %s4008 = scalar_lea.vmem %s6, %s4007
      %p4009 = scmp.lt.s32.totalorder %s23, 1
      %s4010 = scalar_select %p4009, %s23, 1
      %p4011 = scmp.lt.s32.totalorder %s24, 1
      %s4012 = scalar_select %p4011, %s24, 1
      %s4013 = smul.addr %s4010, 2
      %s4014 = sadd.s32 %s4012, %s4013
      %s4015 = smul.addr %s4014, 2
      %s4016 = scalar_lea.vmem %s7, %s4015
      // Predicated region
      $region45: #{residual_block.4} parent=43 // pred_check
        %p4017 = pneg %p214
      $region46: #{residual_block.4} parent=43 // pred_check_branch
        %4019 = sbr.rel (%p4017) target = $region48
      $region47: #{residual_block.4} parent=43 // pred_region
        %s4020 = smul.u32 8, %s24
      $region48: #{residual_block.4} parent=43 // pred_fallthru
        _
      // Predicated region
      $region49: #{residual_block.4} parent=43 // pred_check
        %p4021 = pneg %p242
      $region50: #{residual_block.4} parent=43 // pred_check_branch
        %4023 = sbr.rel (%p4021) target = $region52
      $region51: #{residual_block.4} parent=43 // pred_region
        _
      $region52: #{residual_block.4} parent=43 // pred_fallthru
        _
    $region44: #{residual_block.4} parent=5 // pred_fallthru
      _
    %p4024 = scmp.le.s32.totalorder 2, %s14
    // Predicated region
    $region53: #{residual_block.4} parent=5 // pred_check
      %p4025 = pneg %p4024
    $region54: #{residual_block.4} parent=5 // pred_check_branch
      %4027 = sbr.rel (%p4025) target = $region56
    $region55: #{residual_block.4} parent=5 // pred_region
      %s4028 = ssub.s32 %s14, 2
      // Predicated region
      $region57: #{residual_block.4} parent=55 // pred_check
        %p4029 = pneg %p220
      $region58: #{residual_block.4} parent=55 // pred_check_branch
        %4031 = sbr.rel (%p4029) target = $region60
      $region59: #{residual_block.4} parent=55 // pred_region
        %s4032 = smul.u32 8, %s26
        %p4033 = scmp.lt.s32.totalorder %s25, 1
        %s4034 = scalar_select %p4033, %s25, 1
        %p4035 = scmp.lt.s32.totalorder %s4032, 15
        %s4036 = scalar_select %p4035, %s4032, 15
        %s4037 = smul.addr %s4036, 2
        %s4038 = smul.addr %s4034, 32
        %s4039 = sadd.s32 %s4037, %s4038
        %s4040 = smul.addr %s4039, 4
        %s4041 = scalar_lea.vmem %s6, %s4040
      $region60: #{residual_block.4} parent=55 // pred_fallthru
        _
      // Predicated region
      $region61: #{residual_block.4} parent=55 // pred_check
        %p4042 = pneg %p248
      $region62: #{residual_block.4} parent=55 // pred_check_branch
        %4044 = sbr.rel (%p4042) target = $region64
      $region63: #{residual_block.4} parent=55 // pred_region
        %p4045 = scmp.lt.s32.totalorder %s25, 1
        %s4046 = scalar_select %p4045, %s25, 1
        %p4047 = scmp.lt.s32.totalorder %s26, 1
        %s4048 = scalar_select %p4047, %s26, 1
        %s4049 = smul.addr %s4046, 2
        %s4050 = sadd.s32 %s4048, %s4049
        %s4051 = smul.addr %s4050, 2
        %s4052 = scalar_lea.vmem %s7, %s4051
      $region64: #{residual_block.4} parent=55 // pred_fallthru
        _
    $region56: #{residual_block.4} parent=5 // pred_fallthru
      _
  $region6: #{residual_block.4} parent=0 // loop_footer
    %s18 = sadd.s32 1, %s14
  $region7: #{residual_block.4} parent=0 // loop_footer_branch
    %13 = sbr.rel target = $region3
  $region8: #{residual_block.4} parent=0 // loop_exit
    _

// kernel: residual_block.3
$region0: #{residual_block.3}
  #allocation0 [shape = 'u32[]', space=smem, size = 0x4, offset = 0x4, fixed_abs, tag = 'smem constant byte address 0x4 - core index']
  #allocation1 [shape = 'u32[144,128]{1,0:T(1,128)}', space=vmem, size = 0x12000, scoped, tag = 'internal scratch']
  #allocation2 [shape = 'bf16[10,18,4]{2,1,0:T(8,128)(2,1)}', space=vmem, size = 0xf000, scoped, tag = 'scratch operand']
  #allocation3 [shape = 'f32[128,4]{1,0:T(8,128)}', space=vmem, size = 0x10000, scoped, tag = 'scratch operand']
  %s0 = inlined_call_operand.vmem [shape: bf16[2,16,16,4], index: 0, kind: input, shape index: {}, may-alias: {0,1,2}]
  %s1 = inlined_call_operand.vmem [shape: bf16[2,16,16,4], index: 1, kind: input, shape index: {}, may-alias: {0,1,2}]
  %s2 = inlined_call_operand.vmem [shape: bf16[2,16,16,4], index: 2, kind: input, shape index: {}, may-alias: {0,1,2}]
  %s3 = inlined_call_operand.vmem [shape: f32[1,4], index: 3, kind: input, shape index: {}]
  %s4 = inlined_call_operand.vmem [shape: f32[1,4], index: 4, kind: input, shape index: {}]
  %s5 = inlined_call_operand.vmem [shape: bf16[9,4,4], index: 5, kind: input, shape index: {}]
  %s6 = inlined_call_operand.vmem [shape: bf16[2,16,16,4], index: 6, kind: output, shape index: {0}]
  %s7 = inlined_call_operand.vmem [shape: f32[2,2,2,4], index: 7, kind: output, shape index: {1}]
  %8 = xla_tuple %s6, %s7
  %s9 = sld [smem:[#allocation0]]
  $region65: #{residual_block.3} parent=0
    _
  %s11 = ssub.s32 1, %s9
  %s12 = scalar_select 0, %s11, %s9
  loop: start=0, step=1, limit=6
  $region2: #{residual_block.3} parent=0 // loop_pre_header
    _
  $region3: #{residual_block.3} parent=0 // loop_header
    %s14 = sphi 0, %s18
    %p15 = scmp.ge.s32.totalorder %s14, 6
    %s21 = sphi 0, %s33
    %s22 = sphi 0, %s29
    %s23 = sphi 0, %s21
    %s24 = sphi 0, %s22
    %s25 = sphi 0, %s23
    %s26 = sphi 0, %s24
    %s38 = sphi 0, %s40
    %s41 = sphi 0, %s38
    %s42 = sphi 0, %s41
    %s58 = sphi 0, %s42
    %s74 = sphi 0, %s76
    %s77 = sphi 0, %s74
    %s78 = sphi 0, %s77
    %s94 = sphi 0, %s78
    %s110 = sphi 0, %s112
    %s113 = sphi 0, %s110
    %s114 = sphi 0, %s113
    %s130 = sphi 0, %s114
    %s134 = sphi 0, %s134
    %s136 = sphi 0, %s134
    %s137 = sphi 0, %s136
    %s151 = sphi 0, %s137
    %s155 = sphi 0, %s155
    %s157 = sphi 0, %s155
    %s158 = sphi 0, %s157
    %s172 = sphi 0, %s158
    %s176 = sphi 0, %s176
    %s178 = sphi 0, %s176
    %s179 = sphi 0, %s178
    %s193 = sphi 0, %s179
    %s201 = sphi 0, %s203
    %s204 = sphi 0, %s201
    %s205 = sphi 0, %s204
    %s221 = sphi 0, %s205
    %s229 = sphi 0, %s231
    %s232 = sphi 0, %s229
    %s233 = sphi 0, %s232
    %s249 = sphi 0, %s233
  $region4: #{residual_block.3} parent=0 // loop_header_branch
    %17 = sbr.rel (%p15) target = $region8
  $region5: #{residual_block.3} parent=0 // loop_body
    %s19 = ssub.s32 %s14, 1
    %s20 = ssub.s32 %s14, 2
    %s27 = sadd.s32 1, %s22
    %p28 = scmp.ge.s32.totalorder %s27, 2
    %s29 = scalar_select %p28, 0, %s27
    %s30 = sadd.s32 1, %s21
    %s31 = scalar_select %p28, %s30, %s21
    %p32 = scmp.ge.s32.totalorder %s31, 2
    %s33 = scalar_select %p32, 0, %s31
    %s34 = ssub.s32 %s21, %s33
    %s35 = ssub.s32 %s22, %s29
    %s36 = sor.u32 %s34, %s35
    %p37 = scmp.eq.s32.totalorder %s36, 0
    %s39 = sadd.s32 %s38, 1
    %s40 = scalar_select %p37, %s38, %s39
    %p43 = pneg %p37
    %p44 = scmp.eq.s32.totalorder %s14, 3
    %p45 = por %p43, %p44
    %p46 = scmp.ne.s32.totalorder %s38, %s41
    %p47 = scmp.eq.s32.totalorder %s14, 0
    %p48 = por %p46, %p47
    %p49 = scmp.ne.s32.totalorder %s38, %s41
    %p50 = scmp.eq.s32.totalorder %s19, 3
    %p51 = por %p49, %p50
    %p52 = scmp.ne.s32.totalorder %s41, %s42
    %p53 = scmp.eq.s32.totalorder %s19, 0
    %p54 = por %p52, %p53
    %p55 = scmp.ne.s32.totalorder %s41, %s42
    %p56 = scmp.eq.s32.totalorder %s20, 3
    %p57 = por %p55, %p56
    %p59 = scmp.ne.s32.totalorder %s42, %s58
    %p60 = scmp.eq.s32.totalorder %s20, 0
    %p61 = por %p59, %p60
    %s62 = smul.u32 %s22, 8
    %s63 = ssub.s32 %s62, 1
    %p64 = scmp.gt.s32.totalorder %s63, 0
    %s65 = scalar_select %p64, %s63, 0
    %s66 = smul.u32 %s29, 8
    %s67 = ssub.s32 %s66, 1
    %p68 = scmp.gt.s32.totalorder %s67, 0
    %s69 = scalar_select %p68, %s67, 0
    %s70 = ssub.s32 %s21, %s33
    %s71 = ssub.s32 %s65, %s69
    %s72 = sor.u32 %s70, %s71
    %p73 = scmp.eq.s32.totalorder %s72, 0
    %s75 = sadd.s32 %s74, 1
    %s76 = scalar_select %p73, %s74, %s75
    %p79 = pneg %p73
    %p80 = scmp.eq.s32.totalorder %s14, 3
    %p81 = por %p79, %p80
    %p82 = scmp.ne.s32.totalorder %s74, %s77
    %p83 = scmp.eq.s32.totalorder %s14, 0
    %p84 = por %p82, %p83
    %p85 = scmp.ne.s32.totalorder %s74, %s77
    %p86 = scmp.eq.s32.totalorder %s19, 3
    %p87 = por %p85, %p86
    %p88 = scmp.ne.s32.totalorder %s77, %s78
    %p89 = scmp.eq.s32.totalorder %s19, 0
    %p90 = por %p88, %p89
    %p91 = scmp.ne.s32.totalorder %s77, %s78
    %p92 = scmp.eq.s32.totalorder %s20, 3
    %p93 = por %p91, %p92
    %p95 = scmp.ne.s32.totalorder %s78, %s94
    %p96 = scmp.eq.s32.totalorder %s20, 0
    %p97 = por %p95, %p96
    %s98 = sadd.s32 %s22, 1
    %s99 = smul.u32 %s98, 8
    %p100 = scmp.lt.s32.totalorder %s99, 15
    %s101 = scalar_select %p100, %s99, 15
    %s102 = sadd.s32 %s29, 1
    %s103 = smul.u32 %s102, 8
    %p104 = scmp.lt.s32.totalorder %s103, 15
    %s105 = scalar_select %p104, %s103, 15
    %s106 = ssub.s32 %s21, %s33
    %s107 = ssub.s32 %s101, %s105
    %s108 = sor.u32 %s106, %s107
    %p109 = scmp.eq.s32.totalorder %s108, 0
    %s111 = sadd.s32 %s110, 1
    %s112 = scalar_select %p109, %s110, %s111
    %p115 = pneg %p109
    %p116 = scmp.eq.s32.totalorder %s14, 3
    %p117 = por %p115, %p116
    %p118 = scmp.ne.s32.totalorder %s110, %s113
    %p119 = scmp.eq.s32.totalorder %s14, 0
    %p120 = por %p118, %p119
    %p121 = scmp.ne.s32.totalorder %s110, %s113
    %p122 = scmp.eq.s32.totalorder %s19, 3
    %p123 = por %p121, %p122
    %p124 = scmp.ne.s32.totalorder %s113, %s114
    %p125 = scmp.eq.s32.totalorder %s19, 0
    %p126 = por %p124, %p125
    %p127 = scmp.ne.s32.totalorder %s113, %s114
    %p128 = scmp.eq.s32.totalorder %s20, 3
    %p129 = por %p127, %p128
    %p131 = scmp.ne.s32.totalorder %s114, %s130
    %p132 = scmp.eq.s32.totalorder %s20, 0
    %p133 = por %p131, %p132
    %s135 = sadd.s32 %s134, 1
    %p138 = scmp.eq.s32.totalorder %s14, 3
    %p139 = scmp.ne.s32.totalorder %s134, %s136
    %p140 = scmp.eq.s32.totalorder %s14, 0
    %p141 = por %p139, %p140
    %p142 = scmp.ne.s32.totalorder %s134, %s136
    %p143 = scmp.eq.s32.totalorder %s19, 3
    %p144 = por %p142, %p143
    %p145 = scmp.ne.s32.totalorder %s136, %s137
    %p146 = scmp.eq.s32.totalorder %s19, 0
    %p147 = por %p145, %p146
    %p148 = scmp.ne.s32.totalorder %s136, %s137
    %p149 = scmp.eq.s32.totalorder %s20, 3
    %p150 = por %p148, %p149
    %p152 = scmp.ne.s32.totalorder %s137, %s151
    %p153 = scmp.eq.s32.totalorder %s20, 0
    %p154 = por %p152, %p153
    %s156 = sadd.s32 %s155, 1
    %p159 = scmp.eq.s32.totalorder %s14, 3
    %p160 = scmp.ne.s32.totalorder %s155, %s157
    %p161 = scmp.eq.s32.totalorder %s14, 0
    %p162 = por %p160, %p161
    %p163 = scmp.ne.s32.totalorder %s155, %s157
    %p164 = scmp.eq.s32.totalorder %s19, 3
    %p165 = por %p163, %p164
    %p166 = scmp.ne.s32.totalorder %s157, %s158
    %p167 = scmp.eq.s32.totalorder %s19, 0
    %p168 = por %p166, %p167
    %p169 = scmp.ne.s32.totalorder %s157, %s158
    %p170 = scmp.eq.s32.totalorder %s20, 3
    %p171 = por %p169, %p170
    %p173 = scmp.ne.s32.totalorder %s158, %s172
    %p174 = scmp.eq.s32.totalorder %s20, 0
    %p175 = por %p173, %p174
    %s177 = sadd.s32 %s176, 1
    %p180 = scmp.eq.s32.totalorder %s14, 3
    %p181 = scmp.ne.s32.totalorder %s176, %s178
    %p182 = scmp.eq.s32.totalorder %s14, 0
    %p183 = por %p181, %p182
    %p184 = scmp.ne.s32.totalorder %s176, %s178
    %p185 = scmp.eq.s32.totalorder %s19, 3
    %p186 = por %p184, %p185
    %p187 = scmp.ne.s32.totalorder %s178, %s179
    %p188 = scmp.eq.s32.totalorder %s19, 0
    %p189 = por %p187, %p188
    %p190 = scmp.ne.s32.totalorder %s178, %s179
    %p191 = scmp.eq.s32.totalorder %s20, 3
    %p192 = por %p190, %p191
    %p194 = scmp.ne.s32.totalorder %s179, %s193
    %p195 = scmp.eq.s32.totalorder %s20, 0
    %p196 = por %p194, %p195
    %s197 = ssub.s32 %s21, %s33
    %s198 = ssub.s32 %s22, %s29
    %s199 = sor.u32 %s197, %s198
    %p200 = scmp.eq.s32.totalorder %s199, 0
    %s202 = sadd.s32 %s201, 1
    %s203 = scalar_select %p200, %s201, %s202
    %p206 = pneg %p200
    %p207 = scmp.eq.s32.totalorder %s14, 3
    %p208 = por %p206, %p207
    %p209 = scmp.ne.s32.totalorder %s201, %s204
    %p210 = scmp.eq.s32.totalorder %s14, 0
    %p211 = por %p209, %p210
    %p212 = scmp.ne.s32.totalorder %s201, %s204
    %p213 = scmp.eq.s32.totalorder %s19, 3
    %p214 = por %p212, %p213
    %p215 = scmp.ne.s32.totalorder %s204, %s205
    %p216 = scmp.eq.s32.totalorder %s19, 0
    %p217 = por %p215, %p216
    %p218 = scmp.ne.s32.totalorder %s204, %s205
    %p219 = scmp.eq.s32.totalorder %s20, 3
    %p220 = por %p218, %p219
    %p222 = scmp.ne.s32.totalorder %s205, %s221
    %p223 = scmp.eq.s32.totalorder %s20, 0
    %p224 = por %p222, %p223
    %s225 = ssub.s32 %s21, %s33
    %s226 = ssub.s32 %s22, %s29
    %s227 = sor.u32 %s225, %s226
    %p228 = scmp.eq.s32.totalorder %s227, 0
    %s230 = sadd.s32 %s229, 1
    %s231 = scalar_select %p228, %s229, %s230
    %p234 = pneg %p228
    %p235 = scmp.eq.s32.totalorder %s14, 3
    %p236 = por %p234, %p235
    %p237 = scmp.ne.s32.totalorder %s229, %s232
    %p238 = scmp.eq.s32.totalorder %s14, 0
    %p239 = por %p237, %p238
    %p240 = scmp.ne.s32.totalorder %s229, %s232
    %p241 = scmp.eq.s32.totalorder %s19, 3
    %p242 = por %p240, %p241
    %p243 = scmp.ne.s32.totalorder %s232, %s233
    %p244 = scmp.eq.s32.totalorder %s19, 0
    %p245 = por %p243, %p244
    %p246 = scmp.ne.s32.totalorder %s232, %s233
    %p247 = scmp.eq.s32.totalorder %s20, 3
    %p248 = por %p246, %p247
    %p250 = scmp.ne.s32.totalorder %s233, %s249
    %p251 = scmp.eq.s32.totalorder %s20, 0
    %p252 = por %p250, %p251
    %p253 = scmp.le.s32.totalorder 1, %s14
    %p254 = scmp.lt.s32.totalorder %s14, 5
    %p255 = pnand %p253, %p254
    %p256 = pneg %p255
    // Predicated region
    $region9: #{residual_block.3} parent=5 // pred_check
      _
    $region10: #{residual_block.3} parent=5 // pred_check_branch
      %258 = sbr.rel (%p255) target = $region12
    $region11: #{residual_block.3} parent=5 // pred_region
      %s259 = ssub.s32 %s14, 1
      // Predicated region
      $region13: #{residual_block.3} parent=11 // pred_check
        %p260 = pneg %p147
      $region14: #{residual_block.3} parent=11 // pred_check_branch
        %262 = sbr.rel (%p260) target = $region16
      $region15: #{residual_block.3} parent=11 // pred_region
        _
      $region16: #{residual_block.3} parent=11 // pred_fallthru
        _
      // Predicated region
      $region17: #{residual_block.3} parent=11 // pred_check
        %p263 = pneg %p168
      $region18: #{residual_block.3} parent=11 // pred_check_branch
        %265 = sbr.rel (%p263) target = $region20
      $region19: #{residual_block.3} parent=11 // pred_region
        _
      $region20: #{residual_block.3} parent=11 // pred_fallthru
        _
      // Predicated region
      $region21: #{residual_block.3} parent=11 // pred_check
        %p266 = pneg %p189
      $region22: #{residual_block.3} parent=11 // pred_check_branch
        %268 = sbr.rel (%p266) target = $region24
      $region23: #{residual_block.3} parent=11 // pred_region
        _
      $region24: #{residual_block.3} parent=11 // pred_fallthru
        _
    $region12: #{residual_block.3} parent=5 // pred_fallthru
      _
    %p269 = scmp.lt.s32.totalorder %s14, 4
    // Predicated region
    $region25: #{residual_block.3} parent=5 // pred_check
      %p270 = pneg %p269
    $region26: #{residual_block.3} parent=5 // pred_check_branch
      %272 = sbr.rel (%p270) target = $region28
    $region27: #{residual_block.3} parent=5 // pred_region
      // Predicated region
      $region29: #{residual_block.3} parent=27 // pred_check
        %p273 = pneg %p48
      $region30: #{residual_block.3} parent=27 // pred_check_branch
        %275 = sbr.rel (%p273) target = $region32
      $region31: #{residual_block.3} parent=27 // pred_region
        %s276 = smul.u32 8, %s22
        %p277 = scmp.lt.s32.totalorder %s21, 1
        %s278 = scalar_select %p277, %s21, 1
        %p279 = scmp.lt.s32.totalorder %s276, 15
        %s280 = scalar_select %p279, %s276, 15
        %s281 = smul.addr %s280, 2
        %s282 = smul.addr %s278, 32
        %s283 = sadd.s32 %s281, %s282
        %s284 = smul.addr %s283, 4
        %s285 = scalar_lea.vmem %s0, %s284
        %s286 = smul.u32 8, %s22
      $region32: #{residual_block.3} parent=27 // pred_fallthru
        _
      // Predicated region
      $region33: #{residual_block.3} parent=27 // pred_check
        %p287 = pneg %p84
      $region34: #{residual_block.3} parent=27 // pred_check_branch
        %289 = sbr.rel (%p287) target = $region36
      $region35: #{residual_block.3} parent=27 // pred_region
        %s290 = smul.u32 %s22, 8
        %s291 = ssub.s32 %s290, 1
        %p292 = scmp.gt.s32.totalorder %s291, 0
        %s293 = scalar_select %p292, %s291, 0
        %p294 = scmp.lt.s32.totalorder %s21, 1
        %s295 = scalar_select %p294, %s21, 1
        %p296 = scmp.lt.s32.totalorder %s293, 15
        %s297 = scalar_select %p296, %s293, 15
        %s298 = smul.addr %s297, 2
        %s299 = smul.addr %s295, 32
        %s300 = sadd.s32 %s298, %s299
        %s301 = smul.addr %s300, 4
        %s302 = scalar_lea.vmem %s1, %s301
        %s303 = smul.u32 %s22, 8
        %s304 = ssub.s32 %s303, 1
        %p305 = scmp.gt.s32.totalorder %s304, 0
        %s306 = scalar_select %p305, %s304, 0
      $region36: #{residual_block.3} parent=27 // pred_fallthru
        _
      // Predicated region
      $region37: #{residual_block.3} parent=27 // pred_check
        %p307 = pneg %p120
      $region38: #{residual_block.3} parent=27 // pred_check_branch
        %309 = sbr.rel (%p307) target = $region40
      $region39: #{residual_block.3} parent=27 // pred_region
        %s310 = sadd.s32 %s22, 1
        %s311 = smul.u32 %s310, 8
        %p312 = scmp.lt.s32.totalorder %s311, 15
        %s313 = scalar_select %p312, %s311, 15
        %p314 = scmp.lt.s32.totalorder %s21, 1
        %s315 = scalar_select %p314, %s21, 1
        %p316 = scmp.lt.s32.totalorder %s313, 15
        %s317 = scalar_select %p316, %s313, 15
        %s318 = smul.addr %s317, 2
        %s319 = smul.addr %s315, 32
        %s320 = sadd.s32 %s318, %s319
        %s321 = smul.addr %s320, 4
        %s322 = scalar_lea.vmem %s2, %s321
        %s323 = sadd.s32 %s22, 1
        %s324 = smul.u32 %s323, 8
        %p325 = scmp.lt.s32.totalorder %s324, 15
        %s326 = scalar_select %p325, %s324, 15
      $region40: #{residual_block.3} parent=27 // pred_fallthru
        _
    $region28: #{residual_block.3} parent=5 // pred_fallthru
      _
    %p327 = scmp.le.s32.totalorder 1, %s14
    %p328 = scmp.lt.s32.totalorder %s14, 5
    %p329 = pnand %p327, %p328
    %p330 = pneg %p329
    // Predicated region
    $region41: #{residual_block.3} parent=5 // pred_check
      _
    $region42: #{residual_block.3} parent=5 // pred_check_branch
      %332 = sbr.rel (%p329) target = $region44
    $region43: #{residual_block.3} parent=5 // pred_region
      %s333 = ssub.s32 %s14, 1
      %s334 = smul.u32 8, %s24
      %p335 = scmp.lt.s32.totalorder %s23, 1
      %s336 = scalar_select %p335, %s23, 1
      %p337 = scmp.lt.s32.totalorder %s334, 15
      %s338 = scalar_select %p337, %s334, 15
      %s339 = smul.addr %s338, 2
      %s340 = smul.addr %s336, 32
      %s341 = sadd.s32 %s339, %s340
      %s342 = smul.addr %s341, 4
      %s343 = scalar_lea.vmem %s0, %s342
      %p344 = pneg %p54
      %p345 = pneg %p51
      %s346 = smul.u32 %s24, 8
      %s347 = ssub.s32 %s346, 1
      %p348 = scmp.gt.s32.totalorder %s347, 0
      %s349 = scalar_select %p348, %s347, 0
      %p350 = scmp.lt.s32.totalorder %s23, 1
      %s351 = scalar_select %p350, %s23, 1
      %p352 = scmp.lt.s32.totalorder %s349, 15
      %s353 = scalar_select %p352, %s349, 15
      %s354 = smul.addr %s353, 2
      %s355 = smul.addr %s351, 32
      %s356 = sadd.s32 %s354, %s355
      %s357 = smul.addr %s356, 4
      %s358 = scalar_lea.vmem %s1, %s357
      %p359 = pneg %p90
      %p360 = pneg %p87
      %s361 = sadd.s32 %s24, 1
      %s362 = smul.u32 %s361, 8
      %p363 = scmp.lt.s32.totalorder %s362, 15
      %s364 = scalar_select %p363, %s362, 15
      %p365 = scmp.lt.s32.totalorder %s23, 1
      %s366 = scalar_select %p365, %s23, 1
      %p367 = scmp.lt.s32.totalorder %s364, 15
      %s368 = scalar_select %p367, %s364, 15
      %s369 = smul.addr %s368, 2
      %s370 = smul.addr %s366, 32
      %s371 = sadd.s32 %s369, %s370
      %s372 = smul.addr %s371, 4
      %s373 = scalar_lea.vmem %s2, %s372
      %p374 = pneg %p126
      %p375 = pneg %p123
      %p376 = pneg %p147
      %p377 = pneg %p144
      %p378 = pneg %p168
      %p379 = pneg %p165
      %p380 = pneg %p189
      %p381 = pneg %p186
      %p382 = pneg %p217
      %p383 = pneg %p214
      %s384 = smul.u32 8, %s24
      %p385 = scmp.lt.s32.totalorder %s23, 1
      %s386 = scalar_select %p385, %s23, 1
      %p387 = scmp.lt.s32.totalorder %s384, 15
      %s388 = scalar_select %p387, %s384, 15
      %s389 = smul.addr %s388, 2
      %s390 = smul.addr %s386, 32
      %s391 = sadd.s32 %s389, %s390
      %s392 = smul.addr %s391, 4
      %s393 = scalar_lea.vmem %s6, %s392
      %p394 = pneg %p245
      %p395 = pneg %p242
      %p396 = scmp.lt.s32.totalorder %s23, 1
      %s397 = scalar_select %p396, %s23, 1
      %p398 = scmp.lt.s32.totalorder %s24, 1
      %s399 = scalar_select %p398, %s24, 1
      %s400 = smul.addr %s397, 2
      %s401 = sadd.s32 %s399, %s400
      %s402 = smul.addr %s401, 2
      %s403 = scalar_lea.vmem %s7, %s402
      %s404 = smul.u32 8, %s24
      %p405 = scmp.lt.s32.totalorder %s23, 1
      %s406 = scalar_select %p405, %s23, 1
      %p407 = scmp.lt.s32.totalorder %s404, 15
      %s408 = scalar_select %p407, %s404, 15
      %s409 = smul.addr %s408, 2
      %s410 = smul.addr %s406, 32
      %s411 = sadd.s32 %s409, %s410
      %s412 = smul.addr %s411, 4
      %s413 = scalar_lea.vmem %s0, %s412
      %s414 = smul.u32 8, %s24
      %s415 = smul.u32 %s24, 8
      %s416 = ssub.s32 %s415, 1
      %p417 = scmp.gt.s32.totalorder %s416, 0
      %s418 = scalar_select %p417, %s416, 0
      %p419 = scmp.lt.s32.totalorder %s23, 1
      %s420 = scalar_select %p419, %s23, 1
      %p421 = scmp.lt.s32.totalorder %s418, 15
      %s422 = scalar_select %p421, %s418, 15
      %s423 = smul.addr %s422, 2
      %s424 = smul.addr %s420, 32
      %s425 = sadd.s32 %s423, %s424
      %s426 = smul.addr %s425, 4
      %s427 = scalar_lea.vmem %s1, %s426
      %s428 = smul.u32 %s24, 8
      %s429 = ssub.s32 %s428, 1
      %p430 = scmp.gt.s32.totalorder %s429, 0
      %s431 = scalar_select %p430, %s429, 0
      %s432 = sadd.s32 %s24, 1
      %s433 = smul.u32 %s432, 8
      %p434 = scmp.lt.s32.totalorder %s433, 15
      %s435 = scalar_select %p434, %s433, 15
      %p436 = scmp.lt.s32.totalorder %s23, 1
      %s437 = scalar_select %p436, %s23, 1
      %p438 = scmp.lt.s32.totalorder %s435, 15
      %s439 = scalar_select %p438, %s435, 15
      %s440 = smul.addr %s439, 2
      %s441 = smul.addr %s437, 32
      %s442 = sadd.s32 %s440, %s441
      %s443 = smul.addr %s442, 4
      %s444 = scalar_lea.vmem %s2, %s443
      %s445 = sadd.s32 %s24, 1
      %s446 = smul.u32 %s445, 8
      %p447 = scmp.lt.s32.totalorder %s446, 15
      %s448 = scalar_select %p447, %s446, 15
      %s449 = smul.u32 8, %s24
      %p450 = scmp.lt.s32.totalorder %s23, 1
      %s451 = scalar_select %p450, %s23, 1
      %p452 = scmp.lt.s32.totalorder %s449, 15
      %s453 = scalar_select %p452, %s449, 15
      %s454 = smul.addr %s453, 2
      %s455 = smul.addr %s451, 32
      %s456 = sadd.s32 %s454, %s455
      %s457 = smul.addr %s456, 4
      %s458 = scalar_lea.vmem %s6, %s457
      %s459 = smul.u32 8, %s24
      %p460 = scmp.lt.s32.totalorder %s23, 1
      %s461 = scalar_select %p460, %s23, 1
      %p462 = scmp.lt.s32.totalorder %s24, 1
      %s463 = scalar_select %p462, %s24, 1
      %s464 = smul.addr %s461, 2
      %s465 = sadd.s32 %s463, %s464
      %s466 = smul.addr %s465, 2
      %s467 = scalar_lea.vmem %s7, %s466
      %v469 = vld [vmem:[%s413] sm:$0xf]
      %v470 = vld [vmem:[%s413 + $0x4] sm:$0xf]
      %v471 = vld [vmem:[%s413 + $0x8] sm:$0xf]
      %v472 = vld [vmem:[%s413 + $0xc] sm:$0xf]
      %v473 = vld [vmem:[%s413 + $0x10] sm:$0xf]
      %v474 = vld [vmem:[%s413 + $0x14] sm:$0xf]
      %v475 = vld [vmem:[%s413 + $0x18] sm:$0xf]
      %v476 = vld [vmem:[%s413 + $0x1c] sm:$0xf]
      %v477 = vld [vmem:[%s413 + $0x20] sm:$0xf]
      %v478 = vld [vmem:[%s413 + $0x24] sm:$0xf]
      %v479 = vld [vmem:[%s413 + $0x28] sm:$0xf]
      %v480 = vld [vmem:[%s413 + $0x2c] sm:$0xf]
      %v481 = vld [vmem:[%s413 + $0x30] sm:$0xf]
      %v482 = vld [vmem:[%s413 + $0x34] sm:$0xf]
      %v483 = vld [vmem:[%s413 + $0x38] sm:$0xf]
      %v484 = vld [vmem:[%s413 + $0x3c] sm:$0xf]
      %v485 = vld [vmem:[%s427] sm:$0xf]
      %v486 = vld [vmem:[%s427 + $0x4] sm:$0xf]
      %v487 = vld [vmem:[%s444] sm:$0xf]
      %v488 = vld [vmem:[%s444 + $0x4] sm:$0xf]
      %p489 = scmp.eq.s32.totalorder %s24, 0
      %s490 = scalar_select %p489, 1, 0
      %v491 = vstv %s490
      %vm492 = vcmp.eq.s32.totalorder %v491, 1
      %v493 = vsel %vm492, 0, %v485
      %v494 = vsel %vm492, 0, %v486
      %p495 = scmp.eq.s32.totalorder %s24, 1
      %s496 = scalar_select %p495, 1, 0
      %v497 = vstv %s496
      %vm498 = vcmp.eq.s32.totalorder %v497, 1
      %v499 = vsel %vm498, 0, %v487
      %v500 = vsel %vm498, 0, %v488
      %vm501 = vcmask 24576
      %vm502 = vsmask.f32 256
      %vm503 = vmand %vm501, %vm502
      %v504 = vld [vmem:[#allocation2] sm:$0x1]
      %v505 = vsel %vm503, 0, %v504
      %506 = vst [vmem:[#allocation2] sm:$0x1] %v505
      %v507 = vld [vmem:[#allocation2 + $0xc] sm:$0x1]
      %v508 = vsel %vm503, 0, %v507
      %509 = vst [vmem:[#allocation2 + $0xc] sm:$0x1] %v508
      %v510 = vld [vmem:[#allocation2 + $0x18] sm:$0x1]
      %v511 = vsel %vm503, 0, %v510
      %512 = vst [vmem:[#allocation2 + $0x18] sm:$0x1] %v511
      %v513 = vld [vmem:[#allocation2 + $0x24] sm:$0x1]
      %v514 = vsel %vm503, 0, %v513
      %515 = vst [vmem:[#allocation2 + $0x24] sm:$0x1] %v514
      %v516 = vld [vmem:[#allocation2 + $0x30] sm:$0x1]
      %v517 = vsel %vm503, 0, %v516
      %518 = vst [vmem:[#allocation2 + $0x30] sm:$0x1] %v517
      %v519 = vld [vmem:[#allocation2 + $0x3c] sm:$0x1]
      %v520 = vsel %vm503, 0, %v519
      %521 = vst [vmem:[#allocation2 + $0x3c] sm:$0x1] %v520
      %v522 = vld [vmem:[#allocation2 + $0x48] sm:$0x1]
      %v523 = vsel %vm503, 0, %v522
      %524 = vst [vmem:[#allocation2 + $0x48] sm:$0x1] %v523
      %v525 = vld [vmem:[#allocation2 + $0x54] sm:$0x1]
      %v526 = vsel %vm503, 0, %v525
      %527 = vst [vmem:[#allocation2 + $0x54] sm:$0x1] %v526
      %v528 = vld [vmem:[#allocation2 + $0x60] sm:$0x1]
      %v529 = vsel %vm503, 0, %v528
      %530 = vst [vmem:[#allocation2 + $0x60] sm:$0x1] %v529
      %v531 = vld [vmem:[#allocation2 + $0x6c] sm:$0x1]
      %v532 = vsel %vm503, 0, %v531
      %533 = vst [vmem:[#allocation2 + $0x6c] sm:$0x1] %v532
      %vm534 = vsmask.f32 7938
      %vm535 = vmand %vm501, %vm534
      %v536 = vld [vmem:[#allocation2 + $0x8] sm:$0x1]
      %v537 = vsel %vm535, 0, %v536
      %538 = vst [vmem:[#allocation2 + $0x8] sm:$0x1] %v537
      %v539 = vld [vmem:[#allocation2 + $0x14] sm:$0x1]
      %v540 = vsel %vm535, 0, %v539
      %541 = vst [vmem:[#allocation2 + $0x14] sm:$0x1] %v540
      %v542 = vld [vmem:[#allocation2 + $0x20] sm:$0x1]
      %v543 = vsel %vm535, 0, %v542
      %544 = vst [vmem:[#allocation2 + $0x20] sm:$0x1] %v543
      %v545 = vld [vmem:[#allocation2 + $0x2c] sm:$0x1]
      %v546 = vsel %vm535, 0, %v545
      %547 = vst [vmem:[#allocation2 + $0x2c] sm:$0x1] %v546
      %v548 = vld [vmem:[#allocation2 + $0x38] sm:$0x1]
      %v549 = vsel %vm535, 0, %v548
      %550 = vst [vmem:[#allocation2 + $0x38] sm:$0x1] %v549
      %v551 = vld [vmem:[#allocation2 + $0x44] sm:$0x1]
      %v552 = vsel %vm535, 0, %v551
      %553 = vst [vmem:[#allocation2 + $0x44] sm:$0x1] %v552
      %v554 = vld [vmem:[#allocation2 + $0x50] sm:$0x1]
      %v555 = vsel %vm535, 0, %v554
      %556 = vst [vmem:[#allocation2 + $0x50] sm:$0x1] %v555
      %v557 = vld [vmem:[#allocation2 + $0x5c] sm:$0x1]
      %v558 = vsel %vm535, 0, %v557
      %559 = vst [vmem:[#allocation2 + $0x5c] sm:$0x1] %v558
      %v560 = vld [vmem:[#allocation2 + $0x68] sm:$0x1]
      %v561 = vsel %vm535, 0, %v560
      %562 = vst [vmem:[#allocation2 + $0x68] sm:$0x1] %v561
      %v563 = vld [vmem:[#allocation2 + $0x74] sm:$0x1]
      %v564 = vsel %vm535, 0, %v563
      %565 = vst [vmem:[#allocation2 + $0x74] sm:$0x1] %v564
      %vm566 = vsmask.f32 4368
      %vm567 = vmor %vm502, %vm566
      %v569 = vshrl.u32 %v493, 16
      %v571 = vrot.slane %v569, 7
      %v572 = vshll.u32 %v493, 16
      %v574 = vor.u32 %v571, %v572
      %v575 = vrot.slane %v571, 4
      %v577 = vshrl.u32 %v494, 16
      %v579 = vrot.slane %v577, 7
      %v580 = vshll.u32 %v494, 16
      %v582 = vor.u32 %v579, %v580
      %v583 = vsel %vm567, %v575, %v582
      %v584 = vrot.slane %v579, 4
      %vm588 = vcmask 27648
      %vm589 = vmand %vm588, %vm534
      %v590 = vld [vmem:[#allocation2] sm:$0xf]
      %v591 = vsel %vm589, %v574, %v590
      %592 = vst [vmem:[#allocation2] sm:$0xf] %v591
      %vm593 = vcmask 27648
      %594 = vst.msk [vmem:[#allocation2 + $0x4] sm:$0xf] %vm593, %v583
      %v595 = vld [vmem:[#allocation2 + $0x8] sm:$0x1]
      %v596 = vsel %vm503, %v584, %v595
      %597 = vst [vmem:[#allocation2 + $0x8] sm:$0x1] %v596
      %v599 = vshrl.u32 %v499, 16
      %v601 = vrot.slane %v599, 7
      %v602 = vshll.u32 %v499, 16
      %v604 = vor.u32 %v601, %v602
      %v605 = vrot.slane %v601, 4
      %v607 = vshrl.u32 %v500, 16
      %v609 = vrot.slane %v607, 7
      %v610 = vshll.u32 %v500, 16
      %v612 = vor.u32 %v609, %v610
      %v613 = vsel %vm567, %v605, %v612
      %v614 = vrot.slane %v609, 4
      %s618 = scalar_lea.vmem [#allocation2], 108
      %v619 = vld [vmem:[%s618] sm:$0xf]
      %v620 = vsel %vm589, %v604, %v619
      %621 = vst [vmem:[%s618] sm:$0xf] %v620
      %622 = vst.msk [vmem:[%s618 + $0x4] sm:$0xf] %vm593, %v613
      %v623 = vld [vmem:[%s618 + $0x8] sm:$0x1]
      %v624 = vsel %vm503, %v614, %v623
      %625 = vst [vmem:[%s618 + $0x8] sm:$0x1] %v624
      %v627 = vshrl.u32 %v469, 16
      %v629 = vrot.slane %v627, 7
      %v630 = vshll.u32 %v469, 16
      %v632 = vor.u32 %v629, %v630
      %v633 = vrot.slane %v629, 4
      %v635 = vshrl.u32 %v470, 16
      %v637 = vrot.slane %v635, 7
      %v638 = vshll.u32 %v470, 16
      %v640 = vor.u32 %v637, %v638
      %v641 = vsel %vm567, %v633, %v640
      %v642 = vrot.slane %v637, 4
      %v644 = vshrl.u32 %v471, 16
      %v646 = vrot.slane %v644, 7
      %v647 = vshll.u32 %v471, 16
      %v649 = vor.u32 %v646, %v647
      %v650 = vrot.slane %v646, 4
      %v652 = vshrl.u32 %v472, 16
      %v654 = vrot.slane %v652, 7
      %v655 = vshll.u32 %v472, 16
      %v657 = vor.u32 %v654, %v655
      %v658 = vsel %vm567, %v650, %v657
      %v659 = vrot.slane %v654, 4
      %v661 = vshrl.u32 %v473, 16
      %v663 = vrot.slane %v661, 7
      %v664 = vshll.u32 %v473, 16
      %v666 = vor.u32 %v663, %v664
      %v667 = vrot.slane %v663, 4
      %v669 = vshrl.u32 %v474, 16
      %v671 = vrot.slane %v669, 7
      %v672 = vshll.u32 %v474, 16
      %v674 = vor.u32 %v671, %v672
      %v675 = vsel %vm567, %v667, %v674
      %v676 = vrot.slane %v671, 4
      %v678 = vshrl.u32 %v475, 16
      %v680 = vrot.slane %v678, 7
      %v681 = vshll.u32 %v475, 16
      %v683 = vor.u32 %v680, %v681
      %v684 = vrot.slane %v680, 4
      %v686 = vshrl.u32 %v476, 16
      %v688 = vrot.slane %v686, 7
      %v689 = vshll.u32 %v476, 16
      %v691 = vor.u32 %v688, %v689
      %v692 = vsel %vm567, %v684, %v691
      %v693 = vrot.slane %v688, 4
      %v695 = vshrl.u32 %v477, 16
      %v697 = vrot.slane %v695, 7
      %v698 = vshll.u32 %v477, 16
      %v700 = vor.u32 %v697, %v698
      %v701 = vrot.slane %v697, 4
      %v703 = vshrl.u32 %v478, 16
      %v705 = vrot.slane %v703, 7
      %v706 = vshll.u32 %v478, 16
      %v708 = vor.u32 %v705, %v706
      %v709 = vsel %vm567, %v701, %v708
      %v710 = vrot.slane %v705, 4
      %v712 = vshrl.u32 %v479, 16
      %v714 = vrot.slane %v712, 7
      %v715 = vshll.u32 %v479, 16
      %v717 = vor.u32 %v714, %v715
      %v718 = vrot.slane %v714, 4
      %v720 = vshrl.u32 %v480, 16
      %v722 = vrot.slane %v720, 7
      %v723 = vshll.u32 %v480, 16
      %v725 = vor.u32 %v722, %v723
      %v726 = vsel %vm567, %v718, %v725
      %v727 = vrot.slane %v722, 4
      %v729 = vshrl.u32 %v481, 16
      %v731 = vrot.slane %v729, 7
      %v732 = vshll.u32 %v481, 16
      %v734 = vor.u32 %v731, %v732
      %v735 = vrot.slane %v731, 4
      %v737 = vshrl.u32 %v482, 16
      %v739 = vrot.slane %v737, 7
      %v740 = vshll.u32 %v482, 16
      %v742 = vor.u32 %v739, %v740
      %v743 = vsel %vm567, %v735, %v742
      %v744 = vrot.slane %v739, 4
      %v746 = vshrl.u32 %v483, 16
      %v748 = vrot.slane %v746, 7
      %v749 = vshll.u32 %v483, 16
      %v751 = vor.u32 %v748, %v749
      %v752 = vrot.slane %v748, 4
      %v754 = vshrl.u32 %v484, 16
      %v756 = vrot.slane %v754, 7
      %v757 = vshll.u32 %v484, 16
      %v759 = vor.u32 %v756, %v757
      %v760 = vsel %vm567, %v752, %v759
      %v761 = vrot.slane %v756, 4
      %s786 = scalar_lea.vmem [#allocation2], 12
      %v787 = vld [vmem:[%s786] sm:$0xf]
      %v788 = vsel %vm589, %v632, %v787
      %789 = vst [vmem:[%s786] sm:$0xf] %v788
      %790 = vst.msk [vmem:[%s786 + $0x4] sm:$0xf] %vm593, %v641
      %v791 = vld [vmem:[%s786 + $0x8] sm:$0x1]
      %v792 = vsel %vm503, %v642, %v791
      %793 = vst [vmem:[%s786 + $0x8] sm:$0x1] %v792
      %v794 = vld [vmem:[%s786 + $0xc] sm:$0xf]
      %v795 = vsel %vm589, %v649, %v794
      %796 = vst [vmem:[%s786 + $0xc] sm:$0xf] %v795
      %797 = vst.msk [vmem:[%s786 + $0x10] sm:$0xf] %vm593, %v658
      %v798 = vld [vmem:[%s786 + $0x14] sm:$0x1]
      %v799 = vsel %vm503, %v659, %v798
      %800 = vst [vmem:[%s786 + $0x14] sm:$0x1] %v799
      %v801 = vld [vmem:[%s786 + $0x18] sm:$0xf]
      %v802 = vsel %vm589, %v666, %v801
      %803 = vst [vmem:[%s786 + $0x18] sm:$0xf] %v802
      %804 = vst.msk [vmem:[%s786 + $0x1c] sm:$0xf] %vm593, %v675
      %v805 = vld [vmem:[%s786 + $0x20] sm:$0x1]
      %v806 = vsel %vm503, %v676, %v805
      %807 = vst [vmem:[%s786 + $0x20] sm:$0x1] %v806
      %v808 = vld [vmem:[%s786 + $0x24] sm:$0xf]
      %v809 = vsel %vm589, %v683, %v808
      %810 = vst [vmem:[%s786 + $0x24] sm:$0xf] %v809
      %811 = vst.msk [vmem:[%s786 + $0x28] sm:$0xf] %vm593, %v692
      %v812 = vld [vmem:[%s786 + $0x2c] sm:$0x1]
      %v813 = vsel %vm503, %v693, %v812
      %814 = vst [vmem:[%s786 + $0x2c] sm:$0x1] %v813
      %v815 = vld [vmem:[%s786 + $0x30] sm:$0xf]
      %v816 = vsel %vm589, %v700, %v815
      %817 = vst [vmem:[%s786 + $0x30] sm:$0xf] %v816
      %818 = vst.msk [vmem:[%s786 + $0x34] sm:$0xf] %vm593, %v709
      %v819 = vld [vmem:[%s786 + $0x38] sm:$0x1]
      %v820 = vsel %vm503, %v710, %v819
      %821 = vst [vmem:[%s786 + $0x38] sm:$0x1] %v820
      %v822 = vld [vmem:[%s786 + $0x3c] sm:$0xf]
      %v823 = vsel %vm589, %v717, %v822
      %824 = vst [vmem:[%s786 + $0x3c] sm:$0xf] %v823
      %825 = vst.msk [vmem:[%s786 + $0x40] sm:$0xf] %vm593, %v726
      %v826 = vld [vmem:[%s786 + $0x44] sm:$0x1]
      %v827 = vsel %vm503, %v727, %v826
      %828 = vst [vmem:[%s786 + $0x44] sm:$0x1] %v827
      %v829 = vld [vmem:[%s786 + $0x48] sm:$0xf]
      %v830 = vsel %vm589, %v734, %v829
      %831 = vst [vmem:[%s786 + $0x48] sm:$0xf] %v830
      %832 = vst.msk [vmem:[%s786 + $0x4c] sm:$0xf] %vm593, %v743
      %v833 = vld [vmem:[%s786 + $0x50] sm:$0x1]
      %v834 = vsel %vm503, %v744, %v833
      %835 = vst [vmem:[%s786 + $0x50] sm:$0x1] %v834
      %v836 = vld [vmem:[%s786 + $0x54] sm:$0xf]
      %v837 = vsel %vm589, %v751, %v836
      %838 = vst [vmem:[%s786 + $0x54] sm:$0xf] %v837
      %839 = vst.msk [vmem:[%s786 + $0x58] sm:$0xf] %vm593, %v760
      %v840 = vld [vmem:[%s786 + $0x5c] sm:$0x1]
      %v841 = vsel %vm503, %v761, %v840
      %842 = vst [vmem:[%s786 + $0x5c] sm:$0x1] %v841
      %v843 = vld [vmem:[#allocation2] sm:$0xf]
      %v844 = vld [vmem:[#allocation2 + $0x4] sm:$0xf]
      %v845 = vld [vmem:[#allocation2 + $0xc] sm:$0xf]
      %v846 = vld [vmem:[#allocation2 + $0x10] sm:$0xf]
      %v847 = vld [vmem:[#allocation2 + $0x18] sm:$0xf]
      %v848 = vld [vmem:[#allocation2 + $0x1c] sm:$0xf]
      %v849 = vld [vmem:[#allocation2 + $0x24] sm:$0xf]
      %v850 = vld [vmem:[#allocation2 + $0x28] sm:$0xf]
      %v851 = vld [vmem:[#allocation2 + $0x30] sm:$0xf]
      %v852 = vld [vmem:[#allocation2 + $0x34] sm:$0xf]
      %v853 = vld [vmem:[#allocation2 + $0x3c] sm:$0xf]
      %v854 = vld [vmem:[#allocation2 + $0x40] sm:$0xf]
      %v855 = vld [vmem:[#allocation2 + $0x48] sm:$0xf]
      %v856 = vld [vmem:[#allocation2 + $0x4c] sm:$0xf]
      %v857 = vld [vmem:[#allocation2 + $0x54] sm:$0xf]
      %v858 = vld [vmem:[#allocation2 + $0x58] sm:$0xf]
      %v859 = vld [vmem:[%s5] sm:$0x3]
      %v876 = vunpack.c.l.b16 %v843
      %v877 = vunpack.c.l.b16 %v844
      %v878 = vunpack.c.l.b16 %v845
      %v879 = vunpack.c.l.b16 %v846
      %v880 = vunpack.c.l.b16 %v847
      %v881 = vunpack.c.l.b16 %v848
      %v882 = vunpack.c.l.b16 %v849
      %v883 = vunpack.c.l.b16 %v850
      %v884 = vunpack.c.l.b16 %v851
      %v885 = vunpack.c.l.b16 %v852
      %v886 = vunpack.c.l.b16 %v853
      %v887 = vunpack.c.l.b16 %v854
      %v888 = vunpack.c.l.b16 %v855
      %v889 = vunpack.c.l.b16 %v856
      %v890 = vunpack.c.l.b16 %v857
      %v891 = vunpack.c.l.b16 %v858
      %v892 = vpack.c.b16 %v877, %v876
      %v893 = vpack.c.b16 %v879, %v878
      %v894 = vpack.c.b16 %v881, %v880
      %v895 = vpack.c.b16 %v883, %v882
      %v896 = vpack.c.b16 %v885, %v884
      %v897 = vpack.c.b16 %v887, %v886
      %v898 = vpack.c.b16 %v889, %v888
      %v899 = vpack.c.b16 %v891, %v890
      %vm900 = vcmask 31744
      %v902 = vsel %vm900, %v892, 0
      %v905 = vsel %vm900, %v893, 0
      %v908 = vsel %vm900, %v894, 0
      %v911 = vsel %vm900, %v895, 0
      %v914 = vsel %vm900, %v896, 0
      %v917 = vsel %vm900, %v897, 0
      %v920 = vsel %vm900, %v898, 0
      %v923 = vsel %vm900, %v899, 0
      %vm925 = vcmask 1041408
      %v927 = vsel %vm925, %v859, 0
      %929 = vmatprep.subr.bf16.mxu0 0
      %930 = vmatpush1.bf16.msra.mxu0 0
      %931 = vmatprep.subr.bf16.mxu0 0
      %932 = vmatpush1.bf16.msra.mxu0 0
      %933 = vmatprep.subr.bf16.mxu0 0
      %934 = vmatpush1.bf16.msra.mxu0 0
      %935 = vmatprep.subr.bf16.mxu0 0
      %936 = vmatpush1.bf16.msra.mxu0 0
      %937 = vmatprep.subr.bf16.mxu0 0
      %938 = vmatpush1.bf16.msra.mxu0 0
      %939 = vmatprep.subr.bf16.mxu0 0
      %940 = vmatpush1.bf16.msra.mxu0 0
      %941 = vmatprep.subr.bf16.mxu0 0
      %942 = vmatpush1.bf16.msra.mxu0 0
      %943 = vmatprep.subr.bf16.mxu0 0
      %944 = vmatpush1.bf16.msra.mxu0 %v927
      %945 = vmatprep.subr.bf16.mxu0 0
      %946 = vmatpush2.bf16.msra.mxu0 0
      %947 = vmatprep.subr.bf16.mxu0 0
      %948 = vmatpush2.bf16.msra.mxu0 0
      %949 = vmatprep.subr.bf16.mxu0 0
      %950 = vmatpush2.bf16.msra.mxu0 0
      %951 = vmatprep.subr.bf16.mxu0 0
      %952 = vmatpush2.bf16.msra.mxu0 0
      %953 = vmatprep.subr.bf16.mxu0 0
      %954 = vmatpush2.bf16.msra.mxu0 0
      %955 = vmatprep.subr.bf16.mxu0 0
      %956 = vmatpush2.bf16.msra.mxu0 0
      %957 = vmatprep.subr.bf16.mxu0 0
      %958 = vmatpush2.bf16.msra.mxu0 0
      %959 = vmatprep.subr.bf16.mxu0 0
      %960 = vmatpush2.bf16.msra.mxu0 0
      %961 = vmatprep.mubr.bf16.mxu0 0
      %962 = vmatmul.mubr.bf16.gmra.mxu0 %v902
      %v963 = vpop.f32.mrf.mxu0
      %v964 = vadd.f32 0.0, %v963
      %v965 = vpop.f32.mrf.mxu0
      %v966 = vpop.f32.mrf.mxu0
      %v967 = vadd.f32 0.0, %v966
      %v968 = vpop.f32.mrf.mxu0
      %969 = vmatprep.mubr.bf16.mxu0 0
      %970 = vmatmul.mubr.bf16.gmra.mxu0 %v905
      %v971 = vpop.f32.mrf.mxu0
      %v972 = vadd.f32 0.0, %v971
      %v973 = vpop.f32.mrf.mxu0
      %v974 = vpop.f32.mrf.mxu0
      %v975 = vadd.f32 0.0, %v974
      %v976 = vpop.f32.mrf.mxu0
      %977 = vmatprep.mubr.bf16.mxu0 0
      %978 = vmatmul.mubr.bf16.gmra.mxu0 %v908
      %v979 = vpop.f32.mrf.mxu0
      %v980 = vadd.f32 0.0, %v979
      %v981 = vpop.f32.mrf.mxu0
      %v982 = vpop.f32.mrf.mxu0
      %v983 = vadd.f32 0.0, %v982
      %v984 = vpop.f32.mrf.mxu0
      %985 = vmatprep.mubr.bf16.mxu0 0
      %986 = vmatmul.mubr.bf16.gmra.mxu0 %v911
      %v987 = vpop.f32.mrf.mxu0
      %v988 = vadd.f32 0.0, %v987
      %v989 = vpop.f32.mrf.mxu0
      %v990 = vpop.f32.mrf.mxu0
      %v991 = vadd.f32 0.0, %v990
      %v992 = vpop.f32.mrf.mxu0
      %993 = vmatprep.mubr.bf16.mxu0 0
      %994 = vmatmul.mubr.bf16.gmra.mxu0 %v914
      %v995 = vpop.f32.mrf.mxu0
      %v996 = vadd.f32 0.0, %v995
      %v997 = vpop.f32.mrf.mxu0
      %v998 = vpop.f32.mrf.mxu0
      %v999 = vadd.f32 0.0, %v998
      %v1000 = vpop.f32.mrf.mxu0
      %1001 = vmatprep.mubr.bf16.mxu0 0
      %1002 = vmatmul.mubr.bf16.gmra.mxu0 %v917
      %v1003 = vpop.f32.mrf.mxu0
      %v1004 = vadd.f32 0.0, %v1003
      %v1005 = vpop.f32.mrf.mxu0
      %v1006 = vpop.f32.mrf.mxu0
      %v1007 = vadd.f32 0.0, %v1006
      %v1008 = vpop.f32.mrf.mxu0
      %1009 = vmatprep.mubr.bf16.mxu0 0
      %1010 = vmatmul.mubr.bf16.gmra.mxu0 %v920
      %v1011 = vpop.f32.mrf.mxu0
      %v1012 = vadd.f32 0.0, %v1011
      %v1013 = vpop.f32.mrf.mxu0
      %v1014 = vpop.f32.mrf.mxu0
      %v1015 = vadd.f32 0.0, %v1014
      %v1016 = vpop.f32.mrf.mxu0
      %1017 = vmatprep.mubr.bf16.mxu0 0
      %1018 = vmatmul.mubr.bf16.gmra.mxu0 %v923
      %v1019 = vpop.f32.mrf.mxu0
      %v1020 = vadd.f32 0.0, %v1019
      %v1021 = vpop.f32.mrf.mxu0
      %v1022 = vpop.f32.mrf.mxu0
      %v1023 = vadd.f32 0.0, %v1022
      %v1024 = vpop.f32.mrf.mxu0
      %1025 = vdwg.mxu0
      %1026 = vst.msk [vmem:[#allocation3] sm:$0xff] %vm900, %v964
      %1027 = vst.msk [vmem:[#allocation3 + $0x8] sm:$0xff] %vm900, %v967
      %1028 = vst.msk [vmem:[#allocation3 + $0x10] sm:$0xff] %vm900, %v972
      %1029 = vst.msk [vmem:[#allocation3 + $0x18] sm:$0xff] %vm900, %v975
      %1030 = vst.msk [vmem:[#allocation3 + $0x20] sm:$0xff] %vm900, %v980
      %1031 = vst.msk [vmem:[#allocation3 + $0x28] sm:$0xff] %vm900, %v983
      %1032 = vst.msk [vmem:[#allocation3 + $0x30] sm:$0xff] %vm900, %v988
      %1033 = vst.msk [vmem:[#allocation3 + $0x38] sm:$0xff] %vm900, %v991
      %1034 = vst.msk [vmem:[#allocation3 + $0x40] sm:$0xff] %vm900, %v996
      %1035 = vst.msk [vmem:[#allocation3 + $0x48] sm:$0xff] %vm900, %v999
      %1036 = vst.msk [vmem:[#allocation3 + $0x50] sm:$0xff] %vm900, %v1004
      %1037 = vst.msk [vmem:[#allocation3 + $0x58] sm:$0xff] %vm900, %v1007
      %1038 = vst.msk [vmem:[#allocation3 + $0x60] sm:$0xff] %vm900, %v1012
      %1039 = vst.msk [vmem:[#allocation3 + $0x68] sm:$0xff] %vm900, %v1015
      %1040 = vst.msk [vmem:[#allocation3 + $0x70] sm:$0xff] %vm900, %v1020
      %1041 = vst.msk [vmem:[#allocation3 + $0x78] sm:$0xff] %vm900, %v1023
      %v1042 = vld [vmem:[#allocation2] sm:$0xf]
      %v1043 = vld [vmem:[#allocation2 + $0x4] sm:$0xf]
      %v1044 = vld [vmem:[#allocation2 + $0x8] sm:$0x1]
      %v1045 = vld [vmem:[#allocation2 + $0xc] sm:$0xf]
      %v1046 = vld [vmem:[#allocation2 + $0x10] sm:$0xf]
      %v1047 = vld [vmem:[#allocation2 + $0x14] sm:$0x1]
      %v1048 = vld [vmem:[#allocation2 + $0x18] sm:$0xf]
      %v1049 = vld [vmem:[#allocation2 + $0x1c] sm:$0xf]
      %v1050 = vld [vmem:[#allocation2 + $0x20] sm:$0x1]
      %v1051 = vld [vmem:[#allocation2 + $0x24] sm:$0xf]
      %v1052 = vld [vmem:[#allocation2 + $0x28] sm:$0xf]
      %v1053 = vld [vmem:[#allocation2 + $0x2c] sm:$0x1]
      %v1054 = vld [vmem:[#allocation2 + $0x30] sm:$0xf]
      %v1055 = vld [vmem:[#allocation2 + $0x34] sm:$0xf]
      %v1056 = vld [vmem:[#allocation2 + $0x38] sm:$0x1]
      %v1057 = vld [vmem:[#allocation2 + $0x3c] sm:$0xf]
      %v1058 = vld [vmem:[#allocation2 + $0x40] sm:$0xf]
      %v1059 = vld [vmem:[#allocation2 + $0x44] sm:$0x1]
      %v1060 = vld [vmem:[#allocation2 + $0x48] sm:$0xf]
      %v1061 = vld [vmem:[#allocation2 + $0x4c] sm:$0xf]
      %v1062 = vld [vmem:[#allocation2 + $0x50] sm:$0x1]
      %v1063 = vld [vmem:[#allocation2 + $0x54] sm:$0xf]
      %v1064 = vld [vmem:[#allocation2 + $0x58] sm:$0xf]
      %v1065 = vld [vmem:[#allocation2 + $0x5c] sm:$0x1]
      %vm1066 = vsmask.f32 3328
      %vm1067 = vsmask.f32 7440
      %vm1068 = vmor %vm1066, %vm1067
      %v1070 = vshrl.u32 %v1042, 16
      %v1072 = vrot.slane %v1070, 4
      %v1073 = vshll.u32 %v1042, 16
      %v1075 = vrot.slane %v1073, 5
      %v1076 = vor.u32 %v1072, %v1075
      %v1077 = vrot.slane %v1076, 4
      %v1079 = vshll.u32 %v1043, 16
      %v1081 = vrot.slane %v1079, 5
      %v1082 = vsel %vm1068, %v1077, %v1081
      %v1083 = vshrl.u32 %v1043, 16
      %v1085 = vrot.slane %v1083, 4
      %v1086 = vor.u32 %v1085, %v1081
      %v1087 = vrot.slane %v1086, 4
      %v1089 = vshll.u32 %v1044, 16
      %v1091 = vrot.slane %v1089, 5
      %v1092 = vsel %vm1068, %v1087, %v1091
      %v1094 = vshrl.u32 %v1045, 16
      %v1096 = vrot.slane %v1094, 4
      %v1097 = vshll.u32 %v1045, 16
      %v1099 = vrot.slane %v1097, 5
      %v1100 = vor.u32 %v1096, %v1099
      %v1101 = vrot.slane %v1100, 4
      %v1103 = vshll.u32 %v1046, 16
      %v1105 = vrot.slane %v1103, 5
      %v1106 = vsel %vm1068, %v1101, %v1105
      %v1107 = vshrl.u32 %v1046, 16
      %v1109 = vrot.slane %v1107, 4
      %v1110 = vor.u32 %v1109, %v1105
      %v1111 = vrot.slane %v1110, 4
      %v1113 = vshll.u32 %v1047, 16
      %v1115 = vrot.slane %v1113, 5
      %v1116 = vsel %vm1068, %v1111, %v1115
      %v1118 = vshrl.u32 %v1048, 16
      %v1120 = vrot.slane %v1118, 4
      %v1121 = vshll.u32 %v1048, 16
      %v1123 = vrot.slane %v1121, 5
      %v1124 = vor.u32 %v1120, %v1123
      %v1125 = vrot.slane %v1124, 4
      %v1127 = vshll.u32 %v1049, 16
      %v1129 = vrot.slane %v1127, 5
      %v1130 = vsel %vm1068, %v1125, %v1129
      %v1131 = vshrl.u32 %v1049, 16
      %v1133 = vrot.slane %v1131, 4
      %v1134 = vor.u32 %v1133, %v1129
      %v1135 = vrot.slane %v1134, 4
      %v1137 = vshll.u32 %v1050, 16
      %v1139 = vrot.slane %v1137, 5
      %v1140 = vsel %vm1068, %v1135, %v1139
      %v1142 = vshrl.u32 %v1051, 16
      %v1144 = vrot.slane %v1142, 4
      %v1145 = vshll.u32 %v1051, 16
      %v1147 = vrot.slane %v1145, 5
      %v1148 = vor.u32 %v1144, %v1147
      %v1149 = vrot.slane %v1148, 4
      %v1151 = vshll.u32 %v1052, 16
      %v1153 = vrot.slane %v1151, 5
      %v1154 = vsel %vm1068, %v1149, %v1153
      %v1155 = vshrl.u32 %v1052, 16
      %v1157 = vrot.slane %v1155, 4
      %v1158 = vor.u32 %v1157, %v1153
      %v1159 = vrot.slane %v1158, 4
      %v1161 = vshll.u32 %v1053, 16
      %v1163 = vrot.slane %v1161, 5
      %v1164 = vsel %vm1068, %v1159, %v1163
      %v1166 = vshrl.u32 %v1054, 16
      %v1168 = vrot.slane %v1166, 4
      %v1169 = vshll.u32 %v1054, 16
      %v1171 = vrot.slane %v1169, 5
      %v1172 = vor.u32 %v1168, %v1171
      %v1173 = vrot.slane %v1172, 4
      %v1175 = vshll.u32 %v1055, 16
      %v1177 = vrot.slane %v1175, 5
      %v1178 = vsel %vm1068, %v1173, %v1177
      %v1179 = vshrl.u32 %v1055, 16
      %v1181 = vrot.slane %v1179, 4
      %v1182 = vor.u32 %v1181, %v1177
      %v1183 = vrot.slane %v1182, 4
      %v1185 = vshll.u32 %v1056, 16
      %v1187 = vrot.slane %v1185, 5
      %v1188 = vsel %vm1068, %v1183, %v1187
      %v1190 = vshrl.u32 %v1057, 16
      %v1192 = vrot.slane %v1190, 4
      %v1193 = vshll.u32 %v1057, 16
      %v1195 = vrot.slane %v1193, 5
      %v1196 = vor.u32 %v1192, %v1195
      %v1197 = vrot.slane %v1196, 4
      %v1199 = vshll.u32 %v1058, 16
      %v1201 = vrot.slane %v1199, 5
      %v1202 = vsel %vm1068, %v1197, %v1201
      %v1203 = vshrl.u32 %v1058, 16
      %v1205 = vrot.slane %v1203, 4
      %v1206 = vor.u32 %v1205, %v1201
      %v1207 = vrot.slane %v1206, 4
      %v1209 = vshll.u32 %v1059, 16
      %v1211 = vrot.slane %v1209, 5
      %v1212 = vsel %vm1068, %v1207, %v1211
      %v1214 = vshrl.u32 %v1060, 16
      %v1216 = vrot.slane %v1214, 4
      %v1217 = vshll.u32 %v1060, 16
      %v1219 = vrot.slane %v1217, 5
      %v1220 = vor.u32 %v1216, %v1219
      %v1221 = vrot.slane %v1220, 4
      %v1223 = vshll.u32 %v1061, 16
      %v1225 = vrot.slane %v1223, 5
      %v1226 = vsel %vm1068, %v1221, %v1225
      %v1227 = vshrl.u32 %v1061, 16
      %v1229 = vrot.slane %v1227, 4
      %v1230 = vor.u32 %v1229, %v1225
      %v1231 = vrot.slane %v1230, 4
      %v1233 = vshll.u32 %v1062, 16
      %v1235 = vrot.slane %v1233, 5
      %v1236 = vsel %vm1068, %v1231, %v1235
      %v1238 = vshrl.u32 %v1063, 16
      %v1240 = vrot.slane %v1238, 4
      %v1241 = vshll.u32 %v1063, 16
      %v1243 = vrot.slane %v1241, 5
      %v1244 = vor.u32 %v1240, %v1243
      %v1245 = vrot.slane %v1244, 4
      %v1247 = vshll.u32 %v1064, 16
      %v1249 = vrot.slane %v1247, 5
      %v1250 = vsel %vm1068, %v1245, %v1249
      %v1251 = vshrl.u32 %v1064, 16
      %v1253 = vrot.slane %v1251, 4
      %v1254 = vor.u32 %v1253, %v1249
      %v1255 = vrot.slane %v1254, 4
      %v1257 = vshll.u32 %v1065, 16
      %v1259 = vrot.slane %v1257, 5
      %v1260 = vsel %vm1068, %v1255, %v1259
      %s1261 = scalar_lea.vmem %s5, 2
      %v1262 = vld [vmem:[%s1261] sm:$0x3]
      %v1263 = vunpack.c.l.b16 %v1082
      %v1264 = vunpack.c.l.b16 %v1092
      %v1265 = vunpack.c.l.b16 %v1106
      %v1266 = vunpack.c.l.b16 %v1116
      %v1267 = vunpack.c.l.b16 %v1130
      %v1268 = vunpack.c.l.b16 %v1140
      %v1269 = vunpack.c.l.b16 %v1154
      %v1270 = vunpack.c.l.b16 %v1164
      %v1271 = vunpack.c.l.b16 %v1178
      %v1272 = vunpack.c.l.b16 %v1188
      %v1273 = vunpack.c.l.b16 %v1202
      %v1274 = vunpack.c.l.b16 %v1212
      %v1275 = vunpack.c.l.b16 %v1226
      %v1276 = vunpack.c.l.b16 %v1236
      %v1277 = vunpack.c.l.b16 %v1250
      %v1278 = vunpack.c.l.b16 %v1260
      %v1279 = vpack.c.b16 %v1264, %v1263
      %v1280 = vpack.c.b16 %v1266, %v1265
      %v1281 = vpack.c.b16 %v1268, %v1267
      %v1282 = vpack.c.b16 %v1270, %v1269
      %v1283 = vpack.c.b16 %v1272, %v1271
      %v1284 = vpack.c.b16 %v1274, %v1273
      %v1285 = vpack.c.b16 %v1276, %v1275
      %v1286 = vpack.c.b16 %v1278, %v1277
      %v1288 = vsel %vm900, %v1279, 0
      %v1291 = vsel %vm900, %v1280, 0
      %v1294 = vsel %vm900, %v1281, 0
      %v1297 = vsel %vm900, %v1282, 0
      %v1300 = vsel %vm900, %v1283, 0
      %v1303 = vsel %vm900, %v1284, 0
      %v1306 = vsel %vm900, %v1285, 0
      %v1309 = vsel %vm900, %v1286, 0
      %v1312 = vsel %vm925, %v1262, 0
      %1314 = vmatprep.subr.bf16.mxu0 0
      %1315 = vmatpush1.bf16.msra.mxu0 0
      %1316 = vmatprep.subr.bf16.mxu0 0
      %1317 = vmatpush1.bf16.msra.mxu0 0
      %1318 = vmatprep.subr.bf16.mxu0 0
      %1319 = vmatpush1.bf16.msra.mxu0 0
      %1320 = vmatprep.subr.bf16.mxu0 0
      %1321 = vmatpush1.bf16.msra.mxu0 0
      %1322 = vmatprep.subr.bf16.mxu0 0
      %1323 = vmatpush1.bf16.msra.mxu0 0
      %1324 = vmatprep.subr.bf16.mxu0 0
      %1325 = vmatpush1.bf16.msra.mxu0 0
      %1326 = vmatprep.subr.bf16.mxu0 0
      %1327 = vmatpush1.bf16.msra.mxu0 0
      %1328 = vmatprep.subr.bf16.mxu0 0
      %1329 = vmatpush1.bf16.msra.mxu0 %v1312
      %1330 = vmatprep.subr.bf16.mxu0 0
      %1331 = vmatpush2.bf16.msra.mxu0 0
      %1332 = vmatprep.subr.bf16.mxu0 0
      %1333 = vmatpush2.bf16.msra.mxu0 0
      %1334 = vmatprep.subr.bf16.mxu0 0
      %1335 = vmatpush2.bf16.msra.mxu0 0
      %1336 = vmatprep.subr.bf16.mxu0 0
      %1337 = vmatpush2.bf16.msra.mxu0 0
      %1338 = vmatprep.subr.bf16.mxu0 0
      %1339 = vmatpush2.bf16.msra.mxu0 0
      %1340 = vmatprep.subr.bf16.mxu0 0
      %1341 = vmatpush2.bf16.msra.mxu0 0
      %1342 = vmatprep.subr.bf16.mxu0 0
      %1343 = vmatpush2.bf16.msra.mxu0 0
      %1344 = vmatprep.subr.bf16.mxu0 0
      %1345 = vmatpush2.bf16.msra.mxu0 0
      %1346 = vmatprep.mubr.bf16.mxu0 0
      %1347 = vmatmul.mubr.bf16.gmra.mxu0 %v1288
      %v1348 = vpop.f32.mrf.mxu0
      %v1349 = vadd.f32 0.0, %v1348
      %v1350 = vpop.f32.mrf.mxu0
      %v1351 = vpop.f32.mrf.mxu0
      %v1352 = vadd.f32 0.0, %v1351
      %v1353 = vpop.f32.mrf.mxu0
      %1354 = vmatprep.mubr.bf16.mxu0 0
      %1355 = vmatmul.mubr.bf16.gmra.mxu0 %v1291
      %v1356 = vpop.f32.mrf.mxu0
      %v1357 = vadd.f32 0.0, %v1356
      %v1358 = vpop.f32.mrf.mxu0
      %v1359 = vpop.f32.mrf.mxu0
      %v1360 = vadd.f32 0.0, %v1359
      %v1361 = vpop.f32.mrf.mxu0
      %1362 = vmatprep.mubr.bf16.mxu0 0
      %1363 = vmatmul.mubr.bf16.gmra.mxu0 %v1294
      %v1364 = vpop.f32.mrf.mxu0
      %v1365 = vadd.f32 0.0, %v1364
      %v1366 = vpop.f32.mrf.mxu0
      %v1367 = vpop.f32.mrf.mxu0
      %v1368 = vadd.f32 0.0, %v1367
      %v1369 = vpop.f32.mrf.mxu0
      %1370 = vmatprep.mubr.bf16.mxu0 0
      %1371 = vmatmul.mubr.bf16.gmra.mxu0 %v1297
      %v1372 = vpop.f32.mrf.mxu0
      %v1373 = vadd.f32 0.0, %v1372
      %v1374 = vpop.f32.mrf.mxu0
      %v1375 = vpop.f32.mrf.mxu0
      %v1376 = vadd.f32 0.0, %v1375
      %v1377 = vpop.f32.mrf.mxu0
      %1378 = vmatprep.mubr.bf16.mxu0 0
      %1379 = vmatmul.mubr.bf16.gmra.mxu0 %v1300
      %v1380 = vpop.f32.mrf.mxu0
      %v1381 = vadd.f32 0.0, %v1380
      %v1382 = vpop.f32.mrf.mxu0
      %v1383 = vpop.f32.mrf.mxu0
      %v1384 = vadd.f32 0.0, %v1383
      %v1385 = vpop.f32.mrf.mxu0
      %1386 = vmatprep.mubr.bf16.mxu0 0
      %1387 = vmatmul.mubr.bf16.gmra.mxu0 %v1303
      %v1388 = vpop.f32.mrf.mxu0
      %v1389 = vadd.f32 0.0, %v1388
      %v1390 = vpop.f32.mrf.mxu0
      %v1391 = vpop.f32.mrf.mxu0
      %v1392 = vadd.f32 0.0, %v1391
      %v1393 = vpop.f32.mrf.mxu0
      %1394 = vmatprep.mubr.bf16.mxu0 0
      %1395 = vmatmul.mubr.bf16.gmra.mxu0 %v1306
      %v1396 = vpop.f32.mrf.mxu0
      %v1397 = vadd.f32 0.0, %v1396
      %v1398 = vpop.f32.mrf.mxu0
      %v1399 = vpop.f32.mrf.mxu0
      %v1400 = vadd.f32 0.0, %v1399
      %v1401 = vpop.f32.mrf.mxu0
      %1402 = vmatprep.mubr.bf16.mxu0 0
      %1403 = vmatmul.mubr.bf16.gmra.mxu0 %v1309
      %v1404 = vpop.f32.mrf.mxu0
      %v1405 = vadd.f32 0.0, %v1404
      %v1406 = vpop.f32.mrf.mxu0
      %v1407 = vpop.f32.mrf.mxu0
      %v1408 = vadd.f32 0.0, %v1407
      %v1409 = vpop.f32.mrf.mxu0
      %1410 = vdwg.mxu0
      %v1411 = vld [vmem:[#allocation3] sm:$0xff]
      %v1412 = vld [vmem:[#allocation3 + $0x8] sm:$0xff]
      %v1413 = vld [vmem:[#allocation3 + $0x10] sm:$0xff]
      %v1414 = vld [vmem:[#allocation3 + $0x18] sm:$0xff]
      %v1415 = vld [vmem:[#allocation3 + $0x20] sm:$0xff]
      %v1416 = vld [vmem:[#allocation3 + $0x28] sm:$0xff]
      %v1417 = vld [vmem:[#allocation3 + $0x30] sm:$0xff]
      %v1418 = vld [vmem:[#allocation3 + $0x38] sm:$0xff]
      %v1419 = vld [vmem:[#allocation3 + $0x40] sm:$0xff]
      %v1420 = vld [vmem:[#allocation3 + $0x48] sm:$0xff]
      %v1421 = vld [vmem:[#allocation3 + $0x50] sm:$0xff]
      %v1422 = vld [vmem:[#allocation3 + $0x58] sm:$0xff]
      %v1423 = vld [vmem:[#allocation3 + $0x60] sm:$0xff]
      %v1424 = vld [vmem:[#allocation3 + $0x68] sm:$0xff]
      %v1425 = vld [vmem:[#allocation3 + $0x70] sm:$0xff]
      %v1426 = vld [vmem:[#allocation3 + $0x78] sm:$0xff]
      %v1427 = vadd.f32 %v1411, %v1349
      %v1428 = vadd.f32 %v1412, %v1352
      %v1429 = vadd.f32 %v1413, %v1357
      %v1430 = vadd.f32 %v1414, %v1360
      %v1431 = vadd.f32 %v1415, %v1365
      %v1432 = vadd.f32 %v1416, %v1368
      %v1433 = vadd.f32 %v1417, %v1373
      %v1434 = vadd.f32 %v1418, %v1376
      %v1435 = vadd.f32 %v1419, %v1381
      %v1436 = vadd.f32 %v1420, %v1384
      %v1437 = vadd.f32 %v1421, %v1389
      %v1438 = vadd.f32 %v1422, %v1392
      %v1439 = vadd.f32 %v1423, %v1397
      %v1440 = vadd.f32 %v1424, %v1400
      %v1441 = vadd.f32 %v1425, %v1405
      %v1442 = vadd.f32 %v1426, %v1408
      %1443 = vst.msk [vmem:[#allocation3] sm:$0xff] %vm900, %v1427
      %1444 = vst.msk [vmem:[#allocation3 + $0x8] sm:$0xff] %vm900, %v1428
      %1445 = vst.msk [vmem:[#allocation3 + $0x10] sm:$0xff] %vm900, %v1429
      %1446 = vst.msk [vmem:[#allocation3 + $0x18] sm:$0xff] %vm900, %v1430
      %1447 = vst.msk [vmem:[#allocation3 + $0x20] sm:$0xff] %vm900, %v1431
      %1448 = vst.msk [vmem:[#allocation3 + $0x28] sm:$0xff] %vm900, %v1432
      %1449 = vst.msk [vmem:[#allocation3 + $0x30] sm:$0xff] %vm900, %v1433
      %1450 = vst.msk [vmem:[#allocation3 + $0x38] sm:$0xff] %vm900, %v1434
      %1451 = vst.msk [vmem:[#allocation3 + $0x40] sm:$0xff] %vm900, %v1435
      %1452 = vst.msk [vmem:[#allocation3 + $0x48] sm:$0xff] %vm900, %v1436
      %1453 = vst.msk [vmem:[#allocation3 + $0x50] sm:$0xff] %vm900, %v1437
      %1454 = vst.msk [vmem:[#allocation3 + $0x58] sm:$0xff] %vm900, %v1438
      %1455 = vst.msk [vmem:[#allocation3 + $0x60] sm:$0xff] %vm900, %v1439
      %1456 = vst.msk [vmem:[#allocation3 + $0x68] sm:$0xff] %vm900, %v1440
      %1457 = vst.msk [vmem:[#allocation3 + $0x70] sm:$0xff] %vm900, %v1441
      %1458 = vst.msk [vmem:[#allocation3 + $0x78] sm:$0xff] %vm900, %v1442
      %v1459 = vld [vmem:[#allocation2] sm:$0xe]
      %v1460 = vld [vmem:[#allocation2 + $0x4] sm:$0xf]
      %v1461 = vld [vmem:[#allocation2 + $0x8] sm:$0x1]
      %v1462 = vld [vmem:[#allocation2 + $0xc] sm:$0xe]
      %v1463 = vld [vmem:[#allocation2 + $0x10] sm:$0xf]
      %v1464 = vld [vmem:[#allocation2 + $0x14] sm:$0x1]
      %v1465 = vld [vmem:[#allocation2 + $0x18] sm:$0xe]
      %v1466 = vld [vmem:[#allocation2 + $0x1c] sm:$0xf]
      %v1467 = vld [vmem:[#allocation2 + $0x20] sm:$0x1]
      %v1468 = vld [vmem:[#allocation2 + $0x24] sm:$0xe]
      %v1469 = vld [vmem:[#allocation2 + $0x28] sm:$0xf]
      %v1470 = vld [vmem:[#allocation2 + $0x2c] sm:$0x1]
      %v1471 = vld [vmem:[#allocation2 + $0x30] sm:$0xe]
      %v1472 = vld [vmem:[#allocation2 + $0x34] sm:$0xf]
      %v1473 = vld [vmem:[#allocation2 + $0x38] sm:$0x1]
      %v1474 = vld [vmem:[#allocation2 + $0x3c] sm:$0xe]
      %v1475 = vld [vmem:[#allocation2 + $0x40] sm:$0xf]
      %v1476 = vld [vmem:[#allocation2 + $0x44] sm:$0x1]
      %v1477 = vld [vmem:[#allocation2 + $0x48] sm:$0xe]
      %v1478 = vld [vmem:[#allocation2 + $0x4c] sm:$0xf]
      %v1479 = vld [vmem:[#allocation2 + $0x50] sm:$0x1]
      %v1480 = vld [vmem:[#allocation2 + $0x54] sm:$0xe]
      %v1481 = vld [vmem:[#allocation2 + $0x58] sm:$0xf]
      %v1482 = vld [vmem:[#allocation2 + $0x5c] sm:$0x1]
      %vm1507 = vcmask 1042432
      %vm1508 = vcmask 1046532
      %vm1509 = vmor %vm1507, %vm1508
      %v1510 = vrot.slane %v1459, 5
      %v1511 = vrot.slane %v1510, 4
      %v1512 = vrot.slane %v1460, 5
      %v1513 = vsel %vm1509, %v1511, %v1512
      %v1514 = vrot.slane %v1512, 4
      %v1515 = vrot.slane %v1461, 5
      %v1516 = vsel %vm1509, %v1514, %v1515
      %v1517 = vrot.slane %v1462, 5
      %v1518 = vrot.slane %v1517, 4
      %v1519 = vrot.slane %v1463, 5
      %v1520 = vsel %vm1509, %v1518, %v1519
      %v1521 = vrot.slane %v1519, 4
      %v1522 = vrot.slane %v1464, 5
      %v1523 = vsel %vm1509, %v1521, %v1522
      %v1524 = vrot.slane %v1465, 5
      %v1525 = vrot.slane %v1524, 4
      %v1526 = vrot.slane %v1466, 5
      %v1527 = vsel %vm1509, %v1525, %v1526
      %v1528 = vrot.slane %v1526, 4
      %v1529 = vrot.slane %v1467, 5
      %v1530 = vsel %vm1509, %v1528, %v1529
      %v1531 = vrot.slane %v1468, 5
      %v1532 = vrot.slane %v1531, 4
      %v1533 = vrot.slane %v1469, 5
      %v1534 = vsel %vm1509, %v1532, %v1533
      %v1535 = vrot.slane %v1533, 4
      %v1536 = vrot.slane %v1470, 5
      %v1537 = vsel %vm1509, %v1535, %v1536
      %v1538 = vrot.slane %v1471, 5
      %v1539 = vrot.slane %v1538, 4
      %v1540 = vrot.slane %v1472, 5
      %v1541 = vsel %vm1509, %v1539, %v1540
      %v1542 = vrot.slane %v1540, 4
      %v1543 = vrot.slane %v1473, 5
      %v1544 = vsel %vm1509, %v1542, %v1543
      %v1545 = vrot.slane %v1474, 5
      %v1546 = vrot.slane %v1545, 4
      %v1547 = vrot.slane %v1475, 5
      %v1548 = vsel %vm1509, %v1546, %v1547
      %v1549 = vrot.slane %v1547, 4
      %v1550 = vrot.slane %v1476, 5
      %v1551 = vsel %vm1509, %v1549, %v1550
      %v1552 = vrot.slane %v1477, 5
      %v1553 = vrot.slane %v1552, 4
      %v1554 = vrot.slane %v1478, 5
      %v1555 = vsel %vm1509, %v1553, %v1554
      %v1556 = vrot.slane %v1554, 4
      %v1557 = vrot.slane %v1479, 5
      %v1558 = vsel %vm1509, %v1556, %v1557
      %v1559 = vrot.slane %v1480, 5
      %v1560 = vrot.slane %v1559, 4
      %v1561 = vrot.slane %v1481, 5
      %v1562 = vsel %vm1509, %v1560, %v1561
      %v1563 = vrot.slane %v1561, 4
      %v1564 = vrot.slane %v1482, 5
      %v1565 = vsel %vm1509, %v1563, %v1564
      %s1566 = scalar_lea.vmem %s5, 4
      %v1567 = vld [vmem:[%s1566] sm:$0x3]
      %v1568 = vunpack.c.l.b16 %v1513
      %v1569 = vunpack.c.l.b16 %v1516
      %v1570 = vunpack.c.l.b16 %v1520
      %v1571 = vunpack.c.l.b16 %v1523
      %v1572 = vunpack.c.l.b16 %v1527
      %v1573 = vunpack.c.l.b16 %v1530
      %v1574 = vunpack.c.l.b16 %v1534
      %v1575 = vunpack.c.l.b16 %v1537
      %v1576 = vunpack.c.l.b16 %v1541
      %v1577 = vunpack.c.l.b16 %v1544
      %v1578 = vunpack.c.l.b16 %v1548
      %v1579 = vunpack.c.l.b16 %v1551
      %v1580 = vunpack.c.l.b16 %v1555
      %v1581 = vunpack.c.l.b16 %v1558
      %v1582 = vunpack.c.l.b16 %v1562
      %v1583 = vunpack.c.l.b16 %v1565
      %v1584 = vpack.c.b16 %v1569, %v1568
      %v1585 = vpack.c.b16 %v1571, %v1570
      %v1586 = vpack.c.b16 %v1573, %v1572
      %v1587 = vpack.c.b16 %v1575, %v1574
      %v1588 = vpack.c.b16 %v1577, %v1576
      %v1589 = vpack.c.b16 %v1579, %v1578
      %v1590 = vpack.c.b16 %v1581, %v1580
      %v1591 = vpack.c.b16 %v1583, %v1582
      %v1593 = vsel %vm900, %v1584, 0
      %v1596 = vsel %vm900, %v1585, 0
      %v1599 = vsel %vm900, %v1586, 0
      %v1602 = vsel %vm900, %v1587, 0
      %v1605 = vsel %vm900, %v1588, 0
      %v1608 = vsel %vm900, %v1589, 0
      %v1611 = vsel %vm900, %v1590, 0
      %v1614 = vsel %vm900, %v1591, 0
      %v1617 = vsel %vm925, %v1567, 0
      %1619 = vmatprep.subr.bf16.mxu0 0
      %1620 = vmatpush1.bf16.msra.mxu0 0
      %1621 = vmatprep.subr.bf16.mxu0 0
      %1622 = vmatpush1.bf16.msra.mxu0 0
      %1623 = vmatprep.subr.bf16.mxu0 0
      %1624 = vmatpush1.bf16.msra.mxu0 0
      %1625 = vmatprep.subr.bf16.mxu0 0
      %1626 = vmatpush1.bf16.msra.mxu0 0
      %1627 = vmatprep.subr.bf16.mxu0 0
      %1628 = vmatpush1.bf16.msra.mxu0 0
      %1629 = vmatprep.subr.bf16.mxu0 0
      %1630 = vmatpush1.bf16.msra.mxu0 0
      %1631 = vmatprep.subr.bf16.mxu0 0
      %1632 = vmatpush1.bf16.msra.mxu0 0
      %1633 = vmatprep.subr.bf16.mxu0 0
      %1634 = vmatpush1.bf16.msra.mxu0 %v1617
      %1635 = vmatprep.subr.bf16.mxu0 0
      %1636 = vmatpush2.bf16.msra.mxu0 0
      %1637 = vmatprep.subr.bf16.mxu0 0
      %1638 = vmatpush2.bf16.msra.mxu0 0
      %1639 = vmatprep.subr.bf16.mxu0 0
      %1640 = vmatpush2.bf16.msra.mxu0 0
      %1641 = vmatprep.subr.bf16.mxu0 0
      %1642 = vmatpush2.bf16.msra.mxu0 0
      %1643 = vmatprep.subr.bf16.mxu0 0
      %1644 = vmatpush2.bf16.msra.mxu0 0
      %1645 = vmatprep.subr.bf16.mxu0 0
      %1646 = vmatpush2.bf16.msra.mxu0 0
      %1647 = vmatprep.subr.bf16.mxu0 0
      %1648 = vmatpush2.bf16.msra.mxu0 0
      %1649 = vmatprep.subr.bf16.mxu0 0
      %1650 = vmatpush2.bf16.msra.mxu0 0
      %1651 = vmatprep.mubr.bf16.mxu0 0
      %1652 = vmatmul.mubr.bf16.gmra.mxu0 %v1593
      %v1653 = vpop.f32.mrf.mxu0
      %v1654 = vadd.f32 0.0, %v1653
      %v1655 = vpop.f32.mrf.mxu0
      %v1656 = vpop.f32.mrf.mxu0
      %v1657 = vadd.f32 0.0, %v1656
      %v1658 = vpop.f32.mrf.mxu0
      %1659 = vmatprep.mubr.bf16.mxu0 0
      %1660 = vmatmul.mubr.bf16.gmra.mxu0 %v1596
      %v1661 = vpop.f32.mrf.mxu0
      %v1662 = vadd.f32 0.0, %v1661
      %v1663 = vpop.f32.mrf.mxu0
      %v1664 = vpop.f32.mrf.mxu0
      %v1665 = vadd.f32 0.0, %v1664
      %v1666 = vpop.f32.mrf.mxu0
      %1667 = vmatprep.mubr.bf16.mxu0 0
      %1668 = vmatmul.mubr.bf16.gmra.mxu0 %v1599
      %v1669 = vpop.f32.mrf.mxu0
      %v1670 = vadd.f32 0.0, %v1669
      %v1671 = vpop.f32.mrf.mxu0
      %v1672 = vpop.f32.mrf.mxu0
      %v1673 = vadd.f32 0.0, %v1672
      %v1674 = vpop.f32.mrf.mxu0
      %1675 = vmatprep.mubr.bf16.mxu0 0
      %1676 = vmatmul.mubr.bf16.gmra.mxu0 %v1602
      %v1677 = vpop.f32.mrf.mxu0
      %v1678 = vadd.f32 0.0, %v1677
      %v1679 = vpop.f32.mrf.mxu0
      %v1680 = vpop.f32.mrf.mxu0
      %v1681 = vadd.f32 0.0, %v1680
      %v1682 = vpop.f32.mrf.mxu0
      %1683 = vmatprep.mubr.bf16.mxu0 0
      %1684 = vmatmul.mubr.bf16.gmra.mxu0 %v1605
      %v1685 = vpop.f32.mrf.mxu0
      %v1686 = vadd.f32 0.0, %v1685
      %v1687 = vpop.f32.mrf.mxu0
      %v1688 = vpop.f32.mrf.mxu0
      %v1689 = vadd.f32 0.0, %v1688
      %v1690 = vpop.f32.mrf.mxu0
      %1691 = vmatprep.mubr.bf16.mxu0 0
      %1692 = vmatmul.mubr.bf16.gmra.mxu0 %v1608
      %v1693 = vpop.f32.mrf.mxu0
      %v1694 = vadd.f32 0.0, %v1693
      %v1695 = vpop.f32.mrf.mxu0
      %v1696 = vpop.f32.mrf.mxu0
      %v1697 = vadd.f32 0.0, %v1696
      %v1698 = vpop.f32.mrf.mxu0
      %1699 = vmatprep.mubr.bf16.mxu0 0
      %1700 = vmatmul.mubr.bf16.gmra.mxu0 %v1611
      %v1701 = vpop.f32.mrf.mxu0
      %v1702 = vadd.f32 0.0, %v1701
      %v1703 = vpop.f32.mrf.mxu0
      %v1704 = vpop.f32.mrf.mxu0
      %v1705 = vadd.f32 0.0, %v1704
      %v1706 = vpop.f32.mrf.mxu0
      %1707 = vmatprep.mubr.bf16.mxu0 0
      %1708 = vmatmul.mubr.bf16.gmra.mxu0 %v1614
      %v1709 = vpop.f32.mrf.mxu0
      %v1710 = vadd.f32 0.0, %v1709
      %v1711 = vpop.f32.mrf.mxu0
      %v1712 = vpop.f32.mrf.mxu0
      %v1713 = vadd.f32 0.0, %v1712
      %v1714 = vpop.f32.mrf.mxu0
      %1715 = vdwg.mxu0
      %v1716 = vld [vmem:[#allocation3] sm:$0xff]
      %v1717 = vld [vmem:[#allocation3 + $0x8] sm:$0xff]
      %v1718 = vld [vmem:[#allocation3 + $0x10] sm:$0xff]
      %v1719 = vld [vmem:[#allocation3 + $0x18] sm:$0xff]
      %v1720 = vld [vmem:[#allocation3 + $0x20] sm:$0xff]
      %v1721 = vld [vmem:[#allocation3 + $0x28] sm:$0xff]
      %v1722 = vld [vmem:[#allocation3 + $0x30] sm:$0xff]
      %v1723 = vld [vmem:[#allocation3 + $0x38] sm:$0xff]
      %v1724 = vld [vmem:[#allocation3 + $0x40] sm:$0xff]
      %v1725 = vld [vmem:[#allocation3 + $0x48] sm:$0xff]
      %v1726 = vld [vmem:[#allocation3 + $0x50] sm:$0xff]
      %v1727 = vld [vmem:[#allocation3 + $0x58] sm:$0xff]
      %v1728 = vld [vmem:[#allocation3 + $0x60] sm:$0xff]
      %v1729 = vld [vmem:[#allocation3 + $0x68] sm:$0xff]
      %v1730 = vld [vmem:[#allocation3 + $0x70] sm:$0xff]
      %v1731 = vld [vmem:[#allocation3 + $0x78] sm:$0xff]
      %v1732 = vadd.f32 %v1716, %v1654
      %v1733 = vadd.f32 %v1717, %v1657
      %v1734 = vadd.f32 %v1718, %v1662
      %v1735 = vadd.f32 %v1719, %v1665
      %v1736 = vadd.f32 %v1720, %v1670
      %v1737 = vadd.f32 %v1721, %v1673
      %v1738 = vadd.f32 %v1722, %v1678
      %v1739 = vadd.f32 %v1723, %v1681
      %v1740 = vadd.f32 %v1724, %v1686
      %v1741 = vadd.f32 %v1725, %v1689
      %v1742 = vadd.f32 %v1726, %v1694
      %v1743 = vadd.f32 %v1727, %v1697
      %v1744 = vadd.f32 %v1728, %v1702
      %v1745 = vadd.f32 %v1729, %v1705
      %v1746 = vadd.f32 %v1730, %v1710
      %v1747 = vadd.f32 %v1731, %v1713
      %1748 = vst.msk [vmem:[#allocation3] sm:$0xff] %vm900, %v1732
      %1749 = vst.msk [vmem:[#allocation3 + $0x8] sm:$0xff] %vm900, %v1733
      %1750 = vst.msk [vmem:[#allocation3 + $0x10] sm:$0xff] %vm900, %v1734
      %1751 = vst.msk [vmem:[#allocation3 + $0x18] sm:$0xff] %vm900, %v1735
      %1752 = vst.msk [vmem:[#allocation3 + $0x20] sm:$0xff] %vm900, %v1736
      %1753 = vst.msk [vmem:[#allocation3 + $0x28] sm:$0xff] %vm900, %v1737
      %1754 = vst.msk [vmem:[#allocation3 + $0x30] sm:$0xff] %vm900, %v1738
      %1755 = vst.msk [vmem:[#allocation3 + $0x38] sm:$0xff] %vm900, %v1739
      %1756 = vst.msk [vmem:[#allocation3 + $0x40] sm:$0xff] %vm900, %v1740
      %1757 = vst.msk [vmem:[#allocation3 + $0x48] sm:$0xff] %vm900, %v1741
      %1758 = vst.msk [vmem:[#allocation3 + $0x50] sm:$0xff] %vm900, %v1742
      %1759 = vst.msk [vmem:[#allocation3 + $0x58] sm:$0xff] %vm900, %v1743
      %1760 = vst.msk [vmem:[#allocation3 + $0x60] sm:$0xff] %vm900, %v1744
      %1761 = vst.msk [vmem:[#allocation3 + $0x68] sm:$0xff] %vm900, %v1745
      %1762 = vst.msk [vmem:[#allocation3 + $0x70] sm:$0xff] %vm900, %v1746
      %1763 = vst.msk [vmem:[#allocation3 + $0x78] sm:$0xff] %vm900, %v1747
      %v1764 = vld [vmem:[%s786] sm:$0xf]
      %v1765 = vld [vmem:[%s786 + $0x4] sm:$0xf]
      %v1766 = vld [vmem:[%s786 + $0xc] sm:$0xf]
      %v1767 = vld [vmem:[%s786 + $0x10] sm:$0xf]
      %v1768 = vld [vmem:[%s786 + $0x18] sm:$0xf]
      %v1769 = vld [vmem:[%s786 + $0x1c] sm:$0xf]
      %v1770 = vld [vmem:[%s786 + $0x24] sm:$0xf]
      %v1771 = vld [vmem:[%s786 + $0x28] sm:$0xf]
      %v1772 = vld [vmem:[%s786 + $0x30] sm:$0xf]
      %v1773 = vld [vmem:[%s786 + $0x34] sm:$0xf]
      %v1774 = vld [vmem:[%s786 + $0x3c] sm:$0xf]
      %v1775 = vld [vmem:[%s786 + $0x40] sm:$0xf]
      %v1776 = vld [vmem:[%s786 + $0x48] sm:$0xf]
      %v1777 = vld [vmem:[%s786 + $0x4c] sm:$0xf]
      %v1778 = vld [vmem:[%s786 + $0x54] sm:$0xf]
      %v1779 = vld [vmem:[%s786 + $0x58] sm:$0xf]
      %s1780 = scalar_lea.vmem %s5, 6
      %v1781 = vld [vmem:[%s1780] sm:$0x3]
      %v1798 = vunpack.c.l.b16 %v1764
      %v1799 = vunpack.c.l.b16 %v1765
      %v1800 = vunpack.c.l.b16 %v1766
      %v1801 = vunpack.c.l.b16 %v1767
      %v1802 = vunpack.c.l.b16 %v1768
      %v1803 = vunpack.c.l.b16 %v1769
      %v1804 = vunpack.c.l.b16 %v1770
      %v1805 = vunpack.c.l.b16 %v1771
      %v1806 = vunpack.c.l.b16 %v1772
      %v1807 = vunpack.c.l.b16 %v1773
      %v1808 = vunpack.c.l.b16 %v1774
      %v1809 = vunpack.c.l.b16 %v1775
      %v1810 = vunpack.c.l.b16 %v1776
      %v1811 = vunpack.c.l.b16 %v1777
      %v1812 = vunpack.c.l.b16 %v1778
      %v1813 = vunpack.c.l.b16 %v1779
      %v1814 = vpack.c.b16 %v1799, %v1798
      %v1815 = vpack.c.b16 %v1801, %v1800
      %v1816 = vpack.c.b16 %v1803, %v1802
      %v1817 = vpack.c.b16 %v1805, %v1804
      %v1818 = vpack.c.b16 %v1807, %v1806
      %v1819 = vpack.c.b16 %v1809, %v1808
      %v1820 = vpack.c.b16 %v1811, %v1810
      %v1821 = vpack.c.b16 %v1813, %v1812
      %v1823 = vsel %vm900, %v1814, 0
      %v1826 = vsel %vm900, %v1815, 0
      %v1829 = vsel %vm900, %v1816, 0
      %v1832 = vsel %vm900, %v1817, 0
      %v1835 = vsel %vm900, %v1818, 0
      %v1838 = vsel %vm900, %v1819, 0
      %v1841 = vsel %vm900, %v1820, 0
      %v1844 = vsel %vm900, %v1821, 0
      %v1847 = vsel %vm925, %v1781, 0
      %1849 = vmatprep.subr.bf16.mxu0 0
      %1850 = vmatpush1.bf16.msra.mxu0 0
      %1851 = vmatprep.subr.bf16.mxu0 0
      %1852 = vmatpush1.bf16.msra.mxu0 0
      %1853 = vmatprep.subr.bf16.mxu0 0
      %1854 = vmatpush1.bf16.msra.mxu0 0
      %1855 = vmatprep.subr.bf16.mxu0 0
      %1856 = vmatpush1.bf16.msra.mxu0 0
      %1857 = vmatprep.subr.bf16.mxu0 0
      %1858 = vmatpush1.bf16.msra.mxu0 0
      %1859 = vmatprep.subr.bf16.mxu0 0
      %1860 = vmatpush1.bf16.msra.mxu0 0
      %1861 = vmatprep.subr.bf16.mxu0 0
      %1862 = vmatpush1.bf16.msra.mxu0 0
      %1863 = vmatprep.subr.bf16.mxu0 0
      %1864 = vmatpush1.bf16.msra.mxu0 %v1847
      %1865 = vmatprep.subr.bf16.mxu0 0
      %1866 = vmatpush2.bf16.msra.mxu0 0
      %1867 = vmatprep.subr.bf16.mxu0 0
      %1868 = vmatpush2.bf16.msra.mxu0 0
      %1869 = vmatprep.subr.bf16.mxu0 0
      %1870 = vmatpush2.bf16.msra.mxu0 0
      %1871 = vmatprep.subr.bf16.mxu0 0
      %1872 = vmatpush2.bf16.msra.mxu0 0
      %1873 = vmatprep.subr.bf16.mxu0 0
      %1874 = vmatpush2.bf16.msra.mxu0 0
      %1875 = vmatprep.subr.bf16.mxu0 0
      %1876 = vmatpush2.bf16.msra.mxu0 0
      %1877 = vmatprep.subr.bf16.mxu0 0
      %1878 = vmatpush2.bf16.msra.mxu0 0
      %1879 = vmatprep.subr.bf16.mxu0 0
      %1880 = vmatpush2.bf16.msra.mxu0 0
      %1881 = vmatprep.mubr.bf16.mxu0 0
      %1882 = vmatmul.mubr.bf16.gmra.mxu0 %v1823
      %v1883 = vpop.f32.mrf.mxu0
      %v1884 = vadd.f32 0.0, %v1883
      %v1885 = vpop.f32.mrf.mxu0
      %v1886 = vpop.f32.mrf.mxu0
      %v1887 = vadd.f32 0.0, %v1886
      %v1888 = vpop.f32.mrf.mxu0
      %1889 = vmatprep.mubr.bf16.mxu0 0
      %1890 = vmatmul.mubr.bf16.gmra.mxu0 %v1826
      %v1891 = vpop.f32.mrf.mxu0
      %v1892 = vadd.f32 0.0, %v1891
      %v1893 = vpop.f32.mrf.mxu0
      %v1894 = vpop.f32.mrf.mxu0
      %v1895 = vadd.f32 0.0, %v1894
      %v1896 = vpop.f32.mrf.mxu0
      %1897 = vmatprep.mubr.bf16.mxu0 0
      %1898 = vmatmul.mubr.bf16.gmra.mxu0 %v1829
      %v1899 = vpop.f32.mrf.mxu0
      %v1900 = vadd.f32 0.0, %v1899
      %v1901 = vpop.f32.mrf.mxu0
      %v1902 = vpop.f32.mrf.mxu0
      %v1903 = vadd.f32 0.0, %v1902
      %v1904 = vpop.f32.mrf.mxu0
      %1905 = vmatprep.mubr.bf16.mxu0 0
      %1906 = vmatmul.mubr.bf16.gmra.mxu0 %v1832
      %v1907 = vpop.f32.mrf.mxu0
      %v1908 = vadd.f32 0.0, %v1907
      %v1909 = vpop.f32.mrf.mxu0
      %v1910 = vpop.f32.mrf.mxu0
      %v1911 = vadd.f32 0.0, %v1910
      %v1912 = vpop.f32.mrf.mxu0
      %1913 = vmatprep.mubr.bf16.mxu0 0
      %1914 = vmatmul.mubr.bf16.gmra.mxu0 %v1835
      %v1915 = vpop.f32.mrf.mxu0
      %v1916 = vadd.f32 0.0, %v1915
      %v1917 = vpop.f32.mrf.mxu0
      %v1918 = vpop.f32.mrf.mxu0
      %v1919 = vadd.f32 0.0, %v1918
      %v1920 = vpop.f32.mrf.mxu0
      %1921 = vmatprep.mubr.bf16.mxu0 0
      %1922 = vmatmul.mubr.bf16.gmra.mxu0 %v1838
      %v1923 = vpop.f32.mrf.mxu0
      %v1924 = vadd.f32 0.0, %v1923
      %v1925 = vpop.f32.mrf.mxu0
      %v1926 = vpop.f32.mrf.mxu0
      %v1927 = vadd.f32 0.0, %v1926
      %v1928 = vpop.f32.mrf.mxu0
      %1929 = vmatprep.mubr.bf16.mxu0 0
      %1930 = vmatmul.mubr.bf16.gmra.mxu0 %v1841
      %v1931 = vpop.f32.mrf.mxu0
      %v1932 = vadd.f32 0.0, %v1931
      %v1933 = vpop.f32.mrf.mxu0
      %v1934 = vpop.f32.mrf.mxu0
      %v1935 = vadd.f32 0.0, %v1934
      %v1936 = vpop.f32.mrf.mxu0
      %1937 = vmatprep.mubr.bf16.mxu0 0
      %1938 = vmatmul.mubr.bf16.gmra.mxu0 %v1844
      %v1939 = vpop.f32.mrf.mxu0
      %v1940 = vadd.f32 0.0, %v1939
      %v1941 = vpop.f32.mrf.mxu0
      %v1942 = vpop.f32.mrf.mxu0
      %v1943 = vadd.f32 0.0, %v1942
      %v1944 = vpop.f32.mrf.mxu0
      %1945 = vdwg.mxu0
      %v1946 = vld [vmem:[#allocation3] sm:$0xff]
      %v1947 = vld [vmem:[#allocation3 + $0x8] sm:$0xff]
      %v1948 = vld [vmem:[#allocation3 + $0x10] sm:$0xff]
      %v1949 = vld [vmem:[#allocation3 + $0x18] sm:$0xff]
      %v1950 = vld [vmem:[#allocation3 + $0x20] sm:$0xff]
      %v1951 = vld [vmem:[#allocation3 + $0x28] sm:$0xff]
      %v1952 = vld [vmem:[#allocation3 + $0x30] sm:$0xff]
      %v1953 = vld [vmem:[#allocation3 + $0x38] sm:$0xff]
      %v1954 = vld [vmem:[#allocation3 + $0x40] sm:$0xff]
      %v1955 = vld [vmem:[#allocation3 + $0x48] sm:$0xff]
      %v1956 = vld [vmem:[#allocation3 + $0x50] sm:$0xff]
      %v1957 = vld [vmem:[#allocation3 + $0x58] sm:$0xff]
      %v1958 = vld [vmem:[#allocation3 + $0x60] sm:$0xff]
      %v1959 = vld [vmem:[#allocation3 + $0x68] sm:$0xff]
      %v1960 = vld [vmem:[#allocation3 + $0x70] sm:$0xff]
      %v1961 = vld [vmem:[#allocation3 + $0x78] sm:$0xff]
      %v1962 = vadd.f32 %v1946, %v1884
      %v1963 = vadd.f32 %v1947, %v1887
      %v1964 = vadd.f32 %v1948, %v1892
      %v1965 = vadd.f32 %v1949, %v1895
      %v1966 = vadd.f32 %v1950, %v1900
      %v1967 = vadd.f32 %v1951, %v1903
      %v1968 = vadd.f32 %v1952, %v1908
      %v1969 = vadd.f32 %v1953, %v1911
      %v1970 = vadd.f32 %v1954, %v1916
      %v1971 = vadd.f32 %v1955, %v1919
      %v1972 = vadd.f32 %v1956, %v1924
      %v1973 = vadd.f32 %v1957, %v1927
      %v1974 = vadd.f32 %v1958, %v1932
      %v1975 = vadd.f32 %v1959, %v1935
      %v1976 = vadd.f32 %v1960, %v1940
      %v1977 = vadd.f32 %v1961, %v1943
      %1978 = vst.msk [vmem:[#allocation3] sm:$0xff] %vm900, %v1962
      %1979 = vst.msk [vmem:[#allocation3 + $0x8] sm:$0xff] %vm900, %v1963
      %1980 = vst.msk [vmem:[#allocation3 + $0x10] sm:$0xff] %vm900, %v1964
      %1981 = vst.msk [vmem:[#allocation3 + $0x18] sm:$0xff] %vm900, %v1965
      %1982 = vst.msk [vmem:[#allocation3 + $0x20] sm:$0xff] %vm900, %v1966
      %1983 = vst.msk [vmem:[#allocation3 + $0x28] sm:$0xff] %vm900, %v1967
      %1984 = vst.msk [vmem:[#allocation3 + $0x30] sm:$0xff] %vm900, %v1968
      %1985 = vst.msk [vmem:[#allocation3 + $0x38] sm:$0xff] %vm900, %v1969
      %1986 = vst.msk [vmem:[#allocation3 + $0x40] sm:$0xff] %vm900, %v1970
      %1987 = vst.msk [vmem:[#allocation3 + $0x48] sm:$0xff] %vm900, %v1971
      %1988 = vst.msk [vmem:[#allocation3 + $0x50] sm:$0xff] %vm900, %v1972
      %1989 = vst.msk [vmem:[#allocation3 + $0x58] sm:$0xff] %vm900, %v1973
      %1990 = vst.msk [vmem:[#allocation3 + $0x60] sm:$0xff] %vm900, %v1974
      %1991 = vst.msk [vmem:[#allocation3 + $0x68] sm:$0xff] %vm900, %v1975
      %1992 = vst.msk [vmem:[#allocation3 + $0x70] sm:$0xff] %vm900, %v1976
      %1993 = vst.msk [vmem:[#allocation3 + $0x78] sm:$0xff] %vm900, %v1977
      %v1994 = vld [vmem:[%s786] sm:$0xf]
      %v1995 = vld [vmem:[%s786 + $0x4] sm:$0xf]
      %v1996 = vld [vmem:[%s786 + $0x8] sm:$0x1]
      %v1997 = vld [vmem:[%s786 + $0xc] sm:$0xf]
      %v1998 = vld [vmem:[%s786 + $0x10] sm:$0xf]
      %v1999 = vld [vmem:[%s786 + $0x14] sm:$0x1]
      %v2000 = vld [vmem:[%s786 + $0x18] sm:$0xf]
      %v2001 = vld [vmem:[%s786 + $0x1c] sm:$0xf]
      %v2002 = vld [vmem:[%s786 + $0x20] sm:$0x1]
      %v2003 = vld [vmem:[%s786 + $0x24] sm:$0xf]
      %v2004 = vld [vmem:[%s786 + $0x28] sm:$0xf]
      %v2005 = vld [vmem:[%s786 + $0x2c] sm:$0x1]
      %v2006 = vld [vmem:[%s786 + $0x30] sm:$0xf]
      %v2007 = vld [vmem:[%s786 + $0x34] sm:$0xf]
      %v2008 = vld [vmem:[%s786 + $0x38] sm:$0x1]
      %v2009 = vld [vmem:[%s786 + $0x3c] sm:$0xf]
      %v2010 = vld [vmem:[%s786 + $0x40] sm:$0xf]
      %v2011 = vld [vmem:[%s786 + $0x44] sm:$0x1]
      %v2012 = vld [vmem:[%s786 + $0x48] sm:$0xf]
      %v2013 = vld [vmem:[%s786 + $0x4c] sm:$0xf]
      %v2014 = vld [vmem:[%s786 + $0x50] sm:$0x1]
      %v2015 = vld [vmem:[%s786 + $0x54] sm:$0xf]
      %v2016 = vld [vmem:[%s786 + $0x58] sm:$0xf]
      %v2017 = vld [vmem:[%s786 + $0x5c] sm:$0x1]
      %v2019 = vshrl.u32 %v1994, 16
      %v2021 = vrot.slane %v2019, 4
      %v2022 = vshll.u32 %v1994, 16
      %v2024 = vrot.slane %v2022, 5
      %v2025 = vor.u32 %v2021, %v2024
      %v2026 = vrot.slane %v2025, 4
      %v2028 = vshll.u32 %v1995, 16
      %v2030 = vrot.slane %v2028, 5
      %v2031 = vsel %vm1068, %v2026, %v2030
      %v2032 = vshrl.u32 %v1995, 16
      %v2034 = vrot.slane %v2032, 4
      %v2035 = vor.u32 %v2034, %v2030
      %v2036 = vrot.slane %v2035, 4
      %v2038 = vshll.u32 %v1996, 16
      %v2040 = vrot.slane %v2038, 5
      %v2041 = vsel %vm1068, %v2036, %v2040
      %v2043 = vshrl.u32 %v1997, 16
      %v2045 = vrot.slane %v2043, 4
      %v2046 = vshll.u32 %v1997, 16
      %v2048 = vrot.slane %v2046, 5
      %v2049 = vor.u32 %v2045, %v2048
      %v2050 = vrot.slane %v2049, 4
      %v2052 = vshll.u32 %v1998, 16
      %v2054 = vrot.slane %v2052, 5
      %v2055 = vsel %vm1068, %v2050, %v2054
      %v2056 = vshrl.u32 %v1998, 16
      %v2058 = vrot.slane %v2056, 4
      %v2059 = vor.u32 %v2058, %v2054
      %v2060 = vrot.slane %v2059, 4
      %v2062 = vshll.u32 %v1999, 16
      %v2064 = vrot.slane %v2062, 5
      %v2065 = vsel %vm1068, %v2060, %v2064
      %v2067 = vshrl.u32 %v2000, 16
      %v2069 = vrot.slane %v2067, 4
      %v2070 = vshll.u32 %v2000, 16
      %v2072 = vrot.slane %v2070, 5
      %v2073 = vor.u32 %v2069, %v2072
      %v2074 = vrot.slane %v2073, 4
      %v2076 = vshll.u32 %v2001, 16
      %v2078 = vrot.slane %v2076, 5
      %v2079 = vsel %vm1068, %v2074, %v2078
      %v2080 = vshrl.u32 %v2001, 16
      %v2082 = vrot.slane %v2080, 4
      %v2083 = vor.u32 %v2082, %v2078
      %v2084 = vrot.slane %v2083, 4
      %v2086 = vshll.u32 %v2002, 16
      %v2088 = vrot.slane %v2086, 5
      %v2089 = vsel %vm1068, %v2084, %v2088
      %v2091 = vshrl.u32 %v2003, 16
      %v2093 = vrot.slane %v2091, 4
      %v2094 = vshll.u32 %v2003, 16
      %v2096 = vrot.slane %v2094, 5
      %v2097 = vor.u32 %v2093, %v2096
      %v2098 = vrot.slane %v2097, 4
      %v2100 = vshll.u32 %v2004, 16
      %v2102 = vrot.slane %v2100, 5
      %v2103 = vsel %vm1068, %v2098, %v2102
      %v2104 = vshrl.u32 %v2004, 16
      %v2106 = vrot.slane %v2104, 4
      %v2107 = vor.u32 %v2106, %v2102
      %v2108 = vrot.slane %v2107, 4
      %v2110 = vshll.u32 %v2005, 16
      %v2112 = vrot.slane %v2110, 5
      %v2113 = vsel %vm1068, %v2108, %v2112
      %v2115 = vshrl.u32 %v2006, 16
      %v2117 = vrot.slane %v2115, 4
      %v2118 = vshll.u32 %v2006, 16
      %v2120 = vrot.slane %v2118, 5
      %v2121 = vor.u32 %v2117, %v2120
      %v2122 = vrot.slane %v2121, 4
      %v2124 = vshll.u32 %v2007, 16
      %v2126 = vrot.slane %v2124, 5
      %v2127 = vsel %vm1068, %v2122, %v2126
      %v2128 = vshrl.u32 %v2007, 16
      %v2130 = vrot.slane %v2128, 4
      %v2131 = vor.u32 %v2130, %v2126
      %v2132 = vrot.slane %v2131, 4
      %v2134 = vshll.u32 %v2008, 16
      %v2136 = vrot.slane %v2134, 5
      %v2137 = vsel %vm1068, %v2132, %v2136
      %v2139 = vshrl.u32 %v2009, 16
      %v2141 = vrot.slane %v2139, 4
      %v2142 = vshll.u32 %v2009, 16
      %v2144 = vrot.slane %v2142, 5
      %v2145 = vor.u32 %v2141, %v2144
      %v2146 = vrot.slane %v2145, 4
      %v2148 = vshll.u32 %v2010, 16
      %v2150 = vrot.slane %v2148, 5
      %v2151 = vsel %vm1068, %v2146, %v2150
      %v2152 = vshrl.u32 %v2010, 16
      %v2154 = vrot.slane %v2152, 4
      %v2155 = vor.u32 %v2154, %v2150
      %v2156 = vrot.slane %v2155, 4
      %v2158 = vshll.u32 %v2011, 16
      %v2160 = vrot.slane %v2158, 5
      %v2161 = vsel %vm1068, %v2156, %v2160
      %v2163 = vshrl.u32 %v2012, 16
      %v2165 = vrot.slane %v2163, 4
      %v2166 = vshll.u32 %v2012, 16
      %v2168 = vrot.slane %v2166, 5
      %v2169 = vor.u32 %v2165, %v2168
      %v2170 = vrot.slane %v2169, 4
      %v2172 = vshll.u32 %v2013, 16
      %v2174 = vrot.slane %v2172, 5
      %v2175 = vsel %vm1068, %v2170, %v2174
      %v2176 = vshrl.u32 %v2013, 16
      %v2178 = vrot.slane %v2176, 4
      %v2179 = vor.u32 %v2178, %v2174
      %v2180 = vrot.slane %v2179, 4
      %v2182 = vshll.u32 %v2014, 16
      %v2184 = vrot.slane %v2182, 5
      %v2185 = vsel %vm1068, %v2180, %v2184
      %v2187 = vshrl.u32 %v2015, 16
      %v2189 = vrot.slane %v2187, 4
      %v2190 = vshll.u32 %v2015, 16
      %v2192 = vrot.slane %v2190, 5
      %v2193 = vor.u32 %v2189, %v2192
      %v2194 = vrot.slane %v2193, 4
      %v2196 = vshll.u32 %v2016, 16
      %v2198 = vrot.slane %v2196, 5
      %v2199 = vsel %vm1068, %v2194, %v2198
      %v2200 = vshrl.u32 %v2016, 16
      %v2202 = vrot.slane %v2200, 4
      %v2203 = vor.u32 %v2202, %v2198
      %v2204 = vrot.slane %v2203, 4
      %v2206 = vshll.u32 %v2017, 16
      %v2208 = vrot.slane %v2206, 5
      %v2209 = vsel %vm1068, %v2204, %v2208
      %s2210 = scalar_lea.vmem %s5, 8
      %v2211 = vld [vmem:[%s2210] sm:$0x3]
      %v2212 = vunpack.c.l.b16 %v2031
      %v2213 = vunpack.c.l.b16 %v2041
      %v2214 = vunpack.c.l.b16 %v2055
      %v2215 = vunpack.c.l.b16 %v2065
      %v2216 = vunpack.c.l.b16 %v2079
      %v2217 = vunpack.c.l.b16 %v2089
      %v2218 = vunpack.c.l.b16 %v2103
      %v2219 = vunpack.c.l.b16 %v2113
      %v2220 = vunpack.c.l.b16 %v2127
      %v2221 = vunpack.c.l.b16 %v2137
      %v2222 = vunpack.c.l.b16 %v2151
      %v2223 = vunpack.c.l.b16 %v2161
      %v2224 = vunpack.c.l.b16 %v2175
      %v2225 = vunpack.c.l.b16 %v2185
      %v2226 = vunpack.c.l.b16 %v2199
      %v2227 = vunpack.c.l.b16 %v2209
      %v2228 = vpack.c.b16 %v2213, %v2212
      %v2229 = vpack.c.b16 %v2215, %v2214
      %v2230 = vpack.c.b16 %v2217, %v2216
      %v2231 = vpack.c.b16 %v2219, %v2218
      %v2232 = vpack.c.b16 %v2221, %v2220
      %v2233 = vpack.c.b16 %v2223, %v2222
      %v2234 = vpack.c.b16 %v2225, %v2224
      %v2235 = vpack.c.b16 %v2227, %v2226
      %v2237 = vsel %vm900, %v2228, 0
      %v2240 = vsel %vm900, %v2229, 0
      %v2243 = vsel %vm900, %v2230, 0
      %v2246 = vsel %vm900, %v2231, 0
      %v2249 = vsel %vm900, %v2232, 0
      %v2252 = vsel %vm900, %v2233, 0
      %v2255 = vsel %vm900, %v2234, 0
      %v2258 = vsel %vm900, %v2235, 0
      %v2261 = vsel %vm925, %v2211, 0
      %2263 = vmatprep.subr.bf16.mxu0 0
      %2264 = vmatpush1.bf16.msra.mxu0 0
      %2265 = vmatprep.subr.bf16.mxu0 0
      %2266 = vmatpush1.bf16.msra.mxu0 0
      %2267 = vmatprep.subr.bf16.mxu0 0
      %2268 = vmatpush1.bf16.msra.mxu0 0
      %2269 = vmatprep.subr.bf16.mxu0 0
      %2270 = vmatpush1.bf16.msra.mxu0 0
      %2271 = vmatprep.subr.bf16.mxu0 0
      %2272 = vmatpush1.bf16.msra.mxu0 0
      %2273 = vmatprep.subr.bf16.mxu0 0
      %2274 = vmatpush1.bf16.msra.mxu0 0
      %2275 = vmatprep.subr.bf16.mxu0 0
      %2276 = vmatpush1.bf16.msra.mxu0 0
      %2277 = vmatprep.subr.bf16.mxu0 0
      %2278 = vmatpush1.bf16.msra.mxu0 %v2261
      %2279 = vmatprep.subr.bf16.mxu0 0
      %2280 = vmatpush2.bf16.msra.mxu0 0
      %2281 = vmatprep.subr.bf16.mxu0 0
      %2282 = vmatpush2.bf16.msra.mxu0 0
      %2283 = vmatprep.subr.bf16.mxu0 0
      %2284 = vmatpush2.bf16.msra.mxu0 0
      %2285 = vmatprep.subr.bf16.mxu0 0
      %2286 = vmatpush2.bf16.msra.mxu0 0
      %2287 = vmatprep.subr.bf16.mxu0 0
      %2288 = vmatpush2.bf16.msra.mxu0 0
      %2289 = vmatprep.subr.bf16.mxu0 0
      %2290 = vmatpush2.bf16.msra.mxu0 0
      %2291 = vmatprep.subr.bf16.mxu0 0
      %2292 = vmatpush2.bf16.msra.mxu0 0
      %2293 = vmatprep.subr.bf16.mxu0 0
      %2294 = vmatpush2.bf16.msra.mxu0 0
      %2295 = vmatprep.mubr.bf16.mxu0 0
      %2296 = vmatmul.mubr.bf16.gmra.mxu0 %v2237
      %v2297 = vpop.f32.mrf.mxu0
      %v2298 = vadd.f32 0.0, %v2297
      %v2299 = vpop.f32.mrf.mxu0
      %v2300 = vpop.f32.mrf.mxu0
      %v2301 = vadd.f32 0.0, %v2300
      %v2302 = vpop.f32.mrf.mxu0
      %2303 = vmatprep.mubr.bf16.mxu0 0
      %2304 = vmatmul.mubr.bf16.gmra.mxu0 %v2240
      %v2305 = vpop.f32.mrf.mxu0
      %v2306 = vadd.f32 0.0, %v2305
      %v2307 = vpop.f32.mrf.mxu0
      %v2308 = vpop.f32.mrf.mxu0
      %v2309 = vadd.f32 0.0, %v2308
      %v2310 = vpop.f32.mrf.mxu0
      %2311 = vmatprep.mubr.bf16.mxu0 0
      %2312 = vmatmul.mubr.bf16.gmra.mxu0 %v2243
      %v2313 = vpop.f32.mrf.mxu0
      %v2314 = vadd.f32 0.0, %v2313
      %v2315 = vpop.f32.mrf.mxu0
      %v2316 = vpop.f32.mrf.mxu0
      %v2317 = vadd.f32 0.0, %v2316
      %v2318 = vpop.f32.mrf.mxu0
      %2319 = vmatprep.mubr.bf16.mxu0 0
      %2320 = vmatmul.mubr.bf16.gmra.mxu0 %v2246
      %v2321 = vpop.f32.mrf.mxu0
      %v2322 = vadd.f32 0.0, %v2321
      %v2323 = vpop.f32.mrf.mxu0
      %v2324 = vpop.f32.mrf.mxu0
      %v2325 = vadd.f32 0.0, %v2324
      %v2326 = vpop.f32.mrf.mxu0
      %2327 = vmatprep.mubr.bf16.mxu0 0
      %2328 = vmatmul.mubr.bf16.gmra.mxu0 %v2249
      %v2329 = vpop.f32.mrf.mxu0
      %v2330 = vadd.f32 0.0, %v2329
      %v2331 = vpop.f32.mrf.mxu0
      %v2332 = vpop.f32.mrf.mxu0
      %v2333 = vadd.f32 0.0, %v2332
      %v2334 = vpop.f32.mrf.mxu0
      %2335 = vmatprep.mubr.bf16.mxu0 0
      %2336 = vmatmul.mubr.bf16.gmra.mxu0 %v2252
      %v2337 = vpop.f32.mrf.mxu0
      %v2338 = vadd.f32 0.0, %v2337
      %v2339 = vpop.f32.mrf.mxu0
      %v2340 = vpop.f32.mrf.mxu0
      %v2341 = vadd.f32 0.0, %v2340
      %v2342 = vpop.f32.mrf.mxu0
      %2343 = vmatprep.mubr.bf16.mxu0 0
      %2344 = vmatmul.mubr.bf16.gmra.mxu0 %v2255
      %v2345 = vpop.f32.mrf.mxu0
      %v2346 = vadd.f32 0.0, %v2345
      %v2347 = vpop.f32.mrf.mxu0
      %v2348 = vpop.f32.mrf.mxu0
      %v2349 = vadd.f32 0.0, %v2348
      %v2350 = vpop.f32.mrf.mxu0
      %2351 = vmatprep.mubr.bf16.mxu0 0
      %2352 = vmatmul.mubr.bf16.gmra.mxu0 %v2258
      %v2353 = vpop.f32.mrf.mxu0
      %v2354 = vadd.f32 0.0, %v2353
      %v2355 = vpop.f32.mrf.mxu0
      %v2356 = vpop.f32.mrf.mxu0
      %v2357 = vadd.f32 0.0, %v2356
      %v2358 = vpop.f32.mrf.mxu0
      %2359 = vdwg.mxu0
      %v2360 = vld [vmem:[#allocation3] sm:$0xff]
      %v2361 = vld [vmem:[#allocation3 + $0x8] sm:$0xff]
      %v2362 = vld [vmem:[#allocation3 + $0x10] sm:$0xff]
      %v2363 = vld [vmem:[#allocation3 + $0x18] sm:$0xff]
      %v2364 = vld [vmem:[#allocation3 + $0x20] sm:$0xff]
      %v2365 = vld [vmem:[#allocation3 + $0x28] sm:$0xff]
      %v2366 = vld [vmem:[#allocation3 + $0x30] sm:$0xff]
      %v2367 = vld [vmem:[#allocation3 + $0x38] sm:$0xff]
      %v2368 = vld [vmem:[#allocation3 + $0x40] sm:$0xff]
      %v2369 = vld [vmem:[#allocation3 + $0x48] sm:$0xff]
      %v2370 = vld [vmem:[#allocation3 + $0x50] sm:$0xff]
      %v2371 = vld [vmem:[#allocation3 + $0x58] sm:$0xff]
      %v2372 = vld [vmem:[#allocation3 + $0x60] sm:$0xff]
      %v2373 = vld [vmem:[#allocation3 + $0x68] sm:$0xff]
      %v2374 = vld [vmem:[#allocation3 + $0x70] sm:$0xff]
      %v2375 = vld [vmem:[#allocation3 + $0x78] sm:$0xff]
      %v2376 = vadd.f32 %v2360, %v2298
      %v2377 = vadd.f32 %v2361, %v2301
      %v2378 = vadd.f32 %v2362, %v2306
      %v2379 = vadd.f32 %v2363, %v2309
      %v2380 = vadd.f32 %v2364, %v2314
      %v2381 = vadd.f32 %v2365, %v2317
      %v2382 = vadd.f32 %v2366, %v2322
      %v2383 = vadd.f32 %v2367, %v2325
      %v2384 = vadd.f32 %v2368, %v2330
      %v2385 = vadd.f32 %v2369, %v2333
      %v2386 = vadd.f32 %v2370, %v2338
      %v2387 = vadd.f32 %v2371, %v2341
      %v2388 = vadd.f32 %v2372, %v2346
      %v2389 = vadd.f32 %v2373, %v2349
      %v2390 = vadd.f32 %v2374, %v2354
      %v2391 = vadd.f32 %v2375, %v2357
      %2392 = vst.msk [vmem:[#allocation3] sm:$0xff] %vm900, %v2376
      %2393 = vst.msk [vmem:[#allocation3 + $0x8] sm:$0xff] %vm900, %v2377
      %2394 = vst.msk [vmem:[#allocation3 + $0x10] sm:$0xff] %vm900, %v2378
      %2395 = vst.msk [vmem:[#allocation3 + $0x18] sm:$0xff] %vm900, %v2379
      %2396 = vst.msk [vmem:[#allocation3 + $0x20] sm:$0xff] %vm900, %v2380
      %2397 = vst.msk [vmem:[#allocation3 + $0x28] sm:$0xff] %vm900, %v2381
      %2398 = vst.msk [vmem:[#allocation3 + $0x30] sm:$0xff] %vm900, %v2382
      %2399 = vst.msk [vmem:[#allocation3 + $0x38] sm:$0xff] %vm900, %v2383
      %2400 = vst.msk [vmem:[#allocation3 + $0x40] sm:$0xff] %vm900, %v2384
      %2401 = vst.msk [vmem:[#allocation3 + $0x48] sm:$0xff] %vm900, %v2385
      %2402 = vst.msk [vmem:[#allocation3 + $0x50] sm:$0xff] %vm900, %v2386
      %2403 = vst.msk [vmem:[#allocation3 + $0x58] sm:$0xff] %vm900, %v2387
      %2404 = vst.msk [vmem:[#allocation3 + $0x60] sm:$0xff] %vm900, %v2388
      %2405 = vst.msk [vmem:[#allocation3 + $0x68] sm:$0xff] %vm900, %v2389
      %2406 = vst.msk [vmem:[#allocation3 + $0x70] sm:$0xff] %vm900, %v2390
      %2407 = vst.msk [vmem:[#allocation3 + $0x78] sm:$0xff] %vm900, %v2391
      %v2408 = vld [vmem:[%s786] sm:$0xe]
      %v2409 = vld [vmem:[%s786 + $0x4] sm:$0xf]
      %v2410 = vld [vmem:[%s786 + $0x8] sm:$0x1]
      %v2411 = vld [vmem:[%s786 + $0xc] sm:$0xe]
      %v2412 = vld [vmem:[%s786 + $0x10] sm:$0xf]
      %v2413 = vld [vmem:[%s786 + $0x14] sm:$0x1]
      %v2414 = vld [vmem:[%s786 + $0x18] sm:$0xe]
      %v2415 = vld [vmem:[%s786 + $0x1c] sm:$0xf]
      %v2416 = vld [vmem:[%s786 + $0x20] sm:$0x1]
      %v2417 = vld [vmem:[%s786 + $0x24] sm:$0xe]
      %v2418 = vld [vmem:[%s786 + $0x28] sm:$0xf]
      %v2419 = vld [vmem:[%s786 + $0x2c] sm:$0x1]
      %v2420 = vld [vmem:[%s786 + $0x30] sm:$0xe]
      %v2421 = vld [vmem:[%s786 + $0x34] sm:$0xf]
      %v2422 = vld [vmem:[%s786 + $0x38] sm:$0x1]
      %v2423 = vld [vmem:[%s786 + $0x3c] sm:$0xe]
      %v2424 = vld [vmem:[%s786 + $0x40] sm:$0xf]
      %v2425 = vld [vmem:[%s786 + $0x44] sm:$0x1]
      %v2426 = vld [vmem:[%s786 + $0x48] sm:$0xe]
      %v2427 = vld [vmem:[%s786 + $0x4c] sm:$0xf]
      %v2428 = vld [vmem:[%s786 + $0x50] sm:$0x1]
      %v2429 = vld [vmem:[%s786 + $0x54] sm:$0xe]
      %v2430 = vld [vmem:[%s786 + $0x58] sm:$0xf]
      %v2431 = vld [vmem:[%s786 + $0x5c] sm:$0x1]
      %v2456 = vrot.slane %v2408, 5
      %v2457 = vrot.slane %v2456, 4
      %v2458 = vrot.slane %v2409, 5
      %v2459 = vsel %vm1509, %v2457, %v2458
      %v2460 = vrot.slane %v2458, 4
      %v2461 = vrot.slane %v2410, 5
      %v2462 = vsel %vm1509, %v2460, %v2461
      %v2463 = vrot.slane %v2411, 5
      %v2464 = vrot.slane %v2463, 4
      %v2465 = vrot.slane %v2412, 5
      %v2466 = vsel %vm1509, %v2464, %v2465
      %v2467 = vrot.slane %v2465, 4
      %v2468 = vrot.slane %v2413, 5
      %v2469 = vsel %vm1509, %v2467, %v2468
      %v2470 = vrot.slane %v2414, 5
      %v2471 = vrot.slane %v2470, 4
      %v2472 = vrot.slane %v2415, 5
      %v2473 = vsel %vm1509, %v2471, %v2472
      %v2474 = vrot.slane %v2472, 4
      %v2475 = vrot.slane %v2416, 5
      %v2476 = vsel %vm1509, %v2474, %v2475
      %v2477 = vrot.slane %v2417, 5
      %v2478 = vrot.slane %v2477, 4
      %v2479 = vrot.slane %v2418, 5
      %v2480 = vsel %vm1509, %v2478, %v2479
      %v2481 = vrot.slane %v2479, 4
      %v2482 = vrot.slane %v2419, 5
      %v2483 = vsel %vm1509, %v2481, %v2482
      %v2484 = vrot.slane %v2420, 5
      %v2485 = vrot.slane %v2484, 4
      %v2486 = vrot.slane %v2421, 5
      %v2487 = vsel %vm1509, %v2485, %v2486
      %v2488 = vrot.slane %v2486, 4
      %v2489 = vrot.slane %v2422, 5
      %v2490 = vsel %vm1509, %v2488, %v2489
      %v2491 = vrot.slane %v2423, 5
      %v2492 = vrot.slane %v2491, 4
      %v2493 = vrot.slane %v2424, 5
      %v2494 = vsel %vm1509, %v2492, %v2493
      %v2495 = vrot.slane %v2493, 4
      %v2496 = vrot.slane %v2425, 5
      %v2497 = vsel %vm1509, %v2495, %v2496
      %v2498 = vrot.slane %v2426, 5
      %v2499 = vrot.slane %v2498, 4
      %v2500 = vrot.slane %v2427, 5
      %v2501 = vsel %vm1509, %v2499, %v2500
      %v2502 = vrot.slane %v2500, 4
      %v2503 = vrot.slane %v2428, 5
      %v2504 = vsel %vm1509, %v2502, %v2503
      %v2505 = vrot.slane %v2429, 5
      %v2506 = vrot.slane %v2505, 4
      %v2507 = vrot.slane %v2430, 5
      %v2508 = vsel %vm1509, %v2506, %v2507
      %v2509 = vrot.slane %v2507, 4
      %v2510 = vrot.slane %v2431, 5
      %v2511 = vsel %vm1509, %v2509, %v2510
      %s2512 = scalar_lea.vmem %s5, 10
      %v2513 = vld [vmem:[%s2512] sm:$0x3]
      %v2514 = vunpack.c.l.b16 %v2459
      %v2515 = vunpack.c.l.b16 %v2462
      %v2516 = vunpack.c.l.b16 %v2466
      %v2517 = vunpack.c.l.b16 %v2469
      %v2518 = vunpack.c.l.b16 %v2473
      %v2519 = vunpack.c.l.b16 %v2476
      %v2520 = vunpack.c.l.b16 %v2480
      %v2521 = vunpack.c.l.b16 %v2483
      %v2522 = vunpack.c.l.b16 %v2487
      %v2523 = vunpack.c.l.b16 %v2490
      %v2524 = vunpack.c.l.b16 %v2494
      %v2525 = vunpack.c.l.b16 %v2497
      %v2526 = vunpack.c.l.b16 %v2501
      %v2527 = vunpack.c.l.b16 %v2504
      %v2528 = vunpack.c.l.b16 %v2508
      %v2529 = vunpack.c.l.b16 %v2511
      %v2530 = vpack.c.b16 %v2515, %v2514
      %v2531 = vpack.c.b16 %v2517, %v2516
      %v2532 = vpack.c.b16 %v2519, %v2518
      %v2533 = vpack.c.b16 %v2521, %v2520
      %v2534 = vpack.c.b16 %v2523, %v2522
      %v2535 = vpack.c.b16 %v2525, %v2524
      %v2536 = vpack.c.b16 %v2527, %v2526
      %v2537 = vpack.c.b16 %v2529, %v2528
      %v2539 = vsel %vm900, %v2530, 0
      %v2542 = vsel %vm900, %v2531, 0
      %v2545 = vsel %vm900, %v2532, 0
      %v2548 = vsel %vm900, %v2533, 0
      %v2551 = vsel %vm900, %v2534, 0
      %v2554 = vsel %vm900, %v2535, 0
      %v2557 = vsel %vm900, %v2536, 0
      %v2560 = vsel %vm900, %v2537, 0
      %v2563 = vsel %vm925, %v2513, 0
      %2565 = vmatprep.subr.bf16.mxu0 0
      %2566 = vmatpush1.bf16.msra.mxu0 0
      %2567 = vmatprep.subr.bf16.mxu0 0
      %2568 = vmatpush1.bf16.msra.mxu0 0
      %2569 = vmatprep.subr.bf16.mxu0 0
      %2570 = vmatpush1.bf16.msra.mxu0 0
      %2571 = vmatprep.subr.bf16.mxu0 0
      %2572 = vmatpush1.bf16.msra.mxu0 0
      %2573 = vmatprep.subr.bf16.mxu0 0
      %2574 = vmatpush1.bf16.msra.mxu0 0
      %2575 = vmatprep.subr.bf16.mxu0 0
      %2576 = vmatpush1.bf16.msra.mxu0 0
      %2577 = vmatprep.subr.bf16.mxu0 0
      %2578 = vmatpush1.bf16.msra.mxu0 0
      %2579 = vmatprep.subr.bf16.mxu0 0
      %2580 = vmatpush1.bf16.msra.mxu0 %v2563
      %2581 = vmatprep.subr.bf16.mxu0 0
      %2582 = vmatpush2.bf16.msra.mxu0 0
      %2583 = vmatprep.subr.bf16.mxu0 0
      %2584 = vmatpush2.bf16.msra.mxu0 0
      %2585 = vmatprep.subr.bf16.mxu0 0
      %2586 = vmatpush2.bf16.msra.mxu0 0
      %2587 = vmatprep.subr.bf16.mxu0 0
      %2588 = vmatpush2.bf16.msra.mxu0 0
      %2589 = vmatprep.subr.bf16.mxu0 0
      %2590 = vmatpush2.bf16.msra.mxu0 0
      %2591 = vmatprep.subr.bf16.mxu0 0
      %2592 = vmatpush2.bf16.msra.mxu0 0
      %2593 = vmatprep.subr.bf16.mxu0 0
      %2594 = vmatpush2.bf16.msra.mxu0 0
      %2595 = vmatprep.subr.bf16.mxu0 0
      %2596 = vmatpush2.bf16.msra.mxu0 0
      %2597 = vmatprep.mubr.bf16.mxu0 0
      %2598 = vmatmul.mubr.bf16.gmra.mxu0 %v2539
      %v2599 = vpop.f32.mrf.mxu0
      %v2600 = vadd.f32 0.0, %v2599
      %v2601 = vpop.f32.mrf.mxu0
      %v2602 = vpop.f32.mrf.mxu0
      %v2603 = vadd.f32 0.0, %v2602
      %v2604 = vpop.f32.mrf.mxu0
      %2605 = vmatprep.mubr.bf16.mxu0 0
      %2606 = vmatmul.mubr.bf16.gmra.mxu0 %v2542
      %v2607 = vpop.f32.mrf.mxu0
      %v2608 = vadd.f32 0.0, %v2607
      %v2609 = vpop.f32.mrf.mxu0
      %v2610 = vpop.f32.mrf.mxu0
      %v2611 = vadd.f32 0.0, %v2610
      %v2612 = vpop.f32.mrf.mxu0
      %2613 = vmatprep.mubr.bf16.mxu0 0
      %2614 = vmatmul.mubr.bf16.gmra.mxu0 %v2545
      %v2615 = vpop.f32.mrf.mxu0
      %v2616 = vadd.f32 0.0, %v2615
      %v2617 = vpop.f32.mrf.mxu0
      %v2618 = vpop.f32.mrf.mxu0
      %v2619 = vadd.f32 0.0, %v2618
      %v2620 = vpop.f32.mrf.mxu0
      %2621 = vmatprep.mubr.bf16.mxu0 0
      %2622 = vmatmul.mubr.bf16.gmra.mxu0 %v2548
      %v2623 = vpop.f32.mrf.mxu0
      %v2624 = vadd.f32 0.0, %v2623
      %v2625 = vpop.f32.mrf.mxu0
      %v2626 = vpop.f32.mrf.mxu0
      %v2627 = vadd.f32 0.0, %v2626
      %v2628 = vpop.f32.mrf.mxu0
      %2629 = vmatprep.mubr.bf16.mxu0 0
      %2630 = vmatmul.mubr.bf16.gmra.mxu0 %v2551
      %v2631 = vpop.f32.mrf.mxu0
      %v2632 = vadd.f32 0.0, %v2631
      %v2633 = vpop.f32.mrf.mxu0
      %v2634 = vpop.f32.mrf.mxu0
      %v2635 = vadd.f32 0.0, %v2634
      %v2636 = vpop.f32.mrf.mxu0
      %2637 = vmatprep.mubr.bf16.mxu0 0
      %2638 = vmatmul.mubr.bf16.gmra.mxu0 %v2554
      %v2639 = vpop.f32.mrf.mxu0
      %v2640 = vadd.f32 0.0, %v2639
      %v2641 = vpop.f32.mrf.mxu0
      %v2642 = vpop.f32.mrf.mxu0
      %v2643 = vadd.f32 0.0, %v2642
      %v2644 = vpop.f32.mrf.mxu0
      %2645 = vmatprep.mubr.bf16.mxu0 0
      %2646 = vmatmul.mubr.bf16.gmra.mxu0 %v2557
      %v2647 = vpop.f32.mrf.mxu0
      %v2648 = vadd.f32 0.0, %v2647
      %v2649 = vpop.f32.mrf.mxu0
      %v2650 = vpop.f32.mrf.mxu0
      %v2651 = vadd.f32 0.0, %v2650
      %v2652 = vpop.f32.mrf.mxu0
      %2653 = vmatprep.mubr.bf16.mxu0 0
      %2654 = vmatmul.mubr.bf16.gmra.mxu0 %v2560
      %v2655 = vpop.f32.mrf.mxu0
      %v2656 = vadd.f32 0.0, %v2655
      %v2657 = vpop.f32.mrf.mxu0
      %v2658 = vpop.f32.mrf.mxu0
      %v2659 = vadd.f32 0.0, %v2658
      %v2660 = vpop.f32.mrf.mxu0
      %2661 = vdwg.mxu0
      %v2662 = vld [vmem:[#allocation3] sm:$0xff]
      %v2663 = vld [vmem:[#allocation3 + $0x8] sm:$0xff]
      %v2664 = vld [vmem:[#allocation3 + $0x10] sm:$0xff]
      %v2665 = vld [vmem:[#allocation3 + $0x18] sm:$0xff]
      %v2666 = vld [vmem:[#allocation3 + $0x20] sm:$0xff]
      %v2667 = vld [vmem:[#allocation3 + $0x28] sm:$0xff]
      %v2668 = vld [vmem:[#allocation3 + $0x30] sm:$0xff]
      %v2669 = vld [vmem:[#allocation3 + $0x38] sm:$0xff]
      %v2670 = vld [vmem:[#allocation3 + $0x40] sm:$0xff]
      %v2671 = vld [vmem:[#allocation3 + $0x48] sm:$0xff]
      %v2672 = vld [vmem:[#allocation3 + $0x50] sm:$0xff]
      %v2673 = vld [vmem:[#allocation3 + $0x58] sm:$0xff]
      %v2674 = vld [vmem:[#allocation3 + $0x60] sm:$0xff]
      %v2675 = vld [vmem:[#allocation3 + $0x68] sm:$0xff]
      %v2676 = vld [vmem:[#allocation3 + $0x70] sm:$0xff]
      %v2677 = vld [vmem:[#allocation3 + $0x78] sm:$0xff]
      %v2678 = vadd.f32 %v2662, %v2600
      %v2679 = vadd.f32 %v2663, %v2603
      %v2680 = vadd.f32 %v2664, %v2608
      %v2681 = vadd.f32 %v2665, %v2611
      %v2682 = vadd.f32 %v2666, %v2616
      %v2683 = vadd.f32 %v2667, %v2619
      %v2684 = vadd.f32 %v2668, %v2624
      %v2685 = vadd.f32 %v2669, %v2627
      %v2686 = vadd.f32 %v2670, %v2632
      %v2687 = vadd.f32 %v2671, %v2635
      %v2688 = vadd.f32 %v2672, %v2640
      %v2689 = vadd.f32 %v2673, %v2643
      %v2690 = vadd.f32 %v2674, %v2648
      %v2691 = vadd.f32 %v2675, %v2651
      %v2692 = vadd.f32 %v2676, %v2656
      %v2693 = vadd.f32 %v2677, %v2659
      %2694 = vst.msk [vmem:[#allocation3] sm:$0xff] %vm900, %v2678
      %2695 = vst.msk [vmem:[#allocation3 + $0x8] sm:$0xff] %vm900, %v2679
      %2696 = vst.msk [vmem:[#allocation3 + $0x10] sm:$0xff] %vm900, %v2680
      %2697 = vst.msk [vmem:[#allocation3 + $0x18] sm:$0xff] %vm900, %v2681
      %2698 = vst.msk [vmem:[#allocation3 + $0x20] sm:$0xff] %vm900, %v2682
      %2699 = vst.msk [vmem:[#allocation3 + $0x28] sm:$0xff] %vm900, %v2683
      %2700 = vst.msk [vmem:[#allocation3 + $0x30] sm:$0xff] %vm900, %v2684
      %2701 = vst.msk [vmem:[#allocation3 + $0x38] sm:$0xff] %vm900, %v2685
      %2702 = vst.msk [vmem:[#allocation3 + $0x40] sm:$0xff] %vm900, %v2686
      %2703 = vst.msk [vmem:[#allocation3 + $0x48] sm:$0xff] %vm900, %v2687
      %2704 = vst.msk [vmem:[#allocation3 + $0x50] sm:$0xff] %vm900, %v2688
      %2705 = vst.msk [vmem:[#allocation3 + $0x58] sm:$0xff] %vm900, %v2689
      %2706 = vst.msk [vmem:[#allocation3 + $0x60] sm:$0xff] %vm900, %v2690
      %2707 = vst.msk [vmem:[#allocation3 + $0x68] sm:$0xff] %vm900, %v2691
      %2708 = vst.msk [vmem:[#allocation3 + $0x70] sm:$0xff] %vm900, %v2692
      %2709 = vst.msk [vmem:[#allocation3 + $0x78] sm:$0xff] %vm900, %v2693
      %s2710 = scalar_lea.vmem [#allocation2], 24
      %v2711 = vld [vmem:[%s2710] sm:$0xf]
      %v2712 = vld [vmem:[%s2710 + $0x4] sm:$0xf]
      %v2713 = vld [vmem:[%s2710 + $0xc] sm:$0xf]
      %v2714 = vld [vmem:[%s2710 + $0x10] sm:$0xf]
      %v2715 = vld [vmem:[%s2710 + $0x18] sm:$0xf]
      %v2716 = vld [vmem:[%s2710 + $0x1c] sm:$0xf]
      %v2717 = vld [vmem:[%s2710 + $0x24] sm:$0xf]
      %v2718 = vld [vmem:[%s2710 + $0x28] sm:$0xf]
      %v2719 = vld [vmem:[%s2710 + $0x30] sm:$0xf]
      %v2720 = vld [vmem:[%s2710 + $0x34] sm:$0xf]
      %v2721 = vld [vmem:[%s2710 + $0x3c] sm:$0xf]
      %v2722 = vld [vmem:[%s2710 + $0x40] sm:$0xf]
      %v2723 = vld [vmem:[%s2710 + $0x48] sm:$0xf]
      %v2724 = vld [vmem:[%s2710 + $0x4c] sm:$0xf]
      %v2725 = vld [vmem:[%s2710 + $0x54] sm:$0xf]
      %v2726 = vld [vmem:[%s2710 + $0x58] sm:$0xf]
      %s2727 = scalar_lea.vmem %s5, 12
      %v2728 = vld [vmem:[%s2727] sm:$0x3]
      %v2745 = vunpack.c.l.b16 %v2711
      %v2746 = vunpack.c.l.b16 %v2712
      %v2747 = vunpack.c.l.b16 %v2713
      %v2748 = vunpack.c.l.b16 %v2714
      %v2749 = vunpack.c.l.b16 %v2715
      %v2750 = vunpack.c.l.b16 %v2716
      %v2751 = vunpack.c.l.b16 %v2717
      %v2752 = vunpack.c.l.b16 %v2718
      %v2753 = vunpack.c.l.b16 %v2719
      %v2754 = vunpack.c.l.b16 %v2720
      %v2755 = vunpack.c.l.b16 %v2721
      %v2756 = vunpack.c.l.b16 %v2722
      %v2757 = vunpack.c.l.b16 %v2723
      %v2758 = vunpack.c.l.b16 %v2724
      %v2759 = vunpack.c.l.b16 %v2725
      %v2760 = vunpack.c.l.b16 %v2726
      %v2761 = vpack.c.b16 %v2746, %v2745
      %v2762 = vpack.c.b16 %v2748, %v2747
      %v2763 = vpack.c.b16 %v2750, %v2749
      %v2764 = vpack.c.b16 %v2752, %v2751
      %v2765 = vpack.c.b16 %v2754, %v2753
      %v2766 = vpack.c.b16 %v2756, %v2755
      %v2767 = vpack.c.b16 %v2758, %v2757
      %v2768 = vpack.c.b16 %v2760, %v2759
      %v2770 = vsel %vm900, %v2761, 0
      %v2773 = vsel %vm900, %v2762, 0
      %v2776 = vsel %vm900, %v2763, 0
      %v2779 = vsel %vm900, %v2764, 0
      %v2782 = vsel %vm900, %v2765, 0
      %v2785 = vsel %vm900, %v2766, 0
      %v2788 = vsel %vm900, %v2767, 0
      %v2791 = vsel %vm900, %v2768, 0
      %v2794 = vsel %vm925, %v2728, 0
      %2796 = vmatprep.subr.bf16.mxu0 0
      %2797 = vmatpush1.bf16.msra.mxu0 0
      %2798 = vmatprep.subr.bf16.mxu0 0
      %2799 = vmatpush1.bf16.msra.mxu0 0
      %2800 = vmatprep.subr.bf16.mxu0 0
      %2801 = vmatpush1.bf16.msra.mxu0 0
      %2802 = vmatprep.subr.bf16.mxu0 0
      %2803 = vmatpush1.bf16.msra.mxu0 0
      %2804 = vmatprep.subr.bf16.mxu0 0
      %2805 = vmatpush1.bf16.msra.mxu0 0
      %2806 = vmatprep.subr.bf16.mxu0 0
      %2807 = vmatpush1.bf16.msra.mxu0 0
      %2808 = vmatprep.subr.bf16.mxu0 0
      %2809 = vmatpush1.bf16.msra.mxu0 0
      %2810 = vmatprep.subr.bf16.mxu0 0
      %2811 = vmatpush1.bf16.msra.mxu0 %v2794
      %2812 = vmatprep.subr.bf16.mxu0 0
      %2813 = vmatpush2.bf16.msra.mxu0 0
      %2814 = vmatprep.subr.bf16.mxu0 0
      %2815 = vmatpush2.bf16.msra.mxu0 0
      %2816 = vmatprep.subr.bf16.mxu0 0
      %2817 = vmatpush2.bf16.msra.mxu0 0
      %2818 = vmatprep.subr.bf16.mxu0 0
      %2819 = vmatpush2.bf16.msra.mxu0 0
      %2820 = vmatprep.subr.bf16.mxu0 0
      %2821 = vmatpush2.bf16.msra.mxu0 0
      %2822 = vmatprep.subr.bf16.mxu0 0
      %2823 = vmatpush2.bf16.msra.mxu0 0
      %2824 = vmatprep.subr.bf16.mxu0 0
      %2825 = vmatpush2.bf16.msra.mxu0 0
      %2826 = vmatprep.subr.bf16.mxu0 0
      %2827 = vmatpush2.bf16.msra.mxu0 0
      %2828 = vmatprep.mubr.bf16.mxu0 0
      %2829 = vmatmul.mubr.bf16.gmra.mxu0 %v2770
      %v2830 = vpop.f32.mrf.mxu0
      %v2831 = vadd.f32 0.0, %v2830
      %v2832 = vpop.f32.mrf.mxu0
      %v2833 = vpop.f32.mrf.mxu0
      %v2834 = vadd.f32 0.0, %v2833
      %v2835 = vpop.f32.mrf.mxu0
      %2836 = vmatprep.mubr.bf16.mxu0 0
      %2837 = vmatmul.mubr.bf16.gmra.mxu0 %v2773
      %v2838 = vpop.f32.mrf.mxu0
      %v2839 = vadd.f32 0.0, %v2838
      %v2840 = vpop.f32.mrf.mxu0
      %v2841 = vpop.f32.mrf.mxu0
      %v2842 = vadd.f32 0.0, %v2841
      %v2843 = vpop.f32.mrf.mxu0
      %2844 = vmatprep.mubr.bf16.mxu0 0
      %2845 = vmatmul.mubr.bf16.gmra.mxu0 %v2776
      %v2846 = vpop.f32.mrf.mxu0
      %v2847 = vadd.f32 0.0, %v2846
      %v2848 = vpop.f32.mrf.mxu0
      %v2849 = vpop.f32.mrf.mxu0
      %v2850 = vadd.f32 0.0, %v2849
      %v2851 = vpop.f32.mrf.mxu0
      %2852 = vmatprep.mubr.bf16.mxu0 0
      %2853 = vmatmul.mubr.bf16.gmra.mxu0 %v2779
      %v2854 = vpop.f32.mrf.mxu0
      %v2855 = vadd.f32 0.0, %v2854
      %v2856 = vpop.f32.mrf.mxu0
      %v2857 = vpop.f32.mrf.mxu0
      %v2858 = vadd.f32 0.0, %v2857
      %v2859 = vpop.f32.mrf.mxu0
      %2860 = vmatprep.mubr.bf16.mxu0 0
      %2861 = vmatmul.mubr.bf16.gmra.mxu0 %v2782
      %v2862 = vpop.f32.mrf.mxu0
      %v2863 = vadd.f32 0.0, %v2862
      %v2864 = vpop.f32.mrf.mxu0
      %v2865 = vpop.f32.mrf.mxu0
      %v2866 = vadd.f32 0.0, %v2865
      %v2867 = vpop.f32.mrf.mxu0
      %2868 = vmatprep.mubr.bf16.mxu0 0
      %2869 = vmatmul.mubr.bf16.gmra.mxu0 %v2785
      %v2870 = vpop.f32.mrf.mxu0
      %v2871 = vadd.f32 0.0, %v2870
      %v2872 = vpop.f32.mrf.mxu0
      %v2873 = vpop.f32.mrf.mxu0
      %v2874 = vadd.f32 0.0, %v2873
      %v2875 = vpop.f32.mrf.mxu0
      %2876 = vmatprep.mubr.bf16.mxu0 0
      %2877 = vmatmul.mubr.bf16.gmra.mxu0 %v2788
      %v2878 = vpop.f32.mrf.mxu0
      %v2879 = vadd.f32 0.0, %v2878
      %v2880 = vpop.f32.mrf.mxu0
      %v2881 = vpop.f32.mrf.mxu0
      %v2882 = vadd.f32 0.0, %v2881
      %v2883 = vpop.f32.mrf.mxu0
      %2884 = vmatprep.mubr.bf16.mxu0 0
      %2885 = vmatmul.mubr.bf16.gmra.mxu0 %v2791
      %v2886 = vpop.f32.mrf.mxu0
      %v2887 = vadd.f32 0.0, %v2886
      %v2888 = vpop.f32.mrf.mxu0
      %v2889 = vpop.f32.mrf.mxu0
      %v2890 = vadd.f32 0.0, %v2889
      %v2891 = vpop.f32.mrf.mxu0
      %2892 = vdwg.mxu0
      %v2893 = vld [vmem:[#allocation3] sm:$0xff]
      %v2894 = vld [vmem:[#allocation3 + $0x8] sm:$0xff]
      %v2895 = vld [vmem:[#allocation3 + $0x10] sm:$0xff]
      %v2896 = vld [vmem:[#allocation3 + $0x18] sm:$0xff]
      %v2897 = vld [vmem:[#allocation3 + $0x20] sm:$0xff]
      %v2898 = vld [vmem:[#allocation3 + $0x28] sm:$0xff]
      %v2899 = vld [vmem:[#allocation3 + $0x30] sm:$0xff]
      %v2900 = vld [vmem:[#allocation3 + $0x38] sm:$0xff]
      %v2901 = vld [vmem:[#allocation3 + $0x40] sm:$0xff]
      %v2902 = vld [vmem:[#allocation3 + $0x48] sm:$0xff]
      %v2903 = vld [vmem:[#allocation3 + $0x50] sm:$0xff]
      %v2904 = vld [vmem:[#allocation3 + $0x58] sm:$0xff]
      %v2905 = vld [vmem:[#allocation3 + $0x60] sm:$0xff]
      %v2906 = vld [vmem:[#allocation3 + $0x68] sm:$0xff]
      %v2907 = vld [vmem:[#allocation3 + $0x70] sm:$0xff]
      %v2908 = vld [vmem:[#allocation3 + $0x78] sm:$0xff]
      %v2909 = vadd.f32 %v2893, %v2831
      %v2910 = vadd.f32 %v2894, %v2834
      %v2911 = vadd.f32 %v2895, %v2839
      %v2912 = vadd.f32 %v2896, %v2842
      %v2913 = vadd.f32 %v2897, %v2847
      %v2914 = vadd.f32 %v2898, %v2850
      %v2915 = vadd.f32 %v2899, %v2855
      %v2916 = vadd.f32 %v2900, %v2858
      %v2917 = vadd.f32 %v2901, %v2863
      %v2918 = vadd.f32 %v2902, %v2866
      %v2919 = vadd.f32 %v2903, %v2871
      %v2920 = vadd.f32 %v2904, %v2874
      %v2921 = vadd.f32 %v2905, %v2879
      %v2922 = vadd.f32 %v2906, %v2882
      %v2923 = vadd.f32 %v2907, %v2887
      %v2924 = vadd.f32 %v2908, %v2890
      %2925 = vst.msk [vmem:[#allocation3] sm:$0xff] %vm900, %v2909
      %2926 = vst.msk [vmem:[#allocation3 + $0x8] sm:$0xff] %vm900, %v2910
      %2927 = vst.msk [vmem:[#allocation3 + $0x10] sm:$0xff] %vm900, %v2911
      %2928 = vst.msk [vmem:[#allocation3 + $0x18] sm:$0xff] %vm900, %v2912
      %2929 = vst.msk [vmem:[#allocation3 + $0x20] sm:$0xff] %vm900, %v2913
      %2930 = vst.msk [vmem:[#allocation3 + $0x28] sm:$0xff] %vm900, %v2914
      %2931 = vst.msk [vmem:[#allocation3 + $0x30] sm:$0xff] %vm900, %v2915
      %2932 = vst.msk [vmem:[#allocation3 + $0x38] sm:$0xff] %vm900, %v2916
      %2933 = vst.msk [vmem:[#allocation3 + $0x40] sm:$0xff] %vm900, %v2917
      %2934 = vst.msk [vmem:[#allocation3 + $0x48] sm:$0xff] %vm900, %v2918
      %2935 = vst.msk [vmem:[#allocation3 + $0x50] sm:$0xff] %vm900, %v2919
      %2936 = vst.msk [vmem:[#allocation3 + $0x58] sm:$0xff] %vm900, %v2920
      %2937 = vst.msk [vmem:[#allocation3 + $0x60] sm:$0xff] %vm900, %v2921
      %2938 = vst.msk [vmem:[#allocation3 + $0x68] sm:$0xff] %vm900, %v2922
      %2939 = vst.msk [vmem:[#allocation3 + $0x70] sm:$0xff] %vm900, %v2923
      %2940 = vst.msk [vmem:[#allocation3 + $0x78] sm:$0xff] %vm900, %v2924
      %v2941 = vld [vmem:[%s2710] sm:$0xf]
      %v2942 = vld [vmem:[%s2710 + $0x4] sm:$0xf]
      %v2943 = vld [vmem:[%s2710 + $0x8] sm:$0x1]
      %v2944 = vld [vmem:[%s2710 + $0xc] sm:$0xf]
      %v2945 = vld [vmem:[%s2710 + $0x10] sm:$0xf]
      %v2946 = vld [vmem:[%s2710 + $0x14] sm:$0x1]
      %v2947 = vld [vmem:[%s2710 + $0x18] sm:$0xf]
      %v2948 = vld [vmem:[%s2710 + $0x1c] sm:$0xf]
      %v2949 = vld [vmem:[%s2710 + $0x20] sm:$0x1]
      %v2950 = vld [vmem:[%s2710 + $0x24] sm:$0xf]
      %v2951 = vld [vmem:[%s2710 + $0x28] sm:$0xf]
      %v2952 = vld [vmem:[%s2710 + $0x2c] sm:$0x1]
      %v2953 = vld [vmem:[%s2710 + $0x30] sm:$0xf]
      %v2954 = vld [vmem:[%s2710 + $0x34] sm:$0xf]
      %v2955 = vld [vmem:[%s2710 + $0x38] sm:$0x1]
      %v2956 = vld [vmem:[%s2710 + $0x3c] sm:$0xf]
      %v2957 = vld [vmem:[%s2710 + $0x40] sm:$0xf]
      %v2958 = vld [vmem:[%s2710 + $0x44] sm:$0x1]
      %v2959 = vld [vmem:[%s2710 + $0x48] sm:$0xf]
      %v2960 = vld [vmem:[%s2710 + $0x4c] sm:$0xf]
      %v2961 = vld [vmem:[%s2710 + $0x50] sm:$0x1]
      %v2962 = vld [vmem:[%s2710 + $0x54] sm:$0xf]
      %v2963 = vld [vmem:[%s2710 + $0x58] sm:$0xf]
      %v2964 = vld [vmem:[%s2710 + $0x5c] sm:$0x1]
      %v2966 = vshrl.u32 %v2941, 16
      %v2968 = vrot.slane %v2966, 4
      %v2969 = vshll.u32 %v2941, 16
      %v2971 = vrot.slane %v2969, 5
      %v2972 = vor.u32 %v2968, %v2971
      %v2973 = vrot.slane %v2972, 4
      %v2975 = vshll.u32 %v2942, 16
      %v2977 = vrot.slane %v2975, 5
      %v2978 = vsel %vm1068, %v2973, %v2977
      %v2979 = vshrl.u32 %v2942, 16
      %v2981 = vrot.slane %v2979, 4
      %v2982 = vor.u32 %v2981, %v2977
      %v2983 = vrot.slane %v2982, 4
      %v2985 = vshll.u32 %v2943, 16
      %v2987 = vrot.slane %v2985, 5
      %v2988 = vsel %vm1068, %v2983, %v2987
      %v2990 = vshrl.u32 %v2944, 16
      %v2992 = vrot.slane %v2990, 4
      %v2993 = vshll.u32 %v2944, 16
      %v2995 = vrot.slane %v2993, 5
      %v2996 = vor.u32 %v2992, %v2995
      %v2997 = vrot.slane %v2996, 4
      %v2999 = vshll.u32 %v2945, 16
      %v3001 = vrot.slane %v2999, 5
      %v3002 = vsel %vm1068, %v2997, %v3001
      %v3003 = vshrl.u32 %v2945, 16
      %v3005 = vrot.slane %v3003, 4
      %v3006 = vor.u32 %v3005, %v3001
      %v3007 = vrot.slane %v3006, 4
      %v3009 = vshll.u32 %v2946, 16
      %v3011 = vrot.slane %v3009, 5
      %v3012 = vsel %vm1068, %v3007, %v3011
      %v3014 = vshrl.u32 %v2947, 16
      %v3016 = vrot.slane %v3014, 4
      %v3017 = vshll.u32 %v2947, 16
      %v3019 = vrot.slane %v3017, 5
      %v3020 = vor.u32 %v3016, %v3019
      %v3021 = vrot.slane %v3020, 4
      %v3023 = vshll.u32 %v2948, 16
      %v3025 = vrot.slane %v3023, 5
      %v3026 = vsel %vm1068, %v3021, %v3025
      %v3027 = vshrl.u32 %v2948, 16
      %v3029 = vrot.slane %v3027, 4
      %v3030 = vor.u32 %v3029, %v3025
      %v3031 = vrot.slane %v3030, 4
      %v3033 = vshll.u32 %v2949, 16
      %v3035 = vrot.slane %v3033, 5
      %v3036 = vsel %vm1068, %v3031, %v3035
      %v3038 = vshrl.u32 %v2950, 16
      %v3040 = vrot.slane %v3038, 4
      %v3041 = vshll.u32 %v2950, 16
      %v3043 = vrot.slane %v3041, 5
      %v3044 = vor.u32 %v3040, %v3043
      %v3045 = vrot.slane %v3044, 4
      %v3047 = vshll.u32 %v2951, 16
      %v3049 = vrot.slane %v3047, 5
      %v3050 = vsel %vm1068, %v3045, %v3049
      %v3051 = vshrl.u32 %v2951, 16
      %v3053 = vrot.slane %v3051, 4
      %v3054 = vor.u32 %v3053, %v3049
      %v3055 = vrot.slane %v3054, 4
      %v3057 = vshll.u32 %v2952, 16
      %v3059 = vrot.slane %v3057, 5
      %v3060 = vsel %vm1068, %v3055, %v3059
      %v3062 = vshrl.u32 %v2953, 16
      %v3064 = vrot.slane %v3062, 4
      %v3065 = vshll.u32 %v2953, 16
      %v3067 = vrot.slane %v3065, 5
      %v3068 = vor.u32 %v3064, %v3067
      %v3069 = vrot.slane %v3068, 4
      %v3071 = vshll.u32 %v2954, 16
      %v3073 = vrot.slane %v3071, 5
      %v3074 = vsel %vm1068, %v3069, %v3073
      %v3075 = vshrl.u32 %v2954, 16
      %v3077 = vrot.slane %v3075, 4
      %v3078 = vor.u32 %v3077, %v3073
      %v3079 = vrot.slane %v3078, 4
      %v3081 = vshll.u32 %v2955, 16
      %v3083 = vrot.slane %v3081, 5
      %v3084 = vsel %vm1068, %v3079, %v3083
      %v3086 = vshrl.u32 %v2956, 16
      %v3088 = vrot.slane %v3086, 4
      %v3089 = vshll.u32 %v2956, 16
      %v3091 = vrot.slane %v3089, 5
      %v3092 = vor.u32 %v3088, %v3091
      %v3093 = vrot.slane %v3092, 4
      %v3095 = vshll.u32 %v2957, 16
      %v3097 = vrot.slane %v3095, 5
      %v3098 = vsel %vm1068, %v3093, %v3097
      %v3099 = vshrl.u32 %v2957, 16
      %v3101 = vrot.slane %v3099, 4
      %v3102 = vor.u32 %v3101, %v3097
      %v3103 = vrot.slane %v3102, 4
      %v3105 = vshll.u32 %v2958, 16
      %v3107 = vrot.slane %v3105, 5
      %v3108 = vsel %vm1068, %v3103, %v3107
      %v3110 = vshrl.u32 %v2959, 16
      %v3112 = vrot.slane %v3110, 4
      %v3113 = vshll.u32 %v2959, 16
      %v3115 = vrot.slane %v3113, 5
      %v3116 = vor.u32 %v3112, %v3115
      %v3117 = vrot.slane %v3116, 4
      %v3119 = vshll.u32 %v2960, 16
      %v3121 = vrot.slane %v3119, 5
      %v3122 = vsel %vm1068, %v3117, %v3121
      %v3123 = vshrl.u32 %v2960, 16
      %v3125 = vrot.slane %v3123, 4
      %v3126 = vor.u32 %v3125, %v3121
      %v3127 = vrot.slane %v3126, 4
      %v3129 = vshll.u32 %v2961, 16
      %v3131 = vrot.slane %v3129, 5
      %v3132 = vsel %vm1068, %v3127, %v3131
      %v3134 = vshrl.u32 %v2962, 16
      %v3136 = vrot.slane %v3134, 4
      %v3137 = vshll.u32 %v2962, 16
      %v3139 = vrot.slane %v3137, 5
      %v3140 = vor.u32 %v3136, %v3139
      %v3141 = vrot.slane %v3140, 4
      %v3143 = vshll.u32 %v2963, 16
      %v3145 = vrot.slane %v3143, 5
      %v3146 = vsel %vm1068, %v3141, %v3145
      %v3147 = vshrl.u32 %v2963, 16
      %v3149 = vrot.slane %v3147, 4
      %v3150 = vor.u32 %v3149, %v3145
      %v3151 = vrot.slane %v3150, 4
      %v3153 = vshll.u32 %v2964, 16
      %v3155 = vrot.slane %v3153, 5
      %v3156 = vsel %vm1068, %v3151, %v3155
      %s3157 = scalar_lea.vmem %s5, 14
      %v3158 = vld [vmem:[%s3157] sm:$0x3]
      %v3159 = vunpack.c.l.b16 %v2978
      %v3160 = vunpack.c.l.b16 %v2988
      %v3161 = vunpack.c.l.b16 %v3002
      %v3162 = vunpack.c.l.b16 %v3012
      %v3163 = vunpack.c.l.b16 %v3026
      %v3164 = vunpack.c.l.b16 %v3036
      %v3165 = vunpack.c.l.b16 %v3050
      %v3166 = vunpack.c.l.b16 %v3060
      %v3167 = vunpack.c.l.b16 %v3074
      %v3168 = vunpack.c.l.b16 %v3084
      %v3169 = vunpack.c.l.b16 %v3098
      %v3170 = vunpack.c.l.b16 %v3108
      %v3171 = vunpack.c.l.b16 %v3122
      %v3172 = vunpack.c.l.b16 %v3132
      %v3173 = vunpack.c.l.b16 %v3146
      %v3174 = vunpack.c.l.b16 %v3156
      %v3175 = vpack.c.b16 %v3160, %v3159
      %v3176 = vpack.c.b16 %v3162, %v3161
      %v3177 = vpack.c.b16 %v3164, %v3163
      %v3178 = vpack.c.b16 %v3166, %v3165
      %v3179 = vpack.c.b16 %v3168, %v3167
      %v3180 = vpack.c.b16 %v3170, %v3169
      %v3181 = vpack.c.b16 %v3172, %v3171
      %v3182 = vpack.c.b16 %v3174, %v3173
      %v3184 = vsel %vm900, %v3175, 0
      %v3187 = vsel %vm900, %v3176, 0
      %v3190 = vsel %vm900, %v3177, 0
      %v3193 = vsel %vm900, %v3178, 0
      %v3196 = vsel %vm900, %v3179, 0
      %v3199 = vsel %vm900, %v3180, 0
      %v3202 = vsel %vm900, %v3181, 0
      %v3205 = vsel %vm900, %v3182, 0
      %v3208 = vsel %vm925, %v3158, 0
      %3210 = vmatprep.subr.bf16.mxu0 0
      %3211 = vmatpush1.bf16.msra.mxu0 0
      %3212 = vmatprep.subr.bf16.mxu0 0
      %3213 = vmatpush1.bf16.msra.mxu0 0
      %3214 = vmatprep.subr.bf16.mxu0 0
      %3215 = vmatpush1.bf16.msra.mxu0 0
      %3216 = vmatprep.subr.bf16.mxu0 0
      %3217 = vmatpush1.bf16.msra.mxu0 0
      %3218 = vmatprep.subr.bf16.mxu0 0
      %3219 = vmatpush1.bf16.msra.mxu0 0
      %3220 = vmatprep.subr.bf16.mxu0 0
      %3221 = vmatpush1.bf16.msra.mxu0 0
      %3222 = vmatprep.subr.bf16.mxu0 0
      %3223 = vmatpush1.bf16.msra.mxu0 0
      %3224 = vmatprep.subr.bf16.mxu0 0
      %3225 = vmatpush1.bf16.msra.mxu0 %v3208
      %3226 = vmatprep.subr.bf16.mxu0 0
      %3227 = vmatpush2.bf16.msra.mxu0 0
      %3228 = vmatprep.subr.bf16.mxu0 0
      %3229 = vmatpush2.bf16.msra.mxu0 0
      %3230 = vmatprep.subr.bf16.mxu0 0
      %3231 = vmatpush2.bf16.msra.mxu0 0
      %3232 = vmatprep.subr.bf16.mxu0 0
      %3233 = vmatpush2.bf16.msra.mxu0 0
      %3234 = vmatprep.subr.bf16.mxu0 0
      %3235 = vmatpush2.bf16.msra.mxu0 0
      %3236 = vmatprep.subr.bf16.mxu0 0
      %3237 = vmatpush2.bf16.msra.mxu0 0
      %3238 = vmatprep.subr.bf16.mxu0 0
      %3239 = vmatpush2.bf16.msra.mxu0 0
      %3240 = vmatprep.subr.bf16.mxu0 0
      %3241 = vmatpush2.bf16.msra.mxu0 0
      %3242 = vmatprep.mubr.bf16.mxu0 0
      %3243 = vmatmul.mubr.bf16.gmra.mxu0 %v3184
      %v3244 = vpop.f32.mrf.mxu0
      %v3245 = vadd.f32 0.0, %v3244
      %v3246 = vpop.f32.mrf.mxu0
      %v3247 = vpop.f32.mrf.mxu0
      %v3248 = vadd.f32 0.0, %v3247
      %v3249 = vpop.f32.mrf.mxu0
      %3250 = vmatprep.mubr.bf16.mxu0 0
      %3251 = vmatmul.mubr.bf16.gmra.mxu0 %v3187
      %v3252 = vpop.f32.mrf.mxu0
      %v3253 = vadd.f32 0.0, %v3252
      %v3254 = vpop.f32.mrf.mxu0
      %v3255 = vpop.f32.mrf.mxu0
      %v3256 = vadd.f32 0.0, %v3255
      %v3257 = vpop.f32.mrf.mxu0
      %3258 = vmatprep.mubr.bf16.mxu0 0
      %3259 = vmatmul.mubr.bf16.gmra.mxu0 %v3190
      %v3260 = vpop.f32.mrf.mxu0
      %v3261 = vadd.f32 0.0, %v3260
      %v3262 = vpop.f32.mrf.mxu0
      %v3263 = vpop.f32.mrf.mxu0
      %v3264 = vadd.f32 0.0, %v3263
      %v3265 = vpop.f32.mrf.mxu0
      %3266 = vmatprep.mubr.bf16.mxu0 0
      %3267 = vmatmul.mubr.bf16.gmra.mxu0 %v3193
      %v3268 = vpop.f32.mrf.mxu0
      %v3269 = vadd.f32 0.0, %v3268
      %v3270 = vpop.f32.mrf.mxu0
      %v3271 = vpop.f32.mrf.mxu0
      %v3272 = vadd.f32 0.0, %v3271
      %v3273 = vpop.f32.mrf.mxu0
      %3274 = vmatprep.mubr.bf16.mxu0 0
      %3275 = vmatmul.mubr.bf16.gmra.mxu0 %v3196
      %v3276 = vpop.f32.mrf.mxu0
      %v3277 = vadd.f32 0.0, %v3276
      %v3278 = vpop.f32.mrf.mxu0
      %v3279 = vpop.f32.mrf.mxu0
      %v3280 = vadd.f32 0.0, %v3279
      %v3281 = vpop.f32.mrf.mxu0
      %3282 = vmatprep.mubr.bf16.mxu0 0
      %3283 = vmatmul.mubr.bf16.gmra.mxu0 %v3199
      %v3284 = vpop.f32.mrf.mxu0
      %v3285 = vadd.f32 0.0, %v3284
      %v3286 = vpop.f32.mrf.mxu0
      %v3287 = vpop.f32.mrf.mxu0
      %v3288 = vadd.f32 0.0, %v3287
      %v3289 = vpop.f32.mrf.mxu0
      %3290 = vmatprep.mubr.bf16.mxu0 0
      %3291 = vmatmul.mubr.bf16.gmra.mxu0 %v3202
      %v3292 = vpop.f32.mrf.mxu0
      %v3293 = vadd.f32 0.0, %v3292
      %v3294 = vpop.f32.mrf.mxu0
      %v3295 = vpop.f32.mrf.mxu0
      %v3296 = vadd.f32 0.0, %v3295
      %v3297 = vpop.f32.mrf.mxu0
      %3298 = vmatprep.mubr.bf16.mxu0 0
      %3299 = vmatmul.mubr.bf16.gmra.mxu0 %v3205
      %v3300 = vpop.f32.mrf.mxu0
      %v3301 = vadd.f32 0.0, %v3300
      %v3302 = vpop.f32.mrf.mxu0
      %v3303 = vpop.f32.mrf.mxu0
      %v3304 = vadd.f32 0.0, %v3303
      %v3305 = vpop.f32.mrf.mxu0
      %3306 = vdwg.mxu0
      %v3307 = vld [vmem:[#allocation3] sm:$0xff]
      %v3308 = vld [vmem:[#allocation3 + $0x8] sm:$0xff]
      %v3309 = vld [vmem:[#allocation3 + $0x10] sm:$0xff]
      %v3310 = vld [vmem:[#allocation3 + $0x18] sm:$0xff]
      %v3311 = vld [vmem:[#allocation3 + $0x20] sm:$0xff]
      %v3312 = vld [vmem:[#allocation3 + $0x28] sm:$0xff]
      %v3313 = vld [vmem:[#allocation3 + $0x30] sm:$0xff]
      %v3314 = vld [vmem:[#allocation3 + $0x38] sm:$0xff]
      %v3315 = vld [vmem:[#allocation3 + $0x40] sm:$0xff]
      %v3316 = vld [vmem:[#allocation3 + $0x48] sm:$0xff]
      %v3317 = vld [vmem:[#allocation3 + $0x50] sm:$0xff]
      %v3318 = vld [vmem:[#allocation3 + $0x58] sm:$0xff]
      %v3319 = vld [vmem:[#allocation3 + $0x60] sm:$0xff]
      %v3320 = vld [vmem:[#allocation3 + $0x68] sm:$0xff]
      %v3321 = vld [vmem:[#allocation3 + $0x70] sm:$0xff]
      %v3322 = vld [vmem:[#allocation3 + $0x78] sm:$0xff]
      %v3323 = vadd.f32 %v3307, %v3245
      %v3324 = vadd.f32 %v3308, %v3248
      %v3325 = vadd.f32 %v3309, %v3253
      %v3326 = vadd.f32 %v3310, %v3256
      %v3327 = vadd.f32 %v3311, %v3261
      %v3328 = vadd.f32 %v3312, %v3264
      %v3329 = vadd.f32 %v3313, %v3269
      %v3330 = vadd.f32 %v3314, %v3272
      %v3331 = vadd.f32 %v3315, %v3277
      %v3332 = vadd.f32 %v3316, %v3280
      %v3333 = vadd.f32 %v3317, %v3285
      %v3334 = vadd.f32 %v3318, %v3288
      %v3335 = vadd.f32 %v3319, %v3293
      %v3336 = vadd.f32 %v3320, %v3296
      %v3337 = vadd.f32 %v3321, %v3301
      %v3338 = vadd.f32 %v3322, %v3304
      %3339 = vst.msk [vmem:[#allocation3] sm:$0xff] %vm900, %v3323
      %3340 = vst.msk [vmem:[#allocation3 + $0x8] sm:$0xff] %vm900, %v3324
      %3341 = vst.msk [vmem:[#allocation3 + $0x10] sm:$0xff] %vm900, %v3325
      %3342 = vst.msk [vmem:[#allocation3 + $0x18] sm:$0xff] %vm900, %v3326
      %3343 = vst.msk [vmem:[#allocation3 + $0x20] sm:$0xff] %vm900, %v3327
      %3344 = vst.msk [vmem:[#allocation3 + $0x28] sm:$0xff] %vm900, %v3328
      %3345 = vst.msk [vmem:[#allocation3 + $0x30] sm:$0xff] %vm900, %v3329
      %3346 = vst.msk [vmem:[#allocation3 + $0x38] sm:$0xff] %vm900, %v3330
      %3347 = vst.msk [vmem:[#allocation3 + $0x40] sm:$0xff] %vm900, %v3331
      %3348 = vst.msk [vmem:[#allocation3 + $0x48] sm:$0xff] %vm900, %v3332
      %3349 = vst.msk [vmem:[#allocation3 + $0x50] sm:$0xff] %vm900, %v3333
      %3350 = vst.msk [vmem:[#allocation3 + $0x58] sm:$0xff] %vm900, %v3334
      %3351 = vst.msk [vmem:[#allocation3 + $0x60] sm:$0xff] %vm900, %v3335
      %3352 = vst.msk [vmem:[#allocation3 + $0x68] sm:$0xff] %vm900, %v3336
      %3353 = vst.msk [vmem:[#allocation3 + $0x70] sm:$0xff] %vm900, %v3337
      %3354 = vst.msk [vmem:[#allocation3 + $0x78] sm:$0xff] %vm900, %v3338
      %v3355 = vld [vmem:[%s2710] sm:$0xe]
      %v3356 = vld [vmem:[%s2710 + $0x4] sm:$0xf]
      %v3357 = vld [vmem:[%s2710 + $0x8] sm:$0x1]
      %v3358 = vld [vmem:[%s2710 + $0xc] sm:$0xe]
      %v3359 = vld [vmem:[%s2710 + $0x10] sm:$0xf]
      %v3360 = vld [vmem:[%s2710 + $0x14] sm:$0x1]
      %v3361 = vld [vmem:[%s2710 + $0x18] sm:$0xe]
      %v3362 = vld [vmem:[%s2710 + $0x1c] sm:$0xf]
      %v3363 = vld [vmem:[%s2710 + $0x20] sm:$0x1]
      %v3364 = vld [vmem:[%s2710 + $0x24] sm:$0xe]
      %v3365 = vld [vmem:[%s2710 + $0x28] sm:$0xf]
      %v3366 = vld [vmem:[%s2710 + $0x2c] sm:$0x1]
      %v3367 = vld [vmem:[%s2710 + $0x30] sm:$0xe]
      %v3368 = vld [vmem:[%s2710 + $0x34] sm:$0xf]
      %v3369 = vld [vmem:[%s2710 + $0x38] sm:$0x1]
      %v3370 = vld [vmem:[%s2710 + $0x3c] sm:$0xe]
      %v3371 = vld [vmem:[%s2710 + $0x40] sm:$0xf]
      %v3372 = vld [vmem:[%s2710 + $0x44] sm:$0x1]
      %v3373 = vld [vmem:[%s2710 + $0x48] sm:$0xe]
      %v3374 = vld [vmem:[%s2710 + $0x4c] sm:$0xf]
      %v3375 = vld [vmem:[%s2710 + $0x50] sm:$0x1]
      %v3376 = vld [vmem:[%s2710 + $0x54] sm:$0xe]
      %v3377 = vld [vmem:[%s2710 + $0x58] sm:$0xf]
      %v3378 = vld [vmem:[%s2710 + $0x5c] sm:$0x1]
      %v3403 = vrot.slane %v3355, 5
      %v3404 = vrot.slane %v3403, 4
      %v3405 = vrot.slane %v3356, 5
      %v3406 = vsel %vm1509, %v3404, %v3405
      %v3407 = vrot.slane %v3405, 4
      %v3408 = vrot.slane %v3357, 5
      %v3409 = vsel %vm1509, %v3407, %v3408
      %v3410 = vrot.slane %v3358, 5
      %v3411 = vrot.slane %v3410, 4
      %v3412 = vrot.slane %v3359, 5
      %v3413 = vsel %vm1509, %v3411, %v3412
      %v3414 = vrot.slane %v3412, 4
      %v3415 = vrot.slane %v3360, 5
      %v3416 = vsel %vm1509, %v3414, %v3415
      %v3417 = vrot.slane %v3361, 5
      %v3418 = vrot.slane %v3417, 4
      %v3419 = vrot.slane %v3362, 5
      %v3420 = vsel %vm1509, %v3418, %v3419
      %v3421 = vrot.slane %v3419, 4
      %v3422 = vrot.slane %v3363, 5
      %v3423 = vsel %vm1509, %v3421, %v3422
      %v3424 = vrot.slane %v3364, 5
      %v3425 = vrot.slane %v3424, 4
      %v3426 = vrot.slane %v3365, 5
      %v3427 = vsel %vm1509, %v3425, %v3426
      %v3428 = vrot.slane %v3426, 4
      %v3429 = vrot.slane %v3366, 5
      %v3430 = vsel %vm1509, %v3428, %v3429
      %v3431 = vrot.slane %v3367, 5
      %v3432 = vrot.slane %v3431, 4
      %v3433 = vrot.slane %v3368, 5
      %v3434 = vsel %vm1509, %v3432, %v3433
      %v3435 = vrot.slane %v3433, 4
      %v3436 = vrot.slane %v3369, 5
      %v3437 = vsel %vm1509, %v3435, %v3436
      %v3438 = vrot.slane %v3370, 5
      %v3439 = vrot.slane %v3438, 4
      %v3440 = vrot.slane %v3371, 5
      %v3441 = vsel %vm1509, %v3439, %v3440
      %v3442 = vrot.slane %v3440, 4
      %v3443 = vrot.slane %v3372, 5
      %v3444 = vsel %vm1509, %v3442, %v3443
      %v3445 = vrot.slane %v3373, 5
      %v3446 = vrot.slane %v3445, 4
      %v3447 = vrot.slane %v3374, 5
      %v3448 = vsel %vm1509, %v3446, %v3447
      %v3449 = vrot.slane %v3447, 4
      %v3450 = vrot.slane %v3375, 5
      %v3451 = vsel %vm1509, %v3449, %v3450
      %v3452 = vrot.slane %v3376, 5
      %v3453 = vrot.slane %v3452, 4
      %v3454 = vrot.slane %v3377, 5
      %v3455 = vsel %vm1509, %v3453, %v3454
      %v3456 = vrot.slane %v3454, 4
      %v3457 = vrot.slane %v3378, 5
      %v3458 = vsel %vm1509, %v3456, %v3457
      %s3459 = scalar_lea.vmem %s5, 16
      %v3460 = vld [vmem:[%s3459] sm:$0x3]
      %v3461 = vunpack.c.l.b16 %v3406
      %v3462 = vunpack.c.l.b16 %v3409
      %v3463 = vunpack.c.l.b16 %v3413
      %v3464 = vunpack.c.l.b16 %v3416
      %v3465 = vunpack.c.l.b16 %v3420
      %v3466 = vunpack.c.l.b16 %v3423
      %v3467 = vunpack.c.l.b16 %v3427
      %v3468 = vunpack.c.l.b16 %v3430
      %v3469 = vunpack.c.l.b16 %v3434
      %v3470 = vunpack.c.l.b16 %v3437
      %v3471 = vunpack.c.l.b16 %v3441
      %v3472 = vunpack.c.l.b16 %v3444
      %v3473 = vunpack.c.l.b16 %v3448
      %v3474 = vunpack.c.l.b16 %v3451
      %v3475 = vunpack.c.l.b16 %v3455
      %v3476 = vunpack.c.l.b16 %v3458
      %v3477 = vpack.c.b16 %v3462, %v3461
      %v3478 = vpack.c.b16 %v3464, %v3463
      %v3479 = vpack.c.b16 %v3466, %v3465
      %v3480 = vpack.c.b16 %v3468, %v3467
      %v3481 = vpack.c.b16 %v3470, %v3469
      %v3482 = vpack.c.b16 %v3472, %v3471
      %v3483 = vpack.c.b16 %v3474, %v3473
      %v3484 = vpack.c.b16 %v3476, %v3475
      %v3486 = vsel %vm900, %v3477, 0
      %v3489 = vsel %vm900, %v3478, 0
      %v3492 = vsel %vm900, %v3479, 0
      %v3495 = vsel %vm900, %v3480, 0
      %v3498 = vsel %vm900, %v3481, 0
      %v3501 = vsel %vm900, %v3482, 0
      %v3504 = vsel %vm900, %v3483, 0
      %v3507 = vsel %vm900, %v3484, 0
      %v3510 = vsel %vm925, %v3460, 0
      %3512 = vmatprep.subr.bf16.mxu0 0
      %3513 = vmatpush1.bf16.msra.mxu0 0
      %3514 = vmatprep.subr.bf16.mxu0 0
      %3515 = vmatpush1.bf16.msra.mxu0 0
      %3516 = vmatprep.subr.bf16.mxu0 0
      %3517 = vmatpush1.bf16.msra.mxu0 0
      %3518 = vmatprep.subr.bf16.mxu0 0
      %3519 = vmatpush1.bf16.msra.mxu0 0
      %3520 = vmatprep.subr.bf16.mxu0 0
      %3521 = vmatpush1.bf16.msra.mxu0 0
      %3522 = vmatprep.subr.bf16.mxu0 0
      %3523 = vmatpush1.bf16.msra.mxu0 0
      %3524 = vmatprep.subr.bf16.mxu0 0
      %3525 = vmatpush1.bf16.msra.mxu0 0
      %3526 = vmatprep.subr.bf16.mxu0 0
      %3527 = vmatpush1.bf16.msra.mxu0 %v3510
      %3528 = vmatprep.subr.bf16.mxu0 0
      %3529 = vmatpush2.bf16.msra.mxu0 0
      %3530 = vmatprep.subr.bf16.mxu0 0
      %3531 = vmatpush2.bf16.msra.mxu0 0
      %3532 = vmatprep.subr.bf16.mxu0 0
      %3533 = vmatpush2.bf16.msra.mxu0 0
      %3534 = vmatprep.subr.bf16.mxu0 0
      %3535 = vmatpush2.bf16.msra.mxu0 0
      %3536 = vmatprep.subr.bf16.mxu0 0
      %3537 = vmatpush2.bf16.msra.mxu0 0
      %3538 = vmatprep.subr.bf16.mxu0 0
      %3539 = vmatpush2.bf16.msra.mxu0 0
      %3540 = vmatprep.subr.bf16.mxu0 0
      %3541 = vmatpush2.bf16.msra.mxu0 0
      %3542 = vmatprep.subr.bf16.mxu0 0
      %3543 = vmatpush2.bf16.msra.mxu0 0
      %3544 = vmatprep.mubr.bf16.mxu0 0
      %3545 = vmatmul.mubr.bf16.gmra.mxu0 %v3486
      %v3546 = vpop.f32.mrf.mxu0
      %v3547 = vadd.f32 0.0, %v3546
      %v3548 = vpop.f32.mrf.mxu0
      %v3549 = vpop.f32.mrf.mxu0
      %v3550 = vadd.f32 0.0, %v3549
      %v3551 = vpop.f32.mrf.mxu0
      %3552 = vmatprep.mubr.bf16.mxu0 0
      %3553 = vmatmul.mubr.bf16.gmra.mxu0 %v3489
      %v3554 = vpop.f32.mrf.mxu0
      %v3555 = vadd.f32 0.0, %v3554
      %v3556 = vpop.f32.mrf.mxu0
      %v3557 = vpop.f32.mrf.mxu0
      %v3558 = vadd.f32 0.0, %v3557
      %v3559 = vpop.f32.mrf.mxu0
      %3560 = vmatprep.mubr.bf16.mxu0 0
      %3561 = vmatmul.mubr.bf16.gmra.mxu0 %v3492
      %v3562 = vpop.f32.mrf.mxu0
      %v3563 = vadd.f32 0.0, %v3562
      %v3564 = vpop.f32.mrf.mxu0
      %v3565 = vpop.f32.mrf.mxu0
      %v3566 = vadd.f32 0.0, %v3565
      %v3567 = vpop.f32.mrf.mxu0
      %3568 = vmatprep.mubr.bf16.mxu0 0
      %3569 = vmatmul.mubr.bf16.gmra.mxu0 %v3495
      %v3570 = vpop.f32.mrf.mxu0
      %v3571 = vadd.f32 0.0, %v3570
      %v3572 = vpop.f32.mrf.mxu0
      %v3573 = vpop.f32.mrf.mxu0
      %v3574 = vadd.f32 0.0, %v3573
      %v3575 = vpop.f32.mrf.mxu0
      %3576 = vmatprep.mubr.bf16.mxu0 0
      %3577 = vmatmul.mubr.bf16.gmra.mxu0 %v3498
      %v3578 = vpop.f32.mrf.mxu0
      %v3579 = vadd.f32 0.0, %v3578
      %v3580 = vpop.f32.mrf.mxu0
      %v3581 = vpop.f32.mrf.mxu0
      %v3582 = vadd.f32 0.0, %v3581
      %v3583 = vpop.f32.mrf.mxu0
      %3584 = vmatprep.mubr.bf16.mxu0 0
      %3585 = vmatmul.mubr.bf16.gmra.mxu0 %v3501
      %v3586 = vpop.f32.mrf.mxu0
      %v3587 = vadd.f32 0.0, %v3586
      %v3588 = vpop.f32.mrf.mxu0
      %v3589 = vpop.f32.mrf.mxu0
      %v3590 = vadd.f32 0.0, %v3589
      %v3591 = vpop.f32.mrf.mxu0
      %3592 = vmatprep.mubr.bf16.mxu0 0
      %3593 = vmatmul.mubr.bf16.gmra.mxu0 %v3504
      %v3594 = vpop.f32.mrf.mxu0
      %v3595 = vadd.f32 0.0, %v3594
      %v3596 = vpop.f32.mrf.mxu0
      %v3597 = vpop.f32.mrf.mxu0
      %v3598 = vadd.f32 0.0, %v3597
      %v3599 = vpop.f32.mrf.mxu0
      %3600 = vmatprep.mubr.bf16.mxu0 0
      %3601 = vmatmul.mubr.bf16.gmra.mxu0 %v3507
      %v3602 = vpop.f32.mrf.mxu0
      %v3603 = vadd.f32 0.0, %v3602
      %v3604 = vpop.f32.mrf.mxu0
      %v3605 = vpop.f32.mrf.mxu0
      %v3606 = vadd.f32 0.0, %v3605
      %v3607 = vpop.f32.mrf.mxu0
      %3608 = vdwg.mxu0
      %v3609 = vld [vmem:[#allocation3] sm:$0xff]
      %v3610 = vld [vmem:[#allocation3 + $0x8] sm:$0xff]
      %v3611 = vld [vmem:[#allocation3 + $0x10] sm:$0xff]
      %v3612 = vld [vmem:[#allocation3 + $0x18] sm:$0xff]
      %v3613 = vld [vmem:[#allocation3 + $0x20] sm:$0xff]
      %v3614 = vld [vmem:[#allocation3 + $0x28] sm:$0xff]
      %v3615 = vld [vmem:[#allocation3 + $0x30] sm:$0xff]
      %v3616 = vld [vmem:[#allocation3 + $0x38] sm:$0xff]
      %v3617 = vld [vmem:[#allocation3 + $0x40] sm:$0xff]
      %v3618 = vld [vmem:[#allocation3 + $0x48] sm:$0xff]
      %v3619 = vld [vmem:[#allocation3 + $0x50] sm:$0xff]
      %v3620 = vld [vmem:[#allocation3 + $0x58] sm:$0xff]
      %v3621 = vld [vmem:[#allocation3 + $0x60] sm:$0xff]
      %v3622 = vld [vmem:[#allocation3 + $0x68] sm:$0xff]
      %v3623 = vld [vmem:[#allocation3 + $0x70] sm:$0xff]
      %v3624 = vld [vmem:[#allocation3 + $0x78] sm:$0xff]
      %v3625 = vadd.f32 %v3609, %v3547
      %v3626 = vadd.f32 %v3610, %v3550
      %v3627 = vadd.f32 %v3611, %v3555
      %v3628 = vadd.f32 %v3612, %v3558
      %v3629 = vadd.f32 %v3613, %v3563
      %v3630 = vadd.f32 %v3614, %v3566
      %v3631 = vadd.f32 %v3615, %v3571
      %v3632 = vadd.f32 %v3616, %v3574
      %v3633 = vadd.f32 %v3617, %v3579
      %v3634 = vadd.f32 %v3618, %v3582
      %v3635 = vadd.f32 %v3619, %v3587
      %v3636 = vadd.f32 %v3620, %v3590
      %v3637 = vadd.f32 %v3621, %v3595
      %v3638 = vadd.f32 %v3622, %v3598
      %v3639 = vadd.f32 %v3623, %v3603
      %v3640 = vadd.f32 %v3624, %v3606
      %3641 = vst.msk [vmem:[#allocation3] sm:$0xff] %vm900, %v3625
      %3642 = vst.msk [vmem:[#allocation3 + $0x8] sm:$0xff] %vm900, %v3626
      %3643 = vst.msk [vmem:[#allocation3 + $0x10] sm:$0xff] %vm900, %v3627
      %3644 = vst.msk [vmem:[#allocation3 + $0x18] sm:$0xff] %vm900, %v3628
      %3645 = vst.msk [vmem:[#allocation3 + $0x20] sm:$0xff] %vm900, %v3629
      %3646 = vst.msk [vmem:[#allocation3 + $0x28] sm:$0xff] %vm900, %v3630
      %3647 = vst.msk [vmem:[#allocation3 + $0x30] sm:$0xff] %vm900, %v3631
      %3648 = vst.msk [vmem:[#allocation3 + $0x38] sm:$0xff] %vm900, %v3632
      %3649 = vst.msk [vmem:[#allocation3 + $0x40] sm:$0xff] %vm900, %v3633
      %3650 = vst.msk [vmem:[#allocation3 + $0x48] sm:$0xff] %vm900, %v3634
      %3651 = vst.msk [vmem:[#allocation3 + $0x50] sm:$0xff] %vm900, %v3635
      %3652 = vst.msk [vmem:[#allocation3 + $0x58] sm:$0xff] %vm900, %v3636
      %3653 = vst.msk [vmem:[#allocation3 + $0x60] sm:$0xff] %vm900, %v3637
      %3654 = vst.msk [vmem:[#allocation3 + $0x68] sm:$0xff] %vm900, %v3638
      %3655 = vst.msk [vmem:[#allocation3 + $0x70] sm:$0xff] %vm900, %v3639
      %3656 = vst.msk [vmem:[#allocation3 + $0x78] sm:$0xff] %vm900, %v3640
      %v3657 = vld [vmem:[#allocation3] sm:$0xff]
      %v3658 = vld [vmem:[#allocation3 + $0x8] sm:$0xff]
      %v3659 = vld [vmem:[#allocation3 + $0x10] sm:$0xff]
      %v3660 = vld [vmem:[#allocation3 + $0x18] sm:$0xff]
      %v3661 = vld [vmem:[#allocation3 + $0x20] sm:$0xff]
      %v3662 = vld [vmem:[#allocation3 + $0x28] sm:$0xff]
      %v3663 = vld [vmem:[#allocation3 + $0x30] sm:$0xff]
      %v3664 = vld [vmem:[#allocation3 + $0x38] sm:$0xff]
      %v3665 = vld [vmem:[#allocation3 + $0x40] sm:$0xff]
      %v3666 = vld [vmem:[#allocation3 + $0x48] sm:$0xff]
      %v3667 = vld [vmem:[#allocation3 + $0x50] sm:$0xff]
      %v3668 = vld [vmem:[#allocation3 + $0x58] sm:$0xff]
      %v3669 = vld [vmem:[#allocation3 + $0x60] sm:$0xff]
      %v3670 = vld [vmem:[#allocation3 + $0x68] sm:$0xff]
      %v3671 = vld [vmem:[#allocation3 + $0x70] sm:$0xff]
      %v3672 = vld [vmem:[#allocation3 + $0x78] sm:$0xff]
      %v3673 = vpack.c.bf16 %v3658, %v3657
      %v3674 = vpack.c.bf16 %v3660, %v3659
      %v3675 = vpack.c.bf16 %v3662, %v3661
      %v3676 = vpack.c.bf16 %v3664, %v3663
      %v3677 = vpack.c.bf16 %v3666, %v3665
      %v3678 = vpack.c.bf16 %v3668, %v3667
      %v3679 = vpack.c.bf16 %v3670, %v3669
      %v3680 = vpack.c.bf16 %v3672, %v3671
      %v3689 = vunpack.c.l.b16 %v3673
      %v3690 = vunpack.c.h.b16 %v3673
      %v3691 = vunpack.c.l.b16 %v3674
      %v3692 = vunpack.c.h.b16 %v3674
      %v3693 = vunpack.c.l.b16 %v3675
      %v3694 = vunpack.c.h.b16 %v3675
      %v3695 = vunpack.c.l.b16 %v3676
      %v3696 = vunpack.c.h.b16 %v3676
      %v3697 = vunpack.c.l.b16 %v3677
      %v3698 = vunpack.c.h.b16 %v3677
      %v3699 = vunpack.c.l.b16 %v3678
      %v3700 = vunpack.c.h.b16 %v3678
      %v3701 = vunpack.c.l.b16 %v3679
      %v3702 = vunpack.c.h.b16 %v3679
      %v3703 = vunpack.c.l.b16 %v3680
      %v3704 = vunpack.c.h.b16 %v3680
      %v3705 = vpack.c.b16 %v3689, %v3689
      %v3706 = vpack.c.b16 %v3690, %v3690
      %v3707 = vpack.c.b16 %v3691, %v3691
      %v3708 = vpack.c.b16 %v3692, %v3692
      %v3709 = vpack.c.b16 %v3693, %v3693
      %v3710 = vpack.c.b16 %v3694, %v3694
      %v3711 = vpack.c.b16 %v3695, %v3695
      %v3712 = vpack.c.b16 %v3696, %v3696
      %v3713 = vpack.c.b16 %v3697, %v3697
      %v3714 = vpack.c.b16 %v3698, %v3698
      %v3715 = vpack.c.b16 %v3699, %v3699
      %v3716 = vpack.c.b16 %v3700, %v3700
      %v3717 = vpack.c.b16 %v3701, %v3701
      %v3718 = vpack.c.b16 %v3702, %v3702
      %v3719 = vpack.c.b16 %v3703, %v3703
      %v3720 = vpack.c.b16 %v3704, %v3704
      %3737 = vst.msk [vmem:[%s458] sm:$0xf] %vm593, %v3705
      %3738 = vst.msk [vmem:[%s458 + $0x4] sm:$0xf] %vm593, %v3706
      %3739 = vst.msk [vmem:[%s458 + $0x8] sm:$0xf] %vm593, %v3707
      %3740 = vst.msk [vmem:[%s458 + $0xc] sm:$0xf] %vm593, %v3708
      %3741 = vst.msk [vmem:[%s458 + $0x10] sm:$0xf] %vm593, %v3709
      %3742 = vst.msk [vmem:[%s458 + $0x14] sm:$0xf] %vm593, %v3710
      %3743 = vst.msk [vmem:[%s458 + $0x18] sm:$0xf] %vm593, %v3711
      %3744 = vst.msk [vmem:[%s458 + $0x1c] sm:$0xf] %vm593, %v3712
      %3745 = vst.msk [vmem:[%s458 + $0x20] sm:$0xf] %vm593, %v3713
      %3746 = vst.msk [vmem:[%s458 + $0x24] sm:$0xf] %vm593, %v3714
      %3747 = vst.msk [vmem:[%s458 + $0x28] sm:$0xf] %vm593, %v3715
      %3748 = vst.msk [vmem:[%s458 + $0x2c] sm:$0xf] %vm593, %v3716
      %3749 = vst.msk [vmem:[%s458 + $0x30] sm:$0xf] %vm593, %v3717
      %3750 = vst.msk [vmem:[%s458 + $0x34] sm:$0xf] %vm593, %v3718
      %3751 = vst.msk [vmem:[%s458 + $0x38] sm:$0xf] %vm593, %v3719
      %3752 = vst.msk [vmem:[%s458 + $0x3c] sm:$0xf] %vm593, %v3720
      %v3753 = vsel %vm900, %v3657, 0.0
      %v3754 = vsel %vm900, %v3658, 0.0
      %v3755 = vadd.f32 %v3753, %v3754
      %v3756 = vsel %vm900, %v3659, 0.0
      %v3757 = vadd.f32 %v3755, %v3756
      %v3758 = vsel %vm900, %v3660, 0.0
      %v3759 = vadd.f32 %v3757, %v3758
      %v3760 = vsel %vm900, %v3661, 0.0
      %v3761 = vadd.f32 %v3759, %v3760
      %v3762 = vsel %vm900, %v3662, 0.0
      %v3763 = vadd.f32 %v3761, %v3762
      %v3764 = vsel %vm900, %v3663, 0.0
      %v3765 = vadd.f32 %v3763, %v3764
      %v3766 = vsel %vm900, %v3664, 0.0
      %v3767 = vadd.f32 %v3765, %v3766
      %v3768 = vsel %vm900, %v3665, 0.0
      %v3769 = vadd.f32 %v3767, %v3768
      %v3770 = vsel %vm900, %v3666, 0.0
      %v3771 = vadd.f32 %v3769, %v3770
      %v3772 = vsel %vm900, %v3667, 0.0
      %v3773 = vadd.f32 %v3771, %v3772
      %v3774 = vsel %vm900, %v3668, 0.0
      %v3775 = vadd.f32 %v3773, %v3774
      %v3776 = vsel %vm900, %v3669, 0.0
      %v3777 = vadd.f32 %v3775, %v3776
      %v3778 = vsel %vm900, %v3670, 0.0
      %v3779 = vadd.f32 %v3777, %v3778
      %v3780 = vsel %vm900, %v3671, 0.0
      %v3781 = vadd.f32 %v3779, %v3780
      %v3782 = vsel %vm900, %v3672, 0.0
      %v3783 = vadd.f32 %v3781, %v3782
      %v3784 = vrot.slane %v3783, 4
      %v3785 = vadd.f32 %v3783, %v3784
      %v3786 = vrot.slane %v3785, 2
      %v3787 = vadd.f32 %v3785, %v3786
      %v3788 = vrot.slane %v3787, 1
      %v3789 = vadd.f32 %v3787, %v3788
      %v3790 = vmul.f32 %v3657, %v3657
      %v3791 = vmul.f32 %v3658, %v3658
      %v3792 = vmul.f32 %v3659, %v3659
      %v3793 = vmul.f32 %v3660, %v3660
      %v3794 = vmul.f32 %v3661, %v3661
      %v3795 = vmul.f32 %v3662, %v3662
      %v3796 = vmul.f32 %v3663, %v3663
      %v3797 = vmul.f32 %v3664, %v3664
      %v3798 = vmul.f32 %v3665, %v3665
      %v3799 = vmul.f32 %v3666, %v3666
      %v3800 = vmul.f32 %v3667, %v3667
      %v3801 = vmul.f32 %v3668, %v3668
      %v3802 = vmul.f32 %v3669, %v3669
      %v3803 = vmul.f32 %v3670, %v3670
      %v3804 = vmul.f32 %v3671, %v3671
      %v3805 = vmul.f32 %v3672, %v3672
      %v3806 = vsel %vm900, %v3790, 0.0
      %v3807 = vsel %vm900, %v3791, 0.0
      %v3808 = vadd.f32 %v3806, %v3807
      %v3809 = vsel %vm900, %v3792, 0.0
      %v3810 = vadd.f32 %v3808, %v3809
      %v3811 = vsel %vm900, %v3793, 0.0
      %v3812 = vadd.f32 %v3810, %v3811
      %v3813 = vsel %vm900, %v3794, 0.0
      %v3814 = vadd.f32 %v3812, %v3813
      %v3815 = vsel %vm900, %v3795, 0.0
      %v3816 = vadd.f32 %v3814, %v3815
      %v3817 = vsel %vm900, %v3796, 0.0
      %v3818 = vadd.f32 %v3816, %v3817
      %v3819 = vsel %vm900, %v3797, 0.0
      %v3820 = vadd.f32 %v3818, %v3819
      %v3821 = vsel %vm900, %v3798, 0.0
      %v3822 = vadd.f32 %v3820, %v3821
      %v3823 = vsel %vm900, %v3799, 0.0
      %v3824 = vadd.f32 %v3822, %v3823
      %v3825 = vsel %vm900, %v3800, 0.0
      %v3826 = vadd.f32 %v3824, %v3825
      %v3827 = vsel %vm900, %v3801, 0.0
      %v3828 = vadd.f32 %v3826, %v3827
      %v3829 = vsel %vm900, %v3802, 0.0
      %v3830 = vadd.f32 %v3828, %v3829
      %v3831 = vsel %vm900, %v3803, 0.0
      %v3832 = vadd.f32 %v3830, %v3831
      %v3833 = vsel %vm900, %v3804, 0.0
      %v3834 = vadd.f32 %v3832, %v3833
      %v3835 = vsel %vm900, %v3805, 0.0
      %v3836 = vadd.f32 %v3834, %v3835
      %v3837 = vrot.slane %v3836, 4
      %v3838 = vadd.f32 %v3836, %v3837
      %v3839 = vrot.slane %v3838, 2
      %v3840 = vadd.f32 %v3838, %v3839
      %v3841 = vrot.slane %v3840, 1
      %v3842 = vadd.f32 %v3840, %v3841
      %vm3843 = vcmask 1040384
      %v3844 = vsel %vm3843, %v3789, %v3842
      %vm3845 = vcmask 25600
      %3846 = vst.msk [vmem:[%s467] sm:$0x3] %vm3845, %v3844
      %s3847 = smul.u32 8, %s24
      %p3848 = scmp.lt.s32.totalorder %s23, 1
      %s3849 = scalar_select %p3848, %s23, 1
      %p3850 = scmp.lt.s32.totalorder %s3847, 15
      %s3851 = scalar_select %p3850, %s3847, 15
      %s3852 = smul.addr %s3851, 2
      %s3853 = smul.addr %s3849, 32
      %s3854 = sadd.s32 %s3852, %s3853
      %s3855 = smul.addr %s3854, 4
      %s3856 = scalar_lea.vmem %s6, %s3855
      %p3857 = scmp.lt.s32.totalorder %s23, 1
      %s3858 = scalar_select %p3857, %s23, 1
      %p3859 = scmp.lt.s32.totalorder %s24, 1
      %s3860 = scalar_select %p3859, %s24, 1
      %s3861 = smul.addr %s3858, 2
      %s3862 = sadd.s32 %s3860, %s3861
      %s3863 = smul.addr %s3862, 2
      %s3864 = scalar_lea.vmem %s7, %s3863
      // Predicated region
      $region45: #{residual_block.3} parent=43 // pred_check
        %p3865 = pneg %p214
      $region46: #{residual_block.3} parent=43 // pred_check_branch
        %3867 = sbr.rel (%p3865) target = $region48
      $region47: #{residual_block.3} parent=43 // pred_region
        %s3868 = smul.u32 8, %s24
      $region48: #{residual_block.3} parent=43 // pred_fallthru
        _
      // Predicated region
      $region49: #{residual_block.3} parent=43 // pred_check
        %p3869 = pneg %p242
      $region50: #{residual_block.3} parent=43 // pred_check_branch
        %3871 = sbr.rel (%p3869) target = $region52
      $region51: #{residual_block.3} parent=43 // pred_region
        _
      $region52: #{residual_block.3} parent=43 // pred_fallthru
        _
    $region44: #{residual_block.3} parent=5 // pred_fallthru
      _
    %p3872 = scmp.le.s32.totalorder 2, %s14
    // Predicated region
    $region53: #{residual_block.3} parent=5 // pred_check
      %p3873 = pneg %p3872
    $region54: #{residual_block.3} parent=5 // pred_check_branch
      %3875 = sbr.rel (%p3873) target = $region56
    $region55: #{residual_block.3} parent=5 // pred_region
      %s3876 = ssub.s32 %s14, 2
      // Predicated region
      $region57: #{residual_block.3} parent=55 // pred_check
        %p3877 = pneg %p220
      $region58: #{residual_block.3} parent=55 // pred_check_branch
        %3879 = sbr.rel (%p3877) target = $region60
      $region59: #{residual_block.3} parent=55 // pred_region
        %s3880 = smul.u32 8, %s26
        %p3881 = scmp.lt.s32.totalorder %s25, 1
        %s3882 = scalar_select %p3881, %s25, 1
        %p3883 = scmp.lt.s32.totalorder %s3880, 15
        %s3884 = scalar_select %p3883, %s3880, 15
        %s3885 = smul.addr %s3884, 2
        %s3886 = smul.addr %s3882, 32
        %s3887 = sadd.s32 %s3885, %s3886
        %s3888 = smul.addr %s3887, 4
        %s3889 = scalar_lea.vmem %s6, %s3888
      $region60: #{residual_block.3} parent=55 // pred_fallthru
        _
      // Predicated region
      $region61: #{residual_block.3} parent=55 // pred_check
        %p3890 = pneg %p248
      $region62: #{residual_block.3} parent=55 // pred_check_branch
        %3892 = sbr.rel (%p3890) target = $region64
      $region63: #{residual_block.3} parent=55 // pred_region
        %p3893 = scmp.lt.s32.totalorder %s25, 1
        %s3894 = scalar_select %p3893, %s25, 1
        %p3895 = scmp.lt.s32.totalorder %s26, 1
        %s3896 = scalar_select %p3895, %s26, 1
        %s3897 = smul.addr %s3894, 2
        %s3898 = sadd.s32 %s3896, %s3897
        %s3899 = smul.addr %s3898, 2
        %s3900 = scalar_lea.vmem %s7, %s3899
      $region64: #{residual_block.3} parent=55 // pred_fallthru
        _
    $region56: #{residual_block.3} parent=5 // pred_fallthru
      _
  $region6: #{residual_block.3} parent=0 // loop_footer
    %s18 = sadd.s32 1, %s14
  $region7: #{residual_block.3} parent=0 // loop_footer_branch
    %13 = sbr.rel target = $region3
  $region8: #{residual_block.3} parent=0 // loop_exit
    _

</llo_original>
